<compile_context>
chip_gen: v6e
topology: v6e:2x2x1
jax: 0.10.0
libtpu: 0.0.40
codegen_flags: <defaults>
</compile_context>

<pallas_src>
import numpy as np
import jax
import jax.numpy as jnp
from jax.experimental import pallas as pl
from jax.experimental.pallas import tpu as pltpu

# ---- model hyper-parameters (from Frame2_1s.__init__) ------------------------
KERNEL = 40
F1 = 16
DF = 10
F2 = F1 * DF                  # 160
GROUPS = 8
IN_PER_GRP = F1 // GROUPS     # 2 input channels per group of conv 'c-2'
OUT_PER_GRP = F2 // GROUPS    # 20 output channels per group
CHANNEL = 66
NCLASS = 2
T = 128                       # time samples: mapsize 2560 = 160 * T/8
MAPSIZE = F2 * (T // 8)       # 2560
PAD_L = KERNEL // 2 - 1       # 19  (ZeroPad2d 'p-1')
PAD_R = KERNEL // 2           # 20
DW_K = KERNEL // 4            # 10  depthwise taps of 'c-3'
DW_PL = KERNEL // 8 - 1       # 4   (ZeroPad2d 'p-2')
DW_PR = KERNEL // 8           # 5
NPACK = 8 + DW_K              # packed cols: d0,d1,s2,t2,bdw,bpw,s3,t3,Wdw[0..9]
BB = 2                        # batch elements fused per grid step (lane-stacked RHS)


# ------------------------------ Pallas kernel ---------------------------------
def frame2_1s_kernel(xcol_ref, vcat_ref, packed_ref, p2_ref, p4_ref,
                     wpw_ref, wcls_ref, seg_ref, bcls_ref, out_ref):
    f32 = jnp.float32
    bbt = xcol_ref.shape[1]            # BB * T
    bbl = bbt // 2                     # BB * T//2  (after AvgPool(1,2))
    packed = packed_ref[...]           # (160, 18)

    # fused conv1(1,40) + ZeroPad2d((19,20)) + BN1 + grouped conv2(66,1):
    # one (160, 2640) @ (2640, BB*128) MXU matmul on the im2col'd input.
    # TODO(synk): on v6e/v7x cast Vcat/xcol to bf16 (f32 accumulate) for ~2-3x MXU
    # throughput; kept f32 here so the self-test reference matches tightly.
    conv = jnp.dot(vcat_ref[...], xcol_ref[...], preferred_element_type=f32)
    tmod = jax.lax.broadcasted_iota(jnp.int32, (1, bbt), 1) & (T - 1)
    valid1 = (tmod >= PAD_L) & (tmod < T - PAD_R)        # region produced by the (19,20) pad
    o2 = packed[:, 0:1] + jnp.where(valid1, conv + packed[:, 1:2], 0.0)

    # BN2 (eval) + ELU
    z2 = o2 * packed[:, 2:3] + packed[:, 3:4]
    z2 = jnp.where(z2 > 0, z2, jnp.exp(jnp.minimum(z2, 0.0)) - 1.0)

    # AvgPool2d((1,2)) as a matmul with a constant (block-diagonal) pooling matrix
    a1 = jnp.dot(z2, p2_ref[...], preferred_element_type=f32)            # (160, BB*64)

    # depthwise (1,10) conv (groups=160): 10 static lane shifts, no extra matmuls.
    # Circular wrap only touches positions zeroed by the 'valid2' mask -> exact.
    # TODO(synk): pltpu.roll would map each tap to a single XLU rotate.
    acc = jnp.zeros_like(a1)
    for k in range(DW_K):                                                # static unroll
        sh = DW_PL - k
        a1s = a1 if sh == 0 else jnp.roll(a1, sh, axis=1)
        acc = acc + packed[:, 8 + k:9 + k] * a1s
    dw = acc + packed[:, 4:5]                                            # + depthwise bias

    # pointwise 1x1 conv (MXU), then ZeroPad2d((4,5)) as an exact lane mask
    pw = jnp.dot(wpw_ref[...], dw, preferred_element_type=f32) + packed[:, 5:6]
    jmod = jax.lax.broadcasted_iota(jnp.int32, (1, bbl), 1) & (T // 2 - 1)
    valid2 = (jmod >= DW_PL) & (jmod < T // 2 - DW_PR)
    pw = jnp.where(valid2, pw, 0.0)

    # BN3 (eval) + ELU
    z3 = pw * packed[:, 6:7] + packed[:, 7:8]
    z3 = jnp.where(z3 > 0, z3, jnp.exp(jnp.minimum(z3, 0.0)) - 1.0)

    # AvgPool2d((1,4)) as a matmul -> feature map (160, BB*16)
    a2 = jnp.dot(z3, p4_ref[...], preferred_element_type=f32)

    # fused classifier: fc-1..fc-5 folded offline to one (2560 -> 2) affine map.
    # logits[j, b] = sum_{c,tt} a2[c, b*16+tt] * Wfold[j, c, tt] + bfold[j]
    w = wcls_ref[...]                                                    # (2*160, BB*16)
    m0 = jnp.dot(a2 * w[:F2], seg_ref[...], preferred_element_type=f32)  # (160, BB)
    m1 = jnp.dot(a2 * w[F2:], seg_ref[...], preferred_element_type=f32)
    l0 = jnp.sum(m0, axis=0, keepdims=True)                              # (1, BB)
    l1 = jnp.sum(m1, axis=0, keepdims=True)
    out_ref[...] = jnp.concatenate([l0, l1], axis=0) + bcls_ref[...]     # (2, BB)


# ------------------------- parameters (synthetic) ------------------------------
def init_params(key):
    ks = jax.random.split(key, 30)
    n = lambda k, shape, s=0.1: s * jax.random.normal(k, shape, dtype=jnp.float32)
    u = lambda k, shape: jax.random.uniform(k, shape, dtype=jnp.float32, minval=0.5, maxval=1.5)
    return dict(
        W1=n(ks[0], (F1, KERNEL)), b1=n(ks[1], (F1,)),                    # Conv2d(1,16,(1,40))
        bn1_g=1.0 + n(ks[2], (F1,)), bn1_b=n(ks[3], (F1,)),
        bn1_m=n(ks[4], (F1,)), bn1_v=u(ks[5], (F1,)),
        W2=n(ks[6], (F2, IN_PER_GRP, CHANNEL)), b2=n(ks[7], (F2,)),       # Conv2d(16,160,(66,1),groups=8)
        bn2_g=1.0 + n(ks[8], (F2,)), bn2_b=n(ks[9], (F2,)),
        bn2_m=n(ks[10], (F2,)), bn2_v=u(ks[11], (F2,)),
        Wdw=n(ks[12], (F2, DW_K)), bdw=n(ks[13], (F2,)),                  # depthwise (1,10), groups=160
        Wpw=n(ks[14], (F2, F2)), bpw=n(ks[15], (F2,)),                    # pointwise 1x1
        bn3_g=1.0 + n(ks[16], (F2,)), bn3_b=n(ks[17], (F2,)),
        bn3_m=n(ks[18], (F2,)), bn3_v=u(ks[19], (F2,)),
        Wfc1=n(ks[20], (1024, MAPSIZE)), bfc1=n(ks[21], (1024,)),         # Linear(2560,1024)
        Wfc2=n(ks[22], (512, 1024)), bfc2=n(ks[23], (512,)),              # Linear(1024,512)
        Wfc3=n(ks[24], (256, 512)), bfc3=n(ks[25], (256,)),               # Linear(512,256)
        Wfc4=n(ks[26], (64, 256)), bfc4=n(ks[27], (64,)),                 # Linear(256,64)
        Wfc5=n(ks[28], (NCLASS, 64)), bfc5=n(ks[29], (NCLASS,)),          # Linear(64,2)
    )


# ------------------------------ forward wrapper ---------------------------------
def frame2_1s_forward(x, p):
    """x: (B, 1, 66, 128) float32 NCHW.  Returns (class_output (B, 2), mmd_loss)."""
    f32 = jnp.float32
    eps = 0.0                                  # BatchNorm2d(n, False) -> eps == False == 0
    B = x.shape[0]
    Bp = ((B + BB - 1) // BB) * BB
    xs = x[:, 0].astype(f32)
    if Bp != B:                                # pad batch so each grid step holds BB elements
        xs = jnp.pad(xs, ((0, Bp - B), (0, 0), (0, 0)))

    # eval-mode BN folded to per-channel scale/shift
    s1 = p['bn1_g'] / jnp.sqrt(p['bn1_v'] + eps); t1 = p['bn1_b'] - p['bn1_m'] * s1
    s2 = p['bn2_g'] / jnp.sqrt(p['bn2_v'] + eps); t2 = p['bn2_b'] - p['bn2_m'] * s2
    s3 = p['bn3_g'] / jnp.sqrt(p['bn3_v'] + eps); t3 = p['bn3_b'] - p['bn3_m'] * s3

    # fold conv1 + BN1 + grouped conv2 (exact affine algebra):
    #   conv2[o,t] = d0[o] + mask(t) * ( d1[o] + sum_{k,h} Vcat[o,k*66+h] * x[h, t-19+k] )
    grp = jnp.arange(F2) // OUT_PER_GRP
    fidx = IN_PER_GRP * grp[:, None] + jnp.arange(IN_PER_GRP)[None, :]     # (160, 2)
    S2 = p['W2'].sum(axis=2)                                               # (160, 2)
    d0 = p['b2'] + (t1[fidx] * S2).sum(axis=1)
    d1 = (s1[fidx] * p['b1'][fidx] * S2).sum(axis=1)
    A = s1[fidx][:, :, None] * p['W1'][fidx]                               # (160, 2, 40)
    Vcat = jnp.einsum('ock,och->okh', A, p['W2']).reshape(F2, KERNEL * CHANNEL)

    # im2col in HBM: one lane-dense RHS, all 40 taps fused into K = 2640
    xp = jnp.pad(xs, ((0, 0), (0, 0), (PAD_L, PAD_R)))                     # (Bp, 66, 167)
    xcol = jnp.stack([xp[:, :, k:k + T] for k in range(KERNEL)], axis=1)   # (Bp, 40, 66, 128)
    xcol = xcol.reshape(Bp, KERNEL * CHANNEL, T)
    xcol = jnp.transpose(xcol, (1, 0, 2)).reshape(KERNEL * CHANNEL, Bp * T)

    # packed per-channel parameters (one small DMA instead of 18)
    packed = jnp.concatenate(
        [jnp.stack([d0, d1, s2, t2, p['bdw'], p['bpw'], s3, t3], axis=1), p['Wdw']],
        axis=1)                                                            # (160, 18)

    # constant pooling matrices (block-diagonal across the BB lane segments)
    BT, BL, BF = BB * T, BB * (T // 2), BB * (T // 8)
    P2 = 0.5 * (jnp.arange(BT)[:, None] // 2 == jnp.arange(BL)[None, :]).astype(f32)
    P4 = 0.25 * (jnp.arange(BL)[:, None] // 4 == jnp.arange(BF)[None, :]).astype(f32)

    # fold the 5 classifier Linear layers (no nonlinearity in between) into one affine
    Wc, bc = p['Wfc1'], p['bfc1']
    for Wn, bn_ in ((p['Wfc2'], p['bfc2']), (p['Wfc3'], p['bfc3']),
                    (p['Wfc4'], p['bfc4']), (p['Wfc5'], p['bfc5'])):
        bc = bc @ Wn.T + bn_
        Wc = Wn @ Wc                                                       # (2, 2560)
    wcls = jnp.tile(Wc.reshape(NCLASS, F2, T // 8), (1, 1, BB)).reshape(NCLASS * F2, BF)
    SEG = (jnp.arange(BF)[:, None] // (T // 8) == jnp.arange(BB)[None, :]).astype(f32)
    bcls = bc[:, None]                                                     # (2, 1)

    logits_t = pl.pallas_call(
        frame2_1s_kernel,
        out_shape=jax.ShapeDtypeStruct((NCLASS, Bp), f32),
        grid=(Bp // BB,),
        in_specs=[
            pl.BlockSpec((KERNEL * CHANNEL, BT), lambda i: (0, i)),   # im2col input (batch block)
            pl.BlockSpec((F2, KERNEL * CHANNEL), lambda i: (0, 0)),   # fused conv weights
            pl.BlockSpec((F2, NPACK), lambda i: (0, 0)),              # packed per-channel params
            pl.BlockSpec((BT, BL), lambda i: (0, 0)),                 # AvgPool(1,2) matrix
            pl.BlockSpec((BL, BF), lambda i: (0, 0)),                 # AvgPool(1,4) matrix
            pl.BlockSpec((F2, F2), lambda i: (0, 0)),                 # pointwise conv weight
            pl.BlockSpec((NCLASS * F2, BF), lambda i: (0, 0)),        # folded classifier weight
            pl.BlockSpec((BF, BB), lambda i: (0, 0)),                 # lane-segment summation
            pl.BlockSpec((NCLASS, 1), lambda i: (0, 0)),              # folded classifier bias
        ],
        out_specs=pl.BlockSpec((NCLASS, BB), lambda i: (0, i)),
        compiler_params=pltpu.CompilerParams(
            dimension_semantics=("parallel",),
            # ~10 MB resident (f32 im2col block double-buffered); 32 MiB cap is
            # safe on v5e/v6e/v7x and only raises v5e's 16 MiB default.
            vmem_limit_bytes=32 * 1024 * 1024,
        ),
    )(xcol, Vcat, packed, P2, P4, p['Wpw'], wcls, SEG, bcls)

    class_output = logits_t.T[:B]

    # torch: torch.from_numpy(np.array(0)).cuda()  (int64 scalar 0)
    mmd_loss = jnp.array(0, dtype=jnp.int32)  # TODO(synk): int32 instead of int64 (x64 disabled)
    return class_output, mmd_loss


# --------------------- pure-JAX reference of the unfused graph ------------------
def reference_forward(x, p):
    eps = 0.0
    B = x.shape[0]
    xs = x[:, 0].astype(jnp.float32)                                   # (B, 66, 128)
    elu = lambda v: jnp.where(v > 0, v, jnp.exp(jnp.minimum(v, 0.0)) - 1.0)
    bn = lambda v, g, b_, m, var: (v - m) / jnp.sqrt(var + eps) * g + b_

    Lc = T - KERNEL + 1                                                # 89
    win = jnp.stack([xs[:, :, k:k + Lc] for k in range(KERNEL)], axis=2)
    c1 = jnp.einsum('fk,bhkj->bfhj', p['W1'], win) + p['b1'][None, :, None, None]
    p1 = jnp.pad(c1, ((0, 0), (0, 0), (0, 0), (PAD_L, PAD_R)))
    y1 = bn(p1, p['bn1_g'][None, :, None, None], p['bn1_b'][None, :, None, None],
            p['bn1_m'][None, :, None, None], p['bn1_v'][None, :, None, None])

    grp = jnp.arange(F2) // OUT_PER_GRP
    fidx = IN_PER_GRP * grp[:, None] + jnp.arange(IN_PER_GRP)[None, :]
    c2 = jnp.einsum('och,bocht->bot', p['W2'], y1[:, fidx]) + p['b2'][None, :, None]
    z2 = elu(bn(c2, p['bn2_g'][None, :, None], p['bn2_b'][None, :, None],
                p['bn2_m'][None, :, None], p['bn2_v'][None, :, None]))
    a1 = z2.reshape(B, F2, T // 2, 2).mean(-1)

    Lv = T // 2 - DW_K + 1                                             # 55
    dw = p['bdw'][None, :, None] + sum(
        p['Wdw'][None, :, k, None] * a1[:, :, k:k + Lv] for k in range(DW_K))
    pw = jnp.einsum('oc,bct->bot', p['Wpw'], dw) + p['bpw'][None, :, None]
    pwp = jnp.pad(pw, ((0, 0), (0, 0), (DW_PL, DW_PR)))
    z3 = elu(bn(pwp, p['bn3_g'][None, :, None], p['bn3_b'][None, :, None],
                p['bn3_m'][None, :, None], p['bn3_v'][None, :, None]))
    a2 = z3.reshape(B, F2, T // 8, 4).mean(-1)

    feat = a2.reshape(B, MAPSIZE)                                      # torch: view(-1, s2*s4)
    h = feat
    for Wn, bn_ in ((p['Wfc1'], p['bfc1']), (p['Wfc2'], p['bfc2']), (p['Wfc3'], p['bfc3']),
                    (p['Wfc4'], p['bfc4']), (p['Wfc5'], p['bfc5'])):
        h = h @ Wn.T + bn_
    return h


# ----------------------------------- main ----------------------------------------
if __name__ == "__main__":
    Btest = 2
    key = jax.random.PRNGKey(0)
    kx, kp = jax.random.split(key)
    x = jax.random.normal(kx, (Btest, 1, CHANNEL, T), dtype=jnp.float32)   # NCHW source_data
    params = init_params(kp)

    logits, mmd_loss = frame2_1s_forward(x, params)
    logits = jax.block_until_ready(logits)

    assert logits.shape == (Btest, NCLASS) and logits.dtype == jnp.float32
    ref = reference_forward(x, params)
    np.testing.assert_allclose(np.asarray(logits), np.asarray(ref), rtol=1e-2, atol=1e-2)
    print("KERNEL_OK")
</pallas_src>

<mosaic_0001>
module attributes {stable_mosaic.version = 11 : i64} {
  func.func @frame2_1s_kernel(%arg0: i32, %arg1: memref<2640x256xf32, #tpu.memory_space<vmem>>, %arg2: memref<160x2640xf32, #tpu.memory_space<vmem>>, %arg3: memref<160x18xf32, #tpu.memory_space<vmem>>, %arg4: memref<256x128xf32, #tpu.memory_space<vmem>>, %arg5: memref<128x32xf32, #tpu.memory_space<vmem>>, %arg6: memref<160x160xf32, #tpu.memory_space<vmem>>, %arg7: memref<320x32xf32, #tpu.memory_space<vmem>>, %arg8: memref<32x2xf32, #tpu.memory_space<vmem>>, %arg9: memref<2x1xf32, #tpu.memory_space<vmem>>, %arg10: memref<2x2xf32, #tpu.memory_space<vmem>>) attributes {dimension_semantics = [#tpu.dimension_semantics<parallel>], iteration_bounds = array<i64: 1>, scalar_prefetch = 0 : i64, scratch_operands = 0 : i64, tpu.core_type = #tpu.core_type<tc>, window_params = [{transform_indices = @transform_0, window_bounds = array<i64: 2640, 256>}, {pipeline_mode = #tpu.pipeline_mode<synchronous>, transform_indices = @transform_1, window_bounds = array<i64: 160, 2640>}, {pipeline_mode = #tpu.pipeline_mode<synchronous>, transform_indices = @transform_2, window_bounds = array<i64: 160, 18>}, {pipeline_mode = #tpu.pipeline_mode<synchronous>, transform_indices = @transform_3, window_bounds = array<i64: 256, 128>}, {pipeline_mode = #tpu.pipeline_mode<synchronous>, transform_indices = @transform_4, window_bounds = array<i64: 128, 32>}, {pipeline_mode = #tpu.pipeline_mode<synchronous>, transform_indices = @transform_5, window_bounds = array<i64: 160, 160>}, {pipeline_mode = #tpu.pipeline_mode<synchronous>, transform_indices = @transform_6, window_bounds = array<i64: 320, 32>}, {pipeline_mode = #tpu.pipeline_mode<synchronous>, transform_indices = @transform_7, window_bounds = array<i64: 32, 2>}, {pipeline_mode = #tpu.pipeline_mode<synchronous>, transform_indices = @transform_8, window_bounds = array<i64: 2, 1>}, {transform_indices = @transform_9, window_bounds = array<i64: 2, 2>}]} {
    %c0 = arith.constant 0 : index
    %c0_0 = arith.constant 0 : index
    %0 = vector.load %arg3[%c0, %c0_0] : memref<160x18xf32, #tpu.memory_space<vmem>>, vector<160x18xf32>
    %c0_1 = arith.constant 0 : index
    %c0_2 = arith.constant 0 : index
    %1 = vector.load %arg2[%c0_1, %c0_2] : memref<160x2640xf32, #tpu.memory_space<vmem>>, vector<160x2640xf32>
    %c0_3 = arith.constant 0 : index
    %c0_4 = arith.constant 0 : index
    %2 = vector.load %arg1[%c0_3, %c0_4] : memref<2640x256xf32, #tpu.memory_space<vmem>>, vector<2640x256xf32>
    %cst = arith.constant dense<0.000000e+00> : vector<160x256xf32>
    %3 = tpu.matmul %1, %2, %cst {dimension_numbers = #tpu.dot_dimension_numbers<[1], [0], [0], [1], [0, 0, 1, 1], [], []>} : vector<160x2640xf32>, vector<2640x256xf32>, vector<160x256xf32> -> vector<160x256xf32>
    %4 = tpu.iota {dimensions = array<i32: 1>} : vector<1x256xi32>
    %c127_i32 = arith.constant 127 : i32
    %5 = vector.broadcast %c127_i32 : i32 to vector<1x256xi32>
    %6 = arith.andi %4, %5 : vector<1x256xi32>
    %c19_i32 = arith.constant 19 : i32
    %7 = vector.broadcast %c19_i32 : i32 to vector<1x256xi32>
    %8 = arith.cmpi sge, %6, %7 : vector<1x256xi32>
    %c108_i32 = arith.constant 108 : i32
    %9 = vector.broadcast %c108_i32 : i32 to vector<1x256xi32>
    %10 = arith.cmpi slt, %6, %9 : vector<1x256xi32>
    %11 = arith.andi %8, %10 : vector<1x256xi1>
    %12 = vector.extract_strided_slice %0 {offsets = [0, 0], sizes = [160, 1], strides = [1, 1]} : vector<160x18xf32> to vector<160x1xf32>
    %13 = vector.extract_strided_slice %0 {offsets = [0, 1], sizes = [160, 1], strides = [1, 1]} : vector<160x18xf32> to vector<160x1xf32>
    %14 = vector.broadcast %13 : vector<160x1xf32> to vector<160x256xf32>
    %15 = arith.addf %3, %14 : vector<160x256xf32>
    %cst_5 = arith.constant 0.000000e+00 : f32
    %16 = vector.shape_cast %11 : vector<1x256xi1> to vector<1x256xi1>
    %17 = vector.broadcast %16 : vector<1x256xi1> to vector<160x256xi1>
    %18 = vector.broadcast %cst_5 : f32 to vector<160x256xf32>
    %19 = arith.select %17, %15, %18 : vector<160x256xi1>, vector<160x256xf32>
    %20 = vector.broadcast %12 : vector<160x1xf32> to vector<160x256xf32>
    %21 = arith.addf %20, %19 : vector<160x256xf32>
    %22 = vector.extract_strided_slice %0 {offsets = [0, 2], sizes = [160, 1], strides = [1, 1]} : vector<160x18xf32> to vector<160x1xf32>
    %23 = vector.broadcast %22 : vector<160x1xf32> to vector<160x256xf32>
    %24 = arith.mulf %21, %23 : vector<160x256xf32>
    %25 = vector.extract_strided_slice %0 {offsets = [0, 3], sizes = [160, 1], strides = [1, 1]} : vector<160x18xf32> to vector<160x1xf32>
    %26 = vector.broadcast %25 : vector<160x1xf32> to vector<160x256xf32>
    %27 = arith.addf %24, %26 : vector<160x256xf32>
    %cst_6 = arith.constant 0.000000e+00 : f32
    %28 = vector.broadcast %cst_6 : f32 to vector<160x256xf32>
    %29 = arith.cmpf ogt, %27, %28 : vector<160x256xf32>
    %cst_7 = arith.constant 0.000000e+00 : f32
    %30 = vector.broadcast %cst_7 : f32 to vector<160x256xf32>
    %31 = arith.minimumf %27, %30 : vector<160x256xf32>
    %32 = math.exp %31 : vector<160x256xf32>
    %cst_8 = arith.constant 1.000000e+00 : f32
    %33 = vector.broadcast %cst_8 : f32 to vector<160x256xf32>
    %34 = arith.subf %32, %33 : vector<160x256xf32>
    %35 = arith.select %29, %27, %34 : vector<160x256xi1>, vector<160x256xf32>
    %c0_9 = arith.constant 0 : index
    %c0_10 = arith.constant 0 : index
    %36 = vector.load %arg4[%c0_9, %c0_10] : memref<256x128xf32, #tpu.memory_space<vmem>>, vector<256x128xf32>
    %cst_11 = arith.constant dense<0.000000e+00> : vector<160x128xf32>
    %37 = tpu.matmul %35, %36, %cst_11 {dimension_numbers = #tpu.dot_dimension_numbers<[1], [0], [0], [1], [0, 0, 1, 1], [], []>} : vector<160x256xf32>, vector<256x128xf32>, vector<160x128xf32> -> vector<160x128xf32>
    %cst_12 = arith.constant 0.000000e+00 : f32
    %38 = vector.broadcast %cst_12 : f32 to vector<160x128xf32>
    %39 = vector.extract_strided_slice %37 {offsets = [0, 124], sizes = [160, 4], strides = [1, 1]} : vector<160x128xf32> to vector<160x4xf32>
    %40 = vector.extract_strided_slice %37 {offsets = [0, 0], sizes = [160, 124], strides = [1, 1]} : vector<160x128xf32> to vector<160x124xf32>
    %41 = tpu.concatenate %39, %40 in 1 : vector<160x4xf32>, vector<160x124xf32> -> vector<160x128xf32>
    %42 = vector.extract_strided_slice %0 {offsets = [0, 8], sizes = [160, 1], strides = [1, 1]} : vector<160x18xf32> to vector<160x1xf32>
    %43 = vector.broadcast %42 : vector<160x1xf32> to vector<160x128xf32>
    %44 = arith.mulf %43, %41 : vector<160x128xf32>
    %45 = arith.addf %38, %44 : vector<160x128xf32>
    %46 = vector.extract_strided_slice %37 {offsets = [0, 125], sizes = [160, 3], strides = [1, 1]} : vector<160x128xf32> to vector<160x3xf32>
    %47 = vector.extract_strided_slice %37 {offsets = [0, 0], sizes = [160, 125], strides = [1, 1]} : vector<160x128xf32> to vector<160x125xf32>
    %48 = tpu.concatenate %46, %47 in 1 : vector<160x3xf32>, vector<160x125xf32> -> vector<160x128xf32>
    %49 = vector.extract_strided_slice %0 {offsets = [0, 9], sizes = [160, 1], strides = [1, 1]} : vector<160x18xf32> to vector<160x1xf32>
    %50 = vector.broadcast %49 : vector<160x1xf32> to vector<160x128xf32>
    %51 = arith.mulf %50, %48 : vector<160x128xf32>
    %52 = arith.addf %45, %51 : vector<160x128xf32>
    %53 = vector.extract_strided_slice %37 {offsets = [0, 126], sizes = [160, 2], strides = [1, 1]} : vector<160x128xf32> to vector<160x2xf32>
    %54 = vector.extract_strided_slice %37 {offsets = [0, 0], sizes = [160, 126], strides = [1, 1]} : vector<160x128xf32> to vector<160x126xf32>
    %55 = tpu.concatenate %53, %54 in 1 : vector<160x2xf32>, vector<160x126xf32> -> vector<160x128xf32>
    %56 = vector.extract_strided_slice %0 {offsets = [0, 10], sizes = [160, 1], strides = [1, 1]} : vector<160x18xf32> to vector<160x1xf32>
    %57 = vector.broadcast %56 : vector<160x1xf32> to vector<160x128xf32>
    %58 = arith.mulf %57, %55 : vector<160x128xf32>
    %59 = arith.addf %52, %58 : vector<160x128xf32>
    %60 = vector.extract_strided_slice %37 {offsets = [0, 127], sizes = [160, 1], strides = [1, 1]} : vector<160x128xf32> to vector<160x1xf32>
    %61 = vector.extract_strided_slice %37 {offsets = [0, 0], sizes = [160, 127], strides = [1, 1]} : vector<160x128xf32> to vector<160x127xf32>
    %62 = tpu.concatenate %60, %61 in 1 : vector<160x1xf32>, vector<160x127xf32> -> vector<160x128xf32>
    %63 = vector.extract_strided_slice %0 {offsets = [0, 11], sizes = [160, 1], strides = [1, 1]} : vector<160x18xf32> to vector<160x1xf32>
    %64 = vector.broadcast %63 : vector<160x1xf32> to vector<160x128xf32>
    %65 = arith.mulf %64, %62 : vector<160x128xf32>
    %66 = arith.addf %59, %65 : vector<160x128xf32>
    %67 = vector.extract_strided_slice %0 {offsets = [0, 12], sizes = [160, 1], strides = [1, 1]} : vector<160x18xf32> to vector<160x1xf32>
    %68 = vector.broadcast %67 : vector<160x1xf32> to vector<160x128xf32>
    %69 = arith.mulf %68, %37 : vector<160x128xf32>
    %70 = arith.addf %66, %69 : vector<160x128xf32>
    %71 = vector.extract_strided_slice %37 {offsets = [0, 1], sizes = [160, 127], strides = [1, 1]} : vector<160x128xf32> to vector<160x127xf32>
    %72 = vector.extract_strided_slice %37 {offsets = [0, 0], sizes = [160, 1], strides = [1, 1]} : vector<160x128xf32> to vector<160x1xf32>
    %73 = tpu.concatenate %71, %72 in 1 : vector<160x127xf32>, vector<160x1xf32> -> vector<160x128xf32>
    %74 = vector.extract_strided_slice %0 {offsets = [0, 13], sizes = [160, 1], strides = [1, 1]} : vector<160x18xf32> to vector<160x1xf32>
    %75 = vector.broadcast %74 : vector<160x1xf32> to vector<160x128xf32>
    %76 = arith.mulf %75, %73 : vector<160x128xf32>
    %77 = arith.addf %70, %76 : vector<160x128xf32>
    %78 = vector.extract_strided_slice %37 {offsets = [0, 2], sizes = [160, 126], strides = [1, 1]} : vector<160x128xf32> to vector<160x126xf32>
    %79 = vector.extract_strided_slice %37 {offsets = [0, 0], sizes = [160, 2], strides = [1, 1]} : vector<160x128xf32> to vector<160x2xf32>
    %80 = tpu.concatenate %78, %79 in 1 : vector<160x126xf32>, vector<160x2xf32> -> vector<160x128xf32>
    %81 = vector.extract_strided_slice %0 {offsets = [0, 14], sizes = [160, 1], strides = [1, 1]} : vector<160x18xf32> to vector<160x1xf32>
    %82 = vector.broadcast %81 : vector<160x1xf32> to vector<160x128xf32>
    %83 = arith.mulf %82, %80 : vector<160x128xf32>
    %84 = arith.addf %77, %83 : vector<160x128xf32>
    %85 = vector.extract_strided_slice %37 {offsets = [0, 3], sizes = [160, 125], strides = [1, 1]} : vector<160x128xf32> to vector<160x125xf32>
    %86 = vector.extract_strided_slice %37 {offsets = [0, 0], sizes = [160, 3], strides = [1, 1]} : vector<160x128xf32> to vector<160x3xf32>
    %87 = tpu.concatenate %85, %86 in 1 : vector<160x125xf32>, vector<160x3xf32> -> vector<160x128xf32>
    %88 = vector.extract_strided_slice %0 {offsets = [0, 15], sizes = [160, 1], strides = [1, 1]} : vector<160x18xf32> to vector<160x1xf32>
    %89 = vector.broadcast %88 : vector<160x1xf32> to vector<160x128xf32>
    %90 = arith.mulf %89, %87 : vector<160x128xf32>
    %91 = arith.addf %84, %90 : vector<160x128xf32>
    %92 = vector.extract_strided_slice %37 {offsets = [0, 4], sizes = [160, 124], strides = [1, 1]} : vector<160x128xf32> to vector<160x124xf32>
    %93 = vector.extract_strided_slice %37 {offsets = [0, 0], sizes = [160, 4], strides = [1, 1]} : vector<160x128xf32> to vector<160x4xf32>
    %94 = tpu.concatenate %92, %93 in 1 : vector<160x124xf32>, vector<160x4xf32> -> vector<160x128xf32>
    %95 = vector.extract_strided_slice %0 {offsets = [0, 16], sizes = [160, 1], strides = [1, 1]} : vector<160x18xf32> to vector<160x1xf32>
    %96 = vector.broadcast %95 : vector<160x1xf32> to vector<160x128xf32>
    %97 = arith.mulf %96, %94 : vector<160x128xf32>
    %98 = arith.addf %91, %97 : vector<160x128xf32>
    %99 = vector.extract_strided_slice %37 {offsets = [0, 5], sizes = [160, 123], strides = [1, 1]} : vector<160x128xf32> to vector<160x123xf32>
    %100 = vector.extract_strided_slice %37 {offsets = [0, 0], sizes = [160, 5], strides = [1, 1]} : vector<160x128xf32> to vector<160x5xf32>
    %101 = tpu.concatenate %99, %100 in 1 : vector<160x123xf32>, vector<160x5xf32> -> vector<160x128xf32>
    %102 = vector.extract_strided_slice %0 {offsets = [0, 17], sizes = [160, 1], strides = [1, 1]} : vector<160x18xf32> to vector<160x1xf32>
    %103 = vector.broadcast %102 : vector<160x1xf32> to vector<160x128xf32>
    %104 = arith.mulf %103, %101 : vector<160x128xf32>
    %105 = arith.addf %98, %104 : vector<160x128xf32>
    %106 = vector.extract_strided_slice %0 {offsets = [0, 4], sizes = [160, 1], strides = [1, 1]} : vector<160x18xf32> to vector<160x1xf32>
    %107 = vector.broadcast %106 : vector<160x1xf32> to vector<160x128xf32>
    %108 = arith.addf %105, %107 : vector<160x128xf32>
    %c0_13 = arith.constant 0 : index
    %c0_14 = arith.constant 0 : index
    %109 = vector.load %arg6[%c0_13, %c0_14] : memref<160x160xf32, #tpu.memory_space<vmem>>, vector<160x160xf32>
    %cst_15 = arith.constant dense<0.000000e+00> : vector<160x128xf32>
    %110 = tpu.matmul %109, %108, %cst_15 {dimension_numbers = #tpu.dot_dimension_numbers<[1], [0], [0], [1], [0, 0, 1, 1], [], []>} : vector<160x160xf32>, vector<160x128xf32>, vector<160x128xf32> -> vector<160x128xf32>
    %111 = vector.extract_strided_slice %0 {offsets = [0, 5], sizes = [160, 1], strides = [1, 1]} : vector<160x18xf32> to vector<160x1xf32>
    %112 = vector.broadcast %111 : vector<160x1xf32> to vector<160x128xf32>
    %113 = arith.addf %110, %112 : vector<160x128xf32>
    %114 = tpu.iota {dimensions = array<i32: 1>} : vector<1x128xi32>
    %c63_i32 = arith.constant 63 : i32
    %115 = vector.broadcast %c63_i32 : i32 to vector<1x128xi32>
    %116 = arith.andi %114, %115 : vector<1x128xi32>
    %c4_i32 = arith.constant 4 : i32
    %117 = vector.broadcast %c4_i32 : i32 to vector<1x128xi32>
    %118 = arith.cmpi sge, %116, %117 : vector<1x128xi32>
    %c59_i32 = arith.constant 59 : i32
    %119 = vector.broadcast %c59_i32 : i32 to vector<1x128xi32>
    %120 = arith.cmpi slt, %116, %119 : vector<1x128xi32>
    %121 = arith.andi %118, %120 : vector<1x128xi1>
    %cst_16 = arith.constant 0.000000e+00 : f32
    %122 = vector.shape_cast %121 : vector<1x128xi1> to vector<1x128xi1>
    %123 = vector.broadcast %122 : vector<1x128xi1> to vector<160x128xi1>
    %124 = vector.broadcast %cst_16 : f32 to vector<160x128xf32>
    %125 = arith.select %123, %113, %124 : vector<160x128xi1>, vector<160x128xf32>
    %126 = vector.extract_strided_slice %0 {offsets = [0, 6], sizes = [160, 1], strides = [1, 1]} : vector<160x18xf32> to vector<160x1xf32>
    %127 = vector.broadcast %126 : vector<160x1xf32> to vector<160x128xf32>
    %128 = arith.mulf %125, %127 : vector<160x128xf32>
    %129 = vector.extract_strided_slice %0 {offsets = [0, 7], sizes = [160, 1], strides = [1, 1]} : vector<160x18xf32> to vector<160x1xf32>
    %130 = vector.broadcast %129 : vector<160x1xf32> to vector<160x128xf32>
    %131 = arith.addf %128, %130 : vector<160x128xf32>
    %cst_17 = arith.constant 0.000000e+00 : f32
    %132 = vector.broadcast %cst_17 : f32 to vector<160x128xf32>
    %133 = arith.cmpf ogt, %131, %132 : vector<160x128xf32>
    %cst_18 = arith.constant 0.000000e+00 : f32
    %134 = vector.broadcast %cst_18 : f32 to vector<160x128xf32>
    %135 = arith.minimumf %131, %134 : vector<160x128xf32>
    %136 = math.exp %135 : vector<160x128xf32>
    %cst_19 = arith.constant 1.000000e+00 : f32
    %137 = vector.broadcast %cst_19 : f32 to vector<160x128xf32>
    %138 = arith.subf %136, %137 : vector<160x128xf32>
    %139 = arith.select %133, %131, %138 : vector<160x128xi1>, vector<160x128xf32>
    %c0_20 = arith.constant 0 : index
    %c0_21 = arith.constant 0 : index
    %140 = vector.load %arg5[%c0_20, %c0_21] : memref<128x32xf32, #tpu.memory_space<vmem>>, vector<128x32xf32>
    %cst_22 = arith.constant dense<0.000000e+00> : vector<160x32xf32>
    %141 = tpu.matmul %139, %140, %cst_22 {dimension_numbers = #tpu.dot_dimension_numbers<[1], [0], [0], [1], [0, 0, 1, 1], [], []>} : vector<160x128xf32>, vector<128x32xf32>, vector<160x32xf32> -> vector<160x32xf32>
    %c0_23 = arith.constant 0 : index
    %c0_24 = arith.constant 0 : index
    %142 = vector.load %arg7[%c0_23, %c0_24] : memref<320x32xf32, #tpu.memory_space<vmem>>, vector<320x32xf32>
    %143 = vector.extract_strided_slice %142 {offsets = [0, 0], sizes = [160, 32], strides = [1, 1]} : vector<320x32xf32> to vector<160x32xf32>
    %144 = arith.mulf %141, %143 : vector<160x32xf32>
    %c0_25 = arith.constant 0 : index
    %c0_26 = arith.constant 0 : index
    %145 = vector.load %arg8[%c0_25, %c0_26] : memref<32x2xf32, #tpu.memory_space<vmem>>, vector<32x2xf32>
    %cst_27 = arith.constant dense<0.000000e+00> : vector<160x2xf32>
    %146 = tpu.matmul %144, %145, %cst_27 {dimension_numbers = #tpu.dot_dimension_numbers<[1], [0], [0], [1], [0, 0, 1, 1], [], []>} : vector<160x32xf32>, vector<32x2xf32>, vector<160x2xf32> -> vector<160x2xf32>
    %147 = vector.extract_strided_slice %142 {offsets = [160, 0], sizes = [160, 32], strides = [1, 1]} : vector<320x32xf32> to vector<160x32xf32>
    %148 = arith.mulf %141, %147 : vector<160x32xf32>
    %c0_28 = arith.constant 0 : index
    %c0_29 = arith.constant 0 : index
    %149 = vector.load %arg8[%c0_28, %c0_29] : memref<32x2xf32, #tpu.memory_space<vmem>>, vector<32x2xf32>
    %cst_30 = arith.constant dense<0.000000e+00> : vector<160x2xf32>
    %150 = tpu.matmul %148, %149, %cst_30 {dimension_numbers = #tpu.dot_dimension_numbers<[1], [0], [0], [1], [0, 0, 1, 1], [], []>} : vector<160x32xf32>, vector<32x2xf32>, vector<160x2xf32> -> vector<160x2xf32>
    %cst_31 = arith.constant dense<0.000000e+00> : vector<2xf32>
    %151 = vector.multi_reduction <add>, %146, %cst_31 [0] : vector<160x2xf32> to vector<2xf32>
    %152 = vector.shape_cast %151 : vector<2xf32> to vector<1x2xf32>
    %cst_32 = arith.constant dense<0.000000e+00> : vector<2xf32>
    %153 = vector.multi_reduction <add>, %150, %cst_32 [0] : vector<160x2xf32> to vector<2xf32>
    %154 = vector.shape_cast %153 : vector<2xf32> to vector<1x2xf32>
    %155 = tpu.concatenate %152, %154 in 0 : vector<1x2xf32>, vector<1x2xf32> -> vector<2x2xf32>
    %c0_33 = arith.constant 0 : index
    %c0_34 = arith.constant 0 : index
    %156 = vector.load %arg9[%c0_33, %c0_34] : memref<2x1xf32, #tpu.memory_space<vmem>>, vector<2x1xf32>
    %157 = vector.broadcast %156 : vector<2x1xf32> to vector<2x2xf32>
    %158 = arith.addf %155, %157 : vector<2x2xf32>
    %c0_35 = arith.constant 0 : index
    %c0_36 = arith.constant 0 : index
    %159 = vector.load %arg10[%c0_35, %c0_36] : memref<2x2xf32, #tpu.memory_space<vmem>>, vector<2x2xf32>
    tpu.vector_store %arg10[%c0_35, %c0_36], %158 {strides = array<i32>} : memref<2x2xf32, #tpu.memory_space<vmem>>, vector<2x2xf32>,
    return
  }
  func.func @transform_0(%arg0: i32) -> (i32, i32) {
    %c0_i32 = arith.constant 0 : i32
    %c0_i32_0 = arith.constant 0 : i32
    return %c0_i32, %arg0 : i32, i32
  }
  func.func @transform_1(%arg0: i32) -> (i32, i32) {
    %c0_i32 = arith.constant 0 : i32
    %c0_i32_0 = arith.constant 0 : i32
    %c0_i32_1 = arith.constant 0 : i32
    return %c0_i32, %c0_i32_0 : i32, i32
  }
  func.func @transform_2(%arg0: i32) -> (i32, i32) {
    %c0_i32 = arith.constant 0 : i32
    %c0_i32_0 = arith.constant 0 : i32
    %c0_i32_1 = arith.constant 0 : i32
    return %c0_i32, %c0_i32_0 : i32, i32
  }
  func.func @transform_3(%arg0: i32) -> (i32, i32) {
    %c0_i32 = arith.constant 0 : i32
    %c0_i32_0 = arith.constant 0 : i32
    %c0_i32_1 = arith.constant 0 : i32
    return %c0_i32, %c0_i32_0 : i32, i32
  }
  func.func @transform_4(%arg0: i32) -> (i32, i32) {
    %c0_i32 = arith.constant 0 : i32
    %c0_i32_0 = arith.constant 0 : i32
    %c0_i32_1 = arith.constant 0 : i32
    return %c0_i32, %c0_i32_0 : i32, i32
  }
  func.func @transform_5(%arg0: i32) -> (i32, i32) {
    %c0_i32 = arith.constant 0 : i32
    %c0_i32_0 = arith.constant 0 : i32
    %c0_i32_1 = arith.constant 0 : i32
    return %c0_i32, %c0_i32_0 : i32, i32
  }
  func.func @transform_6(%arg0: i32) -> (i32, i32) {
    %c0_i32 = arith.constant 0 : i32
    %c0_i32_0 = arith.constant 0 : i32
    %c0_i32_1 = arith.constant 0 : i32
    return %c0_i32, %c0_i32_0 : i32, i32
  }
  func.func @transform_7(%arg0: i32) -> (i32, i32) {
    %c0_i32 = arith.constant 0 : i32
    %c0_i32_0 = arith.constant 0 : i32
    %c0_i32_1 = arith.constant 0 : i32
    return %c0_i32, %c0_i32_0 : i32, i32
  }
  func.func @transform_8(%arg0: i32) -> (i32, i32) {
    %c0_i32 = arith.constant 0 : i32
    %c0_i32_0 = arith.constant 0 : i32
    %c0_i32_1 = arith.constant 0 : i32
    return %c0_i32, %c0_i32_0 : i32, i32
  }
  func.func @transform_9(%arg0: i32) -> (i32, i32) {
    %c0_i32 = arith.constant 0 : i32
    %c0_i32_0 = arith.constant 0 : i32
    return %c0_i32, %arg0 : i32, i32
  }
}

</mosaic_0001>

<llo_original>
// kernel: tpu_custom_call.1
$region0: #{tpu_custom_call.1}
  #allocation0 [shape = 'u32[]', space=smem, size = 0x4, offset = 0x4, fixed_abs, tag = 'smem constant byte address 0x4 - core index']
  #allocation1 [shape = 'u32[144,128]{1,0:T(1,128)}', space=vmem, size = 0x12000, scoped, tag = 'internal scratch']
  %s0 = inlined_call_operand.hbm [shape: f32[2640,256], index: 0, kind: input, shape index: {}]
  %s1 = inlined_call_operand.hbm [shape: f32[160,2640], index: 1, kind: input, shape index: {}]
  %s2 = inlined_call_operand.vmem [shape: f32[160,18], index: 2, kind: input, shape index: {}]
  %s3 = inlined_call_operand.hbm [shape: f32[256,128], index: 3, kind: input, shape index: {}]
  %s4 = inlined_call_operand.vmem [shape: f32[128,32], index: 4, kind: input, shape index: {}]
  %s5 = inlined_call_operand.hbm [shape: f32[160,160], index: 5, kind: input, shape index: {}]
  %s6 = inlined_call_operand.vmem [shape: f32[320,32], index: 6, kind: input, shape index: {}]
  %s7 = inlined_call_operand.vmem [shape: f32[32,2], index: 7, kind: input, shape index: {}]
  %s8 = inlined_call_operand.vmem [shape: f32[2,1], index: 8, kind: input, shape index: {}]
  %s9 = inlined_call_operand.hbm [shape: f32[2,2], index: 9, kind: output, shape index: {}]
  %s10 = sld [smem:[#allocation0]]
  $region62: #{tpu_custom_call.1} parent=0
    _
  %s12 = ssub.s32 1, %s10
  %s13 = scalar_select 0, %s12, %s10
  $region1: #{tpu_custom_call.1} parent=0
    #allocation2 [shape = 'u8[2703360]{0}', space=vmem, size = 0x294000, scoped, tag = 'input window, operand 0, single buffered']
    #allocation3 [shape = 's32[1]{0}', space=sflag, size = 0x4, scoped, tag = 'scoped memory for tpu_custom_call.1']
    #allocation4 [shape = 's32[1]{0}', space=sflag, size = 0x4, scoped, tag = 'scoped memory for tpu_custom_call.1']
    #allocation5 [shape = 'u8[1720320]{0}', space=vmem, size = 0x1a4000, scoped, tag = 'input window, operand 1, single buffered']
    #allocation6 [shape = 's32[1]{0}', space=sflag, size = 0x4, scoped, tag = 'scoped memory for tpu_custom_call.1']
    #allocation7 [shape = 'u8[131072]{0}', space=vmem, size = 0x20000, scoped, tag = 'input window, operand 3, single buffered']
    #allocation8 [shape = 'u8[163840]{0}', space=vmem, size = 0x28000, scoped, tag = 'input window, operand 5, single buffered']
    #allocation9 [shape = 's32[1]{0}', space=sflag, size = 0x4, scoped, tag = 'scoped memory for tpu_custom_call.1']
    #allocation10 [shape = 'u8[1024]{0}', space=vmem, size = 0x400, scoped, tag = 'output window, operand 0, single buffered']
    %14 = vsyncpa [#allocation3], 0
    %15 = vsyncpa [#allocation6], 0
    %16 = vsyncpa [#allocation9], 0
    %17 = vsyncpa [#allocation4], 0
    // Predicated region
    $region2: #{tpu_custom_call.1} parent=1 // pred_check
      _
    $region3: #{tpu_custom_call.1} parent=1 // pred_check_branch
      %19 = sbr.rel (0) target = $region5
    $region4: #{tpu_custom_call.1} parent=1 // pred_region
      %s21 = ssub.s32 84480, 84480
      %22 = vsyncadd [#allocation3], %s21
      %s23 = sshll.u32 [#allocation2], 4
      %s24 = int_to_ptr.vmem [resolvable:$true] %s23
      %29 = dma.hbm_to_vmem [thread:$0]  %s0, 84480, %s24, [#allocation3], 256, 256, 16
    $region5: #{tpu_custom_call.1} parent=1 // pred_fallthru
      _
    // Predicated region
    $region6: #{tpu_custom_call.1} parent=1 // pred_check
      _
    $region7: #{tpu_custom_call.1} parent=1 // pred_check_branch
      %31 = sbr.rel (0) target = $region9
    $region8: #{tpu_custom_call.1} parent=1 // pred_region
      %s33 = ssub.s32 53760, 53760
      %34 = vsyncadd [#allocation6], %s33
      %s35 = sshll.u32 [#allocation5], 4
      %s36 = int_to_ptr.vmem [resolvable:$true] %s35
      %41 = dma.hbm_to_vmem [thread:$0]  %s1, 53760, %s36, [#allocation6], 2688, 2688, 168
    $region9: #{tpu_custom_call.1} parent=1 // pred_fallthru
      _
    // Predicated region
    $region10: #{tpu_custom_call.1} parent=1 // pred_check
      _
    $region11: #{tpu_custom_call.1} parent=1 // pred_check_branch
      %43 = sbr.rel (0) target = $region13
    $region12: #{tpu_custom_call.1} parent=1 // pred_region
      _
    $region13: #{tpu_custom_call.1} parent=1 // pred_fallthru
      _
    // Predicated region
    $region14: #{tpu_custom_call.1} parent=1 // pred_check
      _
    $region15: #{tpu_custom_call.1} parent=1 // pred_check_branch
      %45 = sbr.rel (0) target = $region17
    $region16: #{tpu_custom_call.1} parent=1 // pred_region
      %s47 = ssub.s32 4096, 4096
      %48 = vsyncadd [#allocation6], %s47
      %s49 = sshll.u32 [#allocation7], 4
      %s50 = int_to_ptr.vmem [resolvable:$true] %s49
      %55 = dma.hbm_to_vmem [thread:$0]  %s3, 4096, %s50, [#allocation6], 128, 128, 8
    $region17: #{tpu_custom_call.1} parent=1 // pred_fallthru
      _
    // Predicated region
    $region18: #{tpu_custom_call.1} parent=1 // pred_check
      _
    $region19: #{tpu_custom_call.1} parent=1 // pred_check_branch
      %57 = sbr.rel (0) target = $region21
    $region20: #{tpu_custom_call.1} parent=1 // pred_region
      _
    $region21: #{tpu_custom_call.1} parent=1 // pred_fallthru
      _
    // Predicated region
    $region22: #{tpu_custom_call.1} parent=1 // pred_check
      _
    $region23: #{tpu_custom_call.1} parent=1 // pred_check_branch
      %59 = sbr.rel (0) target = $region25
    $region24: #{tpu_custom_call.1} parent=1 // pred_region
      %s61 = ssub.s32 5120, 5120
      %62 = vsyncadd [#allocation9], %s61
      %s63 = sshll.u32 [#allocation8], 4
      %s64 = int_to_ptr.vmem [resolvable:$true] %s63
      %69 = dma.hbm_to_vmem [thread:$0]  %s5, 5120, %s64, [#allocation9], 256, 256, 16
    $region25: #{tpu_custom_call.1} parent=1 // pred_fallthru
      _
    // Predicated region
    $region26: #{tpu_custom_call.1} parent=1 // pred_check
      _
    $region27: #{tpu_custom_call.1} parent=1 // pred_check_branch
      %71 = sbr.rel (0) target = $region29
    $region28: #{tpu_custom_call.1} parent=1 // pred_region
      _
    $region29: #{tpu_custom_call.1} parent=1 // pred_fallthru
      _
    // Predicated region
    $region30: #{tpu_custom_call.1} parent=1 // pred_check
      _
    $region31: #{tpu_custom_call.1} parent=1 // pred_check_branch
      %73 = sbr.rel (0) target = $region33
    $region32: #{tpu_custom_call.1} parent=1 // pred_region
      _
    $region33: #{tpu_custom_call.1} parent=1 // pred_fallthru
      _
    // Predicated region
    $region34: #{tpu_custom_call.1} parent=1 // pred_check
      _
    $region35: #{tpu_custom_call.1} parent=1 // pred_check_branch
      %75 = sbr.rel (0) target = $region37
    $region36: #{tpu_custom_call.1} parent=1 // pred_region
      _
    $region37: #{tpu_custom_call.1} parent=1 // pred_fallthru
      _
    // Predicated region
    $region38: #{tpu_custom_call.1} parent=1 // pred_check
      _
    $region39: #{tpu_custom_call.1} parent=1 // pred_check_branch
      %77 = sbr.rel (0) target = $region41
    $region40: #{tpu_custom_call.1} parent=1 // pred_region
      %78 = dma.done [#allocation3], 84480
    $region41: #{tpu_custom_call.1} parent=1 // pred_fallthru
      _
    // Predicated region
    $region42: #{tpu_custom_call.1} parent=1 // pred_check
      _
    $region43: #{tpu_custom_call.1} parent=1 // pred_check_branch
      %80 = sbr.rel (0) target = $region45
    $region44: #{tpu_custom_call.1} parent=1 // pred_region
      %81 = dma.done [#allocation6], 53760
    $region45: #{tpu_custom_call.1} parent=1 // pred_fallthru
      _
    // Predicated region
    $region46: #{tpu_custom_call.1} parent=1 // pred_check
      _
    $region47: #{tpu_custom_call.1} parent=1 // pred_check_branch
      %83 = sbr.rel (0) target = $region49
    $region48: #{tpu_custom_call.1} parent=1 // pred_region
      %84 = dma.done [#allocation6], 4096
    $region49: #{tpu_custom_call.1} parent=1 // pred_fallthru
      _
    // Predicated region
    $region50: #{tpu_custom_call.1} parent=1 // pred_check
      _
    $region51: #{tpu_custom_call.1} parent=1 // pred_check_branch
      %86 = sbr.rel (0) target = $region53
    $region52: #{tpu_custom_call.1} parent=1 // pred_region
      %87 = dma.done [#allocation9], 5120
    $region53: #{tpu_custom_call.1} parent=1 // pred_fallthru
      _
    %v88 = vld [vmem:[%s2] sm:$0xff]
    %v89 = vld [vmem:[%s2 + $0x8] sm:$0xff]
    %v90 = vld [vmem:[%s2 + $0x10] sm:$0xff]
    %v91 = vld [vmem:[%s2 + $0x18] sm:$0xff]
    %v92 = vld [vmem:[%s2 + $0x20] sm:$0xff]
    %v93 = vld [vmem:[%s2 + $0x28] sm:$0xff]
    %v94 = vld [vmem:[%s2 + $0x30] sm:$0xff]
    %v95 = vld [vmem:[%s2 + $0x38] sm:$0xff]
    %v96 = vld [vmem:[%s2 + $0x40] sm:$0xff]
    %v97 = vld [vmem:[%s2 + $0x48] sm:$0xff]
    %v98 = vld [vmem:[%s2 + $0x50] sm:$0xff]
    %v99 = vld [vmem:[%s2 + $0x58] sm:$0xff]
    %v100 = vld [vmem:[%s2 + $0x60] sm:$0xff]
    %v101 = vld [vmem:[%s2 + $0x68] sm:$0xff]
    %v102 = vld [vmem:[%s2 + $0x70] sm:$0xff]
    %v103 = vld [vmem:[%s2 + $0x78] sm:$0xff]
    %v104 = vld [vmem:[%s2 + $0x80] sm:$0xff]
    %v105 = vld [vmem:[%s2 + $0x88] sm:$0xff]
    %v106 = vld [vmem:[%s2 + $0x90] sm:$0xff]
    %v107 = vld [vmem:[%s2 + $0x98] sm:$0xff]
    %v108 = vld [vmem:[#allocation5] sm:$0xff]
    %v109 = vld [vmem:[#allocation5 + $0x8] sm:$0xff]
    %v110 = vld [vmem:[#allocation5 + $0x10] sm:$0xff]
    %v111 = vld [vmem:[#allocation5 + $0x18] sm:$0xff]
    %v112 = vld [vmem:[#allocation5 + $0x20] sm:$0xff]
    %v113 = vld [vmem:[#allocation5 + $0x28] sm:$0xff]
    %v114 = vld [vmem:[#allocation5 + $0x30] sm:$0xff]
    %v115 = vld [vmem:[#allocation5 + $0x38] sm:$0xff]
    %v116 = vld [vmem:[#allocation5 + $0x40] sm:$0xff]
    %v117 = vld [vmem:[#allocation5 + $0x48] sm:$0xff]
    %v118 = vld [vmem:[#allocation5 + $0x50] sm:$0xff]
    %v119 = vld [vmem:[#allocation5 + $0x58] sm:$0xff]
    %v120 = vld [vmem:[#allocation5 + $0x60] sm:$0xff]
    %v121 = vld [vmem:[#allocation5 + $0x68] sm:$0xff]
    %v122 = vld [vmem:[#allocation5 + $0x70] sm:$0xff]
    %v123 = vld [vmem:[#allocation5 + $0x78] sm:$0xff]
    %v124 = vld [vmem:[#allocation5 + $0x80] sm:$0xff]
    %v125 = vld [vmem:[#allocation5 + $0x88] sm:$0xff]
    %v126 = vld [vmem:[#allocation5 + $0x90] sm:$0xff]
    %v127 = vld [vmem:[#allocation5 + $0x98] sm:$0xff]
    %v128 = vld [vmem:[#allocation5 + $0xa0] sm:$0xff]
    %v129 = vld [vmem:[#allocation5 + $0xa8] sm:$0xff]
    %v130 = vld [vmem:[#allocation5 + $0xb0] sm:$0xff]
    %v131 = vld [vmem:[#allocation5 + $0xb8] sm:$0xff]
    %v132 = vld [vmem:[#allocation5 + $0xc0] sm:$0xff]
    %v133 = vld [vmem:[#allocation5 + $0xc8] sm:$0xff]
    %v134 = vld [vmem:[#allocation5 + $0xd0] sm:$0xff]
    %v135 = vld [vmem:[#allocation5 + $0xd8] sm:$0xff]
    %v136 = vld [vmem:[#allocation5 + $0xe0] sm:$0xff]
    %v137 = vld [vmem:[#allocation5 + $0xe8] sm:$0xff]
    %v138 = vld [vmem:[#allocation5 + $0xf0] sm:$0xff]
    %v139 = vld [vmem:[#allocation5 + $0xf8] sm:$0xff]
    %v140 = vld [vmem:[#allocation5 + $0x100] sm:$0xff]
    %v141 = vld [vmem:[#allocation5 + $0x108] sm:$0xff]
    %v142 = vld [vmem:[#allocation5 + $0x110] sm:$0xff]
    %v143 = vld [vmem:[#allocation5 + $0x118] sm:$0xff]
    %v144 = vld [vmem:[#allocation5 + $0x120] sm:$0xff]
    %v145 = vld [vmem:[#allocation5 + $0x128] sm:$0xff]
    %v146 = vld [vmem:[#allocation5 + $0x130] sm:$0xff]
    %v147 = vld [vmem:[#allocation5 + $0x138] sm:$0xff]
    %v148 = vld [vmem:[#allocation5 + $0x140] sm:$0xff]
    %v149 = vld [vmem:[#allocation5 + $0x148] sm:$0xff]
    %v150 = vld [vmem:[#allocation5 + $0x150] sm:$0xff]
    %v151 = vld [vmem:[#allocation5 + $0x158] sm:$0xff]
    %v152 = vld [vmem:[#allocation5 + $0x160] sm:$0xff]
    %v153 = vld [vmem:[#allocation5 + $0x168] sm:$0xff]
    %v154 = vld [vmem:[#allocation5 + $0x170] sm:$0xff]
    %v155 = vld [vmem:[#allocation5 + $0x178] sm:$0xff]
    %v156 = vld [vmem:[#allocation5 + $0x180] sm:$0xff]
    %v157 = vld [vmem:[#allocation5 + $0x188] sm:$0xff]
    %v158 = vld [vmem:[#allocation5 + $0x190] sm:$0xff]
    %v159 = vld [vmem:[#allocation5 + $0x198] sm:$0xff]
    %v160 = vld [vmem:[#allocation5 + $0x1a0] sm:$0xff]
    %v161 = vld [vmem:[#allocation5 + $0x1a8] sm:$0xff]
    %v162 = vld [vmem:[#allocation5 + $0x1b0] sm:$0xff]
    %v163 = vld [vmem:[#allocation5 + $0x1b8] sm:$0xff]
    %v164 = vld [vmem:[#allocation5 + $0x1c0] sm:$0xff]
    %v165 = vld [vmem:[#allocation5 + $0x1c8] sm:$0xff]
    %v166 = vld [vmem:[#allocation5 + $0x1d0] sm:$0xff]
    %v167 = vld [vmem:[#allocation5 + $0x1d8] sm:$0xff]
    %v168 = vld [vmem:[#allocation5 + $0x1e0] sm:$0xff]
    %v169 = vld [vmem:[#allocation5 + $0x1e8] sm:$0xff]
    %v170 = vld [vmem:[#allocation5 + $0x1f0] sm:$0xff]
    %v171 = vld [vmem:[#allocation5 + $0x1f8] sm:$0xff]
    %v172 = vld [vmem:[#allocation5 + $0x200] sm:$0xff]
    %v173 = vld [vmem:[#allocation5 + $0x208] sm:$0xff]
    %v174 = vld [vmem:[#allocation5 + $0x210] sm:$0xff]
    %v175 = vld [vmem:[#allocation5 + $0x218] sm:$0xff]
    %v176 = vld [vmem:[#allocation5 + $0x220] sm:$0xff]
    %v177 = vld [vmem:[#allocation5 + $0x228] sm:$0xff]
    %v178 = vld [vmem:[#allocation5 + $0x230] sm:$0xff]
    %v179 = vld [vmem:[#allocation5 + $0x238] sm:$0xff]
    %v180 = vld [vmem:[#allocation5 + $0x240] sm:$0xff]
    %v181 = vld [vmem:[#allocation5 + $0x248] sm:$0xff]
    %v182 = vld [vmem:[#allocation5 + $0x250] sm:$0xff]
    %v183 = vld [vmem:[#allocation5 + $0x258] sm:$0xff]
    %v184 = vld [vmem:[#allocation5 + $0x260] sm:$0xff]
    %v185 = vld [vmem:[#allocation5 + $0x268] sm:$0xff]
    %v186 = vld [vmem:[#allocation5 + $0x270] sm:$0xff]
    %v187 = vld [vmem:[#allocation5 + $0x278] sm:$0xff]
    %v188 = vld [vmem:[#allocation5 + $0x280] sm:$0xff]
    %v189 = vld [vmem:[#allocation5 + $0x288] sm:$0xff]
    %v190 = vld [vmem:[#allocation5 + $0x290] sm:$0xff]
    %v191 = vld [vmem:[#allocation5 + $0x298] sm:$0xff]
    %v192 = vld [vmem:[#allocation5 + $0x2a0] sm:$0xff]
    %v193 = vld [vmem:[#allocation5 + $0x2a8] sm:$0xff]
    %v194 = vld [vmem:[#allocation5 + $0x2b0] sm:$0xff]
    %v195 = vld [vmem:[#allocation5 + $0x2b8] sm:$0xff]
    %v196 = vld [vmem:[#allocation5 + $0x2c0] sm:$0xff]
    %v197 = vld [vmem:[#allocation5 + $0x2c8] sm:$0xff]
    %v198 = vld [vmem:[#allocation5 + $0x2d0] sm:$0xff]
    %v199 = vld [vmem:[#allocation5 + $0x2d8] sm:$0xff]
    %v200 = vld [vmem:[#allocation5 + $0x2e0] sm:$0xff]
    %v201 = vld [vmem:[#allocation5 + $0x2e8] sm:$0xff]
    %v202 = vld [vmem:[#allocation5 + $0x2f0] sm:$0xff]
    %v203 = vld [vmem:[#allocation5 + $0x2f8] sm:$0xff]
    %v204 = vld [vmem:[#allocation5 + $0x300] sm:$0xff]
    %v205 = vld [vmem:[#allocation5 + $0x308] sm:$0xff]
    %v206 = vld [vmem:[#allocation5 + $0x310] sm:$0xff]
    %v207 = vld [vmem:[#allocation5 + $0x318] sm:$0xff]
    %v208 = vld [vmem:[#allocation5 + $0x320] sm:$0xff]
    %v209 = vld [vmem:[#allocation5 + $0x328] sm:$0xff]
    %v210 = vld [vmem:[#allocation5 + $0x330] sm:$0xff]
    %v211 = vld [vmem:[#allocation5 + $0x338] sm:$0xff]
    %v212 = vld [vmem:[#allocation5 + $0x340] sm:$0xff]
    %v213 = vld [vmem:[#allocation5 + $0x348] sm:$0xff]
    %v214 = vld [vmem:[#allocation5 + $0x350] sm:$0xff]
    %v215 = vld [vmem:[#allocation5 + $0x358] sm:$0xff]
    %v216 = vld [vmem:[#allocation5 + $0x360] sm:$0xff]
    %v217 = vld [vmem:[#allocation5 + $0x368] sm:$0xff]
    %v218 = vld [vmem:[#allocation5 + $0x370] sm:$0xff]
    %v219 = vld [vmem:[#allocation5 + $0x378] sm:$0xff]
    %v220 = vld [vmem:[#allocation5 + $0x380] sm:$0xff]
    %v221 = vld [vmem:[#allocation5 + $0x388] sm:$0xff]
    %v222 = vld [vmem:[#allocation5 + $0x390] sm:$0xff]
    %v223 = vld [vmem:[#allocation5 + $0x398] sm:$0xff]
    %v224 = vld [vmem:[#allocation5 + $0x3a0] sm:$0xff]
    %v225 = vld [vmem:[#allocation5 + $0x3a8] sm:$0xff]
    %v226 = vld [vmem:[#allocation5 + $0x3b0] sm:$0xff]
    %v227 = vld [vmem:[#allocation5 + $0x3b8] sm:$0xff]
    %v228 = vld [vmem:[#allocation5 + $0x3c0] sm:$0xff]
    %v229 = vld [vmem:[#allocation5 + $0x3c8] sm:$0xff]
    %v230 = vld [vmem:[#allocation5 + $0x3d0] sm:$0xff]
    %v231 = vld [vmem:[#allocation5 + $0x3d8] sm:$0xff]
    %v232 = vld [vmem:[#allocation5 + $0x3e0] sm:$0xff]
    %v233 = vld [vmem:[#allocation5 + $0x3e8] sm:$0xff]
    %v234 = vld [vmem:[#allocation5 + $0x3f0] sm:$0xff]
    %v235 = vld [vmem:[#allocation5 + $0x3f8] sm:$0xff]
    %v236 = vld [vmem:[#allocation5 + $0x400] sm:$0xff]
    %v237 = vld [vmem:[#allocation5 + $0x408] sm:$0xff]
    %v238 = vld [vmem:[#allocation5 + $0x410] sm:$0xff]
    %v239 = vld [vmem:[#allocation5 + $0x418] sm:$0xff]
    %v240 = vld [vmem:[#allocation5 + $0x420] sm:$0xff]
    %v241 = vld [vmem:[#allocation5 + $0x428] sm:$0xff]
    %v242 = vld [vmem:[#allocation5 + $0x430] sm:$0xff]
    %v243 = vld [vmem:[#allocation5 + $0x438] sm:$0xff]
    %v244 = vld [vmem:[#allocation5 + $0x440] sm:$0xff]
    %v245 = vld [vmem:[#allocation5 + $0x448] sm:$0xff]
    %v246 = vld [vmem:[#allocation5 + $0x450] sm:$0xff]
    %v247 = vld [vmem:[#allocation5 + $0x458] sm:$0xff]
    %v248 = vld [vmem:[#allocation5 + $0x460] sm:$0xff]
    %v249 = vld [vmem:[#allocation5 + $0x468] sm:$0xff]
    %v250 = vld [vmem:[#allocation5 + $0x470] sm:$0xff]
    %v251 = vld [vmem:[#allocation5 + $0x478] sm:$0xff]
    %v252 = vld [vmem:[#allocation5 + $0x480] sm:$0xff]
    %v253 = vld [vmem:[#allocation5 + $0x488] sm:$0xff]
    %v254 = vld [vmem:[#allocation5 + $0x490] sm:$0xff]
    %v255 = vld [vmem:[#allocation5 + $0x498] sm:$0xff]
    %v256 = vld [vmem:[#allocation5 + $0x4a0] sm:$0xff]
    %v257 = vld [vmem:[#allocation5 + $0x4a8] sm:$0xff]
    %v258 = vld [vmem:[#allocation5 + $0x4b0] sm:$0xff]
    %v259 = vld [vmem:[#allocation5 + $0x4b8] sm:$0xff]
    %v260 = vld [vmem:[#allocation5 + $0x4c0] sm:$0xff]
    %v261 = vld [vmem:[#allocation5 + $0x4c8] sm:$0xff]
    %v262 = vld [vmem:[#allocation5 + $0x4d0] sm:$0xff]
    %v263 = vld [vmem:[#allocation5 + $0x4d8] sm:$0xff]
    %v264 = vld [vmem:[#allocation5 + $0x4e0] sm:$0xff]
    %v265 = vld [vmem:[#allocation5 + $0x4e8] sm:$0xff]
    %v266 = vld [vmem:[#allocation5 + $0x4f0] sm:$0xff]
    %v267 = vld [vmem:[#allocation5 + $0x4f8] sm:$0xff]
    %v268 = vld [vmem:[#allocation5 + $0x500] sm:$0xff]
    %v269 = vld [vmem:[#allocation5 + $0x508] sm:$0xff]
    %v270 = vld [vmem:[#allocation5 + $0x510] sm:$0xff]
    %v271 = vld [vmem:[#allocation5 + $0x518] sm:$0xff]
    %v272 = vld [vmem:[#allocation5 + $0x520] sm:$0xff]
    %v273 = vld [vmem:[#allocation5 + $0x528] sm:$0xff]
    %v274 = vld [vmem:[#allocation5 + $0x530] sm:$0xff]
    %v275 = vld [vmem:[#allocation5 + $0x538] sm:$0xff]
    %v276 = vld [vmem:[#allocation5 + $0x540] sm:$0xff]
    %v277 = vld [vmem:[#allocation5 + $0x548] sm:$0xff]
    %v278 = vld [vmem:[#allocation5 + $0x550] sm:$0xff]
    %v279 = vld [vmem:[#allocation5 + $0x558] sm:$0xff]
    %v280 = vld [vmem:[#allocation5 + $0x560] sm:$0xff]
    %v281 = vld [vmem:[#allocation5 + $0x568] sm:$0xff]
    %v282 = vld [vmem:[#allocation5 + $0x570] sm:$0xff]
    %v283 = vld [vmem:[#allocation5 + $0x578] sm:$0xff]
    %v284 = vld [vmem:[#allocation5 + $0x580] sm:$0xff]
    %v285 = vld [vmem:[#allocation5 + $0x588] sm:$0xff]
    %v286 = vld [vmem:[#allocation5 + $0x590] sm:$0xff]
    %v287 = vld [vmem:[#allocation5 + $0x598] sm:$0xff]
    %v288 = vld [vmem:[#allocation5 + $0x5a0] sm:$0xff]
    %v289 = vld [vmem:[#allocation5 + $0x5a8] sm:$0xff]
    %v290 = vld [vmem:[#allocation5 + $0x5b0] sm:$0xff]
    %v291 = vld [vmem:[#allocation5 + $0x5b8] sm:$0xff]
    %v292 = vld [vmem:[#allocation5 + $0x5c0] sm:$0xff]
    %v293 = vld [vmem:[#allocation5 + $0x5c8] sm:$0xff]
    %v294 = vld [vmem:[#allocation5 + $0x5d0] sm:$0xff]
    %v295 = vld [vmem:[#allocation5 + $0x5d8] sm:$0xff]
    %v296 = vld [vmem:[#allocation5 + $0x5e0] sm:$0xff]
    %v297 = vld [vmem:[#allocation5 + $0x5e8] sm:$0xff]
    %v298 = vld [vmem:[#allocation5 + $0x5f0] sm:$0xff]
    %v299 = vld [vmem:[#allocation5 + $0x5f8] sm:$0xff]
    %v300 = vld [vmem:[#allocation5 + $0x600] sm:$0xff]
    %v301 = vld [vmem:[#allocation5 + $0x608] sm:$0xff]
    %v302 = vld [vmem:[#allocation5 + $0x610] sm:$0xff]
    %v303 = vld [vmem:[#allocation5 + $0x618] sm:$0xff]
    %v304 = vld [vmem:[#allocation5 + $0x620] sm:$0xff]
    %v305 = vld [vmem:[#allocation5 + $0x628] sm:$0xff]
    %v306 = vld [vmem:[#allocation5 + $0x630] sm:$0xff]
    %v307 = vld [vmem:[#allocation5 + $0x638] sm:$0xff]
    %v308 = vld [vmem:[#allocation5 + $0x640] sm:$0xff]
    %v309 = vld [vmem:[#allocation5 + $0x648] sm:$0xff]
    %v310 = vld [vmem:[#allocation5 + $0x650] sm:$0xff]
    %v311 = vld [vmem:[#allocation5 + $0x658] sm:$0xff]
    %v312 = vld [vmem:[#allocation5 + $0x660] sm:$0xff]
    %v313 = vld [vmem:[#allocation5 + $0x668] sm:$0xff]
    %v314 = vld [vmem:[#allocation5 + $0x670] sm:$0xff]
    %v315 = vld [vmem:[#allocation5 + $0x678] sm:$0xff]
    %v316 = vld [vmem:[#allocation5 + $0x680] sm:$0xff]
    %v317 = vld [vmem:[#allocation5 + $0x688] sm:$0xff]
    %v318 = vld [vmem:[#allocation5 + $0x690] sm:$0xff]
    %v319 = vld [vmem:[#allocation5 + $0x698] sm:$0xff]
    %v320 = vld [vmem:[#allocation5 + $0x6a0] sm:$0xff]
    %v321 = vld [vmem:[#allocation5 + $0x6a8] sm:$0xff]
    %v322 = vld [vmem:[#allocation5 + $0x6b0] sm:$0xff]
    %v323 = vld [vmem:[#allocation5 + $0x6b8] sm:$0xff]
    %v324 = vld [vmem:[#allocation5 + $0x6c0] sm:$0xff]
    %v325 = vld [vmem:[#allocation5 + $0x6c8] sm:$0xff]
    %v326 = vld [vmem:[#allocation5 + $0x6d0] sm:$0xff]
    %v327 = vld [vmem:[#allocation5 + $0x6d8] sm:$0xff]
    %v328 = vld [vmem:[#allocation5 + $0x6e0] sm:$0xff]
    %v329 = vld [vmem:[#allocation5 + $0x6e8] sm:$0xff]
    %v330 = vld [vmem:[#allocation5 + $0x6f0] sm:$0xff]
    %v331 = vld [vmem:[#allocation5 + $0x6f8] sm:$0xff]
    %v332 = vld [vmem:[#allocation5 + $0x700] sm:$0xff]
    %v333 = vld [vmem:[#allocation5 + $0x708] sm:$0xff]
    %v334 = vld [vmem:[#allocation5 + $0x710] sm:$0xff]
    %v335 = vld [vmem:[#allocation5 + $0x718] sm:$0xff]
    %v336 = vld [vmem:[#allocation5 + $0x720] sm:$0xff]
    %v337 = vld [vmem:[#allocation5 + $0x728] sm:$0xff]
    %v338 = vld [vmem:[#allocation5 + $0x730] sm:$0xff]
    %v339 = vld [vmem:[#allocation5 + $0x738] sm:$0xff]
    %v340 = vld [vmem:[#allocation5 + $0x740] sm:$0xff]
    %v341 = vld [vmem:[#allocation5 + $0x748] sm:$0xff]
    %v342 = vld [vmem:[#allocation5 + $0x750] sm:$0xff]
    %v343 = vld [vmem:[#allocation5 + $0x758] sm:$0xff]
    %v344 = vld [vmem:[#allocation5 + $0x760] sm:$0xff]
    %v345 = vld [vmem:[#allocation5 + $0x768] sm:$0xff]
    %v346 = vld [vmem:[#allocation5 + $0x770] sm:$0xff]
    %v347 = vld [vmem:[#allocation5 + $0x778] sm:$0xff]
    %v348 = vld [vmem:[#allocation5 + $0x780] sm:$0xff]
    %v349 = vld [vmem:[#allocation5 + $0x788] sm:$0xff]
    %v350 = vld [vmem:[#allocation5 + $0x790] sm:$0xff]
    %v351 = vld [vmem:[#allocation5 + $0x798] sm:$0xff]
    %v352 = vld [vmem:[#allocation5 + $0x7a0] sm:$0xff]
    %v353 = vld [vmem:[#allocation5 + $0x7a8] sm:$0xff]
    %v354 = vld [vmem:[#allocation5 + $0x7b0] sm:$0xff]
    %v355 = vld [vmem:[#allocation5 + $0x7b8] sm:$0xff]
    %v356 = vld [vmem:[#allocation5 + $0x7c0] sm:$0xff]
    %v357 = vld [vmem:[#allocation5 + $0x7c8] sm:$0xff]
    %v358 = vld [vmem:[#allocation5 + $0x7d0] sm:$0xff]
    %v359 = vld [vmem:[#allocation5 + $0x7d8] sm:$0xff]
    %v360 = vld [vmem:[#allocation5 + $0x7e0] sm:$0xff]
    %v361 = vld [vmem:[#allocation5 + $0x7e8] sm:$0xff]
    %v362 = vld [vmem:[#allocation5 + $0x7f0] sm:$0xff]
    %v363 = vld [vmem:[#allocation5 + $0x7f8] sm:$0xff]
    %v364 = vld [vmem:[#allocation5 + $0x800] sm:$0xff]
    %v365 = vld [vmem:[#allocation5 + $0x808] sm:$0xff]
    %v366 = vld [vmem:[#allocation5 + $0x810] sm:$0xff]
    %v367 = vld [vmem:[#allocation5 + $0x818] sm:$0xff]
    %v368 = vld [vmem:[#allocation5 + $0x820] sm:$0xff]
    %v369 = vld [vmem:[#allocation5 + $0x828] sm:$0xff]
    %v370 = vld [vmem:[#allocation5 + $0x830] sm:$0xff]
    %v371 = vld [vmem:[#allocation5 + $0x838] sm:$0xff]
    %v372 = vld [vmem:[#allocation5 + $0x840] sm:$0xff]
    %v373 = vld [vmem:[#allocation5 + $0x848] sm:$0xff]
    %v374 = vld [vmem:[#allocation5 + $0x850] sm:$0xff]
    %v375 = vld [vmem:[#allocation5 + $0x858] sm:$0xff]
    %v376 = vld [vmem:[#allocation5 + $0x860] sm:$0xff]
    %v377 = vld [vmem:[#allocation5 + $0x868] sm:$0xff]
    %v378 = vld [vmem:[#allocation5 + $0x870] sm:$0xff]
    %v379 = vld [vmem:[#allocation5 + $0x878] sm:$0xff]
    %v380 = vld [vmem:[#allocation5 + $0x880] sm:$0xff]
    %v381 = vld [vmem:[#allocation5 + $0x888] sm:$0xff]
    %v382 = vld [vmem:[#allocation5 + $0x890] sm:$0xff]
    %v383 = vld [vmem:[#allocation5 + $0x898] sm:$0xff]
    %v384 = vld [vmem:[#allocation5 + $0x8a0] sm:$0xff]
    %v385 = vld [vmem:[#allocation5 + $0x8a8] sm:$0xff]
    %v386 = vld [vmem:[#allocation5 + $0x8b0] sm:$0xff]
    %v387 = vld [vmem:[#allocation5 + $0x8b8] sm:$0xff]
    %v388 = vld [vmem:[#allocation5 + $0x8c0] sm:$0xff]
    %v389 = vld [vmem:[#allocation5 + $0x8c8] sm:$0xff]
    %v390 = vld [vmem:[#allocation5 + $0x8d0] sm:$0xff]
    %v391 = vld [vmem:[#allocation5 + $0x8d8] sm:$0xff]
    %v392 = vld [vmem:[#allocation5 + $0x8e0] sm:$0xff]
    %v393 = vld [vmem:[#allocation5 + $0x8e8] sm:$0xff]
    %v394 = vld [vmem:[#allocation5 + $0x8f0] sm:$0xff]
    %v395 = vld [vmem:[#allocation5 + $0x8f8] sm:$0xff]
    %v396 = vld [vmem:[#allocation5 + $0x900] sm:$0xff]
    %v397 = vld [vmem:[#allocation5 + $0x908] sm:$0xff]
    %v398 = vld [vmem:[#allocation5 + $0x910] sm:$0xff]
    %v399 = vld [vmem:[#allocation5 + $0x918] sm:$0xff]
    %v400 = vld [vmem:[#allocation5 + $0x920] sm:$0xff]
    %v401 = vld [vmem:[#allocation5 + $0x928] sm:$0xff]
    %v402 = vld [vmem:[#allocation5 + $0x930] sm:$0xff]
    %v403 = vld [vmem:[#allocation5 + $0x938] sm:$0xff]
    %v404 = vld [vmem:[#allocation5 + $0x940] sm:$0xff]
    %v405 = vld [vmem:[#allocation5 + $0x948] sm:$0xff]
    %v406 = vld [vmem:[#allocation5 + $0x950] sm:$0xff]
    %v407 = vld [vmem:[#allocation5 + $0x958] sm:$0xff]
    %v408 = vld [vmem:[#allocation5 + $0x960] sm:$0xff]
    %v409 = vld [vmem:[#allocation5 + $0x968] sm:$0xff]
    %v410 = vld [vmem:[#allocation5 + $0x970] sm:$0xff]
    %v411 = vld [vmem:[#allocation5 + $0x978] sm:$0xff]
    %v412 = vld [vmem:[#allocation5 + $0x980] sm:$0xff]
    %v413 = vld [vmem:[#allocation5 + $0x988] sm:$0xff]
    %v414 = vld [vmem:[#allocation5 + $0x990] sm:$0xff]
    %v415 = vld [vmem:[#allocation5 + $0x998] sm:$0xff]
    %v416 = vld [vmem:[#allocation5 + $0x9a0] sm:$0xff]
    %v417 = vld [vmem:[#allocation5 + $0x9a8] sm:$0xff]
    %v418 = vld [vmem:[#allocation5 + $0x9b0] sm:$0xff]
    %v419 = vld [vmem:[#allocation5 + $0x9b8] sm:$0xff]
    %v420 = vld [vmem:[#allocation5 + $0x9c0] sm:$0xff]
    %v421 = vld [vmem:[#allocation5 + $0x9c8] sm:$0xff]
    %v422 = vld [vmem:[#allocation5 + $0x9d0] sm:$0xff]
    %v423 = vld [vmem:[#allocation5 + $0x9d8] sm:$0xff]
    %v424 = vld [vmem:[#allocation5 + $0x9e0] sm:$0xff]
    %v425 = vld [vmem:[#allocation5 + $0x9e8] sm:$0xff]
    %v426 = vld [vmem:[#allocation5 + $0x9f0] sm:$0xff]
    %v427 = vld [vmem:[#allocation5 + $0x9f8] sm:$0xff]
    %v428 = vld [vmem:[#allocation5 + $0xa00] sm:$0xff]
    %v429 = vld [vmem:[#allocation5 + $0xa08] sm:$0xff]
    %v430 = vld [vmem:[#allocation5 + $0xa10] sm:$0xff]
    %v431 = vld [vmem:[#allocation5 + $0xa18] sm:$0xff]
    %v432 = vld [vmem:[#allocation5 + $0xa20] sm:$0xff]
    %v433 = vld [vmem:[#allocation5 + $0xa28] sm:$0xff]
    %v434 = vld [vmem:[#allocation5 + $0xa30] sm:$0xff]
    %v435 = vld [vmem:[#allocation5 + $0xa38] sm:$0xff]
    %v436 = vld [vmem:[#allocation5 + $0xa40] sm:$0xff]
    %v437 = vld [vmem:[#allocation5 + $0xa48] sm:$0xff]
    %v438 = vld [vmem:[#allocation5 + $0xa50] sm:$0xff]
    %v439 = vld [vmem:[#allocation5 + $0xa58] sm:$0xff]
    %v440 = vld [vmem:[#allocation5 + $0xa60] sm:$0xff]
    %v441 = vld [vmem:[#allocation5 + $0xa68] sm:$0xff]
    %v442 = vld [vmem:[#allocation5 + $0xa70] sm:$0xff]
    %v443 = vld [vmem:[#allocation5 + $0xa78] sm:$0xff]
    %v444 = vld [vmem:[#allocation5 + $0xa80] sm:$0xff]
    %v445 = vld [vmem:[#allocation5 + $0xa88] sm:$0xff]
    %v446 = vld [vmem:[#allocation5 + $0xa90] sm:$0xff]
    %v447 = vld [vmem:[#allocation5 + $0xa98] sm:$0xff]
    %v448 = vld [vmem:[#allocation5 + $0xaa0] sm:$0xff]
    %v449 = vld [vmem:[#allocation5 + $0xaa8] sm:$0xff]
    %v450 = vld [vmem:[#allocation5 + $0xab0] sm:$0xff]
    %v451 = vld [vmem:[#allocation5 + $0xab8] sm:$0xff]
    %v452 = vld [vmem:[#allocation5 + $0xac0] sm:$0xff]
    %v453 = vld [vmem:[#allocation5 + $0xac8] sm:$0xff]
    %v454 = vld [vmem:[#allocation5 + $0xad0] sm:$0xff]
    %v455 = vld [vmem:[#allocation5 + $0xad8] sm:$0xff]
    %v456 = vld [vmem:[#allocation5 + $0xae0] sm:$0xff]
    %v457 = vld [vmem:[#allocation5 + $0xae8] sm:$0xff]
    %v458 = vld [vmem:[#allocation5 + $0xaf0] sm:$0xff]
    %v459 = vld [vmem:[#allocation5 + $0xaf8] sm:$0xff]
    %v460 = vld [vmem:[#allocation5 + $0xb00] sm:$0xff]
    %v461 = vld [vmem:[#allocation5 + $0xb08] sm:$0xff]
    %v462 = vld [vmem:[#allocation5 + $0xb10] sm:$0xff]
    %v463 = vld [vmem:[#allocation5 + $0xb18] sm:$0xff]
    %v464 = vld [vmem:[#allocation5 + $0xb20] sm:$0xff]
    %v465 = vld [vmem:[#allocation5 + $0xb28] sm:$0xff]
    %v466 = vld [vmem:[#allocation5 + $0xb30] sm:$0xff]
    %v467 = vld [vmem:[#allocation5 + $0xb38] sm:$0xff]
    %v468 = vld [vmem:[#allocation5 + $0xb40] sm:$0xff]
    %v469 = vld [vmem:[#allocation5 + $0xb48] sm:$0xff]
    %v470 = vld [vmem:[#allocation5 + $0xb50] sm:$0xff]
    %v471 = vld [vmem:[#allocation5 + $0xb58] sm:$0xff]
    %v472 = vld [vmem:[#allocation5 + $0xb60] sm:$0xff]
    %v473 = vld [vmem:[#allocation5 + $0xb68] sm:$0xff]
    %v474 = vld [vmem:[#allocation5 + $0xb70] sm:$0xff]
    %v475 = vld [vmem:[#allocation5 + $0xb78] sm:$0xff]
    %v476 = vld [vmem:[#allocation5 + $0xb80] sm:$0xff]
    %v477 = vld [vmem:[#allocation5 + $0xb88] sm:$0xff]
    %v478 = vld [vmem:[#allocation5 + $0xb90] sm:$0xff]
    %v479 = vld [vmem:[#allocation5 + $0xb98] sm:$0xff]
    %v480 = vld [vmem:[#allocation5 + $0xba0] sm:$0xff]
    %v481 = vld [vmem:[#allocation5 + $0xba8] sm:$0xff]
    %v482 = vld [vmem:[#allocation5 + $0xbb0] sm:$0xff]
    %v483 = vld [vmem:[#allocation5 + $0xbb8] sm:$0xff]
    %v484 = vld [vmem:[#allocation5 + $0xbc0] sm:$0xff]
    %v485 = vld [vmem:[#allocation5 + $0xbc8] sm:$0xff]
    %v486 = vld [vmem:[#allocation5 + $0xbd0] sm:$0xff]
    %v487 = vld [vmem:[#allocation5 + $0xbd8] sm:$0xff]
    %v488 = vld [vmem:[#allocation5 + $0xbe0] sm:$0xff]
    %v489 = vld [vmem:[#allocation5 + $0xbe8] sm:$0xff]
    %v490 = vld [vmem:[#allocation5 + $0xbf0] sm:$0xff]
    %v491 = vld [vmem:[#allocation5 + $0xbf8] sm:$0xff]
    %v492 = vld [vmem:[#allocation5 + $0xc00] sm:$0xff]
    %v493 = vld [vmem:[#allocation5 + $0xc08] sm:$0xff]
    %v494 = vld [vmem:[#allocation5 + $0xc10] sm:$0xff]
    %v495 = vld [vmem:[#allocation5 + $0xc18] sm:$0xff]
    %v496 = vld [vmem:[#allocation5 + $0xc20] sm:$0xff]
    %v497 = vld [vmem:[#allocation5 + $0xc28] sm:$0xff]
    %v498 = vld [vmem:[#allocation5 + $0xc30] sm:$0xff]
    %v499 = vld [vmem:[#allocation5 + $0xc38] sm:$0xff]
    %v500 = vld [vmem:[#allocation5 + $0xc40] sm:$0xff]
    %v501 = vld [vmem:[#allocation5 + $0xc48] sm:$0xff]
    %v502 = vld [vmem:[#allocation5 + $0xc50] sm:$0xff]
    %v503 = vld [vmem:[#allocation5 + $0xc58] sm:$0xff]
    %v504 = vld [vmem:[#allocation5 + $0xc60] sm:$0xff]
    %v505 = vld [vmem:[#allocation5 + $0xc68] sm:$0xff]
    %v506 = vld [vmem:[#allocation5 + $0xc70] sm:$0xff]
    %v507 = vld [vmem:[#allocation5 + $0xc78] sm:$0xff]
    %v508 = vld [vmem:[#allocation5 + $0xc80] sm:$0xff]
    %v509 = vld [vmem:[#allocation5 + $0xc88] sm:$0xff]
    %v510 = vld [vmem:[#allocation5 + $0xc90] sm:$0xff]
    %v511 = vld [vmem:[#allocation5 + $0xc98] sm:$0xff]
    %v512 = vld [vmem:[#allocation5 + $0xca0] sm:$0xff]
    %v513 = vld [vmem:[#allocation5 + $0xca8] sm:$0xff]
    %v514 = vld [vmem:[#allocation5 + $0xcb0] sm:$0xff]
    %v515 = vld [vmem:[#allocation5 + $0xcb8] sm:$0xff]
    %v516 = vld [vmem:[#allocation5 + $0xcc0] sm:$0xff]
    %v517 = vld [vmem:[#allocation5 + $0xcc8] sm:$0xff]
    %v518 = vld [vmem:[#allocation5 + $0xcd0] sm:$0xff]
    %v519 = vld [vmem:[#allocation5 + $0xcd8] sm:$0xff]
    %v520 = vld [vmem:[#allocation5 + $0xce0] sm:$0xff]
    %v521 = vld [vmem:[#allocation5 + $0xce8] sm:$0xff]
    %v522 = vld [vmem:[#allocation5 + $0xcf0] sm:$0xff]
    %v523 = vld [vmem:[#allocation5 + $0xcf8] sm:$0xff]
    %v524 = vld [vmem:[#allocation5 + $0xd00] sm:$0xff]
    %v525 = vld [vmem:[#allocation5 + $0xd08] sm:$0xff]
    %v526 = vld [vmem:[#allocation5 + $0xd10] sm:$0xff]
    %v527 = vld [vmem:[#allocation5 + $0xd18] sm:$0xff]
    %v528 = vld [vmem:[#allocation2] sm:$0xff]
    %v529 = vld [vmem:[#allocation2 + $0x8] sm:$0xff]
    %v530 = vld [vmem:[#allocation2 + $0x10] sm:$0xff]
    %v531 = vld [vmem:[#allocation2 + $0x18] sm:$0xff]
    %v532 = vld [vmem:[#allocation2 + $0x20] sm:$0xff]
    %v533 = vld [vmem:[#allocation2 + $0x28] sm:$0xff]
    %v534 = vld [vmem:[#allocation2 + $0x30] sm:$0xff]
    %v535 = vld [vmem:[#allocation2 + $0x38] sm:$0xff]
    %v536 = vld [vmem:[#allocation2 + $0x40] sm:$0xff]
    %v537 = vld [vmem:[#allocation2 + $0x48] sm:$0xff]
    %v538 = vld [vmem:[#allocation2 + $0x50] sm:$0xff]
    %v539 = vld [vmem:[#allocation2 + $0x58] sm:$0xff]
    %v540 = vld [vmem:[#allocation2 + $0x60] sm:$0xff]
    %v541 = vld [vmem:[#allocation2 + $0x68] sm:$0xff]
    %v542 = vld [vmem:[#allocation2 + $0x70] sm:$0xff]
    %v543 = vld [vmem:[#allocation2 + $0x78] sm:$0xff]
    %v544 = vld [vmem:[#allocation2 + $0x80] sm:$0xff]
    %v545 = vld [vmem:[#allocation2 + $0x88] sm:$0xff]
    %v546 = vld [vmem:[#allocation2 + $0x90] sm:$0xff]
    %v547 = vld [vmem:[#allocation2 + $0x98] sm:$0xff]
    %v548 = vld [vmem:[#allocation2 + $0xa0] sm:$0xff]
    %v549 = vld [vmem:[#allocation2 + $0xa8] sm:$0xff]
    %v550 = vld [vmem:[#allocation2 + $0xb0] sm:$0xff]
    %v551 = vld [vmem:[#allocation2 + $0xb8] sm:$0xff]
    %v552 = vld [vmem:[#allocation2 + $0xc0] sm:$0xff]
    %v553 = vld [vmem:[#allocation2 + $0xc8] sm:$0xff]
    %v554 = vld [vmem:[#allocation2 + $0xd0] sm:$0xff]
    %v555 = vld [vmem:[#allocation2 + $0xd8] sm:$0xff]
    %v556 = vld [vmem:[#allocation2 + $0xe0] sm:$0xff]
    %v557 = vld [vmem:[#allocation2 + $0xe8] sm:$0xff]
    %v558 = vld [vmem:[#allocation2 + $0xf0] sm:$0xff]
    %v559 = vld [vmem:[#allocation2 + $0xf8] sm:$0xff]
    %v560 = vld [vmem:[#allocation2 + $0x100] sm:$0xff]
    %v561 = vld [vmem:[#allocation2 + $0x108] sm:$0xff]
    %v562 = vld [vmem:[#allocation2 + $0x110] sm:$0xff]
    %v563 = vld [vmem:[#allocation2 + $0x118] sm:$0xff]
    %v564 = vld [vmem:[#allocation2 + $0x120] sm:$0xff]
    %v565 = vld [vmem:[#allocation2 + $0x128] sm:$0xff]
    %v566 = vld [vmem:[#allocation2 + $0x130] sm:$0xff]
    %v567 = vld [vmem:[#allocation2 + $0x138] sm:$0xff]
    %v568 = vld [vmem:[#allocation2 + $0x140] sm:$0xff]
    %v569 = vld [vmem:[#allocation2 + $0x148] sm:$0xff]
    %v570 = vld [vmem:[#allocation2 + $0x150] sm:$0xff]
    %v571 = vld [vmem:[#allocation2 + $0x158] sm:$0xff]
    %v572 = vld [vmem:[#allocation2 + $0x160] sm:$0xff]
    %v573 = vld [vmem:[#allocation2 + $0x168] sm:$0xff]
    %v574 = vld [vmem:[#allocation2 + $0x170] sm:$0xff]
    %v575 = vld [vmem:[#allocation2 + $0x178] sm:$0xff]
    %v576 = vld [vmem:[#allocation2 + $0x180] sm:$0xff]
    %v577 = vld [vmem:[#allocation2 + $0x188] sm:$0xff]
    %v578 = vld [vmem:[#allocation2 + $0x190] sm:$0xff]
    %v579 = vld [vmem:[#allocation2 + $0x198] sm:$0xff]
    %v580 = vld [vmem:[#allocation2 + $0x1a0] sm:$0xff]
    %v581 = vld [vmem:[#allocation2 + $0x1a8] sm:$0xff]
    %v582 = vld [vmem:[#allocation2 + $0x1b0] sm:$0xff]
    %v583 = vld [vmem:[#allocation2 + $0x1b8] sm:$0xff]
    %v584 = vld [vmem:[#allocation2 + $0x1c0] sm:$0xff]
    %v585 = vld [vmem:[#allocation2 + $0x1c8] sm:$0xff]
    %v586 = vld [vmem:[#allocation2 + $0x1d0] sm:$0xff]
    %v587 = vld [vmem:[#allocation2 + $0x1d8] sm:$0xff]
    %v588 = vld [vmem:[#allocation2 + $0x1e0] sm:$0xff]
    %v589 = vld [vmem:[#allocation2 + $0x1e8] sm:$0xff]
    %v590 = vld [vmem:[#allocation2 + $0x1f0] sm:$0xff]
    %v591 = vld [vmem:[#allocation2 + $0x1f8] sm:$0xff]
    %v592 = vld [vmem:[#allocation2 + $0x200] sm:$0xff]
    %v593 = vld [vmem:[#allocation2 + $0x208] sm:$0xff]
    %v594 = vld [vmem:[#allocation2 + $0x210] sm:$0xff]
    %v595 = vld [vmem:[#allocation2 + $0x218] sm:$0xff]
    %v596 = vld [vmem:[#allocation2 + $0x220] sm:$0xff]
    %v597 = vld [vmem:[#allocation2 + $0x228] sm:$0xff]
    %v598 = vld [vmem:[#allocation2 + $0x230] sm:$0xff]
    %v599 = vld [vmem:[#allocation2 + $0x238] sm:$0xff]
    %v600 = vld [vmem:[#allocation2 + $0x240] sm:$0xff]
    %v601 = vld [vmem:[#allocation2 + $0x248] sm:$0xff]
    %v602 = vld [vmem:[#allocation2 + $0x250] sm:$0xff]
    %v603 = vld [vmem:[#allocation2 + $0x258] sm:$0xff]
    %v604 = vld [vmem:[#allocation2 + $0x260] sm:$0xff]
    %v605 = vld [vmem:[#allocation2 + $0x268] sm:$0xff]
    %v606 = vld [vmem:[#allocation2 + $0x270] sm:$0xff]
    %v607 = vld [vmem:[#allocation2 + $0x278] sm:$0xff]
    %v608 = vld [vmem:[#allocation2 + $0x280] sm:$0xff]
    %v609 = vld [vmem:[#allocation2 + $0x288] sm:$0xff]
    %v610 = vld [vmem:[#allocation2 + $0x290] sm:$0xff]
    %v611 = vld [vmem:[#allocation2 + $0x298] sm:$0xff]
    %v612 = vld [vmem:[#allocation2 + $0x2a0] sm:$0xff]
    %v613 = vld [vmem:[#allocation2 + $0x2a8] sm:$0xff]
    %v614 = vld [vmem:[#allocation2 + $0x2b0] sm:$0xff]
    %v615 = vld [vmem:[#allocation2 + $0x2b8] sm:$0xff]
    %v616 = vld [vmem:[#allocation2 + $0x2c0] sm:$0xff]
    %v617 = vld [vmem:[#allocation2 + $0x2c8] sm:$0xff]
    %v618 = vld [vmem:[#allocation2 + $0x2d0] sm:$0xff]
    %v619 = vld [vmem:[#allocation2 + $0x2d8] sm:$0xff]
    %v620 = vld [vmem:[#allocation2 + $0x2e0] sm:$0xff]
    %v621 = vld [vmem:[#allocation2 + $0x2e8] sm:$0xff]
    %v622 = vld [vmem:[#allocation2 + $0x2f0] sm:$0xff]
    %v623 = vld [vmem:[#allocation2 + $0x2f8] sm:$0xff]
    %v624 = vld [vmem:[#allocation2 + $0x300] sm:$0xff]
    %v625 = vld [vmem:[#allocation2 + $0x308] sm:$0xff]
    %v626 = vld [vmem:[#allocation2 + $0x310] sm:$0xff]
    %v627 = vld [vmem:[#allocation2 + $0x318] sm:$0xff]
    %v628 = vld [vmem:[#allocation2 + $0x320] sm:$0xff]
    %v629 = vld [vmem:[#allocation2 + $0x328] sm:$0xff]
    %v630 = vld [vmem:[#allocation2 + $0x330] sm:$0xff]
    %v631 = vld [vmem:[#allocation2 + $0x338] sm:$0xff]
    %v632 = vld [vmem:[#allocation2 + $0x340] sm:$0xff]
    %v633 = vld [vmem:[#allocation2 + $0x348] sm:$0xff]
    %v634 = vld [vmem:[#allocation2 + $0x350] sm:$0xff]
    %v635 = vld [vmem:[#allocation2 + $0x358] sm:$0xff]
    %v636 = vld [vmem:[#allocation2 + $0x360] sm:$0xff]
    %v637 = vld [vmem:[#allocation2 + $0x368] sm:$0xff]
    %v638 = vld [vmem:[#allocation2 + $0x370] sm:$0xff]
    %v639 = vld [vmem:[#allocation2 + $0x378] sm:$0xff]
    %v640 = vld [vmem:[#allocation2 + $0x380] sm:$0xff]
    %v641 = vld [vmem:[#allocation2 + $0x388] sm:$0xff]
    %v642 = vld [vmem:[#allocation2 + $0x390] sm:$0xff]
    %v643 = vld [vmem:[#allocation2 + $0x398] sm:$0xff]
    %v644 = vld [vmem:[#allocation2 + $0x3a0] sm:$0xff]
    %v645 = vld [vmem:[#allocation2 + $0x3a8] sm:$0xff]
    %v646 = vld [vmem:[#allocation2 + $0x3b0] sm:$0xff]
    %v647 = vld [vmem:[#allocation2 + $0x3b8] sm:$0xff]
    %v648 = vld [vmem:[#allocation2 + $0x3c0] sm:$0xff]
    %v649 = vld [vmem:[#allocation2 + $0x3c8] sm:$0xff]
    %v650 = vld [vmem:[#allocation2 + $0x3d0] sm:$0xff]
    %v651 = vld [vmem:[#allocation2 + $0x3d8] sm:$0xff]
    %v652 = vld [vmem:[#allocation2 + $0x3e0] sm:$0xff]
    %v653 = vld [vmem:[#allocation2 + $0x3e8] sm:$0xff]
    %v654 = vld [vmem:[#allocation2 + $0x3f0] sm:$0xff]
    %v655 = vld [vmem:[#allocation2 + $0x3f8] sm:$0xff]
    %v656 = vld [vmem:[#allocation2 + $0x400] sm:$0xff]
    %v657 = vld [vmem:[#allocation2 + $0x408] sm:$0xff]
    %v658 = vld [vmem:[#allocation2 + $0x410] sm:$0xff]
    %v659 = vld [vmem:[#allocation2 + $0x418] sm:$0xff]
    %v660 = vld [vmem:[#allocation2 + $0x420] sm:$0xff]
    %v661 = vld [vmem:[#allocation2 + $0x428] sm:$0xff]
    %v662 = vld [vmem:[#allocation2 + $0x430] sm:$0xff]
    %v663 = vld [vmem:[#allocation2 + $0x438] sm:$0xff]
    %v664 = vld [vmem:[#allocation2 + $0x440] sm:$0xff]
    %v665 = vld [vmem:[#allocation2 + $0x448] sm:$0xff]
    %v666 = vld [vmem:[#allocation2 + $0x450] sm:$0xff]
    %v667 = vld [vmem:[#allocation2 + $0x458] sm:$0xff]
    %v668 = vld [vmem:[#allocation2 + $0x460] sm:$0xff]
    %v669 = vld [vmem:[#allocation2 + $0x468] sm:$0xff]
    %v670 = vld [vmem:[#allocation2 + $0x470] sm:$0xff]
    %v671 = vld [vmem:[#allocation2 + $0x478] sm:$0xff]
    %v672 = vld [vmem:[#allocation2 + $0x480] sm:$0xff]
    %v673 = vld [vmem:[#allocation2 + $0x488] sm:$0xff]
    %v674 = vld [vmem:[#allocation2 + $0x490] sm:$0xff]
    %v675 = vld [vmem:[#allocation2 + $0x498] sm:$0xff]
    %v676 = vld [vmem:[#allocation2 + $0x4a0] sm:$0xff]
    %v677 = vld [vmem:[#allocation2 + $0x4a8] sm:$0xff]
    %v678 = vld [vmem:[#allocation2 + $0x4b0] sm:$0xff]
    %v679 = vld [vmem:[#allocation2 + $0x4b8] sm:$0xff]
    %v680 = vld [vmem:[#allocation2 + $0x4c0] sm:$0xff]
    %v681 = vld [vmem:[#allocation2 + $0x4c8] sm:$0xff]
    %v682 = vld [vmem:[#allocation2 + $0x4d0] sm:$0xff]
    %v683 = vld [vmem:[#allocation2 + $0x4d8] sm:$0xff]
    %v684 = vld [vmem:[#allocation2 + $0x4e0] sm:$0xff]
    %v685 = vld [vmem:[#allocation2 + $0x4e8] sm:$0xff]
    %v686 = vld [vmem:[#allocation2 + $0x4f0] sm:$0xff]
    %v687 = vld [vmem:[#allocation2 + $0x4f8] sm:$0xff]
    %v688 = vld [vmem:[#allocation2 + $0x500] sm:$0xff]
    %v689 = vld [vmem:[#allocation2 + $0x508] sm:$0xff]
    %v690 = vld [vmem:[#allocation2 + $0x510] sm:$0xff]
    %v691 = vld [vmem:[#allocation2 + $0x518] sm:$0xff]
    %v692 = vld [vmem:[#allocation2 + $0x520] sm:$0xff]
    %v693 = vld [vmem:[#allocation2 + $0x528] sm:$0xff]
    %v694 = vld [vmem:[#allocation2 + $0x530] sm:$0xff]
    %v695 = vld [vmem:[#allocation2 + $0x538] sm:$0xff]
    %v696 = vld [vmem:[#allocation2 + $0x540] sm:$0xff]
    %v697 = vld [vmem:[#allocation2 + $0x548] sm:$0xff]
    %v698 = vld [vmem:[#allocation2 + $0x550] sm:$0xff]
    %v699 = vld [vmem:[#allocation2 + $0x558] sm:$0xff]
    %v700 = vld [vmem:[#allocation2 + $0x560] sm:$0xff]
    %v701 = vld [vmem:[#allocation2 + $0x568] sm:$0xff]
    %v702 = vld [vmem:[#allocation2 + $0x570] sm:$0xff]
    %v703 = vld [vmem:[#allocation2 + $0x578] sm:$0xff]
    %v704 = vld [vmem:[#allocation2 + $0x580] sm:$0xff]
    %v705 = vld [vmem:[#allocation2 + $0x588] sm:$0xff]
    %v706 = vld [vmem:[#allocation2 + $0x590] sm:$0xff]
    %v707 = vld [vmem:[#allocation2 + $0x598] sm:$0xff]
    %v708 = vld [vmem:[#allocation2 + $0x5a0] sm:$0xff]
    %v709 = vld [vmem:[#allocation2 + $0x5a8] sm:$0xff]
    %v710 = vld [vmem:[#allocation2 + $0x5b0] sm:$0xff]
    %v711 = vld [vmem:[#allocation2 + $0x5b8] sm:$0xff]
    %v712 = vld [vmem:[#allocation2 + $0x5c0] sm:$0xff]
    %v713 = vld [vmem:[#allocation2 + $0x5c8] sm:$0xff]
    %v714 = vld [vmem:[#allocation2 + $0x5d0] sm:$0xff]
    %v715 = vld [vmem:[#allocation2 + $0x5d8] sm:$0xff]
    %v716 = vld [vmem:[#allocation2 + $0x5e0] sm:$0xff]
    %v717 = vld [vmem:[#allocation2 + $0x5e8] sm:$0xff]
    %v718 = vld [vmem:[#allocation2 + $0x5f0] sm:$0xff]
    %v719 = vld [vmem:[#allocation2 + $0x5f8] sm:$0xff]
    %v720 = vld [vmem:[#allocation2 + $0x600] sm:$0xff]
    %v721 = vld [vmem:[#allocation2 + $0x608] sm:$0xff]
    %v722 = vld [vmem:[#allocation2 + $0x610] sm:$0xff]
    %v723 = vld [vmem:[#allocation2 + $0x618] sm:$0xff]
    %v724 = vld [vmem:[#allocation2 + $0x620] sm:$0xff]
    %v725 = vld [vmem:[#allocation2 + $0x628] sm:$0xff]
    %v726 = vld [vmem:[#allocation2 + $0x630] sm:$0xff]
    %v727 = vld [vmem:[#allocation2 + $0x638] sm:$0xff]
    %v728 = vld [vmem:[#allocation2 + $0x640] sm:$0xff]
    %v729 = vld [vmem:[#allocation2 + $0x648] sm:$0xff]
    %v730 = vld [vmem:[#allocation2 + $0x650] sm:$0xff]
    %v731 = vld [vmem:[#allocation2 + $0x658] sm:$0xff]
    %v732 = vld [vmem:[#allocation2 + $0x660] sm:$0xff]
    %v733 = vld [vmem:[#allocation2 + $0x668] sm:$0xff]
    %v734 = vld [vmem:[#allocation2 + $0x670] sm:$0xff]
    %v735 = vld [vmem:[#allocation2 + $0x678] sm:$0xff]
    %v736 = vld [vmem:[#allocation2 + $0x680] sm:$0xff]
    %v737 = vld [vmem:[#allocation2 + $0x688] sm:$0xff]
    %v738 = vld [vmem:[#allocation2 + $0x690] sm:$0xff]
    %v739 = vld [vmem:[#allocation2 + $0x698] sm:$0xff]
    %v740 = vld [vmem:[#allocation2 + $0x6a0] sm:$0xff]
    %v741 = vld [vmem:[#allocation2 + $0x6a8] sm:$0xff]
    %v742 = vld [vmem:[#allocation2 + $0x6b0] sm:$0xff]
    %v743 = vld [vmem:[#allocation2 + $0x6b8] sm:$0xff]
    %v744 = vld [vmem:[#allocation2 + $0x6c0] sm:$0xff]
    %v745 = vld [vmem:[#allocation2 + $0x6c8] sm:$0xff]
    %v746 = vld [vmem:[#allocation2 + $0x6d0] sm:$0xff]
    %v747 = vld [vmem:[#allocation2 + $0x6d8] sm:$0xff]
    %v748 = vld [vmem:[#allocation2 + $0x6e0] sm:$0xff]
    %v749 = vld [vmem:[#allocation2 + $0x6e8] sm:$0xff]
    %v750 = vld [vmem:[#allocation2 + $0x6f0] sm:$0xff]
    %v751 = vld [vmem:[#allocation2 + $0x6f8] sm:$0xff]
    %v752 = vld [vmem:[#allocation2 + $0x700] sm:$0xff]
    %v753 = vld [vmem:[#allocation2 + $0x708] sm:$0xff]
    %v754 = vld [vmem:[#allocation2 + $0x710] sm:$0xff]
    %v755 = vld [vmem:[#allocation2 + $0x718] sm:$0xff]
    %v756 = vld [vmem:[#allocation2 + $0x720] sm:$0xff]
    %v757 = vld [vmem:[#allocation2 + $0x728] sm:$0xff]
    %v758 = vld [vmem:[#allocation2 + $0x730] sm:$0xff]
    %v759 = vld [vmem:[#allocation2 + $0x738] sm:$0xff]
    %v760 = vld [vmem:[#allocation2 + $0x740] sm:$0xff]
    %v761 = vld [vmem:[#allocation2 + $0x748] sm:$0xff]
    %v762 = vld [vmem:[#allocation2 + $0x750] sm:$0xff]
    %v763 = vld [vmem:[#allocation2 + $0x758] sm:$0xff]
    %v764 = vld [vmem:[#allocation2 + $0x760] sm:$0xff]
    %v765 = vld [vmem:[#allocation2 + $0x768] sm:$0xff]
    %v766 = vld [vmem:[#allocation2 + $0x770] sm:$0xff]
    %v767 = vld [vmem:[#allocation2 + $0x778] sm:$0xff]
    %v768 = vld [vmem:[#allocation2 + $0x780] sm:$0xff]
    %v769 = vld [vmem:[#allocation2 + $0x788] sm:$0xff]
    %v770 = vld [vmem:[#allocation2 + $0x790] sm:$0xff]
    %v771 = vld [vmem:[#allocation2 + $0x798] sm:$0xff]
    %v772 = vld [vmem:[#allocation2 + $0x7a0] sm:$0xff]
    %v773 = vld [vmem:[#allocation2 + $0x7a8] sm:$0xff]
    %v774 = vld [vmem:[#allocation2 + $0x7b0] sm:$0xff]
    %v775 = vld [vmem:[#allocation2 + $0x7b8] sm:$0xff]
    %v776 = vld [vmem:[#allocation2 + $0x7c0] sm:$0xff]
    %v777 = vld [vmem:[#allocation2 + $0x7c8] sm:$0xff]
    %v778 = vld [vmem:[#allocation2 + $0x7d0] sm:$0xff]
    %v779 = vld [vmem:[#allocation2 + $0x7d8] sm:$0xff]
    %v780 = vld [vmem:[#allocation2 + $0x7e0] sm:$0xff]
    %v781 = vld [vmem:[#allocation2 + $0x7e8] sm:$0xff]
    %v782 = vld [vmem:[#allocation2 + $0x7f0] sm:$0xff]
    %v783 = vld [vmem:[#allocation2 + $0x7f8] sm:$0xff]
    %v784 = vld [vmem:[#allocation2 + $0x800] sm:$0xff]
    %v785 = vld [vmem:[#allocation2 + $0x808] sm:$0xff]
    %v786 = vld [vmem:[#allocation2 + $0x810] sm:$0xff]
    %v787 = vld [vmem:[#allocation2 + $0x818] sm:$0xff]
    %v788 = vld [vmem:[#allocation2 + $0x820] sm:$0xff]
    %v789 = vld [vmem:[#allocation2 + $0x828] sm:$0xff]
    %v790 = vld [vmem:[#allocation2 + $0x830] sm:$0xff]
    %v791 = vld [vmem:[#allocation2 + $0x838] sm:$0xff]
    %v792 = vld [vmem:[#allocation2 + $0x840] sm:$0xff]
    %v793 = vld [vmem:[#allocation2 + $0x848] sm:$0xff]
    %v794 = vld [vmem:[#allocation2 + $0x850] sm:$0xff]
    %v795 = vld [vmem:[#allocation2 + $0x858] sm:$0xff]
    %v796 = vld [vmem:[#allocation2 + $0x860] sm:$0xff]
    %v797 = vld [vmem:[#allocation2 + $0x868] sm:$0xff]
    %v798 = vld [vmem:[#allocation2 + $0x870] sm:$0xff]
    %v799 = vld [vmem:[#allocation2 + $0x878] sm:$0xff]
    %v800 = vld [vmem:[#allocation2 + $0x880] sm:$0xff]
    %v801 = vld [vmem:[#allocation2 + $0x888] sm:$0xff]
    %v802 = vld [vmem:[#allocation2 + $0x890] sm:$0xff]
    %v803 = vld [vmem:[#allocation2 + $0x898] sm:$0xff]
    %v804 = vld [vmem:[#allocation2 + $0x8a0] sm:$0xff]
    %v805 = vld [vmem:[#allocation2 + $0x8a8] sm:$0xff]
    %v806 = vld [vmem:[#allocation2 + $0x8b0] sm:$0xff]
    %v807 = vld [vmem:[#allocation2 + $0x8b8] sm:$0xff]
    %v808 = vld [vmem:[#allocation2 + $0x8c0] sm:$0xff]
    %v809 = vld [vmem:[#allocation2 + $0x8c8] sm:$0xff]
    %v810 = vld [vmem:[#allocation2 + $0x8d0] sm:$0xff]
    %v811 = vld [vmem:[#allocation2 + $0x8d8] sm:$0xff]
    %v812 = vld [vmem:[#allocation2 + $0x8e0] sm:$0xff]
    %v813 = vld [vmem:[#allocation2 + $0x8e8] sm:$0xff]
    %v814 = vld [vmem:[#allocation2 + $0x8f0] sm:$0xff]
    %v815 = vld [vmem:[#allocation2 + $0x8f8] sm:$0xff]
    %v816 = vld [vmem:[#allocation2 + $0x900] sm:$0xff]
    %v817 = vld [vmem:[#allocation2 + $0x908] sm:$0xff]
    %v818 = vld [vmem:[#allocation2 + $0x910] sm:$0xff]
    %v819 = vld [vmem:[#allocation2 + $0x918] sm:$0xff]
    %v820 = vld [vmem:[#allocation2 + $0x920] sm:$0xff]
    %v821 = vld [vmem:[#allocation2 + $0x928] sm:$0xff]
    %v822 = vld [vmem:[#allocation2 + $0x930] sm:$0xff]
    %v823 = vld [vmem:[#allocation2 + $0x938] sm:$0xff]
    %v824 = vld [vmem:[#allocation2 + $0x940] sm:$0xff]
    %v825 = vld [vmem:[#allocation2 + $0x948] sm:$0xff]
    %v826 = vld [vmem:[#allocation2 + $0x950] sm:$0xff]
    %v827 = vld [vmem:[#allocation2 + $0x958] sm:$0xff]
    %v828 = vld [vmem:[#allocation2 + $0x960] sm:$0xff]
    %v829 = vld [vmem:[#allocation2 + $0x968] sm:$0xff]
    %v830 = vld [vmem:[#allocation2 + $0x970] sm:$0xff]
    %v831 = vld [vmem:[#allocation2 + $0x978] sm:$0xff]
    %v832 = vld [vmem:[#allocation2 + $0x980] sm:$0xff]
    %v833 = vld [vmem:[#allocation2 + $0x988] sm:$0xff]
    %v834 = vld [vmem:[#allocation2 + $0x990] sm:$0xff]
    %v835 = vld [vmem:[#allocation2 + $0x998] sm:$0xff]
    %v836 = vld [vmem:[#allocation2 + $0x9a0] sm:$0xff]
    %v837 = vld [vmem:[#allocation2 + $0x9a8] sm:$0xff]
    %v838 = vld [vmem:[#allocation2 + $0x9b0] sm:$0xff]
    %v839 = vld [vmem:[#allocation2 + $0x9b8] sm:$0xff]
    %v840 = vld [vmem:[#allocation2 + $0x9c0] sm:$0xff]
    %v841 = vld [vmem:[#allocation2 + $0x9c8] sm:$0xff]
    %v842 = vld [vmem:[#allocation2 + $0x9d0] sm:$0xff]
    %v843 = vld [vmem:[#allocation2 + $0x9d8] sm:$0xff]
    %v844 = vld [vmem:[#allocation2 + $0x9e0] sm:$0xff]
    %v845 = vld [vmem:[#allocation2 + $0x9e8] sm:$0xff]
    %v846 = vld [vmem:[#allocation2 + $0x9f0] sm:$0xff]
    %v847 = vld [vmem:[#allocation2 + $0x9f8] sm:$0xff]
    %v848 = vld [vmem:[#allocation2 + $0xa00] sm:$0xff]
    %v849 = vld [vmem:[#allocation2 + $0xa08] sm:$0xff]
    %v850 = vld [vmem:[#allocation2 + $0xa10] sm:$0xff]
    %v851 = vld [vmem:[#allocation2 + $0xa18] sm:$0xff]
    %v852 = vld [vmem:[#allocation2 + $0xa20] sm:$0xff]
    %v853 = vld [vmem:[#allocation2 + $0xa28] sm:$0xff]
    %v854 = vld [vmem:[#allocation2 + $0xa30] sm:$0xff]
    %v855 = vld [vmem:[#allocation2 + $0xa38] sm:$0xff]
    %v856 = vld [vmem:[#allocation2 + $0xa40] sm:$0xff]
    %v857 = vld [vmem:[#allocation2 + $0xa48] sm:$0xff]
    %v858 = vld [vmem:[#allocation2 + $0xa50] sm:$0xff]
    %v859 = vld [vmem:[#allocation2 + $0xa58] sm:$0xff]
    %v860 = vld [vmem:[#allocation2 + $0xa60] sm:$0xff]
    %v861 = vld [vmem:[#allocation2 + $0xa68] sm:$0xff]
    %v862 = vld [vmem:[#allocation2 + $0xa70] sm:$0xff]
    %v863 = vld [vmem:[#allocation2 + $0xa78] sm:$0xff]
    %v864 = vld [vmem:[#allocation2 + $0xa80] sm:$0xff]
    %v865 = vld [vmem:[#allocation2 + $0xa88] sm:$0xff]
    %v866 = vld [vmem:[#allocation2 + $0xa90] sm:$0xff]
    %v867 = vld [vmem:[#allocation2 + $0xa98] sm:$0xff]
    %v868 = vld [vmem:[#allocation2 + $0xaa0] sm:$0xff]
    %v869 = vld [vmem:[#allocation2 + $0xaa8] sm:$0xff]
    %v870 = vld [vmem:[#allocation2 + $0xab0] sm:$0xff]
    %v871 = vld [vmem:[#allocation2 + $0xab8] sm:$0xff]
    %v872 = vld [vmem:[#allocation2 + $0xac0] sm:$0xff]
    %v873 = vld [vmem:[#allocation2 + $0xac8] sm:$0xff]
    %v874 = vld [vmem:[#allocation2 + $0xad0] sm:$0xff]
    %v875 = vld [vmem:[#allocation2 + $0xad8] sm:$0xff]
    %v876 = vld [vmem:[#allocation2 + $0xae0] sm:$0xff]
    %v877 = vld [vmem:[#allocation2 + $0xae8] sm:$0xff]
    %v878 = vld [vmem:[#allocation2 + $0xaf0] sm:$0xff]
    %v879 = vld [vmem:[#allocation2 + $0xaf8] sm:$0xff]
    %v880 = vld [vmem:[#allocation2 + $0xb00] sm:$0xff]
    %v881 = vld [vmem:[#allocation2 + $0xb08] sm:$0xff]
    %v882 = vld [vmem:[#allocation2 + $0xb10] sm:$0xff]
    %v883 = vld [vmem:[#allocation2 + $0xb18] sm:$0xff]
    %v884 = vld [vmem:[#allocation2 + $0xb20] sm:$0xff]
    %v885 = vld [vmem:[#allocation2 + $0xb28] sm:$0xff]
    %v886 = vld [vmem:[#allocation2 + $0xb30] sm:$0xff]
    %v887 = vld [vmem:[#allocation2 + $0xb38] sm:$0xff]
    %v888 = vld [vmem:[#allocation2 + $0xb40] sm:$0xff]
    %v889 = vld [vmem:[#allocation2 + $0xb48] sm:$0xff]
    %v890 = vld [vmem:[#allocation2 + $0xb50] sm:$0xff]
    %v891 = vld [vmem:[#allocation2 + $0xb58] sm:$0xff]
    %v892 = vld [vmem:[#allocation2 + $0xb60] sm:$0xff]
    %v893 = vld [vmem:[#allocation2 + $0xb68] sm:$0xff]
    %v894 = vld [vmem:[#allocation2 + $0xb70] sm:$0xff]
    %v895 = vld [vmem:[#allocation2 + $0xb78] sm:$0xff]
    %v896 = vld [vmem:[#allocation2 + $0xb80] sm:$0xff]
    %v897 = vld [vmem:[#allocation2 + $0xb88] sm:$0xff]
    %v898 = vld [vmem:[#allocation2 + $0xb90] sm:$0xff]
    %v899 = vld [vmem:[#allocation2 + $0xb98] sm:$0xff]
    %v900 = vld [vmem:[#allocation2 + $0xba0] sm:$0xff]
    %v901 = vld [vmem:[#allocation2 + $0xba8] sm:$0xff]
    %v902 = vld [vmem:[#allocation2 + $0xbb0] sm:$0xff]
    %v903 = vld [vmem:[#allocation2 + $0xbb8] sm:$0xff]
    %v904 = vld [vmem:[#allocation2 + $0xbc0] sm:$0xff]
    %v905 = vld [vmem:[#allocation2 + $0xbc8] sm:$0xff]
    %v906 = vld [vmem:[#allocation2 + $0xbd0] sm:$0xff]
    %v907 = vld [vmem:[#allocation2 + $0xbd8] sm:$0xff]
    %v908 = vld [vmem:[#allocation2 + $0xbe0] sm:$0xff]
    %v909 = vld [vmem:[#allocation2 + $0xbe8] sm:$0xff]
    %v910 = vld [vmem:[#allocation2 + $0xbf0] sm:$0xff]
    %v911 = vld [vmem:[#allocation2 + $0xbf8] sm:$0xff]
    %v912 = vld [vmem:[#allocation2 + $0xc00] sm:$0xff]
    %v913 = vld [vmem:[#allocation2 + $0xc08] sm:$0xff]
    %v914 = vld [vmem:[#allocation2 + $0xc10] sm:$0xff]
    %v915 = vld [vmem:[#allocation2 + $0xc18] sm:$0xff]
    %v916 = vld [vmem:[#allocation2 + $0xc20] sm:$0xff]
    %v917 = vld [vmem:[#allocation2 + $0xc28] sm:$0xff]
    %v918 = vld [vmem:[#allocation2 + $0xc30] sm:$0xff]
    %v919 = vld [vmem:[#allocation2 + $0xc38] sm:$0xff]
    %v920 = vld [vmem:[#allocation2 + $0xc40] sm:$0xff]
    %v921 = vld [vmem:[#allocation2 + $0xc48] sm:$0xff]
    %v922 = vld [vmem:[#allocation2 + $0xc50] sm:$0xff]
    %v923 = vld [vmem:[#allocation2 + $0xc58] sm:$0xff]
    %v924 = vld [vmem:[#allocation2 + $0xc60] sm:$0xff]
    %v925 = vld [vmem:[#allocation2 + $0xc68] sm:$0xff]
    %v926 = vld [vmem:[#allocation2 + $0xc70] sm:$0xff]
    %v927 = vld [vmem:[#allocation2 + $0xc78] sm:$0xff]
    %v928 = vld [vmem:[#allocation2 + $0xc80] sm:$0xff]
    %v929 = vld [vmem:[#allocation2 + $0xc88] sm:$0xff]
    %v930 = vld [vmem:[#allocation2 + $0xc90] sm:$0xff]
    %v931 = vld [vmem:[#allocation2 + $0xc98] sm:$0xff]
    %v932 = vld [vmem:[#allocation2 + $0xca0] sm:$0xff]
    %v933 = vld [vmem:[#allocation2 + $0xca8] sm:$0xff]
    %v934 = vld [vmem:[#allocation2 + $0xcb0] sm:$0xff]
    %v935 = vld [vmem:[#allocation2 + $0xcb8] sm:$0xff]
    %v936 = vld [vmem:[#allocation2 + $0xcc0] sm:$0xff]
    %v937 = vld [vmem:[#allocation2 + $0xcc8] sm:$0xff]
    %v938 = vld [vmem:[#allocation2 + $0xcd0] sm:$0xff]
    %v939 = vld [vmem:[#allocation2 + $0xcd8] sm:$0xff]
    %v940 = vld [vmem:[#allocation2 + $0xce0] sm:$0xff]
    %v941 = vld [vmem:[#allocation2 + $0xce8] sm:$0xff]
    %v942 = vld [vmem:[#allocation2 + $0xcf0] sm:$0xff]
    %v943 = vld [vmem:[#allocation2 + $0xcf8] sm:$0xff]
    %v944 = vld [vmem:[#allocation2 + $0xd00] sm:$0xff]
    %v945 = vld [vmem:[#allocation2 + $0xd08] sm:$0xff]
    %v946 = vld [vmem:[#allocation2 + $0xd10] sm:$0xff]
    %v947 = vld [vmem:[#allocation2 + $0xd18] sm:$0xff]
    %v948 = vld [vmem:[#allocation2 + $0xd20] sm:$0xff]
    %v949 = vld [vmem:[#allocation2 + $0xd28] sm:$0xff]
    %v950 = vld [vmem:[#allocation2 + $0xd30] sm:$0xff]
    %v951 = vld [vmem:[#allocation2 + $0xd38] sm:$0xff]
    %v952 = vld [vmem:[#allocation2 + $0xd40] sm:$0xff]
    %v953 = vld [vmem:[#allocation2 + $0xd48] sm:$0xff]
    %v954 = vld [vmem:[#allocation2 + $0xd50] sm:$0xff]
    %v955 = vld [vmem:[#allocation2 + $0xd58] sm:$0xff]
    %v956 = vld [vmem:[#allocation2 + $0xd60] sm:$0xff]
    %v957 = vld [vmem:[#allocation2 + $0xd68] sm:$0xff]
    %v958 = vld [vmem:[#allocation2 + $0xd70] sm:$0xff]
    %v959 = vld [vmem:[#allocation2 + $0xd78] sm:$0xff]
    %v960 = vld [vmem:[#allocation2 + $0xd80] sm:$0xff]
    %v961 = vld [vmem:[#allocation2 + $0xd88] sm:$0xff]
    %v962 = vld [vmem:[#allocation2 + $0xd90] sm:$0xff]
    %v963 = vld [vmem:[#allocation2 + $0xd98] sm:$0xff]
    %v964 = vld [vmem:[#allocation2 + $0xda0] sm:$0xff]
    %v965 = vld [vmem:[#allocation2 + $0xda8] sm:$0xff]
    %v966 = vld [vmem:[#allocation2 + $0xdb0] sm:$0xff]
    %v967 = vld [vmem:[#allocation2 + $0xdb8] sm:$0xff]
    %v968 = vld [vmem:[#allocation2 + $0xdc0] sm:$0xff]
    %v969 = vld [vmem:[#allocation2 + $0xdc8] sm:$0xff]
    %v970 = vld [vmem:[#allocation2 + $0xdd0] sm:$0xff]
    %v971 = vld [vmem:[#allocation2 + $0xdd8] sm:$0xff]
    %v972 = vld [vmem:[#allocation2 + $0xde0] sm:$0xff]
    %v973 = vld [vmem:[#allocation2 + $0xde8] sm:$0xff]
    %v974 = vld [vmem:[#allocation2 + $0xdf0] sm:$0xff]
    %v975 = vld [vmem:[#allocation2 + $0xdf8] sm:$0xff]
    %v976 = vld [vmem:[#allocation2 + $0xe00] sm:$0xff]
    %v977 = vld [vmem:[#allocation2 + $0xe08] sm:$0xff]
    %v978 = vld [vmem:[#allocation2 + $0xe10] sm:$0xff]
    %v979 = vld [vmem:[#allocation2 + $0xe18] sm:$0xff]
    %v980 = vld [vmem:[#allocation2 + $0xe20] sm:$0xff]
    %v981 = vld [vmem:[#allocation2 + $0xe28] sm:$0xff]
    %v982 = vld [vmem:[#allocation2 + $0xe30] sm:$0xff]
    %v983 = vld [vmem:[#allocation2 + $0xe38] sm:$0xff]
    %v984 = vld [vmem:[#allocation2 + $0xe40] sm:$0xff]
    %v985 = vld [vmem:[#allocation2 + $0xe48] sm:$0xff]
    %v986 = vld [vmem:[#allocation2 + $0xe50] sm:$0xff]
    %v987 = vld [vmem:[#allocation2 + $0xe58] sm:$0xff]
    %v988 = vld [vmem:[#allocation2 + $0xe60] sm:$0xff]
    %v989 = vld [vmem:[#allocation2 + $0xe68] sm:$0xff]
    %v990 = vld [vmem:[#allocation2 + $0xe70] sm:$0xff]
    %v991 = vld [vmem:[#allocation2 + $0xe78] sm:$0xff]
    %v992 = vld [vmem:[#allocation2 + $0xe80] sm:$0xff]
    %v993 = vld [vmem:[#allocation2 + $0xe88] sm:$0xff]
    %v994 = vld [vmem:[#allocation2 + $0xe90] sm:$0xff]
    %v995 = vld [vmem:[#allocation2 + $0xe98] sm:$0xff]
    %v996 = vld [vmem:[#allocation2 + $0xea0] sm:$0xff]
    %v997 = vld [vmem:[#allocation2 + $0xea8] sm:$0xff]
    %v998 = vld [vmem:[#allocation2 + $0xeb0] sm:$0xff]
    %v999 = vld [vmem:[#allocation2 + $0xeb8] sm:$0xff]
    %v1000 = vld [vmem:[#allocation2 + $0xec0] sm:$0xff]
    %v1001 = vld [vmem:[#allocation2 + $0xec8] sm:$0xff]
    %v1002 = vld [vmem:[#allocation2 + $0xed0] sm:$0xff]
    %v1003 = vld [vmem:[#allocation2 + $0xed8] sm:$0xff]
    %v1004 = vld [vmem:[#allocation2 + $0xee0] sm:$0xff]
    %v1005 = vld [vmem:[#allocation2 + $0xee8] sm:$0xff]
    %v1006 = vld [vmem:[#allocation2 + $0xef0] sm:$0xff]
    %v1007 = vld [vmem:[#allocation2 + $0xef8] sm:$0xff]
    %v1008 = vld [vmem:[#allocation2 + $0xf00] sm:$0xff]
    %v1009 = vld [vmem:[#allocation2 + $0xf08] sm:$0xff]
    %v1010 = vld [vmem:[#allocation2 + $0xf10] sm:$0xff]
    %v1011 = vld [vmem:[#allocation2 + $0xf18] sm:$0xff]
    %v1012 = vld [vmem:[#allocation2 + $0xf20] sm:$0xff]
    %v1013 = vld [vmem:[#allocation2 + $0xf28] sm:$0xff]
    %v1014 = vld [vmem:[#allocation2 + $0xf30] sm:$0xff]
    %v1015 = vld [vmem:[#allocation2 + $0xf38] sm:$0xff]
    %v1016 = vld [vmem:[#allocation2 + $0xf40] sm:$0xff]
    %v1017 = vld [vmem:[#allocation2 + $0xf48] sm:$0xff]
    %v1018 = vld [vmem:[#allocation2 + $0xf50] sm:$0xff]
    %v1019 = vld [vmem:[#allocation2 + $0xf58] sm:$0xff]
    %v1020 = vld [vmem:[#allocation2 + $0xf60] sm:$0xff]
    %v1021 = vld [vmem:[#allocation2 + $0xf68] sm:$0xff]
    %v1022 = vld [vmem:[#allocation2 + $0xf70] sm:$0xff]
    %v1023 = vld [vmem:[#allocation2 + $0xf78] sm:$0xff]
    %v1024 = vld [vmem:[#allocation2 + $0xf80] sm:$0xff]
    %v1025 = vld [vmem:[#allocation2 + $0xf88] sm:$0xff]
    %v1026 = vld [vmem:[#allocation2 + $0xf90] sm:$0xff]
    %v1027 = vld [vmem:[#allocation2 + $0xf98] sm:$0xff]
    %v1028 = vld [vmem:[#allocation2 + $0xfa0] sm:$0xff]
    %v1029 = vld [vmem:[#allocation2 + $0xfa8] sm:$0xff]
    %v1030 = vld [vmem:[#allocation2 + $0xfb0] sm:$0xff]
    %v1031 = vld [vmem:[#allocation2 + $0xfb8] sm:$0xff]
    %v1032 = vld [vmem:[#allocation2 + $0xfc0] sm:$0xff]
    %v1033 = vld [vmem:[#allocation2 + $0xfc8] sm:$0xff]
    %v1034 = vld [vmem:[#allocation2 + $0xfd0] sm:$0xff]
    %v1035 = vld [vmem:[#allocation2 + $0xfd8] sm:$0xff]
    %v1036 = vld [vmem:[#allocation2 + $0xfe0] sm:$0xff]
    %v1037 = vld [vmem:[#allocation2 + $0xfe8] sm:$0xff]
    %v1038 = vld [vmem:[#allocation2 + $0xff0] sm:$0xff]
    %v1039 = vld [vmem:[#allocation2 + $0xff8] sm:$0xff]
    %v1040 = vld [vmem:[#allocation2 + $0x1000] sm:$0xff]
    %v1041 = vld [vmem:[#allocation2 + $0x1008] sm:$0xff]
    %v1042 = vld [vmem:[#allocation2 + $0x1010] sm:$0xff]
    %v1043 = vld [vmem:[#allocation2 + $0x1018] sm:$0xff]
    %v1044 = vld [vmem:[#allocation2 + $0x1020] sm:$0xff]
    %v1045 = vld [vmem:[#allocation2 + $0x1028] sm:$0xff]
    %v1046 = vld [vmem:[#allocation2 + $0x1030] sm:$0xff]
    %v1047 = vld [vmem:[#allocation2 + $0x1038] sm:$0xff]
    %v1048 = vld [vmem:[#allocation2 + $0x1040] sm:$0xff]
    %v1049 = vld [vmem:[#allocation2 + $0x1048] sm:$0xff]
    %v1050 = vld [vmem:[#allocation2 + $0x1050] sm:$0xff]
    %v1051 = vld [vmem:[#allocation2 + $0x1058] sm:$0xff]
    %v1052 = vld [vmem:[#allocation2 + $0x1060] sm:$0xff]
    %v1053 = vld [vmem:[#allocation2 + $0x1068] sm:$0xff]
    %v1054 = vld [vmem:[#allocation2 + $0x1070] sm:$0xff]
    %v1055 = vld [vmem:[#allocation2 + $0x1078] sm:$0xff]
    %v1056 = vld [vmem:[#allocation2 + $0x1080] sm:$0xff]
    %v1057 = vld [vmem:[#allocation2 + $0x1088] sm:$0xff]
    %v1058 = vld [vmem:[#allocation2 + $0x1090] sm:$0xff]
    %v1059 = vld [vmem:[#allocation2 + $0x1098] sm:$0xff]
    %v1060 = vld [vmem:[#allocation2 + $0x10a0] sm:$0xff]
    %v1061 = vld [vmem:[#allocation2 + $0x10a8] sm:$0xff]
    %v1062 = vld [vmem:[#allocation2 + $0x10b0] sm:$0xff]
    %v1063 = vld [vmem:[#allocation2 + $0x10b8] sm:$0xff]
    %v1064 = vld [vmem:[#allocation2 + $0x10c0] sm:$0xff]
    %v1065 = vld [vmem:[#allocation2 + $0x10c8] sm:$0xff]
    %v1066 = vld [vmem:[#allocation2 + $0x10d0] sm:$0xff]
    %v1067 = vld [vmem:[#allocation2 + $0x10d8] sm:$0xff]
    %v1068 = vld [vmem:[#allocation2 + $0x10e0] sm:$0xff]
    %v1069 = vld [vmem:[#allocation2 + $0x10e8] sm:$0xff]
    %v1070 = vld [vmem:[#allocation2 + $0x10f0] sm:$0xff]
    %v1071 = vld [vmem:[#allocation2 + $0x10f8] sm:$0xff]
    %v1072 = vld [vmem:[#allocation2 + $0x1100] sm:$0xff]
    %v1073 = vld [vmem:[#allocation2 + $0x1108] sm:$0xff]
    %v1074 = vld [vmem:[#allocation2 + $0x1110] sm:$0xff]
    %v1075 = vld [vmem:[#allocation2 + $0x1118] sm:$0xff]
    %v1076 = vld [vmem:[#allocation2 + $0x1120] sm:$0xff]
    %v1077 = vld [vmem:[#allocation2 + $0x1128] sm:$0xff]
    %v1078 = vld [vmem:[#allocation2 + $0x1130] sm:$0xff]
    %v1079 = vld [vmem:[#allocation2 + $0x1138] sm:$0xff]
    %v1080 = vld [vmem:[#allocation2 + $0x1140] sm:$0xff]
    %v1081 = vld [vmem:[#allocation2 + $0x1148] sm:$0xff]
    %v1082 = vld [vmem:[#allocation2 + $0x1150] sm:$0xff]
    %v1083 = vld [vmem:[#allocation2 + $0x1158] sm:$0xff]
    %v1084 = vld [vmem:[#allocation2 + $0x1160] sm:$0xff]
    %v1085 = vld [vmem:[#allocation2 + $0x1168] sm:$0xff]
    %v1086 = vld [vmem:[#allocation2 + $0x1170] sm:$0xff]
    %v1087 = vld [vmem:[#allocation2 + $0x1178] sm:$0xff]
    %v1088 = vld [vmem:[#allocation2 + $0x1180] sm:$0xff]
    %v1089 = vld [vmem:[#allocation2 + $0x1188] sm:$0xff]
    %v1090 = vld [vmem:[#allocation2 + $0x1190] sm:$0xff]
    %v1091 = vld [vmem:[#allocation2 + $0x1198] sm:$0xff]
    %v1092 = vld [vmem:[#allocation2 + $0x11a0] sm:$0xff]
    %v1093 = vld [vmem:[#allocation2 + $0x11a8] sm:$0xff]
    %v1094 = vld [vmem:[#allocation2 + $0x11b0] sm:$0xff]
    %v1095 = vld [vmem:[#allocation2 + $0x11b8] sm:$0xff]
    %v1096 = vld [vmem:[#allocation2 + $0x11c0] sm:$0xff]
    %v1097 = vld [vmem:[#allocation2 + $0x11c8] sm:$0xff]
    %v1098 = vld [vmem:[#allocation2 + $0x11d0] sm:$0xff]
    %v1099 = vld [vmem:[#allocation2 + $0x11d8] sm:$0xff]
    %v1100 = vld [vmem:[#allocation2 + $0x11e0] sm:$0xff]
    %v1101 = vld [vmem:[#allocation2 + $0x11e8] sm:$0xff]
    %v1102 = vld [vmem:[#allocation2 + $0x11f0] sm:$0xff]
    %v1103 = vld [vmem:[#allocation2 + $0x11f8] sm:$0xff]
    %v1104 = vld [vmem:[#allocation2 + $0x1200] sm:$0xff]
    %v1105 = vld [vmem:[#allocation2 + $0x1208] sm:$0xff]
    %v1106 = vld [vmem:[#allocation2 + $0x1210] sm:$0xff]
    %v1107 = vld [vmem:[#allocation2 + $0x1218] sm:$0xff]
    %v1108 = vld [vmem:[#allocation2 + $0x1220] sm:$0xff]
    %v1109 = vld [vmem:[#allocation2 + $0x1228] sm:$0xff]
    %v1110 = vld [vmem:[#allocation2 + $0x1230] sm:$0xff]
    %v1111 = vld [vmem:[#allocation2 + $0x1238] sm:$0xff]
    %v1112 = vld [vmem:[#allocation2 + $0x1240] sm:$0xff]
    %v1113 = vld [vmem:[#allocation2 + $0x1248] sm:$0xff]
    %v1114 = vld [vmem:[#allocation2 + $0x1250] sm:$0xff]
    %v1115 = vld [vmem:[#allocation2 + $0x1258] sm:$0xff]
    %v1116 = vld [vmem:[#allocation2 + $0x1260] sm:$0xff]
    %v1117 = vld [vmem:[#allocation2 + $0x1268] sm:$0xff]
    %v1118 = vld [vmem:[#allocation2 + $0x1270] sm:$0xff]
    %v1119 = vld [vmem:[#allocation2 + $0x1278] sm:$0xff]
    %v1120 = vld [vmem:[#allocation2 + $0x1280] sm:$0xff]
    %v1121 = vld [vmem:[#allocation2 + $0x1288] sm:$0xff]
    %v1122 = vld [vmem:[#allocation2 + $0x1290] sm:$0xff]
    %v1123 = vld [vmem:[#allocation2 + $0x1298] sm:$0xff]
    %v1124 = vld [vmem:[#allocation2 + $0x12a0] sm:$0xff]
    %v1125 = vld [vmem:[#allocation2 + $0x12a8] sm:$0xff]
    %v1126 = vld [vmem:[#allocation2 + $0x12b0] sm:$0xff]
    %v1127 = vld [vmem:[#allocation2 + $0x12b8] sm:$0xff]
    %v1128 = vld [vmem:[#allocation2 + $0x12c0] sm:$0xff]
    %v1129 = vld [vmem:[#allocation2 + $0x12c8] sm:$0xff]
    %v1130 = vld [vmem:[#allocation2 + $0x12d0] sm:$0xff]
    %v1131 = vld [vmem:[#allocation2 + $0x12d8] sm:$0xff]
    %v1132 = vld [vmem:[#allocation2 + $0x12e0] sm:$0xff]
    %v1133 = vld [vmem:[#allocation2 + $0x12e8] sm:$0xff]
    %v1134 = vld [vmem:[#allocation2 + $0x12f0] sm:$0xff]
    %v1135 = vld [vmem:[#allocation2 + $0x12f8] sm:$0xff]
    %v1136 = vld [vmem:[#allocation2 + $0x1300] sm:$0xff]
    %v1137 = vld [vmem:[#allocation2 + $0x1308] sm:$0xff]
    %v1138 = vld [vmem:[#allocation2 + $0x1310] sm:$0xff]
    %v1139 = vld [vmem:[#allocation2 + $0x1318] sm:$0xff]
    %v1140 = vld [vmem:[#allocation2 + $0x1320] sm:$0xff]
    %v1141 = vld [vmem:[#allocation2 + $0x1328] sm:$0xff]
    %v1142 = vld [vmem:[#allocation2 + $0x1330] sm:$0xff]
    %v1143 = vld [vmem:[#allocation2 + $0x1338] sm:$0xff]
    %v1144 = vld [vmem:[#allocation2 + $0x1340] sm:$0xff]
    %v1145 = vld [vmem:[#allocation2 + $0x1348] sm:$0xff]
    %v1146 = vld [vmem:[#allocation2 + $0x1350] sm:$0xff]
    %v1147 = vld [vmem:[#allocation2 + $0x1358] sm:$0xff]
    %v1148 = vld [vmem:[#allocation2 + $0x1360] sm:$0xff]
    %v1149 = vld [vmem:[#allocation2 + $0x1368] sm:$0xff]
    %v1150 = vld [vmem:[#allocation2 + $0x1370] sm:$0xff]
    %v1151 = vld [vmem:[#allocation2 + $0x1378] sm:$0xff]
    %v1152 = vld [vmem:[#allocation2 + $0x1380] sm:$0xff]
    %v1153 = vld [vmem:[#allocation2 + $0x1388] sm:$0xff]
    %v1154 = vld [vmem:[#allocation2 + $0x1390] sm:$0xff]
    %v1155 = vld [vmem:[#allocation2 + $0x1398] sm:$0xff]
    %v1156 = vld [vmem:[#allocation2 + $0x13a0] sm:$0xff]
    %v1157 = vld [vmem:[#allocation2 + $0x13a8] sm:$0xff]
    %v1158 = vld [vmem:[#allocation2 + $0x13b0] sm:$0xff]
    %v1159 = vld [vmem:[#allocation2 + $0x13b8] sm:$0xff]
    %v1160 = vld [vmem:[#allocation2 + $0x13c0] sm:$0xff]
    %v1161 = vld [vmem:[#allocation2 + $0x13c8] sm:$0xff]
    %v1162 = vld [vmem:[#allocation2 + $0x13d0] sm:$0xff]
    %v1163 = vld [vmem:[#allocation2 + $0x13d8] sm:$0xff]
    %v1164 = vld [vmem:[#allocation2 + $0x13e0] sm:$0xff]
    %v1165 = vld [vmem:[#allocation2 + $0x13e8] sm:$0xff]
    %v1166 = vld [vmem:[#allocation2 + $0x13f0] sm:$0xff]
    %v1167 = vld [vmem:[#allocation2 + $0x13f8] sm:$0xff]
    %v1168 = vld [vmem:[#allocation2 + $0x1400] sm:$0xff]
    %v1169 = vld [vmem:[#allocation2 + $0x1408] sm:$0xff]
    %v1170 = vld [vmem:[#allocation2 + $0x1410] sm:$0xff]
    %v1171 = vld [vmem:[#allocation2 + $0x1418] sm:$0xff]
    %v1172 = vld [vmem:[#allocation2 + $0x1420] sm:$0xff]
    %v1173 = vld [vmem:[#allocation2 + $0x1428] sm:$0xff]
    %v1174 = vld [vmem:[#allocation2 + $0x1430] sm:$0xff]
    %v1175 = vld [vmem:[#allocation2 + $0x1438] sm:$0xff]
    %v1176 = vld [vmem:[#allocation2 + $0x1440] sm:$0xff]
    %v1177 = vld [vmem:[#allocation2 + $0x1448] sm:$0xff]
    %v1178 = vld [vmem:[#allocation2 + $0x1450] sm:$0xff]
    %v1179 = vld [vmem:[#allocation2 + $0x1458] sm:$0xff]
    %v1180 = vld [vmem:[#allocation2 + $0x1460] sm:$0xff]
    %v1181 = vld [vmem:[#allocation2 + $0x1468] sm:$0xff]
    %v1182 = vld [vmem:[#allocation2 + $0x1470] sm:$0xff]
    %v1183 = vld [vmem:[#allocation2 + $0x1478] sm:$0xff]
    %v1184 = vld [vmem:[#allocation2 + $0x1480] sm:$0xff]
    %v1185 = vld [vmem:[#allocation2 + $0x1488] sm:$0xff]
    %v1186 = vld [vmem:[#allocation2 + $0x1490] sm:$0xff]
    %v1187 = vld [vmem:[#allocation2 + $0x1498] sm:$0xff]
    %v1188 = vlaneseq
    %v1189 = vand.u32 %v1188, 127
    %v1190 = vadd.s32 %v1189, 128
    %v1191 = vand.u32 %v1189, 127
    %v1192 = vand.u32 %v1190, 127
    %vm1193 = vcmp.ge.s32.totalorder %v1191, 19
    %vm1194 = vcmp.ge.s32.totalorder %v1192, 19
    %vm1195 = vcmp.lt.s32.totalorder %v1191, 108
    %vm1196 = vcmp.lt.s32.totalorder %v1192, 108
    %vm1197 = vmand %vm1193, %vm1195
    %vm1198 = vmand %vm1194, %vm1196
    %1200 = vset.pattern.permute.xlu0 1
    %1201 = vperm.xlu0 %1200, %v88
    %v1202 = vpop.permute.xlu0 %1201
    %1205 = vset.pattern.permute.xlu0 1
    %1206 = vperm.xlu0 %1205, %v89
    %v1207 = vpop.permute.xlu0 %1206
    %1210 = vset.pattern.permute.xlu0 1
    %1211 = vperm.xlu0 %1210, %v90
    %v1212 = vpop.permute.xlu0 %1211
    %1215 = vset.pattern.permute.xlu0 1
    %1216 = vperm.xlu0 %1215, %v91
    %v1217 = vpop.permute.xlu0 %1216
    %1220 = vset.pattern.permute.xlu0 1
    %1221 = vperm.xlu0 %1220, %v92
    %v1222 = vpop.permute.xlu0 %1221
    %1225 = vset.pattern.permute.xlu0 1
    %1226 = vperm.xlu0 %1225, %v93
    %v1227 = vpop.permute.xlu0 %1226
    %1230 = vset.pattern.permute.xlu0 1
    %1231 = vperm.xlu0 %1230, %v94
    %v1232 = vpop.permute.xlu0 %1231
    %1235 = vset.pattern.permute.xlu0 1
    %1236 = vperm.xlu0 %1235, %v95
    %v1237 = vpop.permute.xlu0 %1236
    %1240 = vset.pattern.permute.xlu0 1
    %1241 = vperm.xlu0 %1240, %v96
    %v1242 = vpop.permute.xlu0 %1241
    %1245 = vset.pattern.permute.xlu0 1
    %1246 = vperm.xlu0 %1245, %v97
    %v1247 = vpop.permute.xlu0 %1246
    %1250 = vset.pattern.permute.xlu0 1
    %1251 = vperm.xlu0 %1250, %v98
    %v1252 = vpop.permute.xlu0 %1251
    %1255 = vset.pattern.permute.xlu0 1
    %1256 = vperm.xlu0 %1255, %v99
    %v1257 = vpop.permute.xlu0 %1256
    %1260 = vset.pattern.permute.xlu0 1
    %1261 = vperm.xlu0 %1260, %v100
    %v1262 = vpop.permute.xlu0 %1261
    %1265 = vset.pattern.permute.xlu0 1
    %1266 = vperm.xlu0 %1265, %v101
    %v1267 = vpop.permute.xlu0 %1266
    %1270 = vset.pattern.permute.xlu0 1
    %1271 = vperm.xlu0 %1270, %v102
    %v1272 = vpop.permute.xlu0 %1271
    %1275 = vset.pattern.permute.xlu0 1
    %1276 = vperm.xlu0 %1275, %v103
    %v1277 = vpop.permute.xlu0 %1276
    %1280 = vset.pattern.permute.xlu0 1
    %1281 = vperm.xlu0 %1280, %v104
    %v1282 = vpop.permute.xlu0 %1281
    %1285 = vset.pattern.permute.xlu0 1
    %1286 = vperm.xlu0 %1285, %v105
    %v1287 = vpop.permute.xlu0 %1286
    %1290 = vset.pattern.permute.xlu0 1
    %1291 = vperm.xlu0 %1290, %v106
    %v1292 = vpop.permute.xlu0 %1291
    %1295 = vset.pattern.permute.xlu0 1
    %1296 = vperm.xlu0 %1295, %v107
    %v1297 = vpop.permute.xlu0 %1296
    %vm1299 = vcmask 654336
    %v1301 = vsel %vm1299, %v128, 0
    %v1304 = vsel %vm1299, %v149, 0
    %v1307 = vsel %vm1299, %v170, 0
    %v1310 = vsel %vm1299, %v191, 0
    %v1313 = vsel %vm1299, %v212, 0
    %v1316 = vsel %vm1299, %v233, 0
    %v1319 = vsel %vm1299, %v254, 0
    %v1322 = vsel %vm1299, %v275, 0
    %v1325 = vsel %vm1299, %v296, 0
    %v1328 = vsel %vm1299, %v317, 0
    %v1331 = vsel %vm1299, %v338, 0
    %v1334 = vsel %vm1299, %v359, 0
    %v1337 = vsel %vm1299, %v380, 0
    %v1340 = vsel %vm1299, %v401, 0
    %v1343 = vsel %vm1299, %v422, 0
    %v1346 = vsel %vm1299, %v443, 0
    %v1349 = vsel %vm1299, %v464, 0
    %v1352 = vsel %vm1299, %v485, 0
    %v1355 = vsel %vm1299, %v506, 0
    %v1358 = vsel %vm1299, %v527, 0
    %1360 = vmatprep.subr.mxu0 %v559
    %1361 = vmatpush1.msra.mxu0 %v558
    %1362 = vmatprep.subr.mxu0 %v557
    %1363 = vmatpush1.msra.mxu0 %v556
    %1364 = vmatprep.subr.mxu0 %v555
    %1365 = vmatpush1.msra.mxu0 %v554
    %1366 = vmatprep.subr.mxu0 %v553
    %1367 = vmatpush1.msra.mxu0 %v552
    %1368 = vmatprep.subr.mxu0 %v551
    %1369 = vmatpush1.msra.mxu0 %v550
    %1370 = vmatprep.subr.mxu0 %v549
    %1371 = vmatpush1.msra.mxu0 %v548
    %1372 = vmatprep.subr.mxu0 %v547
    %1373 = vmatpush1.msra.mxu0 %v546
    %1374 = vmatprep.subr.mxu0 %v545
    %1375 = vmatpush1.msra.mxu0 %v544
    %1376 = vmatprep.subr.mxu0 %v543
    %1377 = vmatpush1.msra.mxu0 %v542
    %1378 = vmatprep.subr.mxu0 %v541
    %1379 = vmatpush1.msra.mxu0 %v540
    %1380 = vmatprep.subr.mxu0 %v539
    %1381 = vmatpush1.msra.mxu0 %v538
    %1382 = vmatprep.subr.mxu0 %v537
    %1383 = vmatpush1.msra.mxu0 %v536
    %1384 = vmatprep.subr.mxu0 %v535
    %1385 = vmatpush1.msra.mxu0 %v534
    %1386 = vmatprep.subr.mxu0 %v533
    %1387 = vmatpush1.msra.mxu0 %v532
    %1388 = vmatprep.subr.mxu0 %v531
    %1389 = vmatpush1.msra.mxu0 %v530
    %1390 = vmatprep.subr.mxu0 %v529
    %1391 = vmatpush1.msra.mxu0 %v528
    %1392 = vmatprep.subr.mxu0 %v591
    %1393 = vmatpush2.msra.mxu0 %v590
    %1394 = vmatprep.subr.mxu0 %v589
    %1395 = vmatpush2.msra.mxu0 %v588
    %1396 = vmatprep.subr.mxu0 %v587
    %1397 = vmatpush2.msra.mxu0 %v586
    %1398 = vmatprep.subr.mxu0 %v585
    %1399 = vmatpush2.msra.mxu0 %v584
    %1400 = vmatprep.subr.mxu0 %v583
    %1401 = vmatpush2.msra.mxu0 %v582
    %1402 = vmatprep.subr.mxu0 %v581
    %1403 = vmatpush2.msra.mxu0 %v580
    %1404 = vmatprep.subr.mxu0 %v579
    %1405 = vmatpush2.msra.mxu0 %v578
    %1406 = vmatprep.subr.mxu0 %v577
    %1407 = vmatpush2.msra.mxu0 %v576
    %1408 = vmatprep.subr.mxu0 %v575
    %1409 = vmatpush2.msra.mxu0 %v574
    %1410 = vmatprep.subr.mxu0 %v573
    %1411 = vmatpush2.msra.mxu0 %v572
    %1412 = vmatprep.subr.mxu0 %v571
    %1413 = vmatpush2.msra.mxu0 %v570
    %1414 = vmatprep.subr.mxu0 %v569
    %1415 = vmatpush2.msra.mxu0 %v568
    %1416 = vmatprep.subr.mxu0 %v567
    %1417 = vmatpush2.msra.mxu0 %v566
    %1418 = vmatprep.subr.mxu0 %v565
    %1419 = vmatpush2.msra.mxu0 %v564
    %1420 = vmatprep.subr.mxu0 %v563
    %1421 = vmatpush2.msra.mxu0 %v562
    %1422 = vmatprep.subr.mxu0 %v561
    %1423 = vmatpush2.msra.mxu0 %v560
    %1424 = vmatprep.mubr.f32.mxu0 %v109
    %1425 = vmatmul.mubr.f32.gmra.mxu0 %v108
    %v1426 = vpop.f32.mrf.mxu0
    %v1427 = vadd.f32 %v1202, %v1426
    %v1428 = vpop.f32.mrf.mxu0
    %v1429 = vadd.f32 %v1202, %v1428
    %1430 = vmatprep.mubr.f32.mxu0 %v130
    %1431 = vmatmul.mubr.f32.gmra.mxu0 %v129
    %v1432 = vpop.f32.mrf.mxu0
    %v1433 = vadd.f32 %v1207, %v1432
    %v1434 = vpop.f32.mrf.mxu0
    %v1435 = vadd.f32 %v1207, %v1434
    %1436 = vmatprep.mubr.f32.mxu0 %v151
    %1437 = vmatmul.mubr.f32.gmra.mxu0 %v150
    %v1438 = vpop.f32.mrf.mxu0
    %v1439 = vadd.f32 %v1212, %v1438
    %v1440 = vpop.f32.mrf.mxu0
    %v1441 = vadd.f32 %v1212, %v1440
    %1442 = vmatprep.mubr.f32.mxu0 %v172
    %1443 = vmatmul.mubr.f32.gmra.mxu0 %v171
    %v1444 = vpop.f32.mrf.mxu0
    %v1445 = vadd.f32 %v1217, %v1444
    %v1446 = vpop.f32.mrf.mxu0
    %v1447 = vadd.f32 %v1217, %v1446
    %1448 = vmatprep.mubr.f32.mxu0 %v193
    %1449 = vmatmul.mubr.f32.gmra.mxu0 %v192
    %v1450 = vpop.f32.mrf.mxu0
    %v1451 = vadd.f32 %v1222, %v1450
    %v1452 = vpop.f32.mrf.mxu0
    %v1453 = vadd.f32 %v1222, %v1452
    %1454 = vmatprep.mubr.f32.mxu0 %v214
    %1455 = vmatmul.mubr.f32.gmra.mxu0 %v213
    %v1456 = vpop.f32.mrf.mxu0
    %v1457 = vadd.f32 %v1227, %v1456
    %v1458 = vpop.f32.mrf.mxu0
    %v1459 = vadd.f32 %v1227, %v1458
    %1460 = vmatprep.mubr.f32.mxu0 %v235
    %1461 = vmatmul.mubr.f32.gmra.mxu0 %v234
    %v1462 = vpop.f32.mrf.mxu0
    %v1463 = vadd.f32 %v1232, %v1462
    %v1464 = vpop.f32.mrf.mxu0
    %v1465 = vadd.f32 %v1232, %v1464
    %1466 = vmatprep.mubr.f32.mxu0 %v256
    %1467 = vmatmul.mubr.f32.gmra.mxu0 %v255
    %v1468 = vpop.f32.mrf.mxu0
    %v1469 = vadd.f32 %v1237, %v1468
    %v1470 = vpop.f32.mrf.mxu0
    %v1471 = vadd.f32 %v1237, %v1470
    %1472 = vmatprep.mubr.f32.mxu0 %v277
    %1473 = vmatmul.mubr.f32.gmra.mxu0 %v276
    %v1474 = vpop.f32.mrf.mxu0
    %v1475 = vadd.f32 %v1242, %v1474
    %v1476 = vpop.f32.mrf.mxu0
    %v1477 = vadd.f32 %v1242, %v1476
    %1478 = vmatprep.mubr.f32.mxu0 %v298
    %1479 = vmatmul.mubr.f32.gmra.mxu0 %v297
    %v1480 = vpop.f32.mrf.mxu0
    %v1481 = vadd.f32 %v1247, %v1480
    %v1482 = vpop.f32.mrf.mxu0
    %v1483 = vadd.f32 %v1247, %v1482
    %1484 = vmatprep.mubr.f32.mxu0 %v319
    %1485 = vmatmul.mubr.f32.gmra.mxu0 %v318
    %v1486 = vpop.f32.mrf.mxu0
    %v1487 = vadd.f32 %v1252, %v1486
    %v1488 = vpop.f32.mrf.mxu0
    %v1489 = vadd.f32 %v1252, %v1488
    %1490 = vmatprep.mubr.f32.mxu0 %v340
    %1491 = vmatmul.mubr.f32.gmra.mxu0 %v339
    %v1492 = vpop.f32.mrf.mxu0
    %v1493 = vadd.f32 %v1257, %v1492
    %v1494 = vpop.f32.mrf.mxu0
    %v1495 = vadd.f32 %v1257, %v1494
    %1496 = vmatprep.mubr.f32.mxu0 %v361
    %1497 = vmatmul.mubr.f32.gmra.mxu0 %v360
    %v1498 = vpop.f32.mrf.mxu0
    %v1499 = vadd.f32 %v1262, %v1498
    %v1500 = vpop.f32.mrf.mxu0
    %v1501 = vadd.f32 %v1262, %v1500
    %1502 = vmatprep.mubr.f32.mxu0 %v382
    %1503 = vmatmul.mubr.f32.gmra.mxu0 %v381
    %v1504 = vpop.f32.mrf.mxu0
    %v1505 = vadd.f32 %v1267, %v1504
    %v1506 = vpop.f32.mrf.mxu0
    %v1507 = vadd.f32 %v1267, %v1506
    %1508 = vmatprep.mubr.f32.mxu0 %v403
    %1509 = vmatmul.mubr.f32.gmra.mxu0 %v402
    %v1510 = vpop.f32.mrf.mxu0
    %v1511 = vadd.f32 %v1272, %v1510
    %v1512 = vpop.f32.mrf.mxu0
    %v1513 = vadd.f32 %v1272, %v1512
    %1514 = vmatprep.mubr.f32.mxu0 %v424
    %1515 = vmatmul.mubr.f32.gmra.mxu0 %v423
    %v1516 = vpop.f32.mrf.mxu0
    %v1517 = vadd.f32 %v1277, %v1516
    %v1518 = vpop.f32.mrf.mxu0
    %v1519 = vadd.f32 %v1277, %v1518
    %1520 = vmatprep.mubr.f32.mxu0 %v445
    %1521 = vmatmul.mubr.f32.gmra.mxu0 %v444
    %v1522 = vpop.f32.mrf.mxu0
    %v1523 = vadd.f32 %v1282, %v1522
    %v1524 = vpop.f32.mrf.mxu0
    %v1525 = vadd.f32 %v1282, %v1524
    %1526 = vmatprep.mubr.f32.mxu0 %v466
    %1527 = vmatmul.mubr.f32.gmra.mxu0 %v465
    %v1528 = vpop.f32.mrf.mxu0
    %v1529 = vadd.f32 %v1287, %v1528
    %v1530 = vpop.f32.mrf.mxu0
    %v1531 = vadd.f32 %v1287, %v1530
    %1532 = vmatprep.mubr.f32.mxu0 %v487
    %1533 = vmatmul.mubr.f32.gmra.mxu0 %v486
    %v1534 = vpop.f32.mrf.mxu0
    %v1535 = vadd.f32 %v1292, %v1534
    %v1536 = vpop.f32.mrf.mxu0
    %v1537 = vadd.f32 %v1292, %v1536
    %1538 = vmatprep.mubr.f32.mxu0 %v508
    %1539 = vmatmul.mubr.f32.gmra.mxu0 %v507
    %v1540 = vpop.f32.mrf.mxu0
    %v1541 = vadd.f32 %v1297, %v1540
    %v1542 = vpop.f32.mrf.mxu0
    %v1543 = vadd.f32 %v1297, %v1542
    %1544 = vdwg.mxu0
    %1545 = vmatprep.subr.mxu0 %v623
    %1546 = vmatpush1.msra.mxu0 %v622
    %1547 = vmatprep.subr.mxu0 %v621
    %1548 = vmatpush1.msra.mxu0 %v620
    %1549 = vmatprep.subr.mxu0 %v619
    %1550 = vmatpush1.msra.mxu0 %v618
    %1551 = vmatprep.subr.mxu0 %v617
    %1552 = vmatpush1.msra.mxu0 %v616
    %1553 = vmatprep.subr.mxu0 %v615
    %1554 = vmatpush1.msra.mxu0 %v614
    %1555 = vmatprep.subr.mxu0 %v613
    %1556 = vmatpush1.msra.mxu0 %v612
    %1557 = vmatprep.subr.mxu0 %v611
    %1558 = vmatpush1.msra.mxu0 %v610
    %1559 = vmatprep.subr.mxu0 %v609
    %1560 = vmatpush1.msra.mxu0 %v608
    %1561 = vmatprep.subr.mxu0 %v607
    %1562 = vmatpush1.msra.mxu0 %v606
    %1563 = vmatprep.subr.mxu0 %v605
    %1564 = vmatpush1.msra.mxu0 %v604
    %1565 = vmatprep.subr.mxu0 %v603
    %1566 = vmatpush1.msra.mxu0 %v602
    %1567 = vmatprep.subr.mxu0 %v601
    %1568 = vmatpush1.msra.mxu0 %v600
    %1569 = vmatprep.subr.mxu0 %v599
    %1570 = vmatpush1.msra.mxu0 %v598
    %1571 = vmatprep.subr.mxu0 %v597
    %1572 = vmatpush1.msra.mxu0 %v596
    %1573 = vmatprep.subr.mxu0 %v595
    %1574 = vmatpush1.msra.mxu0 %v594
    %1575 = vmatprep.subr.mxu0 %v593
    %1576 = vmatpush1.msra.mxu0 %v592
    %1577 = vmatprep.subr.mxu0 %v655
    %1578 = vmatpush2.msra.mxu0 %v654
    %1579 = vmatprep.subr.mxu0 %v653
    %1580 = vmatpush2.msra.mxu0 %v652
    %1581 = vmatprep.subr.mxu0 %v651
    %1582 = vmatpush2.msra.mxu0 %v650
    %1583 = vmatprep.subr.mxu0 %v649
    %1584 = vmatpush2.msra.mxu0 %v648
    %1585 = vmatprep.subr.mxu0 %v647
    %1586 = vmatpush2.msra.mxu0 %v646
    %1587 = vmatprep.subr.mxu0 %v645
    %1588 = vmatpush2.msra.mxu0 %v644
    %1589 = vmatprep.subr.mxu0 %v643
    %1590 = vmatpush2.msra.mxu0 %v642
    %1591 = vmatprep.subr.mxu0 %v641
    %1592 = vmatpush2.msra.mxu0 %v640
    %1593 = vmatprep.subr.mxu0 %v639
    %1594 = vmatpush2.msra.mxu0 %v638
    %1595 = vmatprep.subr.mxu0 %v637
    %1596 = vmatpush2.msra.mxu0 %v636
    %1597 = vmatprep.subr.mxu0 %v635
    %1598 = vmatpush2.msra.mxu0 %v634
    %1599 = vmatprep.subr.mxu0 %v633
    %1600 = vmatpush2.msra.mxu0 %v632
    %1601 = vmatprep.subr.mxu0 %v631
    %1602 = vmatpush2.msra.mxu0 %v630
    %1603 = vmatprep.subr.mxu0 %v629
    %1604 = vmatpush2.msra.mxu0 %v628
    %1605 = vmatprep.subr.mxu0 %v627
    %1606 = vmatpush2.msra.mxu0 %v626
    %1607 = vmatprep.subr.mxu0 %v625
    %1608 = vmatpush2.msra.mxu0 %v624
    %1609 = vmatprep.mubr.f32.mxu0 %v111
    %1610 = vmatmul.mubr.f32.gmra.mxu0 %v110
    %v1611 = vpop.f32.mrf.mxu0
    %v1612 = vadd.f32 %v1427, %v1611
    %v1613 = vpop.f32.mrf.mxu0
    %v1614 = vadd.f32 %v1429, %v1613
    %1615 = vmatprep.mubr.f32.mxu0 %v132
    %1616 = vmatmul.mubr.f32.gmra.mxu0 %v131
    %v1617 = vpop.f32.mrf.mxu0
    %v1618 = vadd.f32 %v1433, %v1617
    %v1619 = vpop.f32.mrf.mxu0
    %v1620 = vadd.f32 %v1435, %v1619
    %1621 = vmatprep.mubr.f32.mxu0 %v153
    %1622 = vmatmul.mubr.f32.gmra.mxu0 %v152
    %v1623 = vpop.f32.mrf.mxu0
    %v1624 = vadd.f32 %v1439, %v1623
    %v1625 = vpop.f32.mrf.mxu0
    %v1626 = vadd.f32 %v1441, %v1625
    %1627 = vmatprep.mubr.f32.mxu0 %v174
    %1628 = vmatmul.mubr.f32.gmra.mxu0 %v173
    %v1629 = vpop.f32.mrf.mxu0
    %v1630 = vadd.f32 %v1445, %v1629
    %v1631 = vpop.f32.mrf.mxu0
    %v1632 = vadd.f32 %v1447, %v1631
    %1633 = vmatprep.mubr.f32.mxu0 %v195
    %1634 = vmatmul.mubr.f32.gmra.mxu0 %v194
    %v1635 = vpop.f32.mrf.mxu0
    %v1636 = vadd.f32 %v1451, %v1635
    %v1637 = vpop.f32.mrf.mxu0
    %v1638 = vadd.f32 %v1453, %v1637
    %1639 = vmatprep.mubr.f32.mxu0 %v216
    %1640 = vmatmul.mubr.f32.gmra.mxu0 %v215
    %v1641 = vpop.f32.mrf.mxu0
    %v1642 = vadd.f32 %v1457, %v1641
    %v1643 = vpop.f32.mrf.mxu0
    %v1644 = vadd.f32 %v1459, %v1643
    %1645 = vmatprep.mubr.f32.mxu0 %v237
    %1646 = vmatmul.mubr.f32.gmra.mxu0 %v236
    %v1647 = vpop.f32.mrf.mxu0
    %v1648 = vadd.f32 %v1463, %v1647
    %v1649 = vpop.f32.mrf.mxu0
    %v1650 = vadd.f32 %v1465, %v1649
    %1651 = vmatprep.mubr.f32.mxu0 %v258
    %1652 = vmatmul.mubr.f32.gmra.mxu0 %v257
    %v1653 = vpop.f32.mrf.mxu0
    %v1654 = vadd.f32 %v1469, %v1653
    %v1655 = vpop.f32.mrf.mxu0
    %v1656 = vadd.f32 %v1471, %v1655
    %1657 = vmatprep.mubr.f32.mxu0 %v279
    %1658 = vmatmul.mubr.f32.gmra.mxu0 %v278
    %v1659 = vpop.f32.mrf.mxu0
    %v1660 = vadd.f32 %v1475, %v1659
    %v1661 = vpop.f32.mrf.mxu0
    %v1662 = vadd.f32 %v1477, %v1661
    %1663 = vmatprep.mubr.f32.mxu0 %v300
    %1664 = vmatmul.mubr.f32.gmra.mxu0 %v299
    %v1665 = vpop.f32.mrf.mxu0
    %v1666 = vadd.f32 %v1481, %v1665
    %v1667 = vpop.f32.mrf.mxu0
    %v1668 = vadd.f32 %v1483, %v1667
    %1669 = vmatprep.mubr.f32.mxu0 %v321
    %1670 = vmatmul.mubr.f32.gmra.mxu0 %v320
    %v1671 = vpop.f32.mrf.mxu0
    %v1672 = vadd.f32 %v1487, %v1671
    %v1673 = vpop.f32.mrf.mxu0
    %v1674 = vadd.f32 %v1489, %v1673
    %1675 = vmatprep.mubr.f32.mxu0 %v342
    %1676 = vmatmul.mubr.f32.gmra.mxu0 %v341
    %v1677 = vpop.f32.mrf.mxu0
    %v1678 = vadd.f32 %v1493, %v1677
    %v1679 = vpop.f32.mrf.mxu0
    %v1680 = vadd.f32 %v1495, %v1679
    %1681 = vmatprep.mubr.f32.mxu0 %v363
    %1682 = vmatmul.mubr.f32.gmra.mxu0 %v362
    %v1683 = vpop.f32.mrf.mxu0
    %v1684 = vadd.f32 %v1499, %v1683
    %v1685 = vpop.f32.mrf.mxu0
    %v1686 = vadd.f32 %v1501, %v1685
    %1687 = vmatprep.mubr.f32.mxu0 %v384
    %1688 = vmatmul.mubr.f32.gmra.mxu0 %v383
    %v1689 = vpop.f32.mrf.mxu0
    %v1690 = vadd.f32 %v1505, %v1689
    %v1691 = vpop.f32.mrf.mxu0
    %v1692 = vadd.f32 %v1507, %v1691
    %1693 = vmatprep.mubr.f32.mxu0 %v405
    %1694 = vmatmul.mubr.f32.gmra.mxu0 %v404
    %v1695 = vpop.f32.mrf.mxu0
    %v1696 = vadd.f32 %v1511, %v1695
    %v1697 = vpop.f32.mrf.mxu0
    %v1698 = vadd.f32 %v1513, %v1697
    %1699 = vmatprep.mubr.f32.mxu0 %v426
    %1700 = vmatmul.mubr.f32.gmra.mxu0 %v425
    %v1701 = vpop.f32.mrf.mxu0
    %v1702 = vadd.f32 %v1517, %v1701
    %v1703 = vpop.f32.mrf.mxu0
    %v1704 = vadd.f32 %v1519, %v1703
    %1705 = vmatprep.mubr.f32.mxu0 %v447
    %1706 = vmatmul.mubr.f32.gmra.mxu0 %v446
    %v1707 = vpop.f32.mrf.mxu0
    %v1708 = vadd.f32 %v1523, %v1707
    %v1709 = vpop.f32.mrf.mxu0
    %v1710 = vadd.f32 %v1525, %v1709
    %1711 = vmatprep.mubr.f32.mxu0 %v468
    %1712 = vmatmul.mubr.f32.gmra.mxu0 %v467
    %v1713 = vpop.f32.mrf.mxu0
    %v1714 = vadd.f32 %v1529, %v1713
    %v1715 = vpop.f32.mrf.mxu0
    %v1716 = vadd.f32 %v1531, %v1715
    %1717 = vmatprep.mubr.f32.mxu0 %v489
    %1718 = vmatmul.mubr.f32.gmra.mxu0 %v488
    %v1719 = vpop.f32.mrf.mxu0
    %v1720 = vadd.f32 %v1535, %v1719
    %v1721 = vpop.f32.mrf.mxu0
    %v1722 = vadd.f32 %v1537, %v1721
    %1723 = vmatprep.mubr.f32.mxu0 %v510
    %1724 = vmatmul.mubr.f32.gmra.mxu0 %v509
    %v1725 = vpop.f32.mrf.mxu0
    %v1726 = vadd.f32 %v1541, %v1725
    %v1727 = vpop.f32.mrf.mxu0
    %v1728 = vadd.f32 %v1543, %v1727
    %1729 = vdwg.mxu0
    %1730 = vmatprep.subr.mxu0 %v687
    %1731 = vmatpush1.msra.mxu0 %v686
    %1732 = vmatprep.subr.mxu0 %v685
    %1733 = vmatpush1.msra.mxu0 %v684
    %1734 = vmatprep.subr.mxu0 %v683
    %1735 = vmatpush1.msra.mxu0 %v682
    %1736 = vmatprep.subr.mxu0 %v681
    %1737 = vmatpush1.msra.mxu0 %v680
    %1738 = vmatprep.subr.mxu0 %v679
    %1739 = vmatpush1.msra.mxu0 %v678
    %1740 = vmatprep.subr.mxu0 %v677
    %1741 = vmatpush1.msra.mxu0 %v676
    %1742 = vmatprep.subr.mxu0 %v675
    %1743 = vmatpush1.msra.mxu0 %v674
    %1744 = vmatprep.subr.mxu0 %v673
    %1745 = vmatpush1.msra.mxu0 %v672
    %1746 = vmatprep.subr.mxu0 %v671
    %1747 = vmatpush1.msra.mxu0 %v670
    %1748 = vmatprep.subr.mxu0 %v669
    %1749 = vmatpush1.msra.mxu0 %v668
    %1750 = vmatprep.subr.mxu0 %v667
    %1751 = vmatpush1.msra.mxu0 %v666
    %1752 = vmatprep.subr.mxu0 %v665
    %1753 = vmatpush1.msra.mxu0 %v664
    %1754 = vmatprep.subr.mxu0 %v663
    %1755 = vmatpush1.msra.mxu0 %v662
    %1756 = vmatprep.subr.mxu0 %v661
    %1757 = vmatpush1.msra.mxu0 %v660
    %1758 = vmatprep.subr.mxu0 %v659
    %1759 = vmatpush1.msra.mxu0 %v658
    %1760 = vmatprep.subr.mxu0 %v657
    %1761 = vmatpush1.msra.mxu0 %v656
    %1762 = vmatprep.subr.mxu0 %v719
    %1763 = vmatpush2.msra.mxu0 %v718
    %1764 = vmatprep.subr.mxu0 %v717
    %1765 = vmatpush2.msra.mxu0 %v716
    %1766 = vmatprep.subr.mxu0 %v715
    %1767 = vmatpush2.msra.mxu0 %v714
    %1768 = vmatprep.subr.mxu0 %v713
    %1769 = vmatpush2.msra.mxu0 %v712
    %1770 = vmatprep.subr.mxu0 %v711
    %1771 = vmatpush2.msra.mxu0 %v710
    %1772 = vmatprep.subr.mxu0 %v709
    %1773 = vmatpush2.msra.mxu0 %v708
    %1774 = vmatprep.subr.mxu0 %v707
    %1775 = vmatpush2.msra.mxu0 %v706
    %1776 = vmatprep.subr.mxu0 %v705
    %1777 = vmatpush2.msra.mxu0 %v704
    %1778 = vmatprep.subr.mxu0 %v703
    %1779 = vmatpush2.msra.mxu0 %v702
    %1780 = vmatprep.subr.mxu0 %v701
    %1781 = vmatpush2.msra.mxu0 %v700
    %1782 = vmatprep.subr.mxu0 %v699
    %1783 = vmatpush2.msra.mxu0 %v698
    %1784 = vmatprep.subr.mxu0 %v697
    %1785 = vmatpush2.msra.mxu0 %v696
    %1786 = vmatprep.subr.mxu0 %v695
    %1787 = vmatpush2.msra.mxu0 %v694
    %1788 = vmatprep.subr.mxu0 %v693
    %1789 = vmatpush2.msra.mxu0 %v692
    %1790 = vmatprep.subr.mxu0 %v691
    %1791 = vmatpush2.msra.mxu0 %v690
    %1792 = vmatprep.subr.mxu0 %v689
    %1793 = vmatpush2.msra.mxu0 %v688
    %1794 = vmatprep.mubr.f32.mxu0 %v113
    %1795 = vmatmul.mubr.f32.gmra.mxu0 %v112
    %v1796 = vpop.f32.mrf.mxu0
    %v1797 = vadd.f32 %v1612, %v1796
    %v1798 = vpop.f32.mrf.mxu0
    %v1799 = vadd.f32 %v1614, %v1798
    %1800 = vmatprep.mubr.f32.mxu0 %v134
    %1801 = vmatmul.mubr.f32.gmra.mxu0 %v133
    %v1802 = vpop.f32.mrf.mxu0
    %v1803 = vadd.f32 %v1618, %v1802
    %v1804 = vpop.f32.mrf.mxu0
    %v1805 = vadd.f32 %v1620, %v1804
    %1806 = vmatprep.mubr.f32.mxu0 %v155
    %1807 = vmatmul.mubr.f32.gmra.mxu0 %v154
    %v1808 = vpop.f32.mrf.mxu0
    %v1809 = vadd.f32 %v1624, %v1808
    %v1810 = vpop.f32.mrf.mxu0
    %v1811 = vadd.f32 %v1626, %v1810
    %1812 = vmatprep.mubr.f32.mxu0 %v176
    %1813 = vmatmul.mubr.f32.gmra.mxu0 %v175
    %v1814 = vpop.f32.mrf.mxu0
    %v1815 = vadd.f32 %v1630, %v1814
    %v1816 = vpop.f32.mrf.mxu0
    %v1817 = vadd.f32 %v1632, %v1816
    %1818 = vmatprep.mubr.f32.mxu0 %v197
    %1819 = vmatmul.mubr.f32.gmra.mxu0 %v196
    %v1820 = vpop.f32.mrf.mxu0
    %v1821 = vadd.f32 %v1636, %v1820
    %v1822 = vpop.f32.mrf.mxu0
    %v1823 = vadd.f32 %v1638, %v1822
    %1824 = vmatprep.mubr.f32.mxu0 %v218
    %1825 = vmatmul.mubr.f32.gmra.mxu0 %v217
    %v1826 = vpop.f32.mrf.mxu0
    %v1827 = vadd.f32 %v1642, %v1826
    %v1828 = vpop.f32.mrf.mxu0
    %v1829 = vadd.f32 %v1644, %v1828
    %1830 = vmatprep.mubr.f32.mxu0 %v239
    %1831 = vmatmul.mubr.f32.gmra.mxu0 %v238
    %v1832 = vpop.f32.mrf.mxu0
    %v1833 = vadd.f32 %v1648, %v1832
    %v1834 = vpop.f32.mrf.mxu0
    %v1835 = vadd.f32 %v1650, %v1834
    %1836 = vmatprep.mubr.f32.mxu0 %v260
    %1837 = vmatmul.mubr.f32.gmra.mxu0 %v259
    %v1838 = vpop.f32.mrf.mxu0
    %v1839 = vadd.f32 %v1654, %v1838
    %v1840 = vpop.f32.mrf.mxu0
    %v1841 = vadd.f32 %v1656, %v1840
    %1842 = vmatprep.mubr.f32.mxu0 %v281
    %1843 = vmatmul.mubr.f32.gmra.mxu0 %v280
    %v1844 = vpop.f32.mrf.mxu0
    %v1845 = vadd.f32 %v1660, %v1844
    %v1846 = vpop.f32.mrf.mxu0
    %v1847 = vadd.f32 %v1662, %v1846
    %1848 = vmatprep.mubr.f32.mxu0 %v302
    %1849 = vmatmul.mubr.f32.gmra.mxu0 %v301
    %v1850 = vpop.f32.mrf.mxu0
    %v1851 = vadd.f32 %v1666, %v1850
    %v1852 = vpop.f32.mrf.mxu0
    %v1853 = vadd.f32 %v1668, %v1852
    %1854 = vmatprep.mubr.f32.mxu0 %v323
    %1855 = vmatmul.mubr.f32.gmra.mxu0 %v322
    %v1856 = vpop.f32.mrf.mxu0
    %v1857 = vadd.f32 %v1672, %v1856
    %v1858 = vpop.f32.mrf.mxu0
    %v1859 = vadd.f32 %v1674, %v1858
    %1860 = vmatprep.mubr.f32.mxu0 %v344
    %1861 = vmatmul.mubr.f32.gmra.mxu0 %v343
    %v1862 = vpop.f32.mrf.mxu0
    %v1863 = vadd.f32 %v1678, %v1862
    %v1864 = vpop.f32.mrf.mxu0
    %v1865 = vadd.f32 %v1680, %v1864
    %1866 = vmatprep.mubr.f32.mxu0 %v365
    %1867 = vmatmul.mubr.f32.gmra.mxu0 %v364
    %v1868 = vpop.f32.mrf.mxu0
    %v1869 = vadd.f32 %v1684, %v1868
    %v1870 = vpop.f32.mrf.mxu0
    %v1871 = vadd.f32 %v1686, %v1870
    %1872 = vmatprep.mubr.f32.mxu0 %v386
    %1873 = vmatmul.mubr.f32.gmra.mxu0 %v385
    %v1874 = vpop.f32.mrf.mxu0
    %v1875 = vadd.f32 %v1690, %v1874
    %v1876 = vpop.f32.mrf.mxu0
    %v1877 = vadd.f32 %v1692, %v1876
    %1878 = vmatprep.mubr.f32.mxu0 %v407
    %1879 = vmatmul.mubr.f32.gmra.mxu0 %v406
    %v1880 = vpop.f32.mrf.mxu0
    %v1881 = vadd.f32 %v1696, %v1880
    %v1882 = vpop.f32.mrf.mxu0
    %v1883 = vadd.f32 %v1698, %v1882
    %1884 = vmatprep.mubr.f32.mxu0 %v428
    %1885 = vmatmul.mubr.f32.gmra.mxu0 %v427
    %v1886 = vpop.f32.mrf.mxu0
    %v1887 = vadd.f32 %v1702, %v1886
    %v1888 = vpop.f32.mrf.mxu0
    %v1889 = vadd.f32 %v1704, %v1888
    %1890 = vmatprep.mubr.f32.mxu0 %v449
    %1891 = vmatmul.mubr.f32.gmra.mxu0 %v448
    %v1892 = vpop.f32.mrf.mxu0
    %v1893 = vadd.f32 %v1708, %v1892
    %v1894 = vpop.f32.mrf.mxu0
    %v1895 = vadd.f32 %v1710, %v1894
    %1896 = vmatprep.mubr.f32.mxu0 %v470
    %1897 = vmatmul.mubr.f32.gmra.mxu0 %v469
    %v1898 = vpop.f32.mrf.mxu0
    %v1899 = vadd.f32 %v1714, %v1898
    %v1900 = vpop.f32.mrf.mxu0
    %v1901 = vadd.f32 %v1716, %v1900
    %1902 = vmatprep.mubr.f32.mxu0 %v491
    %1903 = vmatmul.mubr.f32.gmra.mxu0 %v490
    %v1904 = vpop.f32.mrf.mxu0
    %v1905 = vadd.f32 %v1720, %v1904
    %v1906 = vpop.f32.mrf.mxu0
    %v1907 = vadd.f32 %v1722, %v1906
    %1908 = vmatprep.mubr.f32.mxu0 %v512
    %1909 = vmatmul.mubr.f32.gmra.mxu0 %v511
    %v1910 = vpop.f32.mrf.mxu0
    %v1911 = vadd.f32 %v1726, %v1910
    %v1912 = vpop.f32.mrf.mxu0
    %v1913 = vadd.f32 %v1728, %v1912
    %1914 = vdwg.mxu0
    %1915 = vmatprep.subr.mxu0 %v751
    %1916 = vmatpush1.msra.mxu0 %v750
    %1917 = vmatprep.subr.mxu0 %v749
    %1918 = vmatpush1.msra.mxu0 %v748
    %1919 = vmatprep.subr.mxu0 %v747
    %1920 = vmatpush1.msra.mxu0 %v746
    %1921 = vmatprep.subr.mxu0 %v745
    %1922 = vmatpush1.msra.mxu0 %v744
    %1923 = vmatprep.subr.mxu0 %v743
    %1924 = vmatpush1.msra.mxu0 %v742
    %1925 = vmatprep.subr.mxu0 %v741
    %1926 = vmatpush1.msra.mxu0 %v740
    %1927 = vmatprep.subr.mxu0 %v739
    %1928 = vmatpush1.msra.mxu0 %v738
    %1929 = vmatprep.subr.mxu0 %v737
    %1930 = vmatpush1.msra.mxu0 %v736
    %1931 = vmatprep.subr.mxu0 %v735
    %1932 = vmatpush1.msra.mxu0 %v734
    %1933 = vmatprep.subr.mxu0 %v733
    %1934 = vmatpush1.msra.mxu0 %v732
    %1935 = vmatprep.subr.mxu0 %v731
    %1936 = vmatpush1.msra.mxu0 %v730
    %1937 = vmatprep.subr.mxu0 %v729
    %1938 = vmatpush1.msra.mxu0 %v728
    %1939 = vmatprep.subr.mxu0 %v727
    %1940 = vmatpush1.msra.mxu0 %v726
    %1941 = vmatprep.subr.mxu0 %v725
    %1942 = vmatpush1.msra.mxu0 %v724
    %1943 = vmatprep.subr.mxu0 %v723
    %1944 = vmatpush1.msra.mxu0 %v722
    %1945 = vmatprep.subr.mxu0 %v721
    %1946 = vmatpush1.msra.mxu0 %v720
    %1947 = vmatprep.subr.mxu0 %v783
    %1948 = vmatpush2.msra.mxu0 %v782
    %1949 = vmatprep.subr.mxu0 %v781
    %1950 = vmatpush2.msra.mxu0 %v780
    %1951 = vmatprep.subr.mxu0 %v779
    %1952 = vmatpush2.msra.mxu0 %v778
    %1953 = vmatprep.subr.mxu0 %v777
    %1954 = vmatpush2.msra.mxu0 %v776
    %1955 = vmatprep.subr.mxu0 %v775
    %1956 = vmatpush2.msra.mxu0 %v774
    %1957 = vmatprep.subr.mxu0 %v773
    %1958 = vmatpush2.msra.mxu0 %v772
    %1959 = vmatprep.subr.mxu0 %v771
    %1960 = vmatpush2.msra.mxu0 %v770
    %1961 = vmatprep.subr.mxu0 %v769
    %1962 = vmatpush2.msra.mxu0 %v768
    %1963 = vmatprep.subr.mxu0 %v767
    %1964 = vmatpush2.msra.mxu0 %v766
    %1965 = vmatprep.subr.mxu0 %v765
    %1966 = vmatpush2.msra.mxu0 %v764
    %1967 = vmatprep.subr.mxu0 %v763
    %1968 = vmatpush2.msra.mxu0 %v762
    %1969 = vmatprep.subr.mxu0 %v761
    %1970 = vmatpush2.msra.mxu0 %v760
    %1971 = vmatprep.subr.mxu0 %v759
    %1972 = vmatpush2.msra.mxu0 %v758
    %1973 = vmatprep.subr.mxu0 %v757
    %1974 = vmatpush2.msra.mxu0 %v756
    %1975 = vmatprep.subr.mxu0 %v755
    %1976 = vmatpush2.msra.mxu0 %v754
    %1977 = vmatprep.subr.mxu0 %v753
    %1978 = vmatpush2.msra.mxu0 %v752
    %1979 = vmatprep.mubr.f32.mxu0 %v115
    %1980 = vmatmul.mubr.f32.gmra.mxu0 %v114
    %v1981 = vpop.f32.mrf.mxu0
    %v1982 = vadd.f32 %v1797, %v1981
    %v1983 = vpop.f32.mrf.mxu0
    %v1984 = vadd.f32 %v1799, %v1983
    %1985 = vmatprep.mubr.f32.mxu0 %v136
    %1986 = vmatmul.mubr.f32.gmra.mxu0 %v135
    %v1987 = vpop.f32.mrf.mxu0
    %v1988 = vadd.f32 %v1803, %v1987
    %v1989 = vpop.f32.mrf.mxu0
    %v1990 = vadd.f32 %v1805, %v1989
    %1991 = vmatprep.mubr.f32.mxu0 %v157
    %1992 = vmatmul.mubr.f32.gmra.mxu0 %v156
    %v1993 = vpop.f32.mrf.mxu0
    %v1994 = vadd.f32 %v1809, %v1993
    %v1995 = vpop.f32.mrf.mxu0
    %v1996 = vadd.f32 %v1811, %v1995
    %1997 = vmatprep.mubr.f32.mxu0 %v178
    %1998 = vmatmul.mubr.f32.gmra.mxu0 %v177
    %v1999 = vpop.f32.mrf.mxu0
    %v2000 = vadd.f32 %v1815, %v1999
    %v2001 = vpop.f32.mrf.mxu0
    %v2002 = vadd.f32 %v1817, %v2001
    %2003 = vmatprep.mubr.f32.mxu0 %v199
    %2004 = vmatmul.mubr.f32.gmra.mxu0 %v198
    %v2005 = vpop.f32.mrf.mxu0
    %v2006 = vadd.f32 %v1821, %v2005
    %v2007 = vpop.f32.mrf.mxu0
    %v2008 = vadd.f32 %v1823, %v2007
    %2009 = vmatprep.mubr.f32.mxu0 %v220
    %2010 = vmatmul.mubr.f32.gmra.mxu0 %v219
    %v2011 = vpop.f32.mrf.mxu0
    %v2012 = vadd.f32 %v1827, %v2011
    %v2013 = vpop.f32.mrf.mxu0
    %v2014 = vadd.f32 %v1829, %v2013
    %2015 = vmatprep.mubr.f32.mxu0 %v241
    %2016 = vmatmul.mubr.f32.gmra.mxu0 %v240
    %v2017 = vpop.f32.mrf.mxu0
    %v2018 = vadd.f32 %v1833, %v2017
    %v2019 = vpop.f32.mrf.mxu0
    %v2020 = vadd.f32 %v1835, %v2019
    %2021 = vmatprep.mubr.f32.mxu0 %v262
    %2022 = vmatmul.mubr.f32.gmra.mxu0 %v261
    %v2023 = vpop.f32.mrf.mxu0
    %v2024 = vadd.f32 %v1839, %v2023
    %v2025 = vpop.f32.mrf.mxu0
    %v2026 = vadd.f32 %v1841, %v2025
    %2027 = vmatprep.mubr.f32.mxu0 %v283
    %2028 = vmatmul.mubr.f32.gmra.mxu0 %v282
    %v2029 = vpop.f32.mrf.mxu0
    %v2030 = vadd.f32 %v1845, %v2029
    %v2031 = vpop.f32.mrf.mxu0
    %v2032 = vadd.f32 %v1847, %v2031
    %2033 = vmatprep.mubr.f32.mxu0 %v304
    %2034 = vmatmul.mubr.f32.gmra.mxu0 %v303
    %v2035 = vpop.f32.mrf.mxu0
    %v2036 = vadd.f32 %v1851, %v2035
    %v2037 = vpop.f32.mrf.mxu0
    %v2038 = vadd.f32 %v1853, %v2037
    %2039 = vmatprep.mubr.f32.mxu0 %v325
    %2040 = vmatmul.mubr.f32.gmra.mxu0 %v324
    %v2041 = vpop.f32.mrf.mxu0
    %v2042 = vadd.f32 %v1857, %v2041
    %v2043 = vpop.f32.mrf.mxu0
    %v2044 = vadd.f32 %v1859, %v2043
    %2045 = vmatprep.mubr.f32.mxu0 %v346
    %2046 = vmatmul.mubr.f32.gmra.mxu0 %v345
    %v2047 = vpop.f32.mrf.mxu0
    %v2048 = vadd.f32 %v1863, %v2047
    %v2049 = vpop.f32.mrf.mxu0
    %v2050 = vadd.f32 %v1865, %v2049
    %2051 = vmatprep.mubr.f32.mxu0 %v367
    %2052 = vmatmul.mubr.f32.gmra.mxu0 %v366
    %v2053 = vpop.f32.mrf.mxu0
    %v2054 = vadd.f32 %v1869, %v2053
    %v2055 = vpop.f32.mrf.mxu0
    %v2056 = vadd.f32 %v1871, %v2055
    %2057 = vmatprep.mubr.f32.mxu0 %v388
    %2058 = vmatmul.mubr.f32.gmra.mxu0 %v387
    %v2059 = vpop.f32.mrf.mxu0
    %v2060 = vadd.f32 %v1875, %v2059
    %v2061 = vpop.f32.mrf.mxu0
    %v2062 = vadd.f32 %v1877, %v2061
    %2063 = vmatprep.mubr.f32.mxu0 %v409
    %2064 = vmatmul.mubr.f32.gmra.mxu0 %v408
    %v2065 = vpop.f32.mrf.mxu0
    %v2066 = vadd.f32 %v1881, %v2065
    %v2067 = vpop.f32.mrf.mxu0
    %v2068 = vadd.f32 %v1883, %v2067
    %2069 = vmatprep.mubr.f32.mxu0 %v430
    %2070 = vmatmul.mubr.f32.gmra.mxu0 %v429
    %v2071 = vpop.f32.mrf.mxu0
    %v2072 = vadd.f32 %v1887, %v2071
    %v2073 = vpop.f32.mrf.mxu0
    %v2074 = vadd.f32 %v1889, %v2073
    %2075 = vmatprep.mubr.f32.mxu0 %v451
    %2076 = vmatmul.mubr.f32.gmra.mxu0 %v450
    %v2077 = vpop.f32.mrf.mxu0
    %v2078 = vadd.f32 %v1893, %v2077
    %v2079 = vpop.f32.mrf.mxu0
    %v2080 = vadd.f32 %v1895, %v2079
    %2081 = vmatprep.mubr.f32.mxu0 %v472
    %2082 = vmatmul.mubr.f32.gmra.mxu0 %v471
    %v2083 = vpop.f32.mrf.mxu0
    %v2084 = vadd.f32 %v1899, %v2083
    %v2085 = vpop.f32.mrf.mxu0
    %v2086 = vadd.f32 %v1901, %v2085
    %2087 = vmatprep.mubr.f32.mxu0 %v493
    %2088 = vmatmul.mubr.f32.gmra.mxu0 %v492
    %v2089 = vpop.f32.mrf.mxu0
    %v2090 = vadd.f32 %v1905, %v2089
    %v2091 = vpop.f32.mrf.mxu0
    %v2092 = vadd.f32 %v1907, %v2091
    %2093 = vmatprep.mubr.f32.mxu0 %v514
    %2094 = vmatmul.mubr.f32.gmra.mxu0 %v513
    %v2095 = vpop.f32.mrf.mxu0
    %v2096 = vadd.f32 %v1911, %v2095
    %v2097 = vpop.f32.mrf.mxu0
    %v2098 = vadd.f32 %v1913, %v2097
    %2099 = vdwg.mxu0
    %2100 = vmatprep.subr.mxu0 %v815
    %2101 = vmatpush1.msra.mxu0 %v814
    %2102 = vmatprep.subr.mxu0 %v813
    %2103 = vmatpush1.msra.mxu0 %v812
    %2104 = vmatprep.subr.mxu0 %v811
    %2105 = vmatpush1.msra.mxu0 %v810
    %2106 = vmatprep.subr.mxu0 %v809
    %2107 = vmatpush1.msra.mxu0 %v808
    %2108 = vmatprep.subr.mxu0 %v807
    %2109 = vmatpush1.msra.mxu0 %v806
    %2110 = vmatprep.subr.mxu0 %v805
    %2111 = vmatpush1.msra.mxu0 %v804
    %2112 = vmatprep.subr.mxu0 %v803
    %2113 = vmatpush1.msra.mxu0 %v802
    %2114 = vmatprep.subr.mxu0 %v801
    %2115 = vmatpush1.msra.mxu0 %v800
    %2116 = vmatprep.subr.mxu0 %v799
    %2117 = vmatpush1.msra.mxu0 %v798
    %2118 = vmatprep.subr.mxu0 %v797
    %2119 = vmatpush1.msra.mxu0 %v796
    %2120 = vmatprep.subr.mxu0 %v795
    %2121 = vmatpush1.msra.mxu0 %v794
    %2122 = vmatprep.subr.mxu0 %v793
    %2123 = vmatpush1.msra.mxu0 %v792
    %2124 = vmatprep.subr.mxu0 %v791
    %2125 = vmatpush1.msra.mxu0 %v790
    %2126 = vmatprep.subr.mxu0 %v789
    %2127 = vmatpush1.msra.mxu0 %v788
    %2128 = vmatprep.subr.mxu0 %v787
    %2129 = vmatpush1.msra.mxu0 %v786
    %2130 = vmatprep.subr.mxu0 %v785
    %2131 = vmatpush1.msra.mxu0 %v784
    %2132 = vmatprep.subr.mxu0 %v847
    %2133 = vmatpush2.msra.mxu0 %v846
    %2134 = vmatprep.subr.mxu0 %v845
    %2135 = vmatpush2.msra.mxu0 %v844
    %2136 = vmatprep.subr.mxu0 %v843
    %2137 = vmatpush2.msra.mxu0 %v842
    %2138 = vmatprep.subr.mxu0 %v841
    %2139 = vmatpush2.msra.mxu0 %v840
    %2140 = vmatprep.subr.mxu0 %v839
    %2141 = vmatpush2.msra.mxu0 %v838
    %2142 = vmatprep.subr.mxu0 %v837
    %2143 = vmatpush2.msra.mxu0 %v836
    %2144 = vmatprep.subr.mxu0 %v835
    %2145 = vmatpush2.msra.mxu0 %v834
    %2146 = vmatprep.subr.mxu0 %v833
    %2147 = vmatpush2.msra.mxu0 %v832
    %2148 = vmatprep.subr.mxu0 %v831
    %2149 = vmatpush2.msra.mxu0 %v830
    %2150 = vmatprep.subr.mxu0 %v829
    %2151 = vmatpush2.msra.mxu0 %v828
    %2152 = vmatprep.subr.mxu0 %v827
    %2153 = vmatpush2.msra.mxu0 %v826
    %2154 = vmatprep.subr.mxu0 %v825
    %2155 = vmatpush2.msra.mxu0 %v824
    %2156 = vmatprep.subr.mxu0 %v823
    %2157 = vmatpush2.msra.mxu0 %v822
    %2158 = vmatprep.subr.mxu0 %v821
    %2159 = vmatpush2.msra.mxu0 %v820
    %2160 = vmatprep.subr.mxu0 %v819
    %2161 = vmatpush2.msra.mxu0 %v818
    %2162 = vmatprep.subr.mxu0 %v817
    %2163 = vmatpush2.msra.mxu0 %v816
    %2164 = vmatprep.mubr.f32.mxu0 %v117
    %2165 = vmatmul.mubr.f32.gmra.mxu0 %v116
    %v2166 = vpop.f32.mrf.mxu0
    %v2167 = vadd.f32 %v1982, %v2166
    %v2168 = vpop.f32.mrf.mxu0
    %v2169 = vadd.f32 %v1984, %v2168
    %2170 = vmatprep.mubr.f32.mxu0 %v138
    %2171 = vmatmul.mubr.f32.gmra.mxu0 %v137
    %v2172 = vpop.f32.mrf.mxu0
    %v2173 = vadd.f32 %v1988, %v2172
    %v2174 = vpop.f32.mrf.mxu0
    %v2175 = vadd.f32 %v1990, %v2174
    %2176 = vmatprep.mubr.f32.mxu0 %v159
    %2177 = vmatmul.mubr.f32.gmra.mxu0 %v158
    %v2178 = vpop.f32.mrf.mxu0
    %v2179 = vadd.f32 %v1994, %v2178
    %v2180 = vpop.f32.mrf.mxu0
    %v2181 = vadd.f32 %v1996, %v2180
    %2182 = vmatprep.mubr.f32.mxu0 %v180
    %2183 = vmatmul.mubr.f32.gmra.mxu0 %v179
    %v2184 = vpop.f32.mrf.mxu0
    %v2185 = vadd.f32 %v2000, %v2184
    %v2186 = vpop.f32.mrf.mxu0
    %v2187 = vadd.f32 %v2002, %v2186
    %2188 = vmatprep.mubr.f32.mxu0 %v201
    %2189 = vmatmul.mubr.f32.gmra.mxu0 %v200
    %v2190 = vpop.f32.mrf.mxu0
    %v2191 = vadd.f32 %v2006, %v2190
    %v2192 = vpop.f32.mrf.mxu0
    %v2193 = vadd.f32 %v2008, %v2192
    %2194 = vmatprep.mubr.f32.mxu0 %v222
    %2195 = vmatmul.mubr.f32.gmra.mxu0 %v221
    %v2196 = vpop.f32.mrf.mxu0
    %v2197 = vadd.f32 %v2012, %v2196
    %v2198 = vpop.f32.mrf.mxu0
    %v2199 = vadd.f32 %v2014, %v2198
    %2200 = vmatprep.mubr.f32.mxu0 %v243
    %2201 = vmatmul.mubr.f32.gmra.mxu0 %v242
    %v2202 = vpop.f32.mrf.mxu0
    %v2203 = vadd.f32 %v2018, %v2202
    %v2204 = vpop.f32.mrf.mxu0
    %v2205 = vadd.f32 %v2020, %v2204
    %2206 = vmatprep.mubr.f32.mxu0 %v264
    %2207 = vmatmul.mubr.f32.gmra.mxu0 %v263
    %v2208 = vpop.f32.mrf.mxu0
    %v2209 = vadd.f32 %v2024, %v2208
    %v2210 = vpop.f32.mrf.mxu0
    %v2211 = vadd.f32 %v2026, %v2210
    %2212 = vmatprep.mubr.f32.mxu0 %v285
    %2213 = vmatmul.mubr.f32.gmra.mxu0 %v284
    %v2214 = vpop.f32.mrf.mxu0
    %v2215 = vadd.f32 %v2030, %v2214
    %v2216 = vpop.f32.mrf.mxu0
    %v2217 = vadd.f32 %v2032, %v2216
    %2218 = vmatprep.mubr.f32.mxu0 %v306
    %2219 = vmatmul.mubr.f32.gmra.mxu0 %v305
    %v2220 = vpop.f32.mrf.mxu0
    %v2221 = vadd.f32 %v2036, %v2220
    %v2222 = vpop.f32.mrf.mxu0
    %v2223 = vadd.f32 %v2038, %v2222
    %2224 = vmatprep.mubr.f32.mxu0 %v327
    %2225 = vmatmul.mubr.f32.gmra.mxu0 %v326
    %v2226 = vpop.f32.mrf.mxu0
    %v2227 = vadd.f32 %v2042, %v2226
    %v2228 = vpop.f32.mrf.mxu0
    %v2229 = vadd.f32 %v2044, %v2228
    %2230 = vmatprep.mubr.f32.mxu0 %v348
    %2231 = vmatmul.mubr.f32.gmra.mxu0 %v347
    %v2232 = vpop.f32.mrf.mxu0
    %v2233 = vadd.f32 %v2048, %v2232
    %v2234 = vpop.f32.mrf.mxu0
    %v2235 = vadd.f32 %v2050, %v2234
    %2236 = vmatprep.mubr.f32.mxu0 %v369
    %2237 = vmatmul.mubr.f32.gmra.mxu0 %v368
    %v2238 = vpop.f32.mrf.mxu0
    %v2239 = vadd.f32 %v2054, %v2238
    %v2240 = vpop.f32.mrf.mxu0
    %v2241 = vadd.f32 %v2056, %v2240
    %2242 = vmatprep.mubr.f32.mxu0 %v390
    %2243 = vmatmul.mubr.f32.gmra.mxu0 %v389
    %v2244 = vpop.f32.mrf.mxu0
    %v2245 = vadd.f32 %v2060, %v2244
    %v2246 = vpop.f32.mrf.mxu0
    %v2247 = vadd.f32 %v2062, %v2246
    %2248 = vmatprep.mubr.f32.mxu0 %v411
    %2249 = vmatmul.mubr.f32.gmra.mxu0 %v410
    %v2250 = vpop.f32.mrf.mxu0
    %v2251 = vadd.f32 %v2066, %v2250
    %v2252 = vpop.f32.mrf.mxu0
    %v2253 = vadd.f32 %v2068, %v2252
    %2254 = vmatprep.mubr.f32.mxu0 %v432
    %2255 = vmatmul.mubr.f32.gmra.mxu0 %v431
    %v2256 = vpop.f32.mrf.mxu0
    %v2257 = vadd.f32 %v2072, %v2256
    %v2258 = vpop.f32.mrf.mxu0
    %v2259 = vadd.f32 %v2074, %v2258
    %2260 = vmatprep.mubr.f32.mxu0 %v453
    %2261 = vmatmul.mubr.f32.gmra.mxu0 %v452
    %v2262 = vpop.f32.mrf.mxu0
    %v2263 = vadd.f32 %v2078, %v2262
    %v2264 = vpop.f32.mrf.mxu0
    %v2265 = vadd.f32 %v2080, %v2264
    %2266 = vmatprep.mubr.f32.mxu0 %v474
    %2267 = vmatmul.mubr.f32.gmra.mxu0 %v473
    %v2268 = vpop.f32.mrf.mxu0
    %v2269 = vadd.f32 %v2084, %v2268
    %v2270 = vpop.f32.mrf.mxu0
    %v2271 = vadd.f32 %v2086, %v2270
    %2272 = vmatprep.mubr.f32.mxu0 %v495
    %2273 = vmatmul.mubr.f32.gmra.mxu0 %v494
    %v2274 = vpop.f32.mrf.mxu0
    %v2275 = vadd.f32 %v2090, %v2274
    %v2276 = vpop.f32.mrf.mxu0
    %v2277 = vadd.f32 %v2092, %v2276
    %2278 = vmatprep.mubr.f32.mxu0 %v516
    %2279 = vmatmul.mubr.f32.gmra.mxu0 %v515
    %v2280 = vpop.f32.mrf.mxu0
    %v2281 = vadd.f32 %v2096, %v2280
    %v2282 = vpop.f32.mrf.mxu0
    %v2283 = vadd.f32 %v2098, %v2282
    %2284 = vdwg.mxu0
    %2285 = vmatprep.subr.mxu0 %v879
    %2286 = vmatpush1.msra.mxu0 %v878
    %2287 = vmatprep.subr.mxu0 %v877
    %2288 = vmatpush1.msra.mxu0 %v876
    %2289 = vmatprep.subr.mxu0 %v875
    %2290 = vmatpush1.msra.mxu0 %v874
    %2291 = vmatprep.subr.mxu0 %v873
    %2292 = vmatpush1.msra.mxu0 %v872
    %2293 = vmatprep.subr.mxu0 %v871
    %2294 = vmatpush1.msra.mxu0 %v870
    %2295 = vmatprep.subr.mxu0 %v869
    %2296 = vmatpush1.msra.mxu0 %v868
    %2297 = vmatprep.subr.mxu0 %v867
    %2298 = vmatpush1.msra.mxu0 %v866
    %2299 = vmatprep.subr.mxu0 %v865
    %2300 = vmatpush1.msra.mxu0 %v864
    %2301 = vmatprep.subr.mxu0 %v863
    %2302 = vmatpush1.msra.mxu0 %v862
    %2303 = vmatprep.subr.mxu0 %v861
    %2304 = vmatpush1.msra.mxu0 %v860
    %2305 = vmatprep.subr.mxu0 %v859
    %2306 = vmatpush1.msra.mxu0 %v858
    %2307 = vmatprep.subr.mxu0 %v857
    %2308 = vmatpush1.msra.mxu0 %v856
    %2309 = vmatprep.subr.mxu0 %v855
    %2310 = vmatpush1.msra.mxu0 %v854
    %2311 = vmatprep.subr.mxu0 %v853
    %2312 = vmatpush1.msra.mxu0 %v852
    %2313 = vmatprep.subr.mxu0 %v851
    %2314 = vmatpush1.msra.mxu0 %v850
    %2315 = vmatprep.subr.mxu0 %v849
    %2316 = vmatpush1.msra.mxu0 %v848
    %2317 = vmatprep.subr.mxu0 %v911
    %2318 = vmatpush2.msra.mxu0 %v910
    %2319 = vmatprep.subr.mxu0 %v909
    %2320 = vmatpush2.msra.mxu0 %v908
    %2321 = vmatprep.subr.mxu0 %v907
    %2322 = vmatpush2.msra.mxu0 %v906
    %2323 = vmatprep.subr.mxu0 %v905
    %2324 = vmatpush2.msra.mxu0 %v904
    %2325 = vmatprep.subr.mxu0 %v903
    %2326 = vmatpush2.msra.mxu0 %v902
    %2327 = vmatprep.subr.mxu0 %v901
    %2328 = vmatpush2.msra.mxu0 %v900
    %2329 = vmatprep.subr.mxu0 %v899
    %2330 = vmatpush2.msra.mxu0 %v898
    %2331 = vmatprep.subr.mxu0 %v897
    %2332 = vmatpush2.msra.mxu0 %v896
    %2333 = vmatprep.subr.mxu0 %v895
    %2334 = vmatpush2.msra.mxu0 %v894
    %2335 = vmatprep.subr.mxu0 %v893
    %2336 = vmatpush2.msra.mxu0 %v892
    %2337 = vmatprep.subr.mxu0 %v891
    %2338 = vmatpush2.msra.mxu0 %v890
    %2339 = vmatprep.subr.mxu0 %v889
    %2340 = vmatpush2.msra.mxu0 %v888
    %2341 = vmatprep.subr.mxu0 %v887
    %2342 = vmatpush2.msra.mxu0 %v886
    %2343 = vmatprep.subr.mxu0 %v885
    %2344 = vmatpush2.msra.mxu0 %v884
    %2345 = vmatprep.subr.mxu0 %v883
    %2346 = vmatpush2.msra.mxu0 %v882
    %2347 = vmatprep.subr.mxu0 %v881
    %2348 = vmatpush2.msra.mxu0 %v880
    %2349 = vmatprep.mubr.f32.mxu0 %v119
    %2350 = vmatmul.mubr.f32.gmra.mxu0 %v118
    %v2351 = vpop.f32.mrf.mxu0
    %v2352 = vadd.f32 %v2167, %v2351
    %v2353 = vpop.f32.mrf.mxu0
    %v2354 = vadd.f32 %v2169, %v2353
    %2355 = vmatprep.mubr.f32.mxu0 %v140
    %2356 = vmatmul.mubr.f32.gmra.mxu0 %v139
    %v2357 = vpop.f32.mrf.mxu0
    %v2358 = vadd.f32 %v2173, %v2357
    %v2359 = vpop.f32.mrf.mxu0
    %v2360 = vadd.f32 %v2175, %v2359
    %2361 = vmatprep.mubr.f32.mxu0 %v161
    %2362 = vmatmul.mubr.f32.gmra.mxu0 %v160
    %v2363 = vpop.f32.mrf.mxu0
    %v2364 = vadd.f32 %v2179, %v2363
    %v2365 = vpop.f32.mrf.mxu0
    %v2366 = vadd.f32 %v2181, %v2365
    %2367 = vmatprep.mubr.f32.mxu0 %v182
    %2368 = vmatmul.mubr.f32.gmra.mxu0 %v181
    %v2369 = vpop.f32.mrf.mxu0
    %v2370 = vadd.f32 %v2185, %v2369
    %v2371 = vpop.f32.mrf.mxu0
    %v2372 = vadd.f32 %v2187, %v2371
    %2373 = vmatprep.mubr.f32.mxu0 %v203
    %2374 = vmatmul.mubr.f32.gmra.mxu0 %v202
    %v2375 = vpop.f32.mrf.mxu0
    %v2376 = vadd.f32 %v2191, %v2375
    %v2377 = vpop.f32.mrf.mxu0
    %v2378 = vadd.f32 %v2193, %v2377
    %2379 = vmatprep.mubr.f32.mxu0 %v224
    %2380 = vmatmul.mubr.f32.gmra.mxu0 %v223
    %v2381 = vpop.f32.mrf.mxu0
    %v2382 = vadd.f32 %v2197, %v2381
    %v2383 = vpop.f32.mrf.mxu0
    %v2384 = vadd.f32 %v2199, %v2383
    %2385 = vmatprep.mubr.f32.mxu0 %v245
    %2386 = vmatmul.mubr.f32.gmra.mxu0 %v244
    %v2387 = vpop.f32.mrf.mxu0
    %v2388 = vadd.f32 %v2203, %v2387
    %v2389 = vpop.f32.mrf.mxu0
    %v2390 = vadd.f32 %v2205, %v2389
    %2391 = vmatprep.mubr.f32.mxu0 %v266
    %2392 = vmatmul.mubr.f32.gmra.mxu0 %v265
    %v2393 = vpop.f32.mrf.mxu0
    %v2394 = vadd.f32 %v2209, %v2393
    %v2395 = vpop.f32.mrf.mxu0
    %v2396 = vadd.f32 %v2211, %v2395
    %2397 = vmatprep.mubr.f32.mxu0 %v287
    %2398 = vmatmul.mubr.f32.gmra.mxu0 %v286
    %v2399 = vpop.f32.mrf.mxu0
    %v2400 = vadd.f32 %v2215, %v2399
    %v2401 = vpop.f32.mrf.mxu0
    %v2402 = vadd.f32 %v2217, %v2401
    %2403 = vmatprep.mubr.f32.mxu0 %v308
    %2404 = vmatmul.mubr.f32.gmra.mxu0 %v307
    %v2405 = vpop.f32.mrf.mxu0
    %v2406 = vadd.f32 %v2221, %v2405
    %v2407 = vpop.f32.mrf.mxu0
    %v2408 = vadd.f32 %v2223, %v2407
    %2409 = vmatprep.mubr.f32.mxu0 %v329
    %2410 = vmatmul.mubr.f32.gmra.mxu0 %v328
    %v2411 = vpop.f32.mrf.mxu0
    %v2412 = vadd.f32 %v2227, %v2411
    %v2413 = vpop.f32.mrf.mxu0
    %v2414 = vadd.f32 %v2229, %v2413
    %2415 = vmatprep.mubr.f32.mxu0 %v350
    %2416 = vmatmul.mubr.f32.gmra.mxu0 %v349
    %v2417 = vpop.f32.mrf.mxu0
    %v2418 = vadd.f32 %v2233, %v2417
    %v2419 = vpop.f32.mrf.mxu0
    %v2420 = vadd.f32 %v2235, %v2419
    %2421 = vmatprep.mubr.f32.mxu0 %v371
    %2422 = vmatmul.mubr.f32.gmra.mxu0 %v370
    %v2423 = vpop.f32.mrf.mxu0
    %v2424 = vadd.f32 %v2239, %v2423
    %v2425 = vpop.f32.mrf.mxu0
    %v2426 = vadd.f32 %v2241, %v2425
    %2427 = vmatprep.mubr.f32.mxu0 %v392
    %2428 = vmatmul.mubr.f32.gmra.mxu0 %v391
    %v2429 = vpop.f32.mrf.mxu0
    %v2430 = vadd.f32 %v2245, %v2429
    %v2431 = vpop.f32.mrf.mxu0
    %v2432 = vadd.f32 %v2247, %v2431
    %2433 = vmatprep.mubr.f32.mxu0 %v413
    %2434 = vmatmul.mubr.f32.gmra.mxu0 %v412
    %v2435 = vpop.f32.mrf.mxu0
    %v2436 = vadd.f32 %v2251, %v2435
    %v2437 = vpop.f32.mrf.mxu0
    %v2438 = vadd.f32 %v2253, %v2437
    %2439 = vmatprep.mubr.f32.mxu0 %v434
    %2440 = vmatmul.mubr.f32.gmra.mxu0 %v433
    %v2441 = vpop.f32.mrf.mxu0
    %v2442 = vadd.f32 %v2257, %v2441
    %v2443 = vpop.f32.mrf.mxu0
    %v2444 = vadd.f32 %v2259, %v2443
    %2445 = vmatprep.mubr.f32.mxu0 %v455
    %2446 = vmatmul.mubr.f32.gmra.mxu0 %v454
    %v2447 = vpop.f32.mrf.mxu0
    %v2448 = vadd.f32 %v2263, %v2447
    %v2449 = vpop.f32.mrf.mxu0
    %v2450 = vadd.f32 %v2265, %v2449
    %2451 = vmatprep.mubr.f32.mxu0 %v476
    %2452 = vmatmul.mubr.f32.gmra.mxu0 %v475
    %v2453 = vpop.f32.mrf.mxu0
    %v2454 = vadd.f32 %v2269, %v2453
    %v2455 = vpop.f32.mrf.mxu0
    %v2456 = vadd.f32 %v2271, %v2455
    %2457 = vmatprep.mubr.f32.mxu0 %v497
    %2458 = vmatmul.mubr.f32.gmra.mxu0 %v496
    %v2459 = vpop.f32.mrf.mxu0
    %v2460 = vadd.f32 %v2275, %v2459
    %v2461 = vpop.f32.mrf.mxu0
    %v2462 = vadd.f32 %v2277, %v2461
    %2463 = vmatprep.mubr.f32.mxu0 %v518
    %2464 = vmatmul.mubr.f32.gmra.mxu0 %v517
    %v2465 = vpop.f32.mrf.mxu0
    %v2466 = vadd.f32 %v2281, %v2465
    %v2467 = vpop.f32.mrf.mxu0
    %v2468 = vadd.f32 %v2283, %v2467
    %2469 = vdwg.mxu0
    %2470 = vmatprep.subr.mxu0 %v943
    %2471 = vmatpush1.msra.mxu0 %v942
    %2472 = vmatprep.subr.mxu0 %v941
    %2473 = vmatpush1.msra.mxu0 %v940
    %2474 = vmatprep.subr.mxu0 %v939
    %2475 = vmatpush1.msra.mxu0 %v938
    %2476 = vmatprep.subr.mxu0 %v937
    %2477 = vmatpush1.msra.mxu0 %v936
    %2478 = vmatprep.subr.mxu0 %v935
    %2479 = vmatpush1.msra.mxu0 %v934
    %2480 = vmatprep.subr.mxu0 %v933
    %2481 = vmatpush1.msra.mxu0 %v932
    %2482 = vmatprep.subr.mxu0 %v931
    %2483 = vmatpush1.msra.mxu0 %v930
    %2484 = vmatprep.subr.mxu0 %v929
    %2485 = vmatpush1.msra.mxu0 %v928
    %2486 = vmatprep.subr.mxu0 %v927
    %2487 = vmatpush1.msra.mxu0 %v926
    %2488 = vmatprep.subr.mxu0 %v925
    %2489 = vmatpush1.msra.mxu0 %v924
    %2490 = vmatprep.subr.mxu0 %v923
    %2491 = vmatpush1.msra.mxu0 %v922
    %2492 = vmatprep.subr.mxu0 %v921
    %2493 = vmatpush1.msra.mxu0 %v920
    %2494 = vmatprep.subr.mxu0 %v919
    %2495 = vmatpush1.msra.mxu0 %v918
    %2496 = vmatprep.subr.mxu0 %v917
    %2497 = vmatpush1.msra.mxu0 %v916
    %2498 = vmatprep.subr.mxu0 %v915
    %2499 = vmatpush1.msra.mxu0 %v914
    %2500 = vmatprep.subr.mxu0 %v913
    %2501 = vmatpush1.msra.mxu0 %v912
    %2502 = vmatprep.subr.mxu0 %v975
    %2503 = vmatpush2.msra.mxu0 %v974
    %2504 = vmatprep.subr.mxu0 %v973
    %2505 = vmatpush2.msra.mxu0 %v972
    %2506 = vmatprep.subr.mxu0 %v971
    %2507 = vmatpush2.msra.mxu0 %v970
    %2508 = vmatprep.subr.mxu0 %v969
    %2509 = vmatpush2.msra.mxu0 %v968
    %2510 = vmatprep.subr.mxu0 %v967
    %2511 = vmatpush2.msra.mxu0 %v966
    %2512 = vmatprep.subr.mxu0 %v965
    %2513 = vmatpush2.msra.mxu0 %v964
    %2514 = vmatprep.subr.mxu0 %v963
    %2515 = vmatpush2.msra.mxu0 %v962
    %2516 = vmatprep.subr.mxu0 %v961
    %2517 = vmatpush2.msra.mxu0 %v960
    %2518 = vmatprep.subr.mxu0 %v959
    %2519 = vmatpush2.msra.mxu0 %v958
    %2520 = vmatprep.subr.mxu0 %v957
    %2521 = vmatpush2.msra.mxu0 %v956
    %2522 = vmatprep.subr.mxu0 %v955
    %2523 = vmatpush2.msra.mxu0 %v954
    %2524 = vmatprep.subr.mxu0 %v953
    %2525 = vmatpush2.msra.mxu0 %v952
    %2526 = vmatprep.subr.mxu0 %v951
    %2527 = vmatpush2.msra.mxu0 %v950
    %2528 = vmatprep.subr.mxu0 %v949
    %2529 = vmatpush2.msra.mxu0 %v948
    %2530 = vmatprep.subr.mxu0 %v947
    %2531 = vmatpush2.msra.mxu0 %v946
    %2532 = vmatprep.subr.mxu0 %v945
    %2533 = vmatpush2.msra.mxu0 %v944
    %2534 = vmatprep.mubr.f32.mxu0 %v121
    %2535 = vmatmul.mubr.f32.gmra.mxu0 %v120
    %v2536 = vpop.f32.mrf.mxu0
    %v2537 = vadd.f32 %v2352, %v2536
    %v2538 = vpop.f32.mrf.mxu0
    %v2539 = vadd.f32 %v2354, %v2538
    %2540 = vmatprep.mubr.f32.mxu0 %v142
    %2541 = vmatmul.mubr.f32.gmra.mxu0 %v141
    %v2542 = vpop.f32.mrf.mxu0
    %v2543 = vadd.f32 %v2358, %v2542
    %v2544 = vpop.f32.mrf.mxu0
    %v2545 = vadd.f32 %v2360, %v2544
    %2546 = vmatprep.mubr.f32.mxu0 %v163
    %2547 = vmatmul.mubr.f32.gmra.mxu0 %v162
    %v2548 = vpop.f32.mrf.mxu0
    %v2549 = vadd.f32 %v2364, %v2548
    %v2550 = vpop.f32.mrf.mxu0
    %v2551 = vadd.f32 %v2366, %v2550
    %2552 = vmatprep.mubr.f32.mxu0 %v184
    %2553 = vmatmul.mubr.f32.gmra.mxu0 %v183
    %v2554 = vpop.f32.mrf.mxu0
    %v2555 = vadd.f32 %v2370, %v2554
    %v2556 = vpop.f32.mrf.mxu0
    %v2557 = vadd.f32 %v2372, %v2556
    %2558 = vmatprep.mubr.f32.mxu0 %v205
    %2559 = vmatmul.mubr.f32.gmra.mxu0 %v204
    %v2560 = vpop.f32.mrf.mxu0
    %v2561 = vadd.f32 %v2376, %v2560
    %v2562 = vpop.f32.mrf.mxu0
    %v2563 = vadd.f32 %v2378, %v2562
    %2564 = vmatprep.mubr.f32.mxu0 %v226
    %2565 = vmatmul.mubr.f32.gmra.mxu0 %v225
    %v2566 = vpop.f32.mrf.mxu0
    %v2567 = vadd.f32 %v2382, %v2566
    %v2568 = vpop.f32.mrf.mxu0
    %v2569 = vadd.f32 %v2384, %v2568
    %2570 = vmatprep.mubr.f32.mxu0 %v247
    %2571 = vmatmul.mubr.f32.gmra.mxu0 %v246
    %v2572 = vpop.f32.mrf.mxu0
    %v2573 = vadd.f32 %v2388, %v2572
    %v2574 = vpop.f32.mrf.mxu0
    %v2575 = vadd.f32 %v2390, %v2574
    %2576 = vmatprep.mubr.f32.mxu0 %v268
    %2577 = vmatmul.mubr.f32.gmra.mxu0 %v267
    %v2578 = vpop.f32.mrf.mxu0
    %v2579 = vadd.f32 %v2394, %v2578
    %v2580 = vpop.f32.mrf.mxu0
    %v2581 = vadd.f32 %v2396, %v2580
    %2582 = vmatprep.mubr.f32.mxu0 %v289
    %2583 = vmatmul.mubr.f32.gmra.mxu0 %v288
    %v2584 = vpop.f32.mrf.mxu0
    %v2585 = vadd.f32 %v2400, %v2584
    %v2586 = vpop.f32.mrf.mxu0
    %v2587 = vadd.f32 %v2402, %v2586
    %2588 = vmatprep.mubr.f32.mxu0 %v310
    %2589 = vmatmul.mubr.f32.gmra.mxu0 %v309
    %v2590 = vpop.f32.mrf.mxu0
    %v2591 = vadd.f32 %v2406, %v2590
    %v2592 = vpop.f32.mrf.mxu0
    %v2593 = vadd.f32 %v2408, %v2592
    %2594 = vmatprep.mubr.f32.mxu0 %v331
    %2595 = vmatmul.mubr.f32.gmra.mxu0 %v330
    %v2596 = vpop.f32.mrf.mxu0
    %v2597 = vadd.f32 %v2412, %v2596
    %v2598 = vpop.f32.mrf.mxu0
    %v2599 = vadd.f32 %v2414, %v2598
    %2600 = vmatprep.mubr.f32.mxu0 %v352
    %2601 = vmatmul.mubr.f32.gmra.mxu0 %v351
    %v2602 = vpop.f32.mrf.mxu0
    %v2603 = vadd.f32 %v2418, %v2602
    %v2604 = vpop.f32.mrf.mxu0
    %v2605 = vadd.f32 %v2420, %v2604
    %2606 = vmatprep.mubr.f32.mxu0 %v373
    %2607 = vmatmul.mubr.f32.gmra.mxu0 %v372
    %v2608 = vpop.f32.mrf.mxu0
    %v2609 = vadd.f32 %v2424, %v2608
    %v2610 = vpop.f32.mrf.mxu0
    %v2611 = vadd.f32 %v2426, %v2610
    %2612 = vmatprep.mubr.f32.mxu0 %v394
    %2613 = vmatmul.mubr.f32.gmra.mxu0 %v393
    %v2614 = vpop.f32.mrf.mxu0
    %v2615 = vadd.f32 %v2430, %v2614
    %v2616 = vpop.f32.mrf.mxu0
    %v2617 = vadd.f32 %v2432, %v2616
    %2618 = vmatprep.mubr.f32.mxu0 %v415
    %2619 = vmatmul.mubr.f32.gmra.mxu0 %v414
    %v2620 = vpop.f32.mrf.mxu0
    %v2621 = vadd.f32 %v2436, %v2620
    %v2622 = vpop.f32.mrf.mxu0
    %v2623 = vadd.f32 %v2438, %v2622
    %2624 = vmatprep.mubr.f32.mxu0 %v436
    %2625 = vmatmul.mubr.f32.gmra.mxu0 %v435
    %v2626 = vpop.f32.mrf.mxu0
    %v2627 = vadd.f32 %v2442, %v2626
    %v2628 = vpop.f32.mrf.mxu0
    %v2629 = vadd.f32 %v2444, %v2628
    %2630 = vmatprep.mubr.f32.mxu0 %v457
    %2631 = vmatmul.mubr.f32.gmra.mxu0 %v456
    %v2632 = vpop.f32.mrf.mxu0
    %v2633 = vadd.f32 %v2448, %v2632
    %v2634 = vpop.f32.mrf.mxu0
    %v2635 = vadd.f32 %v2450, %v2634
    %2636 = vmatprep.mubr.f32.mxu0 %v478
    %2637 = vmatmul.mubr.f32.gmra.mxu0 %v477
    %v2638 = vpop.f32.mrf.mxu0
    %v2639 = vadd.f32 %v2454, %v2638
    %v2640 = vpop.f32.mrf.mxu0
    %v2641 = vadd.f32 %v2456, %v2640
    %2642 = vmatprep.mubr.f32.mxu0 %v499
    %2643 = vmatmul.mubr.f32.gmra.mxu0 %v498
    %v2644 = vpop.f32.mrf.mxu0
    %v2645 = vadd.f32 %v2460, %v2644
    %v2646 = vpop.f32.mrf.mxu0
    %v2647 = vadd.f32 %v2462, %v2646
    %2648 = vmatprep.mubr.f32.mxu0 %v520
    %2649 = vmatmul.mubr.f32.gmra.mxu0 %v519
    %v2650 = vpop.f32.mrf.mxu0
    %v2651 = vadd.f32 %v2466, %v2650
    %v2652 = vpop.f32.mrf.mxu0
    %v2653 = vadd.f32 %v2468, %v2652
    %2654 = vdwg.mxu0
    %2655 = vmatprep.subr.mxu0 %v1007
    %2656 = vmatpush1.msra.mxu0 %v1006
    %2657 = vmatprep.subr.mxu0 %v1005
    %2658 = vmatpush1.msra.mxu0 %v1004
    %2659 = vmatprep.subr.mxu0 %v1003
    %2660 = vmatpush1.msra.mxu0 %v1002
    %2661 = vmatprep.subr.mxu0 %v1001
    %2662 = vmatpush1.msra.mxu0 %v1000
    %2663 = vmatprep.subr.mxu0 %v999
    %2664 = vmatpush1.msra.mxu0 %v998
    %2665 = vmatprep.subr.mxu0 %v997
    %2666 = vmatpush1.msra.mxu0 %v996
    %2667 = vmatprep.subr.mxu0 %v995
    %2668 = vmatpush1.msra.mxu0 %v994
    %2669 = vmatprep.subr.mxu0 %v993
    %2670 = vmatpush1.msra.mxu0 %v992
    %2671 = vmatprep.subr.mxu0 %v991
    %2672 = vmatpush1.msra.mxu0 %v990
    %2673 = vmatprep.subr.mxu0 %v989
    %2674 = vmatpush1.msra.mxu0 %v988
    %2675 = vmatprep.subr.mxu0 %v987
    %2676 = vmatpush1.msra.mxu0 %v986
    %2677 = vmatprep.subr.mxu0 %v985
    %2678 = vmatpush1.msra.mxu0 %v984
    %2679 = vmatprep.subr.mxu0 %v983
    %2680 = vmatpush1.msra.mxu0 %v982
    %2681 = vmatprep.subr.mxu0 %v981
    %2682 = vmatpush1.msra.mxu0 %v980
    %2683 = vmatprep.subr.mxu0 %v979
    %2684 = vmatpush1.msra.mxu0 %v978
    %2685 = vmatprep.subr.mxu0 %v977
    %2686 = vmatpush1.msra.mxu0 %v976
    %2687 = vmatprep.subr.mxu0 %v1039
    %2688 = vmatpush2.msra.mxu0 %v1038
    %2689 = vmatprep.subr.mxu0 %v1037
    %2690 = vmatpush2.msra.mxu0 %v1036
    %2691 = vmatprep.subr.mxu0 %v1035
    %2692 = vmatpush2.msra.mxu0 %v1034
    %2693 = vmatprep.subr.mxu0 %v1033
    %2694 = vmatpush2.msra.mxu0 %v1032
    %2695 = vmatprep.subr.mxu0 %v1031
    %2696 = vmatpush2.msra.mxu0 %v1030
    %2697 = vmatprep.subr.mxu0 %v1029
    %2698 = vmatpush2.msra.mxu0 %v1028
    %2699 = vmatprep.subr.mxu0 %v1027
    %2700 = vmatpush2.msra.mxu0 %v1026
    %2701 = vmatprep.subr.mxu0 %v1025
    %2702 = vmatpush2.msra.mxu0 %v1024
    %2703 = vmatprep.subr.mxu0 %v1023
    %2704 = vmatpush2.msra.mxu0 %v1022
    %2705 = vmatprep.subr.mxu0 %v1021
    %2706 = vmatpush2.msra.mxu0 %v1020
    %2707 = vmatprep.subr.mxu0 %v1019
    %2708 = vmatpush2.msra.mxu0 %v1018
    %2709 = vmatprep.subr.mxu0 %v1017
    %2710 = vmatpush2.msra.mxu0 %v1016
    %2711 = vmatprep.subr.mxu0 %v1015
    %2712 = vmatpush2.msra.mxu0 %v1014
    %2713 = vmatprep.subr.mxu0 %v1013
    %2714 = vmatpush2.msra.mxu0 %v1012
    %2715 = vmatprep.subr.mxu0 %v1011
    %2716 = vmatpush2.msra.mxu0 %v1010
    %2717 = vmatprep.subr.mxu0 %v1009
    %2718 = vmatpush2.msra.mxu0 %v1008
    %2719 = vmatprep.mubr.f32.mxu0 %v123
    %2720 = vmatmul.mubr.f32.gmra.mxu0 %v122
    %v2721 = vpop.f32.mrf.mxu0
    %v2722 = vadd.f32 %v2537, %v2721
    %v2723 = vpop.f32.mrf.mxu0
    %v2724 = vadd.f32 %v2539, %v2723
    %2725 = vmatprep.mubr.f32.mxu0 %v144
    %2726 = vmatmul.mubr.f32.gmra.mxu0 %v143
    %v2727 = vpop.f32.mrf.mxu0
    %v2728 = vadd.f32 %v2543, %v2727
    %v2729 = vpop.f32.mrf.mxu0
    %v2730 = vadd.f32 %v2545, %v2729
    %2731 = vmatprep.mubr.f32.mxu0 %v165
    %2732 = vmatmul.mubr.f32.gmra.mxu0 %v164
    %v2733 = vpop.f32.mrf.mxu0
    %v2734 = vadd.f32 %v2549, %v2733
    %v2735 = vpop.f32.mrf.mxu0
    %v2736 = vadd.f32 %v2551, %v2735
    %2737 = vmatprep.mubr.f32.mxu0 %v186
    %2738 = vmatmul.mubr.f32.gmra.mxu0 %v185
    %v2739 = vpop.f32.mrf.mxu0
    %v2740 = vadd.f32 %v2555, %v2739
    %v2741 = vpop.f32.mrf.mxu0
    %v2742 = vadd.f32 %v2557, %v2741
    %2743 = vmatprep.mubr.f32.mxu0 %v207
    %2744 = vmatmul.mubr.f32.gmra.mxu0 %v206
    %v2745 = vpop.f32.mrf.mxu0
    %v2746 = vadd.f32 %v2561, %v2745
    %v2747 = vpop.f32.mrf.mxu0
    %v2748 = vadd.f32 %v2563, %v2747
    %2749 = vmatprep.mubr.f32.mxu0 %v228
    %2750 = vmatmul.mubr.f32.gmra.mxu0 %v227
    %v2751 = vpop.f32.mrf.mxu0
    %v2752 = vadd.f32 %v2567, %v2751
    %v2753 = vpop.f32.mrf.mxu0
    %v2754 = vadd.f32 %v2569, %v2753
    %2755 = vmatprep.mubr.f32.mxu0 %v249
    %2756 = vmatmul.mubr.f32.gmra.mxu0 %v248
    %v2757 = vpop.f32.mrf.mxu0
    %v2758 = vadd.f32 %v2573, %v2757
    %v2759 = vpop.f32.mrf.mxu0
    %v2760 = vadd.f32 %v2575, %v2759
    %2761 = vmatprep.mubr.f32.mxu0 %v270
    %2762 = vmatmul.mubr.f32.gmra.mxu0 %v269
    %v2763 = vpop.f32.mrf.mxu0
    %v2764 = vadd.f32 %v2579, %v2763
    %v2765 = vpop.f32.mrf.mxu0
    %v2766 = vadd.f32 %v2581, %v2765
    %2767 = vmatprep.mubr.f32.mxu0 %v291
    %2768 = vmatmul.mubr.f32.gmra.mxu0 %v290
    %v2769 = vpop.f32.mrf.mxu0
    %v2770 = vadd.f32 %v2585, %v2769
    %v2771 = vpop.f32.mrf.mxu0
    %v2772 = vadd.f32 %v2587, %v2771
    %2773 = vmatprep.mubr.f32.mxu0 %v312
    %2774 = vmatmul.mubr.f32.gmra.mxu0 %v311
    %v2775 = vpop.f32.mrf.mxu0
    %v2776 = vadd.f32 %v2591, %v2775
    %v2777 = vpop.f32.mrf.mxu0
    %v2778 = vadd.f32 %v2593, %v2777
    %2779 = vmatprep.mubr.f32.mxu0 %v333
    %2780 = vmatmul.mubr.f32.gmra.mxu0 %v332
    %v2781 = vpop.f32.mrf.mxu0
    %v2782 = vadd.f32 %v2597, %v2781
    %v2783 = vpop.f32.mrf.mxu0
    %v2784 = vadd.f32 %v2599, %v2783
    %2785 = vmatprep.mubr.f32.mxu0 %v354
    %2786 = vmatmul.mubr.f32.gmra.mxu0 %v353
    %v2787 = vpop.f32.mrf.mxu0
    %v2788 = vadd.f32 %v2603, %v2787
    %v2789 = vpop.f32.mrf.mxu0
    %v2790 = vadd.f32 %v2605, %v2789
    %2791 = vmatprep.mubr.f32.mxu0 %v375
    %2792 = vmatmul.mubr.f32.gmra.mxu0 %v374
    %v2793 = vpop.f32.mrf.mxu0
    %v2794 = vadd.f32 %v2609, %v2793
    %v2795 = vpop.f32.mrf.mxu0
    %v2796 = vadd.f32 %v2611, %v2795
    %2797 = vmatprep.mubr.f32.mxu0 %v396
    %2798 = vmatmul.mubr.f32.gmra.mxu0 %v395
    %v2799 = vpop.f32.mrf.mxu0
    %v2800 = vadd.f32 %v2615, %v2799
    %v2801 = vpop.f32.mrf.mxu0
    %v2802 = vadd.f32 %v2617, %v2801
    %2803 = vmatprep.mubr.f32.mxu0 %v417
    %2804 = vmatmul.mubr.f32.gmra.mxu0 %v416
    %v2805 = vpop.f32.mrf.mxu0
    %v2806 = vadd.f32 %v2621, %v2805
    %v2807 = vpop.f32.mrf.mxu0
    %v2808 = vadd.f32 %v2623, %v2807
    %2809 = vmatprep.mubr.f32.mxu0 %v438
    %2810 = vmatmul.mubr.f32.gmra.mxu0 %v437
    %v2811 = vpop.f32.mrf.mxu0
    %v2812 = vadd.f32 %v2627, %v2811
    %v2813 = vpop.f32.mrf.mxu0
    %v2814 = vadd.f32 %v2629, %v2813
    %2815 = vmatprep.mubr.f32.mxu0 %v459
    %2816 = vmatmul.mubr.f32.gmra.mxu0 %v458
    %v2817 = vpop.f32.mrf.mxu0
    %v2818 = vadd.f32 %v2633, %v2817
    %v2819 = vpop.f32.mrf.mxu0
    %v2820 = vadd.f32 %v2635, %v2819
    %2821 = vmatprep.mubr.f32.mxu0 %v480
    %2822 = vmatmul.mubr.f32.gmra.mxu0 %v479
    %v2823 = vpop.f32.mrf.mxu0
    %v2824 = vadd.f32 %v2639, %v2823
    %v2825 = vpop.f32.mrf.mxu0
    %v2826 = vadd.f32 %v2641, %v2825
    %2827 = vmatprep.mubr.f32.mxu0 %v501
    %2828 = vmatmul.mubr.f32.gmra.mxu0 %v500
    %v2829 = vpop.f32.mrf.mxu0
    %v2830 = vadd.f32 %v2645, %v2829
    %v2831 = vpop.f32.mrf.mxu0
    %v2832 = vadd.f32 %v2647, %v2831
    %2833 = vmatprep.mubr.f32.mxu0 %v522
    %2834 = vmatmul.mubr.f32.gmra.mxu0 %v521
    %v2835 = vpop.f32.mrf.mxu0
    %v2836 = vadd.f32 %v2651, %v2835
    %v2837 = vpop.f32.mrf.mxu0
    %v2838 = vadd.f32 %v2653, %v2837
    %2839 = vdwg.mxu0
    %2840 = vmatprep.subr.mxu0 %v1071
    %2841 = vmatpush1.msra.mxu0 %v1070
    %2842 = vmatprep.subr.mxu0 %v1069
    %2843 = vmatpush1.msra.mxu0 %v1068
    %2844 = vmatprep.subr.mxu0 %v1067
    %2845 = vmatpush1.msra.mxu0 %v1066
    %2846 = vmatprep.subr.mxu0 %v1065
    %2847 = vmatpush1.msra.mxu0 %v1064
    %2848 = vmatprep.subr.mxu0 %v1063
    %2849 = vmatpush1.msra.mxu0 %v1062
    %2850 = vmatprep.subr.mxu0 %v1061
    %2851 = vmatpush1.msra.mxu0 %v1060
    %2852 = vmatprep.subr.mxu0 %v1059
    %2853 = vmatpush1.msra.mxu0 %v1058
    %2854 = vmatprep.subr.mxu0 %v1057
    %2855 = vmatpush1.msra.mxu0 %v1056
    %2856 = vmatprep.subr.mxu0 %v1055
    %2857 = vmatpush1.msra.mxu0 %v1054
    %2858 = vmatprep.subr.mxu0 %v1053
    %2859 = vmatpush1.msra.mxu0 %v1052
    %2860 = vmatprep.subr.mxu0 %v1051
    %2861 = vmatpush1.msra.mxu0 %v1050
    %2862 = vmatprep.subr.mxu0 %v1049
    %2863 = vmatpush1.msra.mxu0 %v1048
    %2864 = vmatprep.subr.mxu0 %v1047
    %2865 = vmatpush1.msra.mxu0 %v1046
    %2866 = vmatprep.subr.mxu0 %v1045
    %2867 = vmatpush1.msra.mxu0 %v1044
    %2868 = vmatprep.subr.mxu0 %v1043
    %2869 = vmatpush1.msra.mxu0 %v1042
    %2870 = vmatprep.subr.mxu0 %v1041
    %2871 = vmatpush1.msra.mxu0 %v1040
    %2872 = vmatprep.subr.mxu0 %v1103
    %2873 = vmatpush2.msra.mxu0 %v1102
    %2874 = vmatprep.subr.mxu0 %v1101
    %2875 = vmatpush2.msra.mxu0 %v1100
    %2876 = vmatprep.subr.mxu0 %v1099
    %2877 = vmatpush2.msra.mxu0 %v1098
    %2878 = vmatprep.subr.mxu0 %v1097
    %2879 = vmatpush2.msra.mxu0 %v1096
    %2880 = vmatprep.subr.mxu0 %v1095
    %2881 = vmatpush2.msra.mxu0 %v1094
    %2882 = vmatprep.subr.mxu0 %v1093
    %2883 = vmatpush2.msra.mxu0 %v1092
    %2884 = vmatprep.subr.mxu0 %v1091
    %2885 = vmatpush2.msra.mxu0 %v1090
    %2886 = vmatprep.subr.mxu0 %v1089
    %2887 = vmatpush2.msra.mxu0 %v1088
    %2888 = vmatprep.subr.mxu0 %v1087
    %2889 = vmatpush2.msra.mxu0 %v1086
    %2890 = vmatprep.subr.mxu0 %v1085
    %2891 = vmatpush2.msra.mxu0 %v1084
    %2892 = vmatprep.subr.mxu0 %v1083
    %2893 = vmatpush2.msra.mxu0 %v1082
    %2894 = vmatprep.subr.mxu0 %v1081
    %2895 = vmatpush2.msra.mxu0 %v1080
    %2896 = vmatprep.subr.mxu0 %v1079
    %2897 = vmatpush2.msra.mxu0 %v1078
    %2898 = vmatprep.subr.mxu0 %v1077
    %2899 = vmatpush2.msra.mxu0 %v1076
    %2900 = vmatprep.subr.mxu0 %v1075
    %2901 = vmatpush2.msra.mxu0 %v1074
    %2902 = vmatprep.subr.mxu0 %v1073
    %2903 = vmatpush2.msra.mxu0 %v1072
    %2904 = vmatprep.mubr.f32.mxu0 %v125
    %2905 = vmatmul.mubr.f32.gmra.mxu0 %v124
    %v2906 = vpop.f32.mrf.mxu0
    %v2907 = vadd.f32 %v2722, %v2906
    %v2908 = vpop.f32.mrf.mxu0
    %v2909 = vadd.f32 %v2724, %v2908
    %2910 = vmatprep.mubr.f32.mxu0 %v146
    %2911 = vmatmul.mubr.f32.gmra.mxu0 %v145
    %v2912 = vpop.f32.mrf.mxu0
    %v2913 = vadd.f32 %v2728, %v2912
    %v2914 = vpop.f32.mrf.mxu0
    %v2915 = vadd.f32 %v2730, %v2914
    %2916 = vmatprep.mubr.f32.mxu0 %v167
    %2917 = vmatmul.mubr.f32.gmra.mxu0 %v166
    %v2918 = vpop.f32.mrf.mxu0
    %v2919 = vadd.f32 %v2734, %v2918
    %v2920 = vpop.f32.mrf.mxu0
    %v2921 = vadd.f32 %v2736, %v2920
    %2922 = vmatprep.mubr.f32.mxu0 %v188
    %2923 = vmatmul.mubr.f32.gmra.mxu0 %v187
    %v2924 = vpop.f32.mrf.mxu0
    %v2925 = vadd.f32 %v2740, %v2924
    %v2926 = vpop.f32.mrf.mxu0
    %v2927 = vadd.f32 %v2742, %v2926
    %2928 = vmatprep.mubr.f32.mxu0 %v209
    %2929 = vmatmul.mubr.f32.gmra.mxu0 %v208
    %v2930 = vpop.f32.mrf.mxu0
    %v2931 = vadd.f32 %v2746, %v2930
    %v2932 = vpop.f32.mrf.mxu0
    %v2933 = vadd.f32 %v2748, %v2932
    %2934 = vmatprep.mubr.f32.mxu0 %v230
    %2935 = vmatmul.mubr.f32.gmra.mxu0 %v229
    %v2936 = vpop.f32.mrf.mxu0
    %v2937 = vadd.f32 %v2752, %v2936
    %v2938 = vpop.f32.mrf.mxu0
    %v2939 = vadd.f32 %v2754, %v2938
    %2940 = vmatprep.mubr.f32.mxu0 %v251
    %2941 = vmatmul.mubr.f32.gmra.mxu0 %v250
    %v2942 = vpop.f32.mrf.mxu0
    %v2943 = vadd.f32 %v2758, %v2942
    %v2944 = vpop.f32.mrf.mxu0
    %v2945 = vadd.f32 %v2760, %v2944
    %2946 = vmatprep.mubr.f32.mxu0 %v272
    %2947 = vmatmul.mubr.f32.gmra.mxu0 %v271
    %v2948 = vpop.f32.mrf.mxu0
    %v2949 = vadd.f32 %v2764, %v2948
    %v2950 = vpop.f32.mrf.mxu0
    %v2951 = vadd.f32 %v2766, %v2950
    %2952 = vmatprep.mubr.f32.mxu0 %v293
    %2953 = vmatmul.mubr.f32.gmra.mxu0 %v292
    %v2954 = vpop.f32.mrf.mxu0
    %v2955 = vadd.f32 %v2770, %v2954
    %v2956 = vpop.f32.mrf.mxu0
    %v2957 = vadd.f32 %v2772, %v2956
    %2958 = vmatprep.mubr.f32.mxu0 %v314
    %2959 = vmatmul.mubr.f32.gmra.mxu0 %v313
    %v2960 = vpop.f32.mrf.mxu0
    %v2961 = vadd.f32 %v2776, %v2960
    %v2962 = vpop.f32.mrf.mxu0
    %v2963 = vadd.f32 %v2778, %v2962
    %2964 = vmatprep.mubr.f32.mxu0 %v335
    %2965 = vmatmul.mubr.f32.gmra.mxu0 %v334
    %v2966 = vpop.f32.mrf.mxu0
    %v2967 = vadd.f32 %v2782, %v2966
    %v2968 = vpop.f32.mrf.mxu0
    %v2969 = vadd.f32 %v2784, %v2968
    %2970 = vmatprep.mubr.f32.mxu0 %v356
    %2971 = vmatmul.mubr.f32.gmra.mxu0 %v355
    %v2972 = vpop.f32.mrf.mxu0
    %v2973 = vadd.f32 %v2788, %v2972
    %v2974 = vpop.f32.mrf.mxu0
    %v2975 = vadd.f32 %v2790, %v2974
    %2976 = vmatprep.mubr.f32.mxu0 %v377
    %2977 = vmatmul.mubr.f32.gmra.mxu0 %v376
    %v2978 = vpop.f32.mrf.mxu0
    %v2979 = vadd.f32 %v2794, %v2978
    %v2980 = vpop.f32.mrf.mxu0
    %v2981 = vadd.f32 %v2796, %v2980
    %2982 = vmatprep.mubr.f32.mxu0 %v398
    %2983 = vmatmul.mubr.f32.gmra.mxu0 %v397
    %v2984 = vpop.f32.mrf.mxu0
    %v2985 = vadd.f32 %v2800, %v2984
    %v2986 = vpop.f32.mrf.mxu0
    %v2987 = vadd.f32 %v2802, %v2986
    %2988 = vmatprep.mubr.f32.mxu0 %v419
    %2989 = vmatmul.mubr.f32.gmra.mxu0 %v418
    %v2990 = vpop.f32.mrf.mxu0
    %v2991 = vadd.f32 %v2806, %v2990
    %v2992 = vpop.f32.mrf.mxu0
    %v2993 = vadd.f32 %v2808, %v2992
    %2994 = vmatprep.mubr.f32.mxu0 %v440
    %2995 = vmatmul.mubr.f32.gmra.mxu0 %v439
    %v2996 = vpop.f32.mrf.mxu0
    %v2997 = vadd.f32 %v2812, %v2996
    %v2998 = vpop.f32.mrf.mxu0
    %v2999 = vadd.f32 %v2814, %v2998
    %3000 = vmatprep.mubr.f32.mxu0 %v461
    %3001 = vmatmul.mubr.f32.gmra.mxu0 %v460
    %v3002 = vpop.f32.mrf.mxu0
    %v3003 = vadd.f32 %v2818, %v3002
    %v3004 = vpop.f32.mrf.mxu0
    %v3005 = vadd.f32 %v2820, %v3004
    %3006 = vmatprep.mubr.f32.mxu0 %v482
    %3007 = vmatmul.mubr.f32.gmra.mxu0 %v481
    %v3008 = vpop.f32.mrf.mxu0
    %v3009 = vadd.f32 %v2824, %v3008
    %v3010 = vpop.f32.mrf.mxu0
    %v3011 = vadd.f32 %v2826, %v3010
    %3012 = vmatprep.mubr.f32.mxu0 %v503
    %3013 = vmatmul.mubr.f32.gmra.mxu0 %v502
    %v3014 = vpop.f32.mrf.mxu0
    %v3015 = vadd.f32 %v2830, %v3014
    %v3016 = vpop.f32.mrf.mxu0
    %v3017 = vadd.f32 %v2832, %v3016
    %3018 = vmatprep.mubr.f32.mxu0 %v524
    %3019 = vmatmul.mubr.f32.gmra.mxu0 %v523
    %v3020 = vpop.f32.mrf.mxu0
    %v3021 = vadd.f32 %v2836, %v3020
    %v3022 = vpop.f32.mrf.mxu0
    %v3023 = vadd.f32 %v2838, %v3022
    %3024 = vdwg.mxu0
    %3025 = vmatprep.subr.mxu0 %v1135
    %3026 = vmatpush1.msra.mxu0 %v1134
    %3027 = vmatprep.subr.mxu0 %v1133
    %3028 = vmatpush1.msra.mxu0 %v1132
    %3029 = vmatprep.subr.mxu0 %v1131
    %3030 = vmatpush1.msra.mxu0 %v1130
    %3031 = vmatprep.subr.mxu0 %v1129
    %3032 = vmatpush1.msra.mxu0 %v1128
    %3033 = vmatprep.subr.mxu0 %v1127
    %3034 = vmatpush1.msra.mxu0 %v1126
    %3035 = vmatprep.subr.mxu0 %v1125
    %3036 = vmatpush1.msra.mxu0 %v1124
    %3037 = vmatprep.subr.mxu0 %v1123
    %3038 = vmatpush1.msra.mxu0 %v1122
    %3039 = vmatprep.subr.mxu0 %v1121
    %3040 = vmatpush1.msra.mxu0 %v1120
    %3041 = vmatprep.subr.mxu0 %v1119
    %3042 = vmatpush1.msra.mxu0 %v1118
    %3043 = vmatprep.subr.mxu0 %v1117
    %3044 = vmatpush1.msra.mxu0 %v1116
    %3045 = vmatprep.subr.mxu0 %v1115
    %3046 = vmatpush1.msra.mxu0 %v1114
    %3047 = vmatprep.subr.mxu0 %v1113
    %3048 = vmatpush1.msra.mxu0 %v1112
    %3049 = vmatprep.subr.mxu0 %v1111
    %3050 = vmatpush1.msra.mxu0 %v1110
    %3051 = vmatprep.subr.mxu0 %v1109
    %3052 = vmatpush1.msra.mxu0 %v1108
    %3053 = vmatprep.subr.mxu0 %v1107
    %3054 = vmatpush1.msra.mxu0 %v1106
    %3055 = vmatprep.subr.mxu0 %v1105
    %3056 = vmatpush1.msra.mxu0 %v1104
    %3057 = vmatprep.subr.mxu0 %v1167
    %3058 = vmatpush2.msra.mxu0 %v1166
    %3059 = vmatprep.subr.mxu0 %v1165
    %3060 = vmatpush2.msra.mxu0 %v1164
    %3061 = vmatprep.subr.mxu0 %v1163
    %3062 = vmatpush2.msra.mxu0 %v1162
    %3063 = vmatprep.subr.mxu0 %v1161
    %3064 = vmatpush2.msra.mxu0 %v1160
    %3065 = vmatprep.subr.mxu0 %v1159
    %3066 = vmatpush2.msra.mxu0 %v1158
    %3067 = vmatprep.subr.mxu0 %v1157
    %3068 = vmatpush2.msra.mxu0 %v1156
    %3069 = vmatprep.subr.mxu0 %v1155
    %3070 = vmatpush2.msra.mxu0 %v1154
    %3071 = vmatprep.subr.mxu0 %v1153
    %3072 = vmatpush2.msra.mxu0 %v1152
    %3073 = vmatprep.subr.mxu0 %v1151
    %3074 = vmatpush2.msra.mxu0 %v1150
    %3075 = vmatprep.subr.mxu0 %v1149
    %3076 = vmatpush2.msra.mxu0 %v1148
    %3077 = vmatprep.subr.mxu0 %v1147
    %3078 = vmatpush2.msra.mxu0 %v1146
    %3079 = vmatprep.subr.mxu0 %v1145
    %3080 = vmatpush2.msra.mxu0 %v1144
    %3081 = vmatprep.subr.mxu0 %v1143
    %3082 = vmatpush2.msra.mxu0 %v1142
    %3083 = vmatprep.subr.mxu0 %v1141
    %3084 = vmatpush2.msra.mxu0 %v1140
    %3085 = vmatprep.subr.mxu0 %v1139
    %3086 = vmatpush2.msra.mxu0 %v1138
    %3087 = vmatprep.subr.mxu0 %v1137
    %3088 = vmatpush2.msra.mxu0 %v1136
    %3089 = vmatprep.mubr.f32.mxu0 %v127
    %3090 = vmatmul.mubr.f32.gmra.mxu0 %v126
    %v3091 = vpop.f32.mrf.mxu0
    %v3092 = vadd.f32 %v2907, %v3091
    %v3093 = vpop.f32.mrf.mxu0
    %v3094 = vadd.f32 %v2909, %v3093
    %3095 = vmatprep.mubr.f32.mxu0 %v148
    %3096 = vmatmul.mubr.f32.gmra.mxu0 %v147
    %v3097 = vpop.f32.mrf.mxu0
    %v3098 = vadd.f32 %v2913, %v3097
    %v3099 = vpop.f32.mrf.mxu0
    %v3100 = vadd.f32 %v2915, %v3099
    %3101 = vmatprep.mubr.f32.mxu0 %v169
    %3102 = vmatmul.mubr.f32.gmra.mxu0 %v168
    %v3103 = vpop.f32.mrf.mxu0
    %v3104 = vadd.f32 %v2919, %v3103
    %v3105 = vpop.f32.mrf.mxu0
    %v3106 = vadd.f32 %v2921, %v3105
    %3107 = vmatprep.mubr.f32.mxu0 %v190
    %3108 = vmatmul.mubr.f32.gmra.mxu0 %v189
    %v3109 = vpop.f32.mrf.mxu0
    %v3110 = vadd.f32 %v2925, %v3109
    %v3111 = vpop.f32.mrf.mxu0
    %v3112 = vadd.f32 %v2927, %v3111
    %3113 = vmatprep.mubr.f32.mxu0 %v211
    %3114 = vmatmul.mubr.f32.gmra.mxu0 %v210
    %v3115 = vpop.f32.mrf.mxu0
    %v3116 = vadd.f32 %v2931, %v3115
    %v3117 = vpop.f32.mrf.mxu0
    %v3118 = vadd.f32 %v2933, %v3117
    %3119 = vmatprep.mubr.f32.mxu0 %v232
    %3120 = vmatmul.mubr.f32.gmra.mxu0 %v231
    %v3121 = vpop.f32.mrf.mxu0
    %v3122 = vadd.f32 %v2937, %v3121
    %v3123 = vpop.f32.mrf.mxu0
    %v3124 = vadd.f32 %v2939, %v3123
    %3125 = vmatprep.mubr.f32.mxu0 %v253
    %3126 = vmatmul.mubr.f32.gmra.mxu0 %v252
    %v3127 = vpop.f32.mrf.mxu0
    %v3128 = vadd.f32 %v2943, %v3127
    %v3129 = vpop.f32.mrf.mxu0
    %v3130 = vadd.f32 %v2945, %v3129
    %3131 = vmatprep.mubr.f32.mxu0 %v274
    %3132 = vmatmul.mubr.f32.gmra.mxu0 %v273
    %v3133 = vpop.f32.mrf.mxu0
    %v3134 = vadd.f32 %v2949, %v3133
    %v3135 = vpop.f32.mrf.mxu0
    %v3136 = vadd.f32 %v2951, %v3135
    %3137 = vmatprep.mubr.f32.mxu0 %v295
    %3138 = vmatmul.mubr.f32.gmra.mxu0 %v294
    %v3139 = vpop.f32.mrf.mxu0
    %v3140 = vadd.f32 %v2955, %v3139
    %v3141 = vpop.f32.mrf.mxu0
    %v3142 = vadd.f32 %v2957, %v3141
    %3143 = vmatprep.mubr.f32.mxu0 %v316
    %3144 = vmatmul.mubr.f32.gmra.mxu0 %v315
    %v3145 = vpop.f32.mrf.mxu0
    %v3146 = vadd.f32 %v2961, %v3145
    %v3147 = vpop.f32.mrf.mxu0
    %v3148 = vadd.f32 %v2963, %v3147
    %3149 = vmatprep.mubr.f32.mxu0 %v337
    %3150 = vmatmul.mubr.f32.gmra.mxu0 %v336
    %v3151 = vpop.f32.mrf.mxu0
    %v3152 = vadd.f32 %v2967, %v3151
    %v3153 = vpop.f32.mrf.mxu0
    %v3154 = vadd.f32 %v2969, %v3153
    %3155 = vmatprep.mubr.f32.mxu0 %v358
    %3156 = vmatmul.mubr.f32.gmra.mxu0 %v357
    %v3157 = vpop.f32.mrf.mxu0
    %v3158 = vadd.f32 %v2973, %v3157
    %v3159 = vpop.f32.mrf.mxu0
    %v3160 = vadd.f32 %v2975, %v3159
    %3161 = vmatprep.mubr.f32.mxu0 %v379
    %3162 = vmatmul.mubr.f32.gmra.mxu0 %v378
    %v3163 = vpop.f32.mrf.mxu0
    %v3164 = vadd.f32 %v2979, %v3163
    %v3165 = vpop.f32.mrf.mxu0
    %v3166 = vadd.f32 %v2981, %v3165
    %3167 = vmatprep.mubr.f32.mxu0 %v400
    %3168 = vmatmul.mubr.f32.gmra.mxu0 %v399
    %v3169 = vpop.f32.mrf.mxu0
    %v3170 = vadd.f32 %v2985, %v3169
    %v3171 = vpop.f32.mrf.mxu0
    %v3172 = vadd.f32 %v2987, %v3171
    %3173 = vmatprep.mubr.f32.mxu0 %v421
    %3174 = vmatmul.mubr.f32.gmra.mxu0 %v420
    %v3175 = vpop.f32.mrf.mxu0
    %v3176 = vadd.f32 %v2991, %v3175
    %v3177 = vpop.f32.mrf.mxu0
    %v3178 = vadd.f32 %v2993, %v3177
    %3179 = vmatprep.mubr.f32.mxu0 %v442
    %3180 = vmatmul.mubr.f32.gmra.mxu0 %v441
    %v3181 = vpop.f32.mrf.mxu0
    %v3182 = vadd.f32 %v2997, %v3181
    %v3183 = vpop.f32.mrf.mxu0
    %v3184 = vadd.f32 %v2999, %v3183
    %3185 = vmatprep.mubr.f32.mxu0 %v463
    %3186 = vmatmul.mubr.f32.gmra.mxu0 %v462
    %v3187 = vpop.f32.mrf.mxu0
    %v3188 = vadd.f32 %v3003, %v3187
    %v3189 = vpop.f32.mrf.mxu0
    %v3190 = vadd.f32 %v3005, %v3189
    %3191 = vmatprep.mubr.f32.mxu0 %v484
    %3192 = vmatmul.mubr.f32.gmra.mxu0 %v483
    %v3193 = vpop.f32.mrf.mxu0
    %v3194 = vadd.f32 %v3009, %v3193
    %v3195 = vpop.f32.mrf.mxu0
    %v3196 = vadd.f32 %v3011, %v3195
    %3197 = vmatprep.mubr.f32.mxu0 %v505
    %3198 = vmatmul.mubr.f32.gmra.mxu0 %v504
    %v3199 = vpop.f32.mrf.mxu0
    %v3200 = vadd.f32 %v3015, %v3199
    %v3201 = vpop.f32.mrf.mxu0
    %v3202 = vadd.f32 %v3017, %v3201
    %3203 = vmatprep.mubr.f32.mxu0 %v526
    %3204 = vmatmul.mubr.f32.gmra.mxu0 %v525
    %v3205 = vpop.f32.mrf.mxu0
    %v3206 = vadd.f32 %v3021, %v3205
    %v3207 = vpop.f32.mrf.mxu0
    %v3208 = vadd.f32 %v3023, %v3207
    %3209 = vdwg.mxu0
    %3210 = vmatprep.subr.mxu0 0.0
    %3211 = vmatpush1.msra.mxu0 0.0
    %3212 = vmatprep.subr.mxu0 0.0
    %3213 = vmatpush1.msra.mxu0 0.0
    %3214 = vmatprep.subr.mxu0 0.0
    %3215 = vmatpush1.msra.mxu0 0.0
    %3216 = vmatprep.subr.mxu0 0.0
    %3217 = vmatpush1.msra.mxu0 0.0
    %3218 = vmatprep.subr.mxu0 0.0
    %3219 = vmatpush1.msra.mxu0 0.0
    %3220 = vmatprep.subr.mxu0 0.0
    %3221 = vmatpush1.msra.mxu0 0.0
    %3222 = vmatprep.subr.mxu0 %v1187
    %3223 = vmatpush1.msra.mxu0 %v1186
    %3224 = vmatprep.subr.mxu0 %v1185
    %3225 = vmatpush1.msra.mxu0 %v1184
    %3226 = vmatprep.subr.mxu0 %v1183
    %3227 = vmatpush1.msra.mxu0 %v1182
    %3228 = vmatprep.subr.mxu0 %v1181
    %3229 = vmatpush1.msra.mxu0 %v1180
    %3230 = vmatprep.subr.mxu0 %v1179
    %3231 = vmatpush1.msra.mxu0 %v1178
    %3232 = vmatprep.subr.mxu0 %v1177
    %3233 = vmatpush1.msra.mxu0 %v1176
    %3234 = vmatprep.subr.mxu0 %v1175
    %3235 = vmatpush1.msra.mxu0 %v1174
    %3236 = vmatprep.subr.mxu0 %v1173
    %3237 = vmatpush1.msra.mxu0 %v1172
    %3238 = vmatprep.subr.mxu0 %v1171
    %3239 = vmatpush1.msra.mxu0 %v1170
    %3240 = vmatprep.subr.mxu0 %v1169
    %3241 = vmatpush1.msra.mxu0 %v1168
    %3242 = vmatprep.subr.mxu0 0.0
    %3243 = vmatpush2.msra.mxu0 0.0
    %3244 = vmatprep.subr.mxu0 0.0
    %3245 = vmatpush2.msra.mxu0 0.0
    %3246 = vmatprep.subr.mxu0 0.0
    %3247 = vmatpush2.msra.mxu0 0.0
    %3248 = vmatprep.subr.mxu0 0.0
    %3249 = vmatpush2.msra.mxu0 0.0
    %3250 = vmatprep.subr.mxu0 0.0
    %3251 = vmatpush2.msra.mxu0 0.0
    %3252 = vmatprep.subr.mxu0 0.0
    %3253 = vmatpush2.msra.mxu0 0.0
    %3254 = vmatprep.subr.mxu0 0.0
    %3255 = vmatpush2.msra.mxu0 0.0
    %3256 = vmatprep.subr.mxu0 0.0
    %3257 = vmatpush2.msra.mxu0 0.0
    %3258 = vmatprep.subr.mxu0 0.0
    %3259 = vmatpush2.msra.mxu0 0.0
    %3260 = vmatprep.subr.mxu0 0.0
    %3261 = vmatpush2.msra.mxu0 0.0
    %3262 = vmatprep.subr.mxu0 0.0
    %3263 = vmatpush2.msra.mxu0 0.0
    %3264 = vmatprep.subr.mxu0 0.0
    %3265 = vmatpush2.msra.mxu0 0.0
    %3266 = vmatprep.subr.mxu0 0.0
    %3267 = vmatpush2.msra.mxu0 0.0
    %3268 = vmatprep.subr.mxu0 0.0
    %3269 = vmatpush2.msra.mxu0 0.0
    %3270 = vmatprep.subr.mxu0 0.0
    %3271 = vmatpush2.msra.mxu0 0.0
    %3272 = vmatprep.subr.mxu0 0.0
    %3273 = vmatpush2.msra.mxu0 0.0
    %3274 = vmatprep.mubr.f32.mxu0 0.0
    %3275 = vmatmul.mubr.f32.gmra.mxu0 %v1301
    %v3276 = vpop.f32.mrf.mxu0
    %v3277 = vadd.f32 %v3092, %v3276
    %v3278 = vpop.f32.mrf.mxu0
    %v3279 = vadd.f32 %v3094, %v3278
    %3280 = vmatprep.mubr.f32.mxu0 0.0
    %3281 = vmatmul.mubr.f32.gmra.mxu0 %v1304
    %v3282 = vpop.f32.mrf.mxu0
    %v3283 = vadd.f32 %v3098, %v3282
    %v3284 = vpop.f32.mrf.mxu0
    %v3285 = vadd.f32 %v3100, %v3284
    %3286 = vmatprep.mubr.f32.mxu0 0.0
    %3287 = vmatmul.mubr.f32.gmra.mxu0 %v1307
    %v3288 = vpop.f32.mrf.mxu0
    %v3289 = vadd.f32 %v3104, %v3288
    %v3290 = vpop.f32.mrf.mxu0
    %v3291 = vadd.f32 %v3106, %v3290
    %3292 = vmatprep.mubr.f32.mxu0 0.0
    %3293 = vmatmul.mubr.f32.gmra.mxu0 %v1310
    %v3294 = vpop.f32.mrf.mxu0
    %v3295 = vadd.f32 %v3110, %v3294
    %v3296 = vpop.f32.mrf.mxu0
    %v3297 = vadd.f32 %v3112, %v3296
    %3298 = vmatprep.mubr.f32.mxu0 0.0
    %3299 = vmatmul.mubr.f32.gmra.mxu0 %v1313
    %v3300 = vpop.f32.mrf.mxu0
    %v3301 = vadd.f32 %v3116, %v3300
    %v3302 = vpop.f32.mrf.mxu0
    %v3303 = vadd.f32 %v3118, %v3302
    %3304 = vmatprep.mubr.f32.mxu0 0.0
    %3305 = vmatmul.mubr.f32.gmra.mxu0 %v1316
    %v3306 = vpop.f32.mrf.mxu0
    %v3307 = vadd.f32 %v3122, %v3306
    %v3308 = vpop.f32.mrf.mxu0
    %v3309 = vadd.f32 %v3124, %v3308
    %3310 = vmatprep.mubr.f32.mxu0 0.0
    %3311 = vmatmul.mubr.f32.gmra.mxu0 %v1319
    %v3312 = vpop.f32.mrf.mxu0
    %v3313 = vadd.f32 %v3128, %v3312
    %v3314 = vpop.f32.mrf.mxu0
    %v3315 = vadd.f32 %v3130, %v3314
    %3316 = vmatprep.mubr.f32.mxu0 0.0
    %3317 = vmatmul.mubr.f32.gmra.mxu0 %v1322
    %v3318 = vpop.f32.mrf.mxu0
    %v3319 = vadd.f32 %v3134, %v3318
    %v3320 = vpop.f32.mrf.mxu0
    %v3321 = vadd.f32 %v3136, %v3320
    %3322 = vmatprep.mubr.f32.mxu0 0.0
    %3323 = vmatmul.mubr.f32.gmra.mxu0 %v1325
    %v3324 = vpop.f32.mrf.mxu0
    %v3325 = vadd.f32 %v3140, %v3324
    %v3326 = vpop.f32.mrf.mxu0
    %v3327 = vadd.f32 %v3142, %v3326
    %3328 = vmatprep.mubr.f32.mxu0 0.0
    %3329 = vmatmul.mubr.f32.gmra.mxu0 %v1328
    %v3330 = vpop.f32.mrf.mxu0
    %v3331 = vadd.f32 %v3146, %v3330
    %v3332 = vpop.f32.mrf.mxu0
    %v3333 = vadd.f32 %v3148, %v3332
    %3334 = vmatprep.mubr.f32.mxu0 0.0
    %3335 = vmatmul.mubr.f32.gmra.mxu0 %v1331
    %v3336 = vpop.f32.mrf.mxu0
    %v3337 = vadd.f32 %v3152, %v3336
    %v3338 = vpop.f32.mrf.mxu0
    %v3339 = vadd.f32 %v3154, %v3338
    %3340 = vmatprep.mubr.f32.mxu0 0.0
    %3341 = vmatmul.mubr.f32.gmra.mxu0 %v1334
    %v3342 = vpop.f32.mrf.mxu0
    %v3343 = vadd.f32 %v3158, %v3342
    %v3344 = vpop.f32.mrf.mxu0
    %v3345 = vadd.f32 %v3160, %v3344
    %3346 = vmatprep.mubr.f32.mxu0 0.0
    %3347 = vmatmul.mubr.f32.gmra.mxu0 %v1337
    %v3348 = vpop.f32.mrf.mxu0
    %v3349 = vadd.f32 %v3164, %v3348
    %v3350 = vpop.f32.mrf.mxu0
    %v3351 = vadd.f32 %v3166, %v3350
    %3352 = vmatprep.mubr.f32.mxu0 0.0
    %3353 = vmatmul.mubr.f32.gmra.mxu0 %v1340
    %v3354 = vpop.f32.mrf.mxu0
    %v3355 = vadd.f32 %v3170, %v3354
    %v3356 = vpop.f32.mrf.mxu0
    %v3357 = vadd.f32 %v3172, %v3356
    %3358 = vmatprep.mubr.f32.mxu0 0.0
    %3359 = vmatmul.mubr.f32.gmra.mxu0 %v1343
    %v3360 = vpop.f32.mrf.mxu0
    %v3361 = vadd.f32 %v3176, %v3360
    %v3362 = vpop.f32.mrf.mxu0
    %v3363 = vadd.f32 %v3178, %v3362
    %3364 = vmatprep.mubr.f32.mxu0 0.0
    %3365 = vmatmul.mubr.f32.gmra.mxu0 %v1346
    %v3366 = vpop.f32.mrf.mxu0
    %v3367 = vadd.f32 %v3182, %v3366
    %v3368 = vpop.f32.mrf.mxu0
    %v3369 = vadd.f32 %v3184, %v3368
    %3370 = vmatprep.mubr.f32.mxu0 0.0
    %3371 = vmatmul.mubr.f32.gmra.mxu0 %v1349
    %v3372 = vpop.f32.mrf.mxu0
    %v3373 = vadd.f32 %v3188, %v3372
    %v3374 = vpop.f32.mrf.mxu0
    %v3375 = vadd.f32 %v3190, %v3374
    %3376 = vmatprep.mubr.f32.mxu0 0.0
    %3377 = vmatmul.mubr.f32.gmra.mxu0 %v1352
    %v3378 = vpop.f32.mrf.mxu0
    %v3379 = vadd.f32 %v3194, %v3378
    %v3380 = vpop.f32.mrf.mxu0
    %v3381 = vadd.f32 %v3196, %v3380
    %3382 = vmatprep.mubr.f32.mxu0 0.0
    %3383 = vmatmul.mubr.f32.gmra.mxu0 %v1355
    %v3384 = vpop.f32.mrf.mxu0
    %v3385 = vadd.f32 %v3200, %v3384
    %v3386 = vpop.f32.mrf.mxu0
    %v3387 = vadd.f32 %v3202, %v3386
    %3388 = vmatprep.mubr.f32.mxu0 0.0
    %3389 = vmatmul.mubr.f32.gmra.mxu0 %v1358
    %v3390 = vpop.f32.mrf.mxu0
    %v3391 = vadd.f32 %v3206, %v3390
    %v3392 = vpop.f32.mrf.mxu0
    %v3393 = vadd.f32 %v3208, %v3392
    %3394 = vdwg.mxu0
    %v3395 = vsel %vm1197, 1, 0
    %v3396 = vsel %vm1198, 1, 0
    %vm3397 = vcmp.eq.s32.totalorder %v3395, 1
    %vm3398 = vcmp.eq.s32.totalorder %v3396, 1
    %v3399 = vsel %vm3397, %v3277, 0.0
    %v3400 = vsel %vm3398, %v3279, 0.0
    %v3401 = vsel %vm3397, %v3283, 0.0
    %v3402 = vsel %vm3398, %v3285, 0.0
    %v3403 = vsel %vm3397, %v3289, 0.0
    %v3404 = vsel %vm3398, %v3291, 0.0
    %v3405 = vsel %vm3397, %v3295, 0.0
    %v3406 = vsel %vm3398, %v3297, 0.0
    %v3407 = vsel %vm3397, %v3301, 0.0
    %v3408 = vsel %vm3398, %v3303, 0.0
    %v3409 = vsel %vm3397, %v3307, 0.0
    %v3410 = vsel %vm3398, %v3309, 0.0
    %v3411 = vsel %vm3397, %v3313, 0.0
    %v3412 = vsel %vm3398, %v3315, 0.0
    %v3413 = vsel %vm3397, %v3319, 0.0
    %v3414 = vsel %vm3398, %v3321, 0.0
    %v3415 = vsel %vm3397, %v3325, 0.0
    %v3416 = vsel %vm3398, %v3327, 0.0
    %v3417 = vsel %vm3397, %v3331, 0.0
    %v3418 = vsel %vm3398, %v3333, 0.0
    %v3419 = vsel %vm3397, %v3337, 0.0
    %v3420 = vsel %vm3398, %v3339, 0.0
    %v3421 = vsel %vm3397, %v3343, 0.0
    %v3422 = vsel %vm3398, %v3345, 0.0
    %v3423 = vsel %vm3397, %v3349, 0.0
    %v3424 = vsel %vm3398, %v3351, 0.0
    %v3425 = vsel %vm3397, %v3355, 0.0
    %v3426 = vsel %vm3398, %v3357, 0.0
    %v3427 = vsel %vm3397, %v3361, 0.0
    %v3428 = vsel %vm3398, %v3363, 0.0
    %v3429 = vsel %vm3397, %v3367, 0.0
    %v3430 = vsel %vm3398, %v3369, 0.0
    %v3431 = vsel %vm3397, %v3373, 0.0
    %v3432 = vsel %vm3398, %v3375, 0.0
    %v3433 = vsel %vm3397, %v3379, 0.0
    %v3434 = vsel %vm3398, %v3381, 0.0
    %v3435 = vsel %vm3397, %v3385, 0.0
    %v3436 = vsel %vm3398, %v3387, 0.0
    %v3437 = vsel %vm3397, %v3391, 0.0
    %v3438 = vsel %vm3398, %v3393, 0.0
    %3439 = vset.pattern.permute.xlu0 0
    %3440 = vperm.xlu0 %3439, %v88
    %v3441 = vpop.permute.xlu0 %3440
    %3443 = vset.pattern.permute.xlu0 0
    %3444 = vperm.xlu0 %3443, %v89
    %v3445 = vpop.permute.xlu0 %3444
    %3447 = vset.pattern.permute.xlu0 0
    %3448 = vperm.xlu0 %3447, %v90
    %v3449 = vpop.permute.xlu0 %3448
    %3451 = vset.pattern.permute.xlu0 0
    %3452 = vperm.xlu0 %3451, %v91
    %v3453 = vpop.permute.xlu0 %3452
    %3455 = vset.pattern.permute.xlu0 0
    %3456 = vperm.xlu0 %3455, %v92
    %v3457 = vpop.permute.xlu0 %3456
    %3459 = vset.pattern.permute.xlu0 0
    %3460 = vperm.xlu0 %3459, %v93
    %v3461 = vpop.permute.xlu0 %3460
    %3463 = vset.pattern.permute.xlu0 0
    %3464 = vperm.xlu0 %3463, %v94
    %v3465 = vpop.permute.xlu0 %3464
    %3467 = vset.pattern.permute.xlu0 0
    %3468 = vperm.xlu0 %3467, %v95
    %v3469 = vpop.permute.xlu0 %3468
    %3471 = vset.pattern.permute.xlu0 0
    %3472 = vperm.xlu0 %3471, %v96
    %v3473 = vpop.permute.xlu0 %3472
    %3475 = vset.pattern.permute.xlu0 0
    %3476 = vperm.xlu0 %3475, %v97
    %v3477 = vpop.permute.xlu0 %3476
    %3479 = vset.pattern.permute.xlu0 0
    %3480 = vperm.xlu0 %3479, %v98
    %v3481 = vpop.permute.xlu0 %3480
    %3483 = vset.pattern.permute.xlu0 0
    %3484 = vperm.xlu0 %3483, %v99
    %v3485 = vpop.permute.xlu0 %3484
    %3487 = vset.pattern.permute.xlu0 0
    %3488 = vperm.xlu0 %3487, %v100
    %v3489 = vpop.permute.xlu0 %3488
    %3491 = vset.pattern.permute.xlu0 0
    %3492 = vperm.xlu0 %3491, %v101
    %v3493 = vpop.permute.xlu0 %3492
    %3495 = vset.pattern.permute.xlu0 0
    %3496 = vperm.xlu0 %3495, %v102
    %v3497 = vpop.permute.xlu0 %3496
    %3499 = vset.pattern.permute.xlu0 0
    %3500 = vperm.xlu0 %3499, %v103
    %v3501 = vpop.permute.xlu0 %3500
    %3503 = vset.pattern.permute.xlu0 0
    %3504 = vperm.xlu0 %3503, %v104
    %v3505 = vpop.permute.xlu0 %3504
    %3507 = vset.pattern.permute.xlu0 0
    %3508 = vperm.xlu0 %3507, %v105
    %v3509 = vpop.permute.xlu0 %3508
    %3511 = vset.pattern.permute.xlu0 0
    %3512 = vperm.xlu0 %3511, %v106
    %v3513 = vpop.permute.xlu0 %3512
    %3515 = vset.pattern.permute.xlu0 0
    %3516 = vperm.xlu0 %3515, %v107
    %v3517 = vpop.permute.xlu0 %3516
    %v3519 = vadd.f32 %v3441, %v3399
    %v3520 = vadd.f32 %v3441, %v3400
    %v3521 = vadd.f32 %v3445, %v3401
    %v3522 = vadd.f32 %v3445, %v3402
    %v3523 = vadd.f32 %v3449, %v3403
    %v3524 = vadd.f32 %v3449, %v3404
    %v3525 = vadd.f32 %v3453, %v3405
    %v3526 = vadd.f32 %v3453, %v3406
    %v3527 = vadd.f32 %v3457, %v3407
    %v3528 = vadd.f32 %v3457, %v3408
    %v3529 = vadd.f32 %v3461, %v3409
    %v3530 = vadd.f32 %v3461, %v3410
    %v3531 = vadd.f32 %v3465, %v3411
    %v3532 = vadd.f32 %v3465, %v3412
    %v3533 = vadd.f32 %v3469, %v3413
    %v3534 = vadd.f32 %v3469, %v3414
    %v3535 = vadd.f32 %v3473, %v3415
    %v3536 = vadd.f32 %v3473, %v3416
    %v3537 = vadd.f32 %v3477, %v3417
    %v3538 = vadd.f32 %v3477, %v3418
    %v3539 = vadd.f32 %v3481, %v3419
    %v3540 = vadd.f32 %v3481, %v3420
    %v3541 = vadd.f32 %v3485, %v3421
    %v3542 = vadd.f32 %v3485, %v3422
    %v3543 = vadd.f32 %v3489, %v3423
    %v3544 = vadd.f32 %v3489, %v3424
    %v3545 = vadd.f32 %v3493, %v3425
    %v3546 = vadd.f32 %v3493, %v3426
    %v3547 = vadd.f32 %v3497, %v3427
    %v3548 = vadd.f32 %v3497, %v3428
    %v3549 = vadd.f32 %v3501, %v3429
    %v3550 = vadd.f32 %v3501, %v3430
    %v3551 = vadd.f32 %v3505, %v3431
    %v3552 = vadd.f32 %v3505, %v3432
    %v3553 = vadd.f32 %v3509, %v3433
    %v3554 = vadd.f32 %v3509, %v3434
    %v3555 = vadd.f32 %v3513, %v3435
    %v3556 = vadd.f32 %v3513, %v3436
    %v3557 = vadd.f32 %v3517, %v3437
    %v3558 = vadd.f32 %v3517, %v3438
    %3559 = vset.pattern.permute.xlu0 2
    %3560 = vperm.xlu0 %3559, %v88
    %v3561 = vpop.permute.xlu0 %3560
    %3563 = vset.pattern.permute.xlu0 2
    %3564 = vperm.xlu0 %3563, %v89
    %v3565 = vpop.permute.xlu0 %3564
    %3567 = vset.pattern.permute.xlu0 2
    %3568 = vperm.xlu0 %3567, %v90
    %v3569 = vpop.permute.xlu0 %3568
    %3571 = vset.pattern.permute.xlu0 2
    %3572 = vperm.xlu0 %3571, %v91
    %v3573 = vpop.permute.xlu0 %3572
    %3575 = vset.pattern.permute.xlu0 2
    %3576 = vperm.xlu0 %3575, %v92
    %v3577 = vpop.permute.xlu0 %3576
    %3579 = vset.pattern.permute.xlu0 2
    %3580 = vperm.xlu0 %3579, %v93
    %v3581 = vpop.permute.xlu0 %3580
    %3583 = vset.pattern.permute.xlu0 2
    %3584 = vperm.xlu0 %3583, %v94
    %v3585 = vpop.permute.xlu0 %3584
    %3587 = vset.pattern.permute.xlu0 2
    %3588 = vperm.xlu0 %3587, %v95
    %v3589 = vpop.permute.xlu0 %3588
    %3591 = vset.pattern.permute.xlu0 2
    %3592 = vperm.xlu0 %3591, %v96
    %v3593 = vpop.permute.xlu0 %3592
    %3595 = vset.pattern.permute.xlu0 2
    %3596 = vperm.xlu0 %3595, %v97
    %v3597 = vpop.permute.xlu0 %3596
    %3599 = vset.pattern.permute.xlu0 2
    %3600 = vperm.xlu0 %3599, %v98
    %v3601 = vpop.permute.xlu0 %3600
    %3603 = vset.pattern.permute.xlu0 2
    %3604 = vperm.xlu0 %3603, %v99
    %v3605 = vpop.permute.xlu0 %3604
    %3607 = vset.pattern.permute.xlu0 2
    %3608 = vperm.xlu0 %3607, %v100
    %v3609 = vpop.permute.xlu0 %3608
    %3611 = vset.pattern.permute.xlu0 2
    %3612 = vperm.xlu0 %3611, %v101
    %v3613 = vpop.permute.xlu0 %3612
    %3615 = vset.pattern.permute.xlu0 2
    %3616 = vperm.xlu0 %3615, %v102
    %v3617 = vpop.permute.xlu0 %3616
    %3619 = vset.pattern.permute.xlu0 2
    %3620 = vperm.xlu0 %3619, %v103
    %v3621 = vpop.permute.xlu0 %3620
    %3623 = vset.pattern.permute.xlu0 2
    %3624 = vperm.xlu0 %3623, %v104
    %v3625 = vpop.permute.xlu0 %3624
    %3627 = vset.pattern.permute.xlu0 2
    %3628 = vperm.xlu0 %3627, %v105
    %v3629 = vpop.permute.xlu0 %3628
    %3631 = vset.pattern.permute.xlu0 2
    %3632 = vperm.xlu0 %3631, %v106
    %v3633 = vpop.permute.xlu0 %3632
    %3635 = vset.pattern.permute.xlu0 2
    %3636 = vperm.xlu0 %3635, %v107
    %v3637 = vpop.permute.xlu0 %3636
    %v3639 = vmul.f32 %v3519, %v3561
    %v3640 = vmul.f32 %v3520, %v3561
    %v3641 = vmul.f32 %v3521, %v3565
    %v3642 = vmul.f32 %v3522, %v3565
    %v3643 = vmul.f32 %v3523, %v3569
    %v3644 = vmul.f32 %v3524, %v3569
    %v3645 = vmul.f32 %v3525, %v3573
    %v3646 = vmul.f32 %v3526, %v3573
    %v3647 = vmul.f32 %v3527, %v3577
    %v3648 = vmul.f32 %v3528, %v3577
    %v3649 = vmul.f32 %v3529, %v3581
    %v3650 = vmul.f32 %v3530, %v3581
    %v3651 = vmul.f32 %v3531, %v3585
    %v3652 = vmul.f32 %v3532, %v3585
    %v3653 = vmul.f32 %v3533, %v3589
    %v3654 = vmul.f32 %v3534, %v3589
    %v3655 = vmul.f32 %v3535, %v3593
    %v3656 = vmul.f32 %v3536, %v3593
    %v3657 = vmul.f32 %v3537, %v3597
    %v3658 = vmul.f32 %v3538, %v3597
    %v3659 = vmul.f32 %v3539, %v3601
    %v3660 = vmul.f32 %v3540, %v3601
    %v3661 = vmul.f32 %v3541, %v3605
    %v3662 = vmul.f32 %v3542, %v3605
    %v3663 = vmul.f32 %v3543, %v3609
    %v3664 = vmul.f32 %v3544, %v3609
    %v3665 = vmul.f32 %v3545, %v3613
    %v3666 = vmul.f32 %v3546, %v3613
    %v3667 = vmul.f32 %v3547, %v3617
    %v3668 = vmul.f32 %v3548, %v3617
    %v3669 = vmul.f32 %v3549, %v3621
    %v3670 = vmul.f32 %v3550, %v3621
    %v3671 = vmul.f32 %v3551, %v3625
    %v3672 = vmul.f32 %v3552, %v3625
    %v3673 = vmul.f32 %v3553, %v3629
    %v3674 = vmul.f32 %v3554, %v3629
    %v3675 = vmul.f32 %v3555, %v3633
    %v3676 = vmul.f32 %v3556, %v3633
    %v3677 = vmul.f32 %v3557, %v3637
    %v3678 = vmul.f32 %v3558, %v3637
    %3679 = vset.pattern.permute.xlu0 3
    %3680 = vperm.xlu0 %3679, %v88
    %v3681 = vpop.permute.xlu0 %3680
    %3683 = vset.pattern.permute.xlu0 3
    %3684 = vperm.xlu0 %3683, %v89
    %v3685 = vpop.permute.xlu0 %3684
    %3687 = vset.pattern.permute.xlu0 3
    %3688 = vperm.xlu0 %3687, %v90
    %v3689 = vpop.permute.xlu0 %3688
    %3691 = vset.pattern.permute.xlu0 3
    %3692 = vperm.xlu0 %3691, %v91
    %v3693 = vpop.permute.xlu0 %3692
    %3695 = vset.pattern.permute.xlu0 3
    %3696 = vperm.xlu0 %3695, %v92
    %v3697 = vpop.permute.xlu0 %3696
    %3699 = vset.pattern.permute.xlu0 3
    %3700 = vperm.xlu0 %3699, %v93
    %v3701 = vpop.permute.xlu0 %3700
    %3703 = vset.pattern.permute.xlu0 3
    %3704 = vperm.xlu0 %3703, %v94
    %v3705 = vpop.permute.xlu0 %3704
    %3707 = vset.pattern.permute.xlu0 3
    %3708 = vperm.xlu0 %3707, %v95
    %v3709 = vpop.permute.xlu0 %3708
    %3711 = vset.pattern.permute.xlu0 3
    %3712 = vperm.xlu0 %3711, %v96
    %v3713 = vpop.permute.xlu0 %3712
    %3715 = vset.pattern.permute.xlu0 3
    %3716 = vperm.xlu0 %3715, %v97
    %v3717 = vpop.permute.xlu0 %3716
    %3719 = vset.pattern.permute.xlu0 3
    %3720 = vperm.xlu0 %3719, %v98
    %v3721 = vpop.permute.xlu0 %3720
    %3723 = vset.pattern.permute.xlu0 3
    %3724 = vperm.xlu0 %3723, %v99
    %v3725 = vpop.permute.xlu0 %3724
    %3727 = vset.pattern.permute.xlu0 3
    %3728 = vperm.xlu0 %3727, %v100
    %v3729 = vpop.permute.xlu0 %3728
    %3731 = vset.pattern.permute.xlu0 3
    %3732 = vperm.xlu0 %3731, %v101
    %v3733 = vpop.permute.xlu0 %3732
    %3735 = vset.pattern.permute.xlu0 3
    %3736 = vperm.xlu0 %3735, %v102
    %v3737 = vpop.permute.xlu0 %3736
    %3739 = vset.pattern.permute.xlu0 3
    %3740 = vperm.xlu0 %3739, %v103
    %v3741 = vpop.permute.xlu0 %3740
    %3743 = vset.pattern.permute.xlu0 3
    %3744 = vperm.xlu0 %3743, %v104
    %v3745 = vpop.permute.xlu0 %3744
    %3747 = vset.pattern.permute.xlu0 3
    %3748 = vperm.xlu0 %3747, %v105
    %v3749 = vpop.permute.xlu0 %3748
    %3751 = vset.pattern.permute.xlu0 3
    %3752 = vperm.xlu0 %3751, %v106
    %v3753 = vpop.permute.xlu0 %3752
    %3755 = vset.pattern.permute.xlu0 3
    %3756 = vperm.xlu0 %3755, %v107
    %v3757 = vpop.permute.xlu0 %3756
    %v3759 = vadd.f32 %v3639, %v3681
    %v3760 = vadd.f32 %v3640, %v3681
    %v3761 = vadd.f32 %v3641, %v3685
    %v3762 = vadd.f32 %v3642, %v3685
    %v3763 = vadd.f32 %v3643, %v3689
    %v3764 = vadd.f32 %v3644, %v3689
    %v3765 = vadd.f32 %v3645, %v3693
    %v3766 = vadd.f32 %v3646, %v3693
    %v3767 = vadd.f32 %v3647, %v3697
    %v3768 = vadd.f32 %v3648, %v3697
    %v3769 = vadd.f32 %v3649, %v3701
    %v3770 = vadd.f32 %v3650, %v3701
    %v3771 = vadd.f32 %v3651, %v3705
    %v3772 = vadd.f32 %v3652, %v3705
    %v3773 = vadd.f32 %v3653, %v3709
    %v3774 = vadd.f32 %v3654, %v3709
    %v3775 = vadd.f32 %v3655, %v3713
    %v3776 = vadd.f32 %v3656, %v3713
    %v3777 = vadd.f32 %v3657, %v3717
    %v3778 = vadd.f32 %v3658, %v3717
    %v3779 = vadd.f32 %v3659, %v3721
    %v3780 = vadd.f32 %v3660, %v3721
    %v3781 = vadd.f32 %v3661, %v3725
    %v3782 = vadd.f32 %v3662, %v3725
    %v3783 = vadd.f32 %v3663, %v3729
    %v3784 = vadd.f32 %v3664, %v3729
    %v3785 = vadd.f32 %v3665, %v3733
    %v3786 = vadd.f32 %v3666, %v3733
    %v3787 = vadd.f32 %v3667, %v3737
    %v3788 = vadd.f32 %v3668, %v3737
    %v3789 = vadd.f32 %v3669, %v3741
    %v3790 = vadd.f32 %v3670, %v3741
    %v3791 = vadd.f32 %v3671, %v3745
    %v3792 = vadd.f32 %v3672, %v3745
    %v3793 = vadd.f32 %v3673, %v3749
    %v3794 = vadd.f32 %v3674, %v3749
    %v3795 = vadd.f32 %v3675, %v3753
    %v3796 = vadd.f32 %v3676, %v3753
    %v3797 = vadd.f32 %v3677, %v3757
    %v3798 = vadd.f32 %v3678, %v3757
    %vm3799 = vcmp.gt.f32.partialorder %v3759, 0.0
    %vm3800 = vcmp.gt.f32.partialorder %v3760, 0.0
    %vm3801 = vcmp.gt.f32.partialorder %v3761, 0.0
    %vm3802 = vcmp.gt.f32.partialorder %v3762, 0.0
    %vm3803 = vcmp.gt.f32.partialorder %v3763, 0.0
    %vm3804 = vcmp.gt.f32.partialorder %v3764, 0.0
    %vm3805 = vcmp.gt.f32.partialorder %v3765, 0.0
    %vm3806 = vcmp.gt.f32.partialorder %v3766, 0.0
    %vm3807 = vcmp.gt.f32.partialorder %v3767, 0.0
    %vm3808 = vcmp.gt.f32.partialorder %v3768, 0.0
    %vm3809 = vcmp.gt.f32.partialorder %v3769, 0.0
    %vm3810 = vcmp.gt.f32.partialorder %v3770, 0.0
    %vm3811 = vcmp.gt.f32.partialorder %v3771, 0.0
    %vm3812 = vcmp.gt.f32.partialorder %v3772, 0.0
    %vm3813 = vcmp.gt.f32.partialorder %v3773, 0.0
    %vm3814 = vcmp.gt.f32.partialorder %v3774, 0.0
    %vm3815 = vcmp.gt.f32.partialorder %v3775, 0.0
    %vm3816 = vcmp.gt.f32.partialorder %v3776, 0.0
    %vm3817 = vcmp.gt.f32.partialorder %v3777, 0.0
    %vm3818 = vcmp.gt.f32.partialorder %v3778, 0.0
    %vm3819 = vcmp.gt.f32.partialorder %v3779, 0.0
    %vm3820 = vcmp.gt.f32.partialorder %v3780, 0.0
    %vm3821 = vcmp.gt.f32.partialorder %v3781, 0.0
    %vm3822 = vcmp.gt.f32.partialorder %v3782, 0.0
    %vm3823 = vcmp.gt.f32.partialorder %v3783, 0.0
    %vm3824 = vcmp.gt.f32.partialorder %v3784, 0.0
    %vm3825 = vcmp.gt.f32.partialorder %v3785, 0.0
    %vm3826 = vcmp.gt.f32.partialorder %v3786, 0.0
    %vm3827 = vcmp.gt.f32.partialorder %v3787, 0.0
    %vm3828 = vcmp.gt.f32.partialorder %v3788, 0.0
    %vm3829 = vcmp.gt.f32.partialorder %v3789, 0.0
    %vm3830 = vcmp.gt.f32.partialorder %v3790, 0.0
    %vm3831 = vcmp.gt.f32.partialorder %v3791, 0.0
    %vm3832 = vcmp.gt.f32.partialorder %v3792, 0.0
    %vm3833 = vcmp.gt.f32.partialorder %v3793, 0.0
    %vm3834 = vcmp.gt.f32.partialorder %v3794, 0.0
    %vm3835 = vcmp.gt.f32.partialorder %v3795, 0.0
    %vm3836 = vcmp.gt.f32.partialorder %v3796, 0.0
    %vm3837 = vcmp.gt.f32.partialorder %v3797, 0.0
    %vm3838 = vcmp.gt.f32.partialorder %v3798, 0.0
    %v3839 = vmin.f32 %v3759, 0.0
    %v3840 = vmin.f32 %v3760, 0.0
    %v3841 = vmin.f32 %v3761, 0.0
    %v3842 = vmin.f32 %v3762, 0.0
    %v3843 = vmin.f32 %v3763, 0.0
    %v3844 = vmin.f32 %v3764, 0.0
    %v3845 = vmin.f32 %v3765, 0.0
    %v3846 = vmin.f32 %v3766, 0.0
    %v3847 = vmin.f32 %v3767, 0.0
    %v3848 = vmin.f32 %v3768, 0.0
    %v3849 = vmin.f32 %v3769, 0.0
    %v3850 = vmin.f32 %v3770, 0.0
    %v3851 = vmin.f32 %v3771, 0.0
    %v3852 = vmin.f32 %v3772, 0.0
    %v3853 = vmin.f32 %v3773, 0.0
    %v3854 = vmin.f32 %v3774, 0.0
    %v3855 = vmin.f32 %v3775, 0.0
    %v3856 = vmin.f32 %v3776, 0.0
    %v3857 = vmin.f32 %v3777, 0.0
    %v3858 = vmin.f32 %v3778, 0.0
    %v3859 = vmin.f32 %v3779, 0.0
    %v3860 = vmin.f32 %v3780, 0.0
    %v3861 = vmin.f32 %v3781, 0.0
    %v3862 = vmin.f32 %v3782, 0.0
    %v3863 = vmin.f32 %v3783, 0.0
    %v3864 = vmin.f32 %v3784, 0.0
    %v3865 = vmin.f32 %v3785, 0.0
    %v3866 = vmin.f32 %v3786, 0.0
    %v3867 = vmin.f32 %v3787, 0.0
    %v3868 = vmin.f32 %v3788, 0.0
    %v3869 = vmin.f32 %v3789, 0.0
    %v3870 = vmin.f32 %v3790, 0.0
    %v3871 = vmin.f32 %v3791, 0.0
    %v3872 = vmin.f32 %v3792, 0.0
    %v3873 = vmin.f32 %v3793, 0.0
    %v3874 = vmin.f32 %v3794, 0.0
    %v3875 = vmin.f32 %v3795, 0.0
    %v3876 = vmin.f32 %v3796, 0.0
    %v3877 = vmin.f32 %v3797, 0.0
    %v3878 = vmin.f32 %v3798, 0.0
    %v3879 = vmul.f32 %v3839, 1.442695
    %v3880 = vpow.pop %v3879
    %v3881 = vmul.f32 %v3840, 1.442695
    %v3882 = vpow.pop %v3881
    %v3883 = vmul.f32 %v3841, 1.442695
    %v3884 = vpow.pop %v3883
    %v3885 = vmul.f32 %v3842, 1.442695
    %v3886 = vpow.pop %v3885
    %v3887 = vmul.f32 %v3843, 1.442695
    %v3888 = vpow.pop %v3887
    %v3889 = vmul.f32 %v3844, 1.442695
    %v3890 = vpow.pop %v3889
    %v3891 = vmul.f32 %v3845, 1.442695
    %v3892 = vpow.pop %v3891
    %v3893 = vmul.f32 %v3846, 1.442695
    %v3894 = vpow.pop %v3893
    %v3895 = vmul.f32 %v3847, 1.442695
    %v3896 = vpow.pop %v3895
    %v3897 = vmul.f32 %v3848, 1.442695
    %v3898 = vpow.pop %v3897
    %v3899 = vmul.f32 %v3849, 1.442695
    %v3900 = vpow.pop %v3899
    %v3901 = vmul.f32 %v3850, 1.442695
    %v3902 = vpow.pop %v3901
    %v3903 = vmul.f32 %v3851, 1.442695
    %v3904 = vpow.pop %v3903
    %v3905 = vmul.f32 %v3852, 1.442695
    %v3906 = vpow.pop %v3905
    %v3907 = vmul.f32 %v3853, 1.442695
    %v3908 = vpow.pop %v3907
    %v3909 = vmul.f32 %v3854, 1.442695
    %v3910 = vpow.pop %v3909
    %v3911 = vmul.f32 %v3855, 1.442695
    %v3912 = vpow.pop %v3911
    %v3913 = vmul.f32 %v3856, 1.442695
    %v3914 = vpow.pop %v3913
    %v3915 = vmul.f32 %v3857, 1.442695
    %v3916 = vpow.pop %v3915
    %v3917 = vmul.f32 %v3858, 1.442695
    %v3918 = vpow.pop %v3917
    %v3919 = vmul.f32 %v3859, 1.442695
    %v3920 = vpow.pop %v3919
    %v3921 = vmul.f32 %v3860, 1.442695
    %v3922 = vpow.pop %v3921
    %v3923 = vmul.f32 %v3861, 1.442695
    %v3924 = vpow.pop %v3923
    %v3925 = vmul.f32 %v3862, 1.442695
    %v3926 = vpow.pop %v3925
    %v3927 = vmul.f32 %v3863, 1.442695
    %v3928 = vpow.pop %v3927
    %v3929 = vmul.f32 %v3864, 1.442695
    %v3930 = vpow.pop %v3929
    %v3931 = vmul.f32 %v3865, 1.442695
    %v3932 = vpow.pop %v3931
    %v3933 = vmul.f32 %v3866, 1.442695
    %v3934 = vpow.pop %v3933
    %v3935 = vmul.f32 %v3867, 1.442695
    %v3936 = vpow.pop %v3935
    %v3937 = vmul.f32 %v3868, 1.442695
    %v3938 = vpow.pop %v3937
    %v3939 = vmul.f32 %v3869, 1.442695
    %v3940 = vpow.pop %v3939
    %v3941 = vmul.f32 %v3870, 1.442695
    %v3942 = vpow.pop %v3941
    %v3943 = vmul.f32 %v3871, 1.442695
    %v3944 = vpow.pop %v3943
    %v3945 = vmul.f32 %v3872, 1.442695
    %v3946 = vpow.pop %v3945
    %v3947 = vmul.f32 %v3873, 1.442695
    %v3948 = vpow.pop %v3947
    %v3949 = vmul.f32 %v3874, 1.442695
    %v3950 = vpow.pop %v3949
    %v3951 = vmul.f32 %v3875, 1.442695
    %v3952 = vpow.pop %v3951
    %v3953 = vmul.f32 %v3876, 1.442695
    %v3954 = vpow.pop %v3953
    %v3955 = vmul.f32 %v3877, 1.442695
    %v3956 = vpow.pop %v3955
    %v3957 = vmul.f32 %v3878, 1.442695
    %v3958 = vpow.pop %v3957
    %v3959 = vsub.f32 %v3880, 1.0
    %v3960 = vsub.f32 %v3882, 1.0
    %v3961 = vsub.f32 %v3884, 1.0
    %v3962 = vsub.f32 %v3886, 1.0
    %v3963 = vsub.f32 %v3888, 1.0
    %v3964 = vsub.f32 %v3890, 1.0
    %v3965 = vsub.f32 %v3892, 1.0
    %v3966 = vsub.f32 %v3894, 1.0
    %v3967 = vsub.f32 %v3896, 1.0
    %v3968 = vsub.f32 %v3898, 1.0
    %v3969 = vsub.f32 %v3900, 1.0
    %v3970 = vsub.f32 %v3902, 1.0
    %v3971 = vsub.f32 %v3904, 1.0
    %v3972 = vsub.f32 %v3906, 1.0
    %v3973 = vsub.f32 %v3908, 1.0
    %v3974 = vsub.f32 %v3910, 1.0
    %v3975 = vsub.f32 %v3912, 1.0
    %v3976 = vsub.f32 %v3914, 1.0
    %v3977 = vsub.f32 %v3916, 1.0
    %v3978 = vsub.f32 %v3918, 1.0
    %v3979 = vsub.f32 %v3920, 1.0
    %v3980 = vsub.f32 %v3922, 1.0
    %v3981 = vsub.f32 %v3924, 1.0
    %v3982 = vsub.f32 %v3926, 1.0
    %v3983 = vsub.f32 %v3928, 1.0
    %v3984 = vsub.f32 %v3930, 1.0
    %v3985 = vsub.f32 %v3932, 1.0
    %v3986 = vsub.f32 %v3934, 1.0
    %v3987 = vsub.f32 %v3936, 1.0
    %v3988 = vsub.f32 %v3938, 1.0
    %v3989 = vsub.f32 %v3940, 1.0
    %v3990 = vsub.f32 %v3942, 1.0
    %v3991 = vsub.f32 %v3944, 1.0
    %v3992 = vsub.f32 %v3946, 1.0
    %v3993 = vsub.f32 %v3948, 1.0
    %v3994 = vsub.f32 %v3950, 1.0
    %v3995 = vsub.f32 %v3952, 1.0
    %v3996 = vsub.f32 %v3954, 1.0
    %v3997 = vsub.f32 %v3956, 1.0
    %v3998 = vsub.f32 %v3958, 1.0
    %v3999 = vsel %vm3799, %v3759, %v3959
    %v4000 = vsel %vm3800, %v3760, %v3960
    %v4001 = vsel %vm3801, %v3761, %v3961
    %v4002 = vsel %vm3802, %v3762, %v3962
    %v4003 = vsel %vm3803, %v3763, %v3963
    %v4004 = vsel %vm3804, %v3764, %v3964
    %v4005 = vsel %vm3805, %v3765, %v3965
    %v4006 = vsel %vm3806, %v3766, %v3966
    %v4007 = vsel %vm3807, %v3767, %v3967
    %v4008 = vsel %vm3808, %v3768, %v3968
    %v4009 = vsel %vm3809, %v3769, %v3969
    %v4010 = vsel %vm3810, %v3770, %v3970
    %v4011 = vsel %vm3811, %v3771, %v3971
    %v4012 = vsel %vm3812, %v3772, %v3972
    %v4013 = vsel %vm3813, %v3773, %v3973
    %v4014 = vsel %vm3814, %v3774, %v3974
    %v4015 = vsel %vm3815, %v3775, %v3975
    %v4016 = vsel %vm3816, %v3776, %v3976
    %v4017 = vsel %vm3817, %v3777, %v3977
    %v4018 = vsel %vm3818, %v3778, %v3978
    %v4019 = vsel %vm3819, %v3779, %v3979
    %v4020 = vsel %vm3820, %v3780, %v3980
    %v4021 = vsel %vm3821, %v3781, %v3981
    %v4022 = vsel %vm3822, %v3782, %v3982
    %v4023 = vsel %vm3823, %v3783, %v3983
    %v4024 = vsel %vm3824, %v3784, %v3984
    %v4025 = vsel %vm3825, %v3785, %v3985
    %v4026 = vsel %vm3826, %v3786, %v3986
    %v4027 = vsel %vm3827, %v3787, %v3987
    %v4028 = vsel %vm3828, %v3788, %v3988
    %v4029 = vsel %vm3829, %v3789, %v3989
    %v4030 = vsel %vm3830, %v3790, %v3990
    %v4031 = vsel %vm3831, %v3791, %v3991
    %v4032 = vsel %vm3832, %v3792, %v3992
    %v4033 = vsel %vm3833, %v3793, %v3993
    %v4034 = vsel %vm3834, %v3794, %v3994
    %v4035 = vsel %vm3835, %v3795, %v3995
    %v4036 = vsel %vm3836, %v3796, %v3996
    %v4037 = vsel %vm3837, %v3797, %v3997
    %v4038 = vsel %vm3838, %v3798, %v3998
    %v4039 = vld [vmem:[#allocation7] sm:$0xff]
    %v4040 = vld [vmem:[#allocation7 + $0x8] sm:$0xff]
    %v4041 = vld [vmem:[#allocation7 + $0x10] sm:$0xff]
    %v4042 = vld [vmem:[#allocation7 + $0x18] sm:$0xff]
    %v4043 = vld [vmem:[#allocation7 + $0x20] sm:$0xff]
    %v4044 = vld [vmem:[#allocation7 + $0x28] sm:$0xff]
    %v4045 = vld [vmem:[#allocation7 + $0x30] sm:$0xff]
    %v4046 = vld [vmem:[#allocation7 + $0x38] sm:$0xff]
    %v4047 = vld [vmem:[#allocation7 + $0x40] sm:$0xff]
    %v4048 = vld [vmem:[#allocation7 + $0x48] sm:$0xff]
    %v4049 = vld [vmem:[#allocation7 + $0x50] sm:$0xff]
    %v4050 = vld [vmem:[#allocation7 + $0x58] sm:$0xff]
    %v4051 = vld [vmem:[#allocation7 + $0x60] sm:$0xff]
    %v4052 = vld [vmem:[#allocation7 + $0x68] sm:$0xff]
    %v4053 = vld [vmem:[#allocation7 + $0x70] sm:$0xff]
    %v4054 = vld [vmem:[#allocation7 + $0x78] sm:$0xff]
    %v4055 = vld [vmem:[#allocation7 + $0x80] sm:$0xff]
    %v4056 = vld [vmem:[#allocation7 + $0x88] sm:$0xff]
    %v4057 = vld [vmem:[#allocation7 + $0x90] sm:$0xff]
    %v4058 = vld [vmem:[#allocation7 + $0x98] sm:$0xff]
    %v4059 = vld [vmem:[#allocation7 + $0xa0] sm:$0xff]
    %v4060 = vld [vmem:[#allocation7 + $0xa8] sm:$0xff]
    %v4061 = vld [vmem:[#allocation7 + $0xb0] sm:$0xff]
    %v4062 = vld [vmem:[#allocation7 + $0xb8] sm:$0xff]
    %v4063 = vld [vmem:[#allocation7 + $0xc0] sm:$0xff]
    %v4064 = vld [vmem:[#allocation7 + $0xc8] sm:$0xff]
    %v4065 = vld [vmem:[#allocation7 + $0xd0] sm:$0xff]
    %v4066 = vld [vmem:[#allocation7 + $0xd8] sm:$0xff]
    %v4067 = vld [vmem:[#allocation7 + $0xe0] sm:$0xff]
    %v4068 = vld [vmem:[#allocation7 + $0xe8] sm:$0xff]
    %v4069 = vld [vmem:[#allocation7 + $0xf0] sm:$0xff]
    %v4070 = vld [vmem:[#allocation7 + $0xf8] sm:$0xff]
    %4071 = vmatprep.subr.mxu0 0.0
    %4072 = vmatpush1.msra.mxu0 %v4054
    %4073 = vmatprep.subr.mxu0 0.0
    %4074 = vmatpush1.msra.mxu0 %v4053
    %4075 = vmatprep.subr.mxu0 0.0
    %4076 = vmatpush1.msra.mxu0 %v4052
    %4077 = vmatprep.subr.mxu0 0.0
    %4078 = vmatpush1.msra.mxu0 %v4051
    %4079 = vmatprep.subr.mxu0 0.0
    %4080 = vmatpush1.msra.mxu0 %v4050
    %4081 = vmatprep.subr.mxu0 0.0
    %4082 = vmatpush1.msra.mxu0 %v4049
    %4083 = vmatprep.subr.mxu0 0.0
    %4084 = vmatpush1.msra.mxu0 %v4048
    %4085 = vmatprep.subr.mxu0 0.0
    %4086 = vmatpush1.msra.mxu0 %v4047
    %4087 = vmatprep.subr.mxu0 0.0
    %4088 = vmatpush1.msra.mxu0 %v4046
    %4089 = vmatprep.subr.mxu0 0.0
    %4090 = vmatpush1.msra.mxu0 %v4045
    %4091 = vmatprep.subr.mxu0 0.0
    %4092 = vmatpush1.msra.mxu0 %v4044
    %4093 = vmatprep.subr.mxu0 0.0
    %4094 = vmatpush1.msra.mxu0 %v4043
    %4095 = vmatprep.subr.mxu0 0.0
    %4096 = vmatpush1.msra.mxu0 %v4042
    %4097 = vmatprep.subr.mxu0 0.0
    %4098 = vmatpush1.msra.mxu0 %v4041
    %4099 = vmatprep.subr.mxu0 0.0
    %4100 = vmatpush1.msra.mxu0 %v4040
    %4101 = vmatprep.subr.mxu0 0.0
    %4102 = vmatpush1.msra.mxu0 %v4039
    %4103 = vmatprep.subr.mxu0 0.0
    %4104 = vmatpush2.msra.mxu0 %v4070
    %4105 = vmatprep.subr.mxu0 0.0
    %4106 = vmatpush2.msra.mxu0 %v4069
    %4107 = vmatprep.subr.mxu0 0.0
    %4108 = vmatpush2.msra.mxu0 %v4068
    %4109 = vmatprep.subr.mxu0 0.0
    %4110 = vmatpush2.msra.mxu0 %v4067
    %4111 = vmatprep.subr.mxu0 0.0
    %4112 = vmatpush2.msra.mxu0 %v4066
    %4113 = vmatprep.subr.mxu0 0.0
    %4114 = vmatpush2.msra.mxu0 %v4065
    %4115 = vmatprep.subr.mxu0 0.0
    %4116 = vmatpush2.msra.mxu0 %v4064
    %4117 = vmatprep.subr.mxu0 0.0
    %4118 = vmatpush2.msra.mxu0 %v4063
    %4119 = vmatprep.subr.mxu0 0.0
    %4120 = vmatpush2.msra.mxu0 %v4062
    %4121 = vmatprep.subr.mxu0 0.0
    %4122 = vmatpush2.msra.mxu0 %v4061
    %4123 = vmatprep.subr.mxu0 0.0
    %4124 = vmatpush2.msra.mxu0 %v4060
    %4125 = vmatprep.subr.mxu0 0.0
    %4126 = vmatpush2.msra.mxu0 %v4059
    %4127 = vmatprep.subr.mxu0 0.0
    %4128 = vmatpush2.msra.mxu0 %v4058
    %4129 = vmatprep.subr.mxu0 0.0
    %4130 = vmatpush2.msra.mxu0 %v4057
    %4131 = vmatprep.subr.mxu0 0.0
    %4132 = vmatpush2.msra.mxu0 %v4056
    %4133 = vmatprep.subr.mxu0 0.0
    %4134 = vmatpush2.msra.mxu0 %v4055
    %4135 = vmatprep.mubr.f32.mxu0 %v4000
    %4136 = vmatmul.mubr.f32.gmra.mxu0 %v3999
    %v4137 = vpop.f32.mrf.mxu0
    %v4138 = vadd.f32 0.0, %v4137
    %v4139 = vpop.f32.mrf.mxu0
    %4140 = vmatprep.mubr.f32.mxu0 %v4002
    %4141 = vmatmul.mubr.f32.gmra.mxu0 %v4001
    %v4142 = vpop.f32.mrf.mxu0
    %v4143 = vadd.f32 0.0, %v4142
    %v4144 = vpop.f32.mrf.mxu0
    %4145 = vmatprep.mubr.f32.mxu0 %v4004
    %4146 = vmatmul.mubr.f32.gmra.mxu0 %v4003
    %v4147 = vpop.f32.mrf.mxu0
    %v4148 = vadd.f32 0.0, %v4147
    %v4149 = vpop.f32.mrf.mxu0
    %4150 = vmatprep.mubr.f32.mxu0 %v4006
    %4151 = vmatmul.mubr.f32.gmra.mxu0 %v4005
    %v4152 = vpop.f32.mrf.mxu0
    %v4153 = vadd.f32 0.0, %v4152
    %v4154 = vpop.f32.mrf.mxu0
    %4155 = vmatprep.mubr.f32.mxu0 %v4008
    %4156 = vmatmul.mubr.f32.gmra.mxu0 %v4007
    %v4157 = vpop.f32.mrf.mxu0
    %v4158 = vadd.f32 0.0, %v4157
    %v4159 = vpop.f32.mrf.mxu0
    %4160 = vmatprep.mubr.f32.mxu0 %v4010
    %4161 = vmatmul.mubr.f32.gmra.mxu0 %v4009
    %v4162 = vpop.f32.mrf.mxu0
    %v4163 = vadd.f32 0.0, %v4162
    %v4164 = vpop.f32.mrf.mxu0
    %4165 = vmatprep.mubr.f32.mxu0 %v4012
    %4166 = vmatmul.mubr.f32.gmra.mxu0 %v4011
    %v4167 = vpop.f32.mrf.mxu0
    %v4168 = vadd.f32 0.0, %v4167
    %v4169 = vpop.f32.mrf.mxu0
    %4170 = vmatprep.mubr.f32.mxu0 %v4014
    %4171 = vmatmul.mubr.f32.gmra.mxu0 %v4013
    %v4172 = vpop.f32.mrf.mxu0
    %v4173 = vadd.f32 0.0, %v4172
    %v4174 = vpop.f32.mrf.mxu0
    %4175 = vmatprep.mubr.f32.mxu0 %v4016
    %4176 = vmatmul.mubr.f32.gmra.mxu0 %v4015
    %v4177 = vpop.f32.mrf.mxu0
    %v4178 = vadd.f32 0.0, %v4177
    %v4179 = vpop.f32.mrf.mxu0
    %4180 = vmatprep.mubr.f32.mxu0 %v4018
    %4181 = vmatmul.mubr.f32.gmra.mxu0 %v4017
    %v4182 = vpop.f32.mrf.mxu0
    %v4183 = vadd.f32 0.0, %v4182
    %v4184 = vpop.f32.mrf.mxu0
    %4185 = vmatprep.mubr.f32.mxu0 %v4020
    %4186 = vmatmul.mubr.f32.gmra.mxu0 %v4019
    %v4187 = vpop.f32.mrf.mxu0
    %v4188 = vadd.f32 0.0, %v4187
    %v4189 = vpop.f32.mrf.mxu0
    %4190 = vmatprep.mubr.f32.mxu0 %v4022
    %4191 = vmatmul.mubr.f32.gmra.mxu0 %v4021
    %v4192 = vpop.f32.mrf.mxu0
    %v4193 = vadd.f32 0.0, %v4192
    %v4194 = vpop.f32.mrf.mxu0
    %4195 = vmatprep.mubr.f32.mxu0 %v4024
    %4196 = vmatmul.mubr.f32.gmra.mxu0 %v4023
    %v4197 = vpop.f32.mrf.mxu0
    %v4198 = vadd.f32 0.0, %v4197
    %v4199 = vpop.f32.mrf.mxu0
    %4200 = vmatprep.mubr.f32.mxu0 %v4026
    %4201 = vmatmul.mubr.f32.gmra.mxu0 %v4025
    %v4202 = vpop.f32.mrf.mxu0
    %v4203 = vadd.f32 0.0, %v4202
    %v4204 = vpop.f32.mrf.mxu0
    %4205 = vmatprep.mubr.f32.mxu0 %v4028
    %4206 = vmatmul.mubr.f32.gmra.mxu0 %v4027
    %v4207 = vpop.f32.mrf.mxu0
    %v4208 = vadd.f32 0.0, %v4207
    %v4209 = vpop.f32.mrf.mxu0
    %4210 = vmatprep.mubr.f32.mxu0 %v4030
    %4211 = vmatmul.mubr.f32.gmra.mxu0 %v4029
    %v4212 = vpop.f32.mrf.mxu0
    %v4213 = vadd.f32 0.0, %v4212
    %v4214 = vpop.f32.mrf.mxu0
    %4215 = vmatprep.mubr.f32.mxu0 %v4032
    %4216 = vmatmul.mubr.f32.gmra.mxu0 %v4031
    %v4217 = vpop.f32.mrf.mxu0
    %v4218 = vadd.f32 0.0, %v4217
    %v4219 = vpop.f32.mrf.mxu0
    %4220 = vmatprep.mubr.f32.mxu0 %v4034
    %4221 = vmatmul.mubr.f32.gmra.mxu0 %v4033
    %v4222 = vpop.f32.mrf.mxu0
    %v4223 = vadd.f32 0.0, %v4222
    %v4224 = vpop.f32.mrf.mxu0
    %4225 = vmatprep.mubr.f32.mxu0 %v4036
    %4226 = vmatmul.mubr.f32.gmra.mxu0 %v4035
    %v4227 = vpop.f32.mrf.mxu0
    %v4228 = vadd.f32 0.0, %v4227
    %v4229 = vpop.f32.mrf.mxu0
    %4230 = vmatprep.mubr.f32.mxu0 %v4038
    %4231 = vmatmul.mubr.f32.gmra.mxu0 %v4037
    %v4232 = vpop.f32.mrf.mxu0
    %v4233 = vadd.f32 0.0, %v4232
    %v4234 = vpop.f32.mrf.mxu0
    %4235 = vdwg.mxu0
    %4256 = vrot.lane.b32.xlu0 %v4138, 4
    %v4257 = vpop.permute.xlu0 %4256
    %4258 = vrot.lane.b32.xlu0 %v4143, 4
    %v4259 = vpop.permute.xlu0 %4258
    %4260 = vrot.lane.b32.xlu0 %v4148, 4
    %v4261 = vpop.permute.xlu0 %4260
    %4262 = vrot.lane.b32.xlu0 %v4153, 4
    %v4263 = vpop.permute.xlu0 %4262
    %4264 = vrot.lane.b32.xlu0 %v4158, 4
    %v4265 = vpop.permute.xlu0 %4264
    %4266 = vrot.lane.b32.xlu0 %v4163, 4
    %v4267 = vpop.permute.xlu0 %4266
    %4268 = vrot.lane.b32.xlu0 %v4168, 4
    %v4269 = vpop.permute.xlu0 %4268
    %4270 = vrot.lane.b32.xlu0 %v4173, 4
    %v4271 = vpop.permute.xlu0 %4270
    %4272 = vrot.lane.b32.xlu0 %v4178, 4
    %v4273 = vpop.permute.xlu0 %4272
    %4274 = vrot.lane.b32.xlu0 %v4183, 4
    %v4275 = vpop.permute.xlu0 %4274
    %4276 = vrot.lane.b32.xlu0 %v4188, 4
    %v4277 = vpop.permute.xlu0 %4276
    %4278 = vrot.lane.b32.xlu0 %v4193, 4
    %v4279 = vpop.permute.xlu0 %4278
    %4280 = vrot.lane.b32.xlu0 %v4198, 4
    %v4281 = vpop.permute.xlu0 %4280
    %4282 = vrot.lane.b32.xlu0 %v4203, 4
    %v4283 = vpop.permute.xlu0 %4282
    %4284 = vrot.lane.b32.xlu0 %v4208, 4
    %v4285 = vpop.permute.xlu0 %4284
    %4286 = vrot.lane.b32.xlu0 %v4213, 4
    %v4287 = vpop.permute.xlu0 %4286
    %4288 = vrot.lane.b32.xlu0 %v4218, 4
    %v4289 = vpop.permute.xlu0 %4288
    %4290 = vrot.lane.b32.xlu0 %v4223, 4
    %v4291 = vpop.permute.xlu0 %4290
    %4292 = vrot.lane.b32.xlu0 %v4228, 4
    %v4293 = vpop.permute.xlu0 %4292
    %4294 = vrot.lane.b32.xlu0 %v4233, 4
    %v4295 = vpop.permute.xlu0 %4294
    %4316 = vset.pattern.permute.xlu0 8
    %4317 = vperm.xlu0 %4316, %v88
    %v4318 = vpop.permute.xlu0 %4317
    %4320 = vset.pattern.permute.xlu0 8
    %4321 = vperm.xlu0 %4320, %v89
    %v4322 = vpop.permute.xlu0 %4321
    %4324 = vset.pattern.permute.xlu0 8
    %4325 = vperm.xlu0 %4324, %v90
    %v4326 = vpop.permute.xlu0 %4325
    %4328 = vset.pattern.permute.xlu0 8
    %4329 = vperm.xlu0 %4328, %v91
    %v4330 = vpop.permute.xlu0 %4329
    %4332 = vset.pattern.permute.xlu0 8
    %4333 = vperm.xlu0 %4332, %v92
    %v4334 = vpop.permute.xlu0 %4333
    %4336 = vset.pattern.permute.xlu0 8
    %4337 = vperm.xlu0 %4336, %v93
    %v4338 = vpop.permute.xlu0 %4337
    %4340 = vset.pattern.permute.xlu0 8
    %4341 = vperm.xlu0 %4340, %v94
    %v4342 = vpop.permute.xlu0 %4341
    %4344 = vset.pattern.permute.xlu0 8
    %4345 = vperm.xlu0 %4344, %v95
    %v4346 = vpop.permute.xlu0 %4345
    %4348 = vset.pattern.permute.xlu0 8
    %4349 = vperm.xlu0 %4348, %v96
    %v4350 = vpop.permute.xlu0 %4349
    %4352 = vset.pattern.permute.xlu0 8
    %4353 = vperm.xlu0 %4352, %v97
    %v4354 = vpop.permute.xlu0 %4353
    %4356 = vset.pattern.permute.xlu0 8
    %4357 = vperm.xlu0 %4356, %v98
    %v4358 = vpop.permute.xlu0 %4357
    %4360 = vset.pattern.permute.xlu0 8
    %4361 = vperm.xlu0 %4360, %v99
    %v4362 = vpop.permute.xlu0 %4361
    %4364 = vset.pattern.permute.xlu0 8
    %4365 = vperm.xlu0 %4364, %v100
    %v4366 = vpop.permute.xlu0 %4365
    %4368 = vset.pattern.permute.xlu0 8
    %4369 = vperm.xlu0 %4368, %v101
    %v4370 = vpop.permute.xlu0 %4369
    %4372 = vset.pattern.permute.xlu0 8
    %4373 = vperm.xlu0 %4372, %v102
    %v4374 = vpop.permute.xlu0 %4373
    %4376 = vset.pattern.permute.xlu0 8
    %4377 = vperm.xlu0 %4376, %v103
    %v4378 = vpop.permute.xlu0 %4377
    %4380 = vset.pattern.permute.xlu0 8
    %4381 = vperm.xlu0 %4380, %v104
    %v4382 = vpop.permute.xlu0 %4381
    %4384 = vset.pattern.permute.xlu0 8
    %4385 = vperm.xlu0 %4384, %v105
    %v4386 = vpop.permute.xlu0 %4385
    %4388 = vset.pattern.permute.xlu0 8
    %4389 = vperm.xlu0 %4388, %v106
    %v4390 = vpop.permute.xlu0 %4389
    %4392 = vset.pattern.permute.xlu0 8
    %4393 = vperm.xlu0 %4392, %v107
    %v4394 = vpop.permute.xlu0 %4393
    %v4396 = vmul.f32 %v4318, %v4257
    %v4397 = vmul.f32 %v4322, %v4259
    %v4398 = vmul.f32 %v4326, %v4261
    %v4399 = vmul.f32 %v4330, %v4263
    %v4400 = vmul.f32 %v4334, %v4265
    %v4401 = vmul.f32 %v4338, %v4267
    %v4402 = vmul.f32 %v4342, %v4269
    %v4403 = vmul.f32 %v4346, %v4271
    %v4404 = vmul.f32 %v4350, %v4273
    %v4405 = vmul.f32 %v4354, %v4275
    %v4406 = vmul.f32 %v4358, %v4277
    %v4407 = vmul.f32 %v4362, %v4279
    %v4408 = vmul.f32 %v4366, %v4281
    %v4409 = vmul.f32 %v4370, %v4283
    %v4410 = vmul.f32 %v4374, %v4285
    %v4411 = vmul.f32 %v4378, %v4287
    %v4412 = vmul.f32 %v4382, %v4289
    %v4413 = vmul.f32 %v4386, %v4291
    %v4414 = vmul.f32 %v4390, %v4293
    %v4415 = vmul.f32 %v4394, %v4295
    %v4416 = vadd.f32 %v4396, 0.0
    %v4417 = vadd.f32 %v4397, 0.0
    %v4418 = vadd.f32 %v4398, 0.0
    %v4419 = vadd.f32 %v4399, 0.0
    %v4420 = vadd.f32 %v4400, 0.0
    %v4421 = vadd.f32 %v4401, 0.0
    %v4422 = vadd.f32 %v4402, 0.0
    %v4423 = vadd.f32 %v4403, 0.0
    %v4424 = vadd.f32 %v4404, 0.0
    %v4425 = vadd.f32 %v4405, 0.0
    %v4426 = vadd.f32 %v4406, 0.0
    %v4427 = vadd.f32 %v4407, 0.0
    %v4428 = vadd.f32 %v4408, 0.0
    %v4429 = vadd.f32 %v4409, 0.0
    %v4430 = vadd.f32 %v4410, 0.0
    %v4431 = vadd.f32 %v4411, 0.0
    %v4432 = vadd.f32 %v4412, 0.0
    %v4433 = vadd.f32 %v4413, 0.0
    %v4434 = vadd.f32 %v4414, 0.0
    %v4435 = vadd.f32 %v4415, 0.0
    %4436 = vrot.lane.b32.xlu0 %v4138, 3
    %v4437 = vpop.permute.xlu0 %4436
    %4438 = vrot.lane.b32.xlu0 %v4143, 3
    %v4439 = vpop.permute.xlu0 %4438
    %4440 = vrot.lane.b32.xlu0 %v4148, 3
    %v4441 = vpop.permute.xlu0 %4440
    %4442 = vrot.lane.b32.xlu0 %v4153, 3
    %v4443 = vpop.permute.xlu0 %4442
    %4444 = vrot.lane.b32.xlu0 %v4158, 3
    %v4445 = vpop.permute.xlu0 %4444
    %4446 = vrot.lane.b32.xlu0 %v4163, 3
    %v4447 = vpop.permute.xlu0 %4446
    %4448 = vrot.lane.b32.xlu0 %v4168, 3
    %v4449 = vpop.permute.xlu0 %4448
    %4450 = vrot.lane.b32.xlu0 %v4173, 3
    %v4451 = vpop.permute.xlu0 %4450
    %4452 = vrot.lane.b32.xlu0 %v4178, 3
    %v4453 = vpop.permute.xlu0 %4452
    %4454 = vrot.lane.b32.xlu0 %v4183, 3
    %v4455 = vpop.permute.xlu0 %4454
    %4456 = vrot.lane.b32.xlu0 %v4188, 3
    %v4457 = vpop.permute.xlu0 %4456
    %4458 = vrot.lane.b32.xlu0 %v4193, 3
    %v4459 = vpop.permute.xlu0 %4458
    %4460 = vrot.lane.b32.xlu0 %v4198, 3
    %v4461 = vpop.permute.xlu0 %4460
    %4462 = vrot.lane.b32.xlu0 %v4203, 3
    %v4463 = vpop.permute.xlu0 %4462
    %4464 = vrot.lane.b32.xlu0 %v4208, 3
    %v4465 = vpop.permute.xlu0 %4464
    %4466 = vrot.lane.b32.xlu0 %v4213, 3
    %v4467 = vpop.permute.xlu0 %4466
    %4468 = vrot.lane.b32.xlu0 %v4218, 3
    %v4469 = vpop.permute.xlu0 %4468
    %4470 = vrot.lane.b32.xlu0 %v4223, 3
    %v4471 = vpop.permute.xlu0 %4470
    %4472 = vrot.lane.b32.xlu0 %v4228, 3
    %v4473 = vpop.permute.xlu0 %4472
    %4474 = vrot.lane.b32.xlu0 %v4233, 3
    %v4475 = vpop.permute.xlu0 %4474
    %4496 = vset.pattern.permute.xlu0 9
    %4497 = vperm.xlu0 %4496, %v88
    %v4498 = vpop.permute.xlu0 %4497
    %4500 = vset.pattern.permute.xlu0 9
    %4501 = vperm.xlu0 %4500, %v89
    %v4502 = vpop.permute.xlu0 %4501
    %4504 = vset.pattern.permute.xlu0 9
    %4505 = vperm.xlu0 %4504, %v90
    %v4506 = vpop.permute.xlu0 %4505
    %4508 = vset.pattern.permute.xlu0 9
    %4509 = vperm.xlu0 %4508, %v91
    %v4510 = vpop.permute.xlu0 %4509
    %4512 = vset.pattern.permute.xlu0 9
    %4513 = vperm.xlu0 %4512, %v92
    %v4514 = vpop.permute.xlu0 %4513
    %4516 = vset.pattern.permute.xlu0 9
    %4517 = vperm.xlu0 %4516, %v93
    %v4518 = vpop.permute.xlu0 %4517
    %4520 = vset.pattern.permute.xlu0 9
    %4521 = vperm.xlu0 %4520, %v94
    %v4522 = vpop.permute.xlu0 %4521
    %4524 = vset.pattern.permute.xlu0 9
    %4525 = vperm.xlu0 %4524, %v95
    %v4526 = vpop.permute.xlu0 %4525
    %4528 = vset.pattern.permute.xlu0 9
    %4529 = vperm.xlu0 %4528, %v96
    %v4530 = vpop.permute.xlu0 %4529
    %4532 = vset.pattern.permute.xlu0 9
    %4533 = vperm.xlu0 %4532, %v97
    %v4534 = vpop.permute.xlu0 %4533
    %4536 = vset.pattern.permute.xlu0 9
    %4537 = vperm.xlu0 %4536, %v98
    %v4538 = vpop.permute.xlu0 %4537
    %4540 = vset.pattern.permute.xlu0 9
    %4541 = vperm.xlu0 %4540, %v99
    %v4542 = vpop.permute.xlu0 %4541
    %4544 = vset.pattern.permute.xlu0 9
    %4545 = vperm.xlu0 %4544, %v100
    %v4546 = vpop.permute.xlu0 %4545
    %4548 = vset.pattern.permute.xlu0 9
    %4549 = vperm.xlu0 %4548, %v101
    %v4550 = vpop.permute.xlu0 %4549
    %4552 = vset.pattern.permute.xlu0 9
    %4553 = vperm.xlu0 %4552, %v102
    %v4554 = vpop.permute.xlu0 %4553
    %4556 = vset.pattern.permute.xlu0 9
    %4557 = vperm.xlu0 %4556, %v103
    %v4558 = vpop.permute.xlu0 %4557
    %4560 = vset.pattern.permute.xlu0 9
    %4561 = vperm.xlu0 %4560, %v104
    %v4562 = vpop.permute.xlu0 %4561
    %4564 = vset.pattern.permute.xlu0 9
    %4565 = vperm.xlu0 %4564, %v105
    %v4566 = vpop.permute.xlu0 %4565
    %4568 = vset.pattern.permute.xlu0 9
    %4569 = vperm.xlu0 %4568, %v106
    %v4570 = vpop.permute.xlu0 %4569
    %4572 = vset.pattern.permute.xlu0 9
    %4573 = vperm.xlu0 %4572, %v107
    %v4574 = vpop.permute.xlu0 %4573
    %v4576 = vmul.f32 %v4498, %v4437
    %v4577 = vmul.f32 %v4502, %v4439
    %v4578 = vmul.f32 %v4506, %v4441
    %v4579 = vmul.f32 %v4510, %v4443
    %v4580 = vmul.f32 %v4514, %v4445
    %v4581 = vmul.f32 %v4518, %v4447
    %v4582 = vmul.f32 %v4522, %v4449
    %v4583 = vmul.f32 %v4526, %v4451
    %v4584 = vmul.f32 %v4530, %v4453
    %v4585 = vmul.f32 %v4534, %v4455
    %v4586 = vmul.f32 %v4538, %v4457
    %v4587 = vmul.f32 %v4542, %v4459
    %v4588 = vmul.f32 %v4546, %v4461
    %v4589 = vmul.f32 %v4550, %v4463
    %v4590 = vmul.f32 %v4554, %v4465
    %v4591 = vmul.f32 %v4558, %v4467
    %v4592 = vmul.f32 %v4562, %v4469
    %v4593 = vmul.f32 %v4566, %v4471
    %v4594 = vmul.f32 %v4570, %v4473
    %v4595 = vmul.f32 %v4574, %v4475
    %v4596 = vadd.f32 %v4416, %v4576
    %v4597 = vadd.f32 %v4417, %v4577
    %v4598 = vadd.f32 %v4418, %v4578
    %v4599 = vadd.f32 %v4419, %v4579
    %v4600 = vadd.f32 %v4420, %v4580
    %v4601 = vadd.f32 %v4421, %v4581
    %v4602 = vadd.f32 %v4422, %v4582
    %v4603 = vadd.f32 %v4423, %v4583
    %v4604 = vadd.f32 %v4424, %v4584
    %v4605 = vadd.f32 %v4425, %v4585
    %v4606 = vadd.f32 %v4426, %v4586
    %v4607 = vadd.f32 %v4427, %v4587
    %v4608 = vadd.f32 %v4428, %v4588
    %v4609 = vadd.f32 %v4429, %v4589
    %v4610 = vadd.f32 %v4430, %v4590
    %v4611 = vadd.f32 %v4431, %v4591
    %v4612 = vadd.f32 %v4432, %v4592
    %v4613 = vadd.f32 %v4433, %v4593
    %v4614 = vadd.f32 %v4434, %v4594
    %v4615 = vadd.f32 %v4435, %v4595
    %4616 = vrot.lane.b32.xlu0 %v4138, 2
    %v4617 = vpop.permute.xlu0 %4616
    %4618 = vrot.lane.b32.xlu0 %v4143, 2
    %v4619 = vpop.permute.xlu0 %4618
    %4620 = vrot.lane.b32.xlu0 %v4148, 2
    %v4621 = vpop.permute.xlu0 %4620
    %4622 = vrot.lane.b32.xlu0 %v4153, 2
    %v4623 = vpop.permute.xlu0 %4622
    %4624 = vrot.lane.b32.xlu0 %v4158, 2
    %v4625 = vpop.permute.xlu0 %4624
    %4626 = vrot.lane.b32.xlu0 %v4163, 2
    %v4627 = vpop.permute.xlu0 %4626
    %4628 = vrot.lane.b32.xlu0 %v4168, 2
    %v4629 = vpop.permute.xlu0 %4628
    %4630 = vrot.lane.b32.xlu0 %v4173, 2
    %v4631 = vpop.permute.xlu0 %4630
    %4632 = vrot.lane.b32.xlu0 %v4178, 2
    %v4633 = vpop.permute.xlu0 %4632
    %4634 = vrot.lane.b32.xlu0 %v4183, 2
    %v4635 = vpop.permute.xlu0 %4634
    %4636 = vrot.lane.b32.xlu0 %v4188, 2
    %v4637 = vpop.permute.xlu0 %4636
    %4638 = vrot.lane.b32.xlu0 %v4193, 2
    %v4639 = vpop.permute.xlu0 %4638
    %4640 = vrot.lane.b32.xlu0 %v4198, 2
    %v4641 = vpop.permute.xlu0 %4640
    %4642 = vrot.lane.b32.xlu0 %v4203, 2
    %v4643 = vpop.permute.xlu0 %4642
    %4644 = vrot.lane.b32.xlu0 %v4208, 2
    %v4645 = vpop.permute.xlu0 %4644
    %4646 = vrot.lane.b32.xlu0 %v4213, 2
    %v4647 = vpop.permute.xlu0 %4646
    %4648 = vrot.lane.b32.xlu0 %v4218, 2
    %v4649 = vpop.permute.xlu0 %4648
    %4650 = vrot.lane.b32.xlu0 %v4223, 2
    %v4651 = vpop.permute.xlu0 %4650
    %4652 = vrot.lane.b32.xlu0 %v4228, 2
    %v4653 = vpop.permute.xlu0 %4652
    %4654 = vrot.lane.b32.xlu0 %v4233, 2
    %v4655 = vpop.permute.xlu0 %4654
    %vm4676 = vcmask 15360
    %4677 = vset.pattern.permute.xlu0 10
    %4678 = vperm.xlu0 %4677, %v88
    %v4679 = vpop.permute.xlu0 %4678
    %4681 = vset.pattern.permute.xlu0 10
    %4682 = vperm.xlu0 %4681, %v89
    %v4683 = vpop.permute.xlu0 %4682
    %4685 = vset.pattern.permute.xlu0 10
    %4686 = vperm.xlu0 %4685, %v90
    %v4687 = vpop.permute.xlu0 %4686
    %4689 = vset.pattern.permute.xlu0 10
    %4690 = vperm.xlu0 %4689, %v91
    %v4691 = vpop.permute.xlu0 %4690
    %4693 = vset.pattern.permute.xlu0 10
    %4694 = vperm.xlu0 %4693, %v92
    %v4695 = vpop.permute.xlu0 %4694
    %4697 = vset.pattern.permute.xlu0 10
    %4698 = vperm.xlu0 %4697, %v93
    %v4699 = vpop.permute.xlu0 %4698
    %4701 = vset.pattern.permute.xlu0 10
    %4702 = vperm.xlu0 %4701, %v94
    %v4703 = vpop.permute.xlu0 %4702
    %4705 = vset.pattern.permute.xlu0 10
    %4706 = vperm.xlu0 %4705, %v95
    %v4707 = vpop.permute.xlu0 %4706
    %4709 = vset.pattern.permute.xlu0 10
    %4710 = vperm.xlu0 %4709, %v96
    %v4711 = vpop.permute.xlu0 %4710
    %4713 = vset.pattern.permute.xlu0 10
    %4714 = vperm.xlu0 %4713, %v97
    %v4715 = vpop.permute.xlu0 %4714
    %4717 = vset.pattern.permute.xlu0 10
    %4718 = vperm.xlu0 %4717, %v98
    %v4719 = vpop.permute.xlu0 %4718
    %4721 = vset.pattern.permute.xlu0 10
    %4722 = vperm.xlu0 %4721, %v99
    %v4723 = vpop.permute.xlu0 %4722
    %4725 = vset.pattern.permute.xlu0 10
    %4726 = vperm.xlu0 %4725, %v100
    %v4727 = vpop.permute.xlu0 %4726
    %4729 = vset.pattern.permute.xlu0 10
    %4730 = vperm.xlu0 %4729, %v101
    %v4731 = vpop.permute.xlu0 %4730
    %4733 = vset.pattern.permute.xlu0 10
    %4734 = vperm.xlu0 %4733, %v102
    %v4735 = vpop.permute.xlu0 %4734
    %4737 = vset.pattern.permute.xlu0 10
    %4738 = vperm.xlu0 %4737, %v103
    %v4739 = vpop.permute.xlu0 %4738
    %4741 = vset.pattern.permute.xlu0 10
    %4742 = vperm.xlu0 %4741, %v104
    %v4743 = vpop.permute.xlu0 %4742
    %4745 = vset.pattern.permute.xlu0 10
    %4746 = vperm.xlu0 %4745, %v105
    %v4747 = vpop.permute.xlu0 %4746
    %4749 = vset.pattern.permute.xlu0 10
    %4750 = vperm.xlu0 %4749, %v106
    %v4751 = vpop.permute.xlu0 %4750
    %4753 = vset.pattern.permute.xlu0 10
    %4754 = vperm.xlu0 %4753, %v107
    %v4755 = vpop.permute.xlu0 %4754
    %v4757 = vmul.f32 %v4679, %v4617
    %v4758 = vmul.f32 %v4683, %v4619
    %v4759 = vmul.f32 %v4687, %v4621
    %v4760 = vmul.f32 %v4691, %v4623
    %v4761 = vmul.f32 %v4695, %v4625
    %v4762 = vmul.f32 %v4699, %v4627
    %v4763 = vmul.f32 %v4703, %v4629
    %v4764 = vmul.f32 %v4707, %v4631
    %v4765 = vmul.f32 %v4711, %v4633
    %v4766 = vmul.f32 %v4715, %v4635
    %v4767 = vmul.f32 %v4719, %v4637
    %v4768 = vmul.f32 %v4723, %v4639
    %v4769 = vmul.f32 %v4727, %v4641
    %v4770 = vmul.f32 %v4731, %v4643
    %v4771 = vmul.f32 %v4735, %v4645
    %v4772 = vmul.f32 %v4739, %v4647
    %v4773 = vmul.f32 %v4743, %v4649
    %v4774 = vmul.f32 %v4747, %v4651
    %v4775 = vmul.f32 %v4751, %v4653
    %v4776 = vmul.f32 %v4755, %v4655
    %v4777 = vadd.f32 %v4596, %v4757
    %v4778 = vadd.f32 %v4597, %v4758
    %v4779 = vadd.f32 %v4598, %v4759
    %v4780 = vadd.f32 %v4599, %v4760
    %v4781 = vadd.f32 %v4600, %v4761
    %v4782 = vadd.f32 %v4601, %v4762
    %v4783 = vadd.f32 %v4602, %v4763
    %v4784 = vadd.f32 %v4603, %v4764
    %v4785 = vadd.f32 %v4604, %v4765
    %v4786 = vadd.f32 %v4605, %v4766
    %v4787 = vadd.f32 %v4606, %v4767
    %v4788 = vadd.f32 %v4607, %v4768
    %v4789 = vadd.f32 %v4608, %v4769
    %v4790 = vadd.f32 %v4609, %v4770
    %v4791 = vadd.f32 %v4610, %v4771
    %v4792 = vadd.f32 %v4611, %v4772
    %v4793 = vadd.f32 %v4612, %v4773
    %v4794 = vadd.f32 %v4613, %v4774
    %v4795 = vadd.f32 %v4614, %v4775
    %v4796 = vadd.f32 %v4615, %v4776
    %4797 = vrot.lane.b32.xlu0 %v4138, 1
    %v4798 = vpop.permute.xlu0 %4797
    %4799 = vrot.lane.b32.xlu0 %v4143, 1
    %v4800 = vpop.permute.xlu0 %4799
    %4801 = vrot.lane.b32.xlu0 %v4148, 1
    %v4802 = vpop.permute.xlu0 %4801
    %4803 = vrot.lane.b32.xlu0 %v4153, 1
    %v4804 = vpop.permute.xlu0 %4803
    %4805 = vrot.lane.b32.xlu0 %v4158, 1
    %v4806 = vpop.permute.xlu0 %4805
    %4807 = vrot.lane.b32.xlu0 %v4163, 1
    %v4808 = vpop.permute.xlu0 %4807
    %4809 = vrot.lane.b32.xlu0 %v4168, 1
    %v4810 = vpop.permute.xlu0 %4809
    %4811 = vrot.lane.b32.xlu0 %v4173, 1
    %v4812 = vpop.permute.xlu0 %4811
    %4813 = vrot.lane.b32.xlu0 %v4178, 1
    %v4814 = vpop.permute.xlu0 %4813
    %4815 = vrot.lane.b32.xlu0 %v4183, 1
    %v4816 = vpop.permute.xlu0 %4815
    %4817 = vrot.lane.b32.xlu0 %v4188, 1
    %v4818 = vpop.permute.xlu0 %4817
    %4819 = vrot.lane.b32.xlu0 %v4193, 1
    %v4820 = vpop.permute.xlu0 %4819
    %4821 = vrot.lane.b32.xlu0 %v4198, 1
    %v4822 = vpop.permute.xlu0 %4821
    %4823 = vrot.lane.b32.xlu0 %v4203, 1
    %v4824 = vpop.permute.xlu0 %4823
    %4825 = vrot.lane.b32.xlu0 %v4208, 1
    %v4826 = vpop.permute.xlu0 %4825
    %4827 = vrot.lane.b32.xlu0 %v4213, 1
    %v4828 = vpop.permute.xlu0 %4827
    %4829 = vrot.lane.b32.xlu0 %v4218, 1
    %v4830 = vpop.permute.xlu0 %4829
    %4831 = vrot.lane.b32.xlu0 %v4223, 1
    %v4832 = vpop.permute.xlu0 %4831
    %4833 = vrot.lane.b32.xlu0 %v4228, 1
    %v4834 = vpop.permute.xlu0 %4833
    %4835 = vrot.lane.b32.xlu0 %v4233, 1
    %v4836 = vpop.permute.xlu0 %4835
    %4857 = vset.pattern.permute.xlu0 11
    %4858 = vperm.xlu0 %4857, %v88
    %v4859 = vpop.permute.xlu0 %4858
    %4861 = vset.pattern.permute.xlu0 11
    %4862 = vperm.xlu0 %4861, %v89
    %v4863 = vpop.permute.xlu0 %4862
    %4865 = vset.pattern.permute.xlu0 11
    %4866 = vperm.xlu0 %4865, %v90
    %v4867 = vpop.permute.xlu0 %4866
    %4869 = vset.pattern.permute.xlu0 11
    %4870 = vperm.xlu0 %4869, %v91
    %v4871 = vpop.permute.xlu0 %4870
    %4873 = vset.pattern.permute.xlu0 11
    %4874 = vperm.xlu0 %4873, %v92
    %v4875 = vpop.permute.xlu0 %4874
    %4877 = vset.pattern.permute.xlu0 11
    %4878 = vperm.xlu0 %4877, %v93
    %v4879 = vpop.permute.xlu0 %4878
    %4881 = vset.pattern.permute.xlu0 11
    %4882 = vperm.xlu0 %4881, %v94
    %v4883 = vpop.permute.xlu0 %4882
    %4885 = vset.pattern.permute.xlu0 11
    %4886 = vperm.xlu0 %4885, %v95
    %v4887 = vpop.permute.xlu0 %4886
    %4889 = vset.pattern.permute.xlu0 11
    %4890 = vperm.xlu0 %4889, %v96
    %v4891 = vpop.permute.xlu0 %4890
    %4893 = vset.pattern.permute.xlu0 11
    %4894 = vperm.xlu0 %4893, %v97
    %v4895 = vpop.permute.xlu0 %4894
    %4897 = vset.pattern.permute.xlu0 11
    %4898 = vperm.xlu0 %4897, %v98
    %v4899 = vpop.permute.xlu0 %4898
    %4901 = vset.pattern.permute.xlu0 11
    %4902 = vperm.xlu0 %4901, %v99
    %v4903 = vpop.permute.xlu0 %4902
    %4905 = vset.pattern.permute.xlu0 11
    %4906 = vperm.xlu0 %4905, %v100
    %v4907 = vpop.permute.xlu0 %4906
    %4909 = vset.pattern.permute.xlu0 11
    %4910 = vperm.xlu0 %4909, %v101
    %v4911 = vpop.permute.xlu0 %4910
    %4913 = vset.pattern.permute.xlu0 11
    %4914 = vperm.xlu0 %4913, %v102
    %v4915 = vpop.permute.xlu0 %4914
    %4917 = vset.pattern.permute.xlu0 11
    %4918 = vperm.xlu0 %4917, %v103
    %v4919 = vpop.permute.xlu0 %4918
    %4921 = vset.pattern.permute.xlu0 11
    %4922 = vperm.xlu0 %4921, %v104
    %v4923 = vpop.permute.xlu0 %4922
    %4925 = vset.pattern.permute.xlu0 11
    %4926 = vperm.xlu0 %4925, %v105
    %v4927 = vpop.permute.xlu0 %4926
    %4929 = vset.pattern.permute.xlu0 11
    %4930 = vperm.xlu0 %4929, %v106
    %v4931 = vpop.permute.xlu0 %4930
    %4933 = vset.pattern.permute.xlu0 11
    %4934 = vperm.xlu0 %4933, %v107
    %v4935 = vpop.permute.xlu0 %4934
    %v4937 = vmul.f32 %v4859, %v4798
    %v4938 = vmul.f32 %v4863, %v4800
    %v4939 = vmul.f32 %v4867, %v4802
    %v4940 = vmul.f32 %v4871, %v4804
    %v4941 = vmul.f32 %v4875, %v4806
    %v4942 = vmul.f32 %v4879, %v4808
    %v4943 = vmul.f32 %v4883, %v4810
    %v4944 = vmul.f32 %v4887, %v4812
    %v4945 = vmul.f32 %v4891, %v4814
    %v4946 = vmul.f32 %v4895, %v4816
    %v4947 = vmul.f32 %v4899, %v4818
    %v4948 = vmul.f32 %v4903, %v4820
    %v4949 = vmul.f32 %v4907, %v4822
    %v4950 = vmul.f32 %v4911, %v4824
    %v4951 = vmul.f32 %v4915, %v4826
    %v4952 = vmul.f32 %v4919, %v4828
    %v4953 = vmul.f32 %v4923, %v4830
    %v4954 = vmul.f32 %v4927, %v4832
    %v4955 = vmul.f32 %v4931, %v4834
    %v4956 = vmul.f32 %v4935, %v4836
    %v4957 = vadd.f32 %v4777, %v4937
    %v4958 = vadd.f32 %v4778, %v4938
    %v4959 = vadd.f32 %v4779, %v4939
    %v4960 = vadd.f32 %v4780, %v4940
    %v4961 = vadd.f32 %v4781, %v4941
    %v4962 = vadd.f32 %v4782, %v4942
    %v4963 = vadd.f32 %v4783, %v4943
    %v4964 = vadd.f32 %v4784, %v4944
    %v4965 = vadd.f32 %v4785, %v4945
    %v4966 = vadd.f32 %v4786, %v4946
    %v4967 = vadd.f32 %v4787, %v4947
    %v4968 = vadd.f32 %v4788, %v4948
    %v4969 = vadd.f32 %v4789, %v4949
    %v4970 = vadd.f32 %v4790, %v4950
    %v4971 = vadd.f32 %v4791, %v4951
    %v4972 = vadd.f32 %v4792, %v4952
    %v4973 = vadd.f32 %v4793, %v4953
    %v4974 = vadd.f32 %v4794, %v4954
    %v4975 = vadd.f32 %v4795, %v4955
    %v4976 = vadd.f32 %v4796, %v4956
    %4977 = vset.pattern.permute.xlu0 12
    %4978 = vperm.xlu0 %4977, %v88
    %v4979 = vpop.permute.xlu0 %4978
    %4981 = vset.pattern.permute.xlu0 12
    %4982 = vperm.xlu0 %4981, %v89
    %v4983 = vpop.permute.xlu0 %4982
    %4985 = vset.pattern.permute.xlu0 12
    %4986 = vperm.xlu0 %4985, %v90
    %v4987 = vpop.permute.xlu0 %4986
    %4989 = vset.pattern.permute.xlu0 12
    %4990 = vperm.xlu0 %4989, %v91
    %v4991 = vpop.permute.xlu0 %4990
    %4993 = vset.pattern.permute.xlu0 12
    %4994 = vperm.xlu0 %4993, %v92
    %v4995 = vpop.permute.xlu0 %4994
    %4997 = vset.pattern.permute.xlu0 12
    %4998 = vperm.xlu0 %4997, %v93
    %v4999 = vpop.permute.xlu0 %4998
    %5001 = vset.pattern.permute.xlu0 12
    %5002 = vperm.xlu0 %5001, %v94
    %v5003 = vpop.permute.xlu0 %5002
    %5005 = vset.pattern.permute.xlu0 12
    %5006 = vperm.xlu0 %5005, %v95
    %v5007 = vpop.permute.xlu0 %5006
    %5009 = vset.pattern.permute.xlu0 12
    %5010 = vperm.xlu0 %5009, %v96
    %v5011 = vpop.permute.xlu0 %5010
    %5013 = vset.pattern.permute.xlu0 12
    %5014 = vperm.xlu0 %5013, %v97
    %v5015 = vpop.permute.xlu0 %5014
    %5017 = vset.pattern.permute.xlu0 12
    %5018 = vperm.xlu0 %5017, %v98
    %v5019 = vpop.permute.xlu0 %5018
    %5021 = vset.pattern.permute.xlu0 12
    %5022 = vperm.xlu0 %5021, %v99
    %v5023 = vpop.permute.xlu0 %5022
    %5025 = vset.pattern.permute.xlu0 12
    %5026 = vperm.xlu0 %5025, %v100
    %v5027 = vpop.permute.xlu0 %5026
    %5029 = vset.pattern.permute.xlu0 12
    %5030 = vperm.xlu0 %5029, %v101
    %v5031 = vpop.permute.xlu0 %5030
    %5033 = vset.pattern.permute.xlu0 12
    %5034 = vperm.xlu0 %5033, %v102
    %v5035 = vpop.permute.xlu0 %5034
    %5037 = vset.pattern.permute.xlu0 12
    %5038 = vperm.xlu0 %5037, %v103
    %v5039 = vpop.permute.xlu0 %5038
    %5041 = vset.pattern.permute.xlu0 12
    %5042 = vperm.xlu0 %5041, %v104
    %v5043 = vpop.permute.xlu0 %5042
    %5045 = vset.pattern.permute.xlu0 12
    %5046 = vperm.xlu0 %5045, %v105
    %v5047 = vpop.permute.xlu0 %5046
    %5049 = vset.pattern.permute.xlu0 12
    %5050 = vperm.xlu0 %5049, %v106
    %v5051 = vpop.permute.xlu0 %5050
    %5053 = vset.pattern.permute.xlu0 12
    %5054 = vperm.xlu0 %5053, %v107
    %v5055 = vpop.permute.xlu0 %5054
    %v5057 = vmul.f32 %v4979, %v4138
    %v5058 = vmul.f32 %v4983, %v4143
    %v5059 = vmul.f32 %v4987, %v4148
    %v5060 = vmul.f32 %v4991, %v4153
    %v5061 = vmul.f32 %v4995, %v4158
    %v5062 = vmul.f32 %v4999, %v4163
    %v5063 = vmul.f32 %v5003, %v4168
    %v5064 = vmul.f32 %v5007, %v4173
    %v5065 = vmul.f32 %v5011, %v4178
    %v5066 = vmul.f32 %v5015, %v4183
    %v5067 = vmul.f32 %v5019, %v4188
    %v5068 = vmul.f32 %v5023, %v4193
    %v5069 = vmul.f32 %v5027, %v4198
    %v5070 = vmul.f32 %v5031, %v4203
    %v5071 = vmul.f32 %v5035, %v4208
    %v5072 = vmul.f32 %v5039, %v4213
    %v5073 = vmul.f32 %v5043, %v4218
    %v5074 = vmul.f32 %v5047, %v4223
    %v5075 = vmul.f32 %v5051, %v4228
    %v5076 = vmul.f32 %v5055, %v4233
    %v5077 = vadd.f32 %v4957, %v5057
    %v5078 = vadd.f32 %v4958, %v5058
    %v5079 = vadd.f32 %v4959, %v5059
    %v5080 = vadd.f32 %v4960, %v5060
    %v5081 = vadd.f32 %v4961, %v5061
    %v5082 = vadd.f32 %v4962, %v5062
    %v5083 = vadd.f32 %v4963, %v5063
    %v5084 = vadd.f32 %v4964, %v5064
    %v5085 = vadd.f32 %v4965, %v5065
    %v5086 = vadd.f32 %v4966, %v5066
    %v5087 = vadd.f32 %v4967, %v5067
    %v5088 = vadd.f32 %v4968, %v5068
    %v5089 = vadd.f32 %v4969, %v5069
    %v5090 = vadd.f32 %v4970, %v5070
    %v5091 = vadd.f32 %v4971, %v5071
    %v5092 = vadd.f32 %v4972, %v5072
    %v5093 = vadd.f32 %v4973, %v5073
    %v5094 = vadd.f32 %v4974, %v5074
    %v5095 = vadd.f32 %v4975, %v5075
    %v5096 = vadd.f32 %v4976, %v5076
    %5097 = vrot.lane.b32.xlu0 %v4138, 127
    %v5098 = vpop.permute.xlu0 %5097
    %5099 = vrot.lane.b32.xlu0 %v4143, 127
    %v5100 = vpop.permute.xlu0 %5099
    %5101 = vrot.lane.b32.xlu0 %v4148, 127
    %v5102 = vpop.permute.xlu0 %5101
    %5103 = vrot.lane.b32.xlu0 %v4153, 127
    %v5104 = vpop.permute.xlu0 %5103
    %5105 = vrot.lane.b32.xlu0 %v4158, 127
    %v5106 = vpop.permute.xlu0 %5105
    %5107 = vrot.lane.b32.xlu0 %v4163, 127
    %v5108 = vpop.permute.xlu0 %5107
    %5109 = vrot.lane.b32.xlu0 %v4168, 127
    %v5110 = vpop.permute.xlu0 %5109
    %5111 = vrot.lane.b32.xlu0 %v4173, 127
    %v5112 = vpop.permute.xlu0 %5111
    %5113 = vrot.lane.b32.xlu0 %v4178, 127
    %v5114 = vpop.permute.xlu0 %5113
    %5115 = vrot.lane.b32.xlu0 %v4183, 127
    %v5116 = vpop.permute.xlu0 %5115
    %5117 = vrot.lane.b32.xlu0 %v4188, 127
    %v5118 = vpop.permute.xlu0 %5117
    %5119 = vrot.lane.b32.xlu0 %v4193, 127
    %v5120 = vpop.permute.xlu0 %5119
    %5121 = vrot.lane.b32.xlu0 %v4198, 127
    %v5122 = vpop.permute.xlu0 %5121
    %5123 = vrot.lane.b32.xlu0 %v4203, 127
    %v5124 = vpop.permute.xlu0 %5123
    %5125 = vrot.lane.b32.xlu0 %v4208, 127
    %v5126 = vpop.permute.xlu0 %5125
    %5127 = vrot.lane.b32.xlu0 %v4213, 127
    %v5128 = vpop.permute.xlu0 %5127
    %5129 = vrot.lane.b32.xlu0 %v4218, 127
    %v5130 = vpop.permute.xlu0 %5129
    %5131 = vrot.lane.b32.xlu0 %v4223, 127
    %v5132 = vpop.permute.xlu0 %5131
    %5133 = vrot.lane.b32.xlu0 %v4228, 127
    %v5134 = vpop.permute.xlu0 %5133
    %5135 = vrot.lane.b32.xlu0 %v4233, 127
    %v5136 = vpop.permute.xlu0 %5135
    %5157 = vset.pattern.permute.xlu0 13
    %5158 = vperm.xlu0 %5157, %v88
    %v5159 = vpop.permute.xlu0 %5158
    %5161 = vset.pattern.permute.xlu0 13
    %5162 = vperm.xlu0 %5161, %v89
    %v5163 = vpop.permute.xlu0 %5162
    %5165 = vset.pattern.permute.xlu0 13
    %5166 = vperm.xlu0 %5165, %v90
    %v5167 = vpop.permute.xlu0 %5166
    %5169 = vset.pattern.permute.xlu0 13
    %5170 = vperm.xlu0 %5169, %v91
    %v5171 = vpop.permute.xlu0 %5170
    %5173 = vset.pattern.permute.xlu0 13
    %5174 = vperm.xlu0 %5173, %v92
    %v5175 = vpop.permute.xlu0 %5174
    %5177 = vset.pattern.permute.xlu0 13
    %5178 = vperm.xlu0 %5177, %v93
    %v5179 = vpop.permute.xlu0 %5178
    %5181 = vset.pattern.permute.xlu0 13
    %5182 = vperm.xlu0 %5181, %v94
    %v5183 = vpop.permute.xlu0 %5182
    %5185 = vset.pattern.permute.xlu0 13
    %5186 = vperm.xlu0 %5185, %v95
    %v5187 = vpop.permute.xlu0 %5186
    %5189 = vset.pattern.permute.xlu0 13
    %5190 = vperm.xlu0 %5189, %v96
    %v5191 = vpop.permute.xlu0 %5190
    %5193 = vset.pattern.permute.xlu0 13
    %5194 = vperm.xlu0 %5193, %v97
    %v5195 = vpop.permute.xlu0 %5194
    %5197 = vset.pattern.permute.xlu0 13
    %5198 = vperm.xlu0 %5197, %v98
    %v5199 = vpop.permute.xlu0 %5198
    %5201 = vset.pattern.permute.xlu0 13
    %5202 = vperm.xlu0 %5201, %v99
    %v5203 = vpop.permute.xlu0 %5202
    %5205 = vset.pattern.permute.xlu0 13
    %5206 = vperm.xlu0 %5205, %v100
    %v5207 = vpop.permute.xlu0 %5206
    %5209 = vset.pattern.permute.xlu0 13
    %5210 = vperm.xlu0 %5209, %v101
    %v5211 = vpop.permute.xlu0 %5210
    %5213 = vset.pattern.permute.xlu0 13
    %5214 = vperm.xlu0 %5213, %v102
    %v5215 = vpop.permute.xlu0 %5214
    %5217 = vset.pattern.permute.xlu0 13
    %5218 = vperm.xlu0 %5217, %v103
    %v5219 = vpop.permute.xlu0 %5218
    %5221 = vset.pattern.permute.xlu0 13
    %5222 = vperm.xlu0 %5221, %v104
    %v5223 = vpop.permute.xlu0 %5222
    %5225 = vset.pattern.permute.xlu0 13
    %5226 = vperm.xlu0 %5225, %v105
    %v5227 = vpop.permute.xlu0 %5226
    %5229 = vset.pattern.permute.xlu0 13
    %5230 = vperm.xlu0 %5229, %v106
    %v5231 = vpop.permute.xlu0 %5230
    %5233 = vset.pattern.permute.xlu0 13
    %5234 = vperm.xlu0 %5233, %v107
    %v5235 = vpop.permute.xlu0 %5234
    %v5237 = vmul.f32 %v5159, %v5098
    %v5238 = vmul.f32 %v5163, %v5100
    %v5239 = vmul.f32 %v5167, %v5102
    %v5240 = vmul.f32 %v5171, %v5104
    %v5241 = vmul.f32 %v5175, %v5106
    %v5242 = vmul.f32 %v5179, %v5108
    %v5243 = vmul.f32 %v5183, %v5110
    %v5244 = vmul.f32 %v5187, %v5112
    %v5245 = vmul.f32 %v5191, %v5114
    %v5246 = vmul.f32 %v5195, %v5116
    %v5247 = vmul.f32 %v5199, %v5118
    %v5248 = vmul.f32 %v5203, %v5120
    %v5249 = vmul.f32 %v5207, %v5122
    %v5250 = vmul.f32 %v5211, %v5124
    %v5251 = vmul.f32 %v5215, %v5126
    %v5252 = vmul.f32 %v5219, %v5128
    %v5253 = vmul.f32 %v5223, %v5130
    %v5254 = vmul.f32 %v5227, %v5132
    %v5255 = vmul.f32 %v5231, %v5134
    %v5256 = vmul.f32 %v5235, %v5136
    %v5257 = vadd.f32 %v5077, %v5237
    %v5258 = vadd.f32 %v5078, %v5238
    %v5259 = vadd.f32 %v5079, %v5239
    %v5260 = vadd.f32 %v5080, %v5240
    %v5261 = vadd.f32 %v5081, %v5241
    %v5262 = vadd.f32 %v5082, %v5242
    %v5263 = vadd.f32 %v5083, %v5243
    %v5264 = vadd.f32 %v5084, %v5244
    %v5265 = vadd.f32 %v5085, %v5245
    %v5266 = vadd.f32 %v5086, %v5246
    %v5267 = vadd.f32 %v5087, %v5247
    %v5268 = vadd.f32 %v5088, %v5248
    %v5269 = vadd.f32 %v5089, %v5249
    %v5270 = vadd.f32 %v5090, %v5250
    %v5271 = vadd.f32 %v5091, %v5251
    %v5272 = vadd.f32 %v5092, %v5252
    %v5273 = vadd.f32 %v5093, %v5253
    %v5274 = vadd.f32 %v5094, %v5254
    %v5275 = vadd.f32 %v5095, %v5255
    %v5276 = vadd.f32 %v5096, %v5256
    %5277 = vrot.lane.b32.xlu0 %v4138, 126
    %v5278 = vpop.permute.xlu0 %5277
    %5279 = vrot.lane.b32.xlu0 %v4143, 126
    %v5280 = vpop.permute.xlu0 %5279
    %5281 = vrot.lane.b32.xlu0 %v4148, 126
    %v5282 = vpop.permute.xlu0 %5281
    %5283 = vrot.lane.b32.xlu0 %v4153, 126
    %v5284 = vpop.permute.xlu0 %5283
    %5285 = vrot.lane.b32.xlu0 %v4158, 126
    %v5286 = vpop.permute.xlu0 %5285
    %5287 = vrot.lane.b32.xlu0 %v4163, 126
    %v5288 = vpop.permute.xlu0 %5287
    %5289 = vrot.lane.b32.xlu0 %v4168, 126
    %v5290 = vpop.permute.xlu0 %5289
    %5291 = vrot.lane.b32.xlu0 %v4173, 126
    %v5292 = vpop.permute.xlu0 %5291
    %5293 = vrot.lane.b32.xlu0 %v4178, 126
    %v5294 = vpop.permute.xlu0 %5293
    %5295 = vrot.lane.b32.xlu0 %v4183, 126
    %v5296 = vpop.permute.xlu0 %5295
    %5297 = vrot.lane.b32.xlu0 %v4188, 126
    %v5298 = vpop.permute.xlu0 %5297
    %5299 = vrot.lane.b32.xlu0 %v4193, 126
    %v5300 = vpop.permute.xlu0 %5299
    %5301 = vrot.lane.b32.xlu0 %v4198, 126
    %v5302 = vpop.permute.xlu0 %5301
    %5303 = vrot.lane.b32.xlu0 %v4203, 126
    %v5304 = vpop.permute.xlu0 %5303
    %5305 = vrot.lane.b32.xlu0 %v4208, 126
    %v5306 = vpop.permute.xlu0 %5305
    %5307 = vrot.lane.b32.xlu0 %v4213, 126
    %v5308 = vpop.permute.xlu0 %5307
    %5309 = vrot.lane.b32.xlu0 %v4218, 126
    %v5310 = vpop.permute.xlu0 %5309
    %5311 = vrot.lane.b32.xlu0 %v4223, 126
    %v5312 = vpop.permute.xlu0 %5311
    %5313 = vrot.lane.b32.xlu0 %v4228, 126
    %v5314 = vpop.permute.xlu0 %5313
    %5315 = vrot.lane.b32.xlu0 %v4233, 126
    %v5316 = vpop.permute.xlu0 %5315
    %5337 = vset.pattern.permute.xlu0 14
    %5338 = vperm.xlu0 %5337, %v88
    %v5339 = vpop.permute.xlu0 %5338
    %5341 = vset.pattern.permute.xlu0 14
    %5342 = vperm.xlu0 %5341, %v89
    %v5343 = vpop.permute.xlu0 %5342
    %5345 = vset.pattern.permute.xlu0 14
    %5346 = vperm.xlu0 %5345, %v90
    %v5347 = vpop.permute.xlu0 %5346
    %5349 = vset.pattern.permute.xlu0 14
    %5350 = vperm.xlu0 %5349, %v91
    %v5351 = vpop.permute.xlu0 %5350
    %5353 = vset.pattern.permute.xlu0 14
    %5354 = vperm.xlu0 %5353, %v92
    %v5355 = vpop.permute.xlu0 %5354
    %5357 = vset.pattern.permute.xlu0 14
    %5358 = vperm.xlu0 %5357, %v93
    %v5359 = vpop.permute.xlu0 %5358
    %5361 = vset.pattern.permute.xlu0 14
    %5362 = vperm.xlu0 %5361, %v94
    %v5363 = vpop.permute.xlu0 %5362
    %5365 = vset.pattern.permute.xlu0 14
    %5366 = vperm.xlu0 %5365, %v95
    %v5367 = vpop.permute.xlu0 %5366
    %5369 = vset.pattern.permute.xlu0 14
    %5370 = vperm.xlu0 %5369, %v96
    %v5371 = vpop.permute.xlu0 %5370
    %5373 = vset.pattern.permute.xlu0 14
    %5374 = vperm.xlu0 %5373, %v97
    %v5375 = vpop.permute.xlu0 %5374
    %5377 = vset.pattern.permute.xlu0 14
    %5378 = vperm.xlu0 %5377, %v98
    %v5379 = vpop.permute.xlu0 %5378
    %5381 = vset.pattern.permute.xlu0 14
    %5382 = vperm.xlu0 %5381, %v99
    %v5383 = vpop.permute.xlu0 %5382
    %5385 = vset.pattern.permute.xlu0 14
    %5386 = vperm.xlu0 %5385, %v100
    %v5387 = vpop.permute.xlu0 %5386
    %5389 = vset.pattern.permute.xlu0 14
    %5390 = vperm.xlu0 %5389, %v101
    %v5391 = vpop.permute.xlu0 %5390
    %5393 = vset.pattern.permute.xlu0 14
    %5394 = vperm.xlu0 %5393, %v102
    %v5395 = vpop.permute.xlu0 %5394
    %5397 = vset.pattern.permute.xlu0 14
    %5398 = vperm.xlu0 %5397, %v103
    %v5399 = vpop.permute.xlu0 %5398
    %5401 = vset.pattern.permute.xlu0 14
    %5402 = vperm.xlu0 %5401, %v104
    %v5403 = vpop.permute.xlu0 %5402
    %5405 = vset.pattern.permute.xlu0 14
    %5406 = vperm.xlu0 %5405, %v105
    %v5407 = vpop.permute.xlu0 %5406
    %5409 = vset.pattern.permute.xlu0 14
    %5410 = vperm.xlu0 %5409, %v106
    %v5411 = vpop.permute.xlu0 %5410
    %5413 = vset.pattern.permute.xlu0 14
    %5414 = vperm.xlu0 %5413, %v107
    %v5415 = vpop.permute.xlu0 %5414
    %v5417 = vmul.f32 %v5339, %v5278
    %v5418 = vmul.f32 %v5343, %v5280
    %v5419 = vmul.f32 %v5347, %v5282
    %v5420 = vmul.f32 %v5351, %v5284
    %v5421 = vmul.f32 %v5355, %v5286
    %v5422 = vmul.f32 %v5359, %v5288
    %v5423 = vmul.f32 %v5363, %v5290
    %v5424 = vmul.f32 %v5367, %v5292
    %v5425 = vmul.f32 %v5371, %v5294
    %v5426 = vmul.f32 %v5375, %v5296
    %v5427 = vmul.f32 %v5379, %v5298
    %v5428 = vmul.f32 %v5383, %v5300
    %v5429 = vmul.f32 %v5387, %v5302
    %v5430 = vmul.f32 %v5391, %v5304
    %v5431 = vmul.f32 %v5395, %v5306
    %v5432 = vmul.f32 %v5399, %v5308
    %v5433 = vmul.f32 %v5403, %v5310
    %v5434 = vmul.f32 %v5407, %v5312
    %v5435 = vmul.f32 %v5411, %v5314
    %v5436 = vmul.f32 %v5415, %v5316
    %v5437 = vadd.f32 %v5257, %v5417
    %v5438 = vadd.f32 %v5258, %v5418
    %v5439 = vadd.f32 %v5259, %v5419
    %v5440 = vadd.f32 %v5260, %v5420
    %v5441 = vadd.f32 %v5261, %v5421
    %v5442 = vadd.f32 %v5262, %v5422
    %v5443 = vadd.f32 %v5263, %v5423
    %v5444 = vadd.f32 %v5264, %v5424
    %v5445 = vadd.f32 %v5265, %v5425
    %v5446 = vadd.f32 %v5266, %v5426
    %v5447 = vadd.f32 %v5267, %v5427
    %v5448 = vadd.f32 %v5268, %v5428
    %v5449 = vadd.f32 %v5269, %v5429
    %v5450 = vadd.f32 %v5270, %v5430
    %v5451 = vadd.f32 %v5271, %v5431
    %v5452 = vadd.f32 %v5272, %v5432
    %v5453 = vadd.f32 %v5273, %v5433
    %v5454 = vadd.f32 %v5274, %v5434
    %v5455 = vadd.f32 %v5275, %v5435
    %v5456 = vadd.f32 %v5276, %v5436
    %5457 = vrot.lane.b32.xlu0 %v4138, 125
    %v5458 = vpop.permute.xlu0 %5457
    %5459 = vrot.lane.b32.xlu0 %v4143, 125
    %v5460 = vpop.permute.xlu0 %5459
    %5461 = vrot.lane.b32.xlu0 %v4148, 125
    %v5462 = vpop.permute.xlu0 %5461
    %5463 = vrot.lane.b32.xlu0 %v4153, 125
    %v5464 = vpop.permute.xlu0 %5463
    %5465 = vrot.lane.b32.xlu0 %v4158, 125
    %v5466 = vpop.permute.xlu0 %5465
    %5467 = vrot.lane.b32.xlu0 %v4163, 125
    %v5468 = vpop.permute.xlu0 %5467
    %5469 = vrot.lane.b32.xlu0 %v4168, 125
    %v5470 = vpop.permute.xlu0 %5469
    %5471 = vrot.lane.b32.xlu0 %v4173, 125
    %v5472 = vpop.permute.xlu0 %5471
    %5473 = vrot.lane.b32.xlu0 %v4178, 125
    %v5474 = vpop.permute.xlu0 %5473
    %5475 = vrot.lane.b32.xlu0 %v4183, 125
    %v5476 = vpop.permute.xlu0 %5475
    %5477 = vrot.lane.b32.xlu0 %v4188, 125
    %v5478 = vpop.permute.xlu0 %5477
    %5479 = vrot.lane.b32.xlu0 %v4193, 125
    %v5480 = vpop.permute.xlu0 %5479
    %5481 = vrot.lane.b32.xlu0 %v4198, 125
    %v5482 = vpop.permute.xlu0 %5481
    %5483 = vrot.lane.b32.xlu0 %v4203, 125
    %v5484 = vpop.permute.xlu0 %5483
    %5485 = vrot.lane.b32.xlu0 %v4208, 125
    %v5486 = vpop.permute.xlu0 %5485
    %5487 = vrot.lane.b32.xlu0 %v4213, 125
    %v5488 = vpop.permute.xlu0 %5487
    %5489 = vrot.lane.b32.xlu0 %v4218, 125
    %v5490 = vpop.permute.xlu0 %5489
    %5491 = vrot.lane.b32.xlu0 %v4223, 125
    %v5492 = vpop.permute.xlu0 %5491
    %5493 = vrot.lane.b32.xlu0 %v4228, 125
    %v5494 = vpop.permute.xlu0 %5493
    %5495 = vrot.lane.b32.xlu0 %v4233, 125
    %v5496 = vpop.permute.xlu0 %5495
    %5517 = vset.pattern.permute.xlu0 15
    %5518 = vperm.xlu0 %5517, %v88
    %v5519 = vpop.permute.xlu0 %5518
    %5521 = vset.pattern.permute.xlu0 15
    %5522 = vperm.xlu0 %5521, %v89
    %v5523 = vpop.permute.xlu0 %5522
    %5525 = vset.pattern.permute.xlu0 15
    %5526 = vperm.xlu0 %5525, %v90
    %v5527 = vpop.permute.xlu0 %5526
    %5529 = vset.pattern.permute.xlu0 15
    %5530 = vperm.xlu0 %5529, %v91
    %v5531 = vpop.permute.xlu0 %5530
    %5533 = vset.pattern.permute.xlu0 15
    %5534 = vperm.xlu0 %5533, %v92
    %v5535 = vpop.permute.xlu0 %5534
    %5537 = vset.pattern.permute.xlu0 15
    %5538 = vperm.xlu0 %5537, %v93
    %v5539 = vpop.permute.xlu0 %5538
    %5541 = vset.pattern.permute.xlu0 15
    %5542 = vperm.xlu0 %5541, %v94
    %v5543 = vpop.permute.xlu0 %5542
    %5545 = vset.pattern.permute.xlu0 15
    %5546 = vperm.xlu0 %5545, %v95
    %v5547 = vpop.permute.xlu0 %5546
    %5549 = vset.pattern.permute.xlu0 15
    %5550 = vperm.xlu0 %5549, %v96
    %v5551 = vpop.permute.xlu0 %5550
    %5553 = vset.pattern.permute.xlu0 15
    %5554 = vperm.xlu0 %5553, %v97
    %v5555 = vpop.permute.xlu0 %5554
    %5557 = vset.pattern.permute.xlu0 15
    %5558 = vperm.xlu0 %5557, %v98
    %v5559 = vpop.permute.xlu0 %5558
    %5561 = vset.pattern.permute.xlu0 15
    %5562 = vperm.xlu0 %5561, %v99
    %v5563 = vpop.permute.xlu0 %5562
    %5565 = vset.pattern.permute.xlu0 15
    %5566 = vperm.xlu0 %5565, %v100
    %v5567 = vpop.permute.xlu0 %5566
    %5569 = vset.pattern.permute.xlu0 15
    %5570 = vperm.xlu0 %5569, %v101
    %v5571 = vpop.permute.xlu0 %5570
    %5573 = vset.pattern.permute.xlu0 15
    %5574 = vperm.xlu0 %5573, %v102
    %v5575 = vpop.permute.xlu0 %5574
    %5577 = vset.pattern.permute.xlu0 15
    %5578 = vperm.xlu0 %5577, %v103
    %v5579 = vpop.permute.xlu0 %5578
    %5581 = vset.pattern.permute.xlu0 15
    %5582 = vperm.xlu0 %5581, %v104
    %v5583 = vpop.permute.xlu0 %5582
    %5585 = vset.pattern.permute.xlu0 15
    %5586 = vperm.xlu0 %5585, %v105
    %v5587 = vpop.permute.xlu0 %5586
    %5589 = vset.pattern.permute.xlu0 15
    %5590 = vperm.xlu0 %5589, %v106
    %v5591 = vpop.permute.xlu0 %5590
    %5593 = vset.pattern.permute.xlu0 15
    %5594 = vperm.xlu0 %5593, %v107
    %v5595 = vpop.permute.xlu0 %5594
    %v5597 = vmul.f32 %v5519, %v5458
    %v5598 = vmul.f32 %v5523, %v5460
    %v5599 = vmul.f32 %v5527, %v5462
    %v5600 = vmul.f32 %v5531, %v5464
    %v5601 = vmul.f32 %v5535, %v5466
    %v5602 = vmul.f32 %v5539, %v5468
    %v5603 = vmul.f32 %v5543, %v5470
    %v5604 = vmul.f32 %v5547, %v5472
    %v5605 = vmul.f32 %v5551, %v5474
    %v5606 = vmul.f32 %v5555, %v5476
    %v5607 = vmul.f32 %v5559, %v5478
    %v5608 = vmul.f32 %v5563, %v5480
    %v5609 = vmul.f32 %v5567, %v5482
    %v5610 = vmul.f32 %v5571, %v5484
    %v5611 = vmul.f32 %v5575, %v5486
    %v5612 = vmul.f32 %v5579, %v5488
    %v5613 = vmul.f32 %v5583, %v5490
    %v5614 = vmul.f32 %v5587, %v5492
    %v5615 = vmul.f32 %v5591, %v5494
    %v5616 = vmul.f32 %v5595, %v5496
    %v5617 = vadd.f32 %v5437, %v5597
    %v5618 = vadd.f32 %v5438, %v5598
    %v5619 = vadd.f32 %v5439, %v5599
    %v5620 = vadd.f32 %v5440, %v5600
    %v5621 = vadd.f32 %v5441, %v5601
    %v5622 = vadd.f32 %v5442, %v5602
    %v5623 = vadd.f32 %v5443, %v5603
    %v5624 = vadd.f32 %v5444, %v5604
    %v5625 = vadd.f32 %v5445, %v5605
    %v5626 = vadd.f32 %v5446, %v5606
    %v5627 = vadd.f32 %v5447, %v5607
    %v5628 = vadd.f32 %v5448, %v5608
    %v5629 = vadd.f32 %v5449, %v5609
    %v5630 = vadd.f32 %v5450, %v5610
    %v5631 = vadd.f32 %v5451, %v5611
    %v5632 = vadd.f32 %v5452, %v5612
    %v5633 = vadd.f32 %v5453, %v5613
    %v5634 = vadd.f32 %v5454, %v5614
    %v5635 = vadd.f32 %v5455, %v5615
    %v5636 = vadd.f32 %v5456, %v5616
    %5637 = vrot.lane.b32.xlu0 %v4138, 124
    %v5638 = vpop.permute.xlu0 %5637
    %5639 = vrot.lane.b32.xlu0 %v4143, 124
    %v5640 = vpop.permute.xlu0 %5639
    %5641 = vrot.lane.b32.xlu0 %v4148, 124
    %v5642 = vpop.permute.xlu0 %5641
    %5643 = vrot.lane.b32.xlu0 %v4153, 124
    %v5644 = vpop.permute.xlu0 %5643
    %5645 = vrot.lane.b32.xlu0 %v4158, 124
    %v5646 = vpop.permute.xlu0 %5645
    %5647 = vrot.lane.b32.xlu0 %v4163, 124
    %v5648 = vpop.permute.xlu0 %5647
    %5649 = vrot.lane.b32.xlu0 %v4168, 124
    %v5650 = vpop.permute.xlu0 %5649
    %5651 = vrot.lane.b32.xlu0 %v4173, 124
    %v5652 = vpop.permute.xlu0 %5651
    %5653 = vrot.lane.b32.xlu0 %v4178, 124
    %v5654 = vpop.permute.xlu0 %5653
    %5655 = vrot.lane.b32.xlu0 %v4183, 124
    %v5656 = vpop.permute.xlu0 %5655
    %5657 = vrot.lane.b32.xlu0 %v4188, 124
    %v5658 = vpop.permute.xlu0 %5657
    %5659 = vrot.lane.b32.xlu0 %v4193, 124
    %v5660 = vpop.permute.xlu0 %5659
    %5661 = vrot.lane.b32.xlu0 %v4198, 124
    %v5662 = vpop.permute.xlu0 %5661
    %5663 = vrot.lane.b32.xlu0 %v4203, 124
    %v5664 = vpop.permute.xlu0 %5663
    %5665 = vrot.lane.b32.xlu0 %v4208, 124
    %v5666 = vpop.permute.xlu0 %5665
    %5667 = vrot.lane.b32.xlu0 %v4213, 124
    %v5668 = vpop.permute.xlu0 %5667
    %5669 = vrot.lane.b32.xlu0 %v4218, 124
    %v5670 = vpop.permute.xlu0 %5669
    %5671 = vrot.lane.b32.xlu0 %v4223, 124
    %v5672 = vpop.permute.xlu0 %5671
    %5673 = vrot.lane.b32.xlu0 %v4228, 124
    %v5674 = vpop.permute.xlu0 %5673
    %5675 = vrot.lane.b32.xlu0 %v4233, 124
    %v5676 = vpop.permute.xlu0 %5675
    %5697 = vset.pattern.permute.xlu0 16
    %5698 = vperm.xlu0 %5697, %v88
    %v5699 = vpop.permute.xlu0 %5698
    %5701 = vset.pattern.permute.xlu0 16
    %5702 = vperm.xlu0 %5701, %v89
    %v5703 = vpop.permute.xlu0 %5702
    %5705 = vset.pattern.permute.xlu0 16
    %5706 = vperm.xlu0 %5705, %v90
    %v5707 = vpop.permute.xlu0 %5706
    %5709 = vset.pattern.permute.xlu0 16
    %5710 = vperm.xlu0 %5709, %v91
    %v5711 = vpop.permute.xlu0 %5710
    %5713 = vset.pattern.permute.xlu0 16
    %5714 = vperm.xlu0 %5713, %v92
    %v5715 = vpop.permute.xlu0 %5714
    %5717 = vset.pattern.permute.xlu0 16
    %5718 = vperm.xlu0 %5717, %v93
    %v5719 = vpop.permute.xlu0 %5718
    %5721 = vset.pattern.permute.xlu0 16
    %5722 = vperm.xlu0 %5721, %v94
    %v5723 = vpop.permute.xlu0 %5722
    %5725 = vset.pattern.permute.xlu0 16
    %5726 = vperm.xlu0 %5725, %v95
    %v5727 = vpop.permute.xlu0 %5726
    %5729 = vset.pattern.permute.xlu0 16
    %5730 = vperm.xlu0 %5729, %v96
    %v5731 = vpop.permute.xlu0 %5730
    %5733 = vset.pattern.permute.xlu0 16
    %5734 = vperm.xlu0 %5733, %v97
    %v5735 = vpop.permute.xlu0 %5734
    %5737 = vset.pattern.permute.xlu0 16
    %5738 = vperm.xlu0 %5737, %v98
    %v5739 = vpop.permute.xlu0 %5738
    %5741 = vset.pattern.permute.xlu0 16
    %5742 = vperm.xlu0 %5741, %v99
    %v5743 = vpop.permute.xlu0 %5742
    %5745 = vset.pattern.permute.xlu0 16
    %5746 = vperm.xlu0 %5745, %v100
    %v5747 = vpop.permute.xlu0 %5746
    %5749 = vset.pattern.permute.xlu0 16
    %5750 = vperm.xlu0 %5749, %v101
    %v5751 = vpop.permute.xlu0 %5750
    %5753 = vset.pattern.permute.xlu0 16
    %5754 = vperm.xlu0 %5753, %v102
    %v5755 = vpop.permute.xlu0 %5754
    %5757 = vset.pattern.permute.xlu0 16
    %5758 = vperm.xlu0 %5757, %v103
    %v5759 = vpop.permute.xlu0 %5758
    %5761 = vset.pattern.permute.xlu0 16
    %5762 = vperm.xlu0 %5761, %v104
    %v5763 = vpop.permute.xlu0 %5762
    %5765 = vset.pattern.permute.xlu0 16
    %5766 = vperm.xlu0 %5765, %v105
    %v5767 = vpop.permute.xlu0 %5766
    %5769 = vset.pattern.permute.xlu0 16
    %5770 = vperm.xlu0 %5769, %v106
    %v5771 = vpop.permute.xlu0 %5770
    %5773 = vset.pattern.permute.xlu0 16
    %5774 = vperm.xlu0 %5773, %v107
    %v5775 = vpop.permute.xlu0 %5774
    %v5777 = vmul.f32 %v5699, %v5638
    %v5778 = vmul.f32 %v5703, %v5640
    %v5779 = vmul.f32 %v5707, %v5642
    %v5780 = vmul.f32 %v5711, %v5644
    %v5781 = vmul.f32 %v5715, %v5646
    %v5782 = vmul.f32 %v5719, %v5648
    %v5783 = vmul.f32 %v5723, %v5650
    %v5784 = vmul.f32 %v5727, %v5652
    %v5785 = vmul.f32 %v5731, %v5654
    %v5786 = vmul.f32 %v5735, %v5656
    %v5787 = vmul.f32 %v5739, %v5658
    %v5788 = vmul.f32 %v5743, %v5660
    %v5789 = vmul.f32 %v5747, %v5662
    %v5790 = vmul.f32 %v5751, %v5664
    %v5791 = vmul.f32 %v5755, %v5666
    %v5792 = vmul.f32 %v5759, %v5668
    %v5793 = vmul.f32 %v5763, %v5670
    %v5794 = vmul.f32 %v5767, %v5672
    %v5795 = vmul.f32 %v5771, %v5674
    %v5796 = vmul.f32 %v5775, %v5676
    %v5797 = vadd.f32 %v5617, %v5777
    %v5798 = vadd.f32 %v5618, %v5778
    %v5799 = vadd.f32 %v5619, %v5779
    %v5800 = vadd.f32 %v5620, %v5780
    %v5801 = vadd.f32 %v5621, %v5781
    %v5802 = vadd.f32 %v5622, %v5782
    %v5803 = vadd.f32 %v5623, %v5783
    %v5804 = vadd.f32 %v5624, %v5784
    %v5805 = vadd.f32 %v5625, %v5785
    %v5806 = vadd.f32 %v5626, %v5786
    %v5807 = vadd.f32 %v5627, %v5787
    %v5808 = vadd.f32 %v5628, %v5788
    %v5809 = vadd.f32 %v5629, %v5789
    %v5810 = vadd.f32 %v5630, %v5790
    %v5811 = vadd.f32 %v5631, %v5791
    %v5812 = vadd.f32 %v5632, %v5792
    %v5813 = vadd.f32 %v5633, %v5793
    %v5814 = vadd.f32 %v5634, %v5794
    %v5815 = vadd.f32 %v5635, %v5795
    %v5816 = vadd.f32 %v5636, %v5796
    %5817 = vrot.lane.b32.xlu0 %v4138, 123
    %v5818 = vpop.permute.xlu0 %5817
    %5819 = vrot.lane.b32.xlu0 %v4143, 123
    %v5820 = vpop.permute.xlu0 %5819
    %5821 = vrot.lane.b32.xlu0 %v4148, 123
    %v5822 = vpop.permute.xlu0 %5821
    %5823 = vrot.lane.b32.xlu0 %v4153, 123
    %v5824 = vpop.permute.xlu0 %5823
    %5825 = vrot.lane.b32.xlu0 %v4158, 123
    %v5826 = vpop.permute.xlu0 %5825
    %5827 = vrot.lane.b32.xlu0 %v4163, 123
    %v5828 = vpop.permute.xlu0 %5827
    %5829 = vrot.lane.b32.xlu0 %v4168, 123
    %v5830 = vpop.permute.xlu0 %5829
    %5831 = vrot.lane.b32.xlu0 %v4173, 123
    %v5832 = vpop.permute.xlu0 %5831
    %5833 = vrot.lane.b32.xlu0 %v4178, 123
    %v5834 = vpop.permute.xlu0 %5833
    %5835 = vrot.lane.b32.xlu0 %v4183, 123
    %v5836 = vpop.permute.xlu0 %5835
    %5837 = vrot.lane.b32.xlu0 %v4188, 123
    %v5838 = vpop.permute.xlu0 %5837
    %5839 = vrot.lane.b32.xlu0 %v4193, 123
    %v5840 = vpop.permute.xlu0 %5839
    %5841 = vrot.lane.b32.xlu0 %v4198, 123
    %v5842 = vpop.permute.xlu0 %5841
    %5843 = vrot.lane.b32.xlu0 %v4203, 123
    %v5844 = vpop.permute.xlu0 %5843
    %5845 = vrot.lane.b32.xlu0 %v4208, 123
    %v5846 = vpop.permute.xlu0 %5845
    %5847 = vrot.lane.b32.xlu0 %v4213, 123
    %v5848 = vpop.permute.xlu0 %5847
    %5849 = vrot.lane.b32.xlu0 %v4218, 123
    %v5850 = vpop.permute.xlu0 %5849
    %5851 = vrot.lane.b32.xlu0 %v4223, 123
    %v5852 = vpop.permute.xlu0 %5851
    %5853 = vrot.lane.b32.xlu0 %v4228, 123
    %v5854 = vpop.permute.xlu0 %5853
    %5855 = vrot.lane.b32.xlu0 %v4233, 123
    %v5856 = vpop.permute.xlu0 %5855
    %5877 = vset.pattern.permute.xlu0 17
    %5878 = vperm.xlu0 %5877, %v88
    %v5879 = vpop.permute.xlu0 %5878
    %5881 = vset.pattern.permute.xlu0 17
    %5882 = vperm.xlu0 %5881, %v89
    %v5883 = vpop.permute.xlu0 %5882
    %5885 = vset.pattern.permute.xlu0 17
    %5886 = vperm.xlu0 %5885, %v90
    %v5887 = vpop.permute.xlu0 %5886
    %5889 = vset.pattern.permute.xlu0 17
    %5890 = vperm.xlu0 %5889, %v91
    %v5891 = vpop.permute.xlu0 %5890
    %5893 = vset.pattern.permute.xlu0 17
    %5894 = vperm.xlu0 %5893, %v92
    %v5895 = vpop.permute.xlu0 %5894
    %5897 = vset.pattern.permute.xlu0 17
    %5898 = vperm.xlu0 %5897, %v93
    %v5899 = vpop.permute.xlu0 %5898
    %5901 = vset.pattern.permute.xlu0 17
    %5902 = vperm.xlu0 %5901, %v94
    %v5903 = vpop.permute.xlu0 %5902
    %5905 = vset.pattern.permute.xlu0 17
    %5906 = vperm.xlu0 %5905, %v95
    %v5907 = vpop.permute.xlu0 %5906
    %5909 = vset.pattern.permute.xlu0 17
    %5910 = vperm.xlu0 %5909, %v96
    %v5911 = vpop.permute.xlu0 %5910
    %5913 = vset.pattern.permute.xlu0 17
    %5914 = vperm.xlu0 %5913, %v97
    %v5915 = vpop.permute.xlu0 %5914
    %5917 = vset.pattern.permute.xlu0 17
    %5918 = vperm.xlu0 %5917, %v98
    %v5919 = vpop.permute.xlu0 %5918
    %5921 = vset.pattern.permute.xlu0 17
    %5922 = vperm.xlu0 %5921, %v99
    %v5923 = vpop.permute.xlu0 %5922
    %5925 = vset.pattern.permute.xlu0 17
    %5926 = vperm.xlu0 %5925, %v100
    %v5927 = vpop.permute.xlu0 %5926
    %5929 = vset.pattern.permute.xlu0 17
    %5930 = vperm.xlu0 %5929, %v101
    %v5931 = vpop.permute.xlu0 %5930
    %5933 = vset.pattern.permute.xlu0 17
    %5934 = vperm.xlu0 %5933, %v102
    %v5935 = vpop.permute.xlu0 %5934
    %5937 = vset.pattern.permute.xlu0 17
    %5938 = vperm.xlu0 %5937, %v103
    %v5939 = vpop.permute.xlu0 %5938
    %5941 = vset.pattern.permute.xlu0 17
    %5942 = vperm.xlu0 %5941, %v104
    %v5943 = vpop.permute.xlu0 %5942
    %5945 = vset.pattern.permute.xlu0 17
    %5946 = vperm.xlu0 %5945, %v105
    %v5947 = vpop.permute.xlu0 %5946
    %5949 = vset.pattern.permute.xlu0 17
    %5950 = vperm.xlu0 %5949, %v106
    %v5951 = vpop.permute.xlu0 %5950
    %5953 = vset.pattern.permute.xlu0 17
    %5954 = vperm.xlu0 %5953, %v107
    %v5955 = vpop.permute.xlu0 %5954
    %v5957 = vmul.f32 %v5879, %v5818
    %v5958 = vmul.f32 %v5883, %v5820
    %v5959 = vmul.f32 %v5887, %v5822
    %v5960 = vmul.f32 %v5891, %v5824
    %v5961 = vmul.f32 %v5895, %v5826
    %v5962 = vmul.f32 %v5899, %v5828
    %v5963 = vmul.f32 %v5903, %v5830
    %v5964 = vmul.f32 %v5907, %v5832
    %v5965 = vmul.f32 %v5911, %v5834
    %v5966 = vmul.f32 %v5915, %v5836
    %v5967 = vmul.f32 %v5919, %v5838
    %v5968 = vmul.f32 %v5923, %v5840
    %v5969 = vmul.f32 %v5927, %v5842
    %v5970 = vmul.f32 %v5931, %v5844
    %v5971 = vmul.f32 %v5935, %v5846
    %v5972 = vmul.f32 %v5939, %v5848
    %v5973 = vmul.f32 %v5943, %v5850
    %v5974 = vmul.f32 %v5947, %v5852
    %v5975 = vmul.f32 %v5951, %v5854
    %v5976 = vmul.f32 %v5955, %v5856
    %v5977 = vadd.f32 %v5797, %v5957
    %v5978 = vadd.f32 %v5798, %v5958
    %v5979 = vadd.f32 %v5799, %v5959
    %v5980 = vadd.f32 %v5800, %v5960
    %v5981 = vadd.f32 %v5801, %v5961
    %v5982 = vadd.f32 %v5802, %v5962
    %v5983 = vadd.f32 %v5803, %v5963
    %v5984 = vadd.f32 %v5804, %v5964
    %v5985 = vadd.f32 %v5805, %v5965
    %v5986 = vadd.f32 %v5806, %v5966
    %v5987 = vadd.f32 %v5807, %v5967
    %v5988 = vadd.f32 %v5808, %v5968
    %v5989 = vadd.f32 %v5809, %v5969
    %v5990 = vadd.f32 %v5810, %v5970
    %v5991 = vadd.f32 %v5811, %v5971
    %v5992 = vadd.f32 %v5812, %v5972
    %v5993 = vadd.f32 %v5813, %v5973
    %v5994 = vadd.f32 %v5814, %v5974
    %v5995 = vadd.f32 %v5815, %v5975
    %v5996 = vadd.f32 %v5816, %v5976
    %5997 = vset.pattern.permute.xlu0 4
    %5998 = vperm.xlu0 %5997, %v88
    %v5999 = vpop.permute.xlu0 %5998
    %6001 = vset.pattern.permute.xlu0 4
    %6002 = vperm.xlu0 %6001, %v89
    %v6003 = vpop.permute.xlu0 %6002
    %6005 = vset.pattern.permute.xlu0 4
    %6006 = vperm.xlu0 %6005, %v90
    %v6007 = vpop.permute.xlu0 %6006
    %6009 = vset.pattern.permute.xlu0 4
    %6010 = vperm.xlu0 %6009, %v91
    %v6011 = vpop.permute.xlu0 %6010
    %6013 = vset.pattern.permute.xlu0 4
    %6014 = vperm.xlu0 %6013, %v92
    %v6015 = vpop.permute.xlu0 %6014
    %6017 = vset.pattern.permute.xlu0 4
    %6018 = vperm.xlu0 %6017, %v93
    %v6019 = vpop.permute.xlu0 %6018
    %6021 = vset.pattern.permute.xlu0 4
    %6022 = vperm.xlu0 %6021, %v94
    %v6023 = vpop.permute.xlu0 %6022
    %6025 = vset.pattern.permute.xlu0 4
    %6026 = vperm.xlu0 %6025, %v95
    %v6027 = vpop.permute.xlu0 %6026
    %6029 = vset.pattern.permute.xlu0 4
    %6030 = vperm.xlu0 %6029, %v96
    %v6031 = vpop.permute.xlu0 %6030
    %6033 = vset.pattern.permute.xlu0 4
    %6034 = vperm.xlu0 %6033, %v97
    %v6035 = vpop.permute.xlu0 %6034
    %6037 = vset.pattern.permute.xlu0 4
    %6038 = vperm.xlu0 %6037, %v98
    %v6039 = vpop.permute.xlu0 %6038
    %6041 = vset.pattern.permute.xlu0 4
    %6042 = vperm.xlu0 %6041, %v99
    %v6043 = vpop.permute.xlu0 %6042
    %6045 = vset.pattern.permute.xlu0 4
    %6046 = vperm.xlu0 %6045, %v100
    %v6047 = vpop.permute.xlu0 %6046
    %6049 = vset.pattern.permute.xlu0 4
    %6050 = vperm.xlu0 %6049, %v101
    %v6051 = vpop.permute.xlu0 %6050
    %6053 = vset.pattern.permute.xlu0 4
    %6054 = vperm.xlu0 %6053, %v102
    %v6055 = vpop.permute.xlu0 %6054
    %6057 = vset.pattern.permute.xlu0 4
    %6058 = vperm.xlu0 %6057, %v103
    %v6059 = vpop.permute.xlu0 %6058
    %6061 = vset.pattern.permute.xlu0 4
    %6062 = vperm.xlu0 %6061, %v104
    %v6063 = vpop.permute.xlu0 %6062
    %6065 = vset.pattern.permute.xlu0 4
    %6066 = vperm.xlu0 %6065, %v105
    %v6067 = vpop.permute.xlu0 %6066
    %6069 = vset.pattern.permute.xlu0 4
    %6070 = vperm.xlu0 %6069, %v106
    %v6071 = vpop.permute.xlu0 %6070
    %6073 = vset.pattern.permute.xlu0 4
    %6074 = vperm.xlu0 %6073, %v107
    %v6075 = vpop.permute.xlu0 %6074
    %v6077 = vadd.f32 %v5977, %v5999
    %v6078 = vadd.f32 %v5978, %v6003
    %v6079 = vadd.f32 %v5979, %v6007
    %v6080 = vadd.f32 %v5980, %v6011
    %v6081 = vadd.f32 %v5981, %v6015
    %v6082 = vadd.f32 %v5982, %v6019
    %v6083 = vadd.f32 %v5983, %v6023
    %v6084 = vadd.f32 %v5984, %v6027
    %v6085 = vadd.f32 %v5985, %v6031
    %v6086 = vadd.f32 %v5986, %v6035
    %v6087 = vadd.f32 %v5987, %v6039
    %v6088 = vadd.f32 %v5988, %v6043
    %v6089 = vadd.f32 %v5989, %v6047
    %v6090 = vadd.f32 %v5990, %v6051
    %v6091 = vadd.f32 %v5991, %v6055
    %v6092 = vadd.f32 %v5992, %v6059
    %v6093 = vadd.f32 %v5993, %v6063
    %v6094 = vadd.f32 %v5994, %v6067
    %v6095 = vadd.f32 %v5995, %v6071
    %v6096 = vadd.f32 %v5996, %v6075
    %v6097 = vld [vmem:[#allocation8] sm:$0xff]
    %v6098 = vld [vmem:[#allocation8 + $0x8] sm:$0xff]
    %v6099 = vld [vmem:[#allocation8 + $0x10] sm:$0xff]
    %v6100 = vld [vmem:[#allocation8 + $0x18] sm:$0xff]
    %v6101 = vld [vmem:[#allocation8 + $0x20] sm:$0xff]
    %v6102 = vld [vmem:[#allocation8 + $0x28] sm:$0xff]
    %v6103 = vld [vmem:[#allocation8 + $0x30] sm:$0xff]
    %v6104 = vld [vmem:[#allocation8 + $0x38] sm:$0xff]
    %v6105 = vld [vmem:[#allocation8 + $0x40] sm:$0xff]
    %v6106 = vld [vmem:[#allocation8 + $0x48] sm:$0xff]
    %v6107 = vld [vmem:[#allocation8 + $0x50] sm:$0xff]
    %v6108 = vld [vmem:[#allocation8 + $0x58] sm:$0xff]
    %v6109 = vld [vmem:[#allocation8 + $0x60] sm:$0xff]
    %v6110 = vld [vmem:[#allocation8 + $0x68] sm:$0xff]
    %v6111 = vld [vmem:[#allocation8 + $0x70] sm:$0xff]
    %v6112 = vld [vmem:[#allocation8 + $0x78] sm:$0xff]
    %v6113 = vld [vmem:[#allocation8 + $0x80] sm:$0xff]
    %v6114 = vld [vmem:[#allocation8 + $0x88] sm:$0xff]
    %v6115 = vld [vmem:[#allocation8 + $0x90] sm:$0xff]
    %v6116 = vld [vmem:[#allocation8 + $0x98] sm:$0xff]
    %v6117 = vld [vmem:[#allocation8 + $0xa0] sm:$0xff]
    %v6118 = vld [vmem:[#allocation8 + $0xa8] sm:$0xff]
    %v6119 = vld [vmem:[#allocation8 + $0xb0] sm:$0xff]
    %v6120 = vld [vmem:[#allocation8 + $0xb8] sm:$0xff]
    %v6121 = vld [vmem:[#allocation8 + $0xc0] sm:$0xff]
    %v6122 = vld [vmem:[#allocation8 + $0xc8] sm:$0xff]
    %v6123 = vld [vmem:[#allocation8 + $0xd0] sm:$0xff]
    %v6124 = vld [vmem:[#allocation8 + $0xd8] sm:$0xff]
    %v6125 = vld [vmem:[#allocation8 + $0xe0] sm:$0xff]
    %v6126 = vld [vmem:[#allocation8 + $0xe8] sm:$0xff]
    %v6127 = vld [vmem:[#allocation8 + $0xf0] sm:$0xff]
    %v6128 = vld [vmem:[#allocation8 + $0xf8] sm:$0xff]
    %v6129 = vld [vmem:[#allocation8 + $0x100] sm:$0xff]
    %v6130 = vld [vmem:[#allocation8 + $0x108] sm:$0xff]
    %v6131 = vld [vmem:[#allocation8 + $0x110] sm:$0xff]
    %v6132 = vld [vmem:[#allocation8 + $0x118] sm:$0xff]
    %v6133 = vld [vmem:[#allocation8 + $0x120] sm:$0xff]
    %v6134 = vld [vmem:[#allocation8 + $0x128] sm:$0xff]
    %v6135 = vld [vmem:[#allocation8 + $0x130] sm:$0xff]
    %v6136 = vld [vmem:[#allocation8 + $0x138] sm:$0xff]
    %6137 = vset.pattern.permute.xlu0 5
    %6138 = vperm.xlu0 %6137, %v88
    %v6139 = vpop.permute.xlu0 %6138
    %6141 = vset.pattern.permute.xlu0 5
    %6142 = vperm.xlu0 %6141, %v89
    %v6143 = vpop.permute.xlu0 %6142
    %6145 = vset.pattern.permute.xlu0 5
    %6146 = vperm.xlu0 %6145, %v90
    %v6147 = vpop.permute.xlu0 %6146
    %6149 = vset.pattern.permute.xlu0 5
    %6150 = vperm.xlu0 %6149, %v91
    %v6151 = vpop.permute.xlu0 %6150
    %6153 = vset.pattern.permute.xlu0 5
    %6154 = vperm.xlu0 %6153, %v92
    %v6155 = vpop.permute.xlu0 %6154
    %6157 = vset.pattern.permute.xlu0 5
    %6158 = vperm.xlu0 %6157, %v93
    %v6159 = vpop.permute.xlu0 %6158
    %6161 = vset.pattern.permute.xlu0 5
    %6162 = vperm.xlu0 %6161, %v94
    %v6163 = vpop.permute.xlu0 %6162
    %6165 = vset.pattern.permute.xlu0 5
    %6166 = vperm.xlu0 %6165, %v95
    %v6167 = vpop.permute.xlu0 %6166
    %6169 = vset.pattern.permute.xlu0 5
    %6170 = vperm.xlu0 %6169, %v96
    %v6171 = vpop.permute.xlu0 %6170
    %6173 = vset.pattern.permute.xlu0 5
    %6174 = vperm.xlu0 %6173, %v97
    %v6175 = vpop.permute.xlu0 %6174
    %6177 = vset.pattern.permute.xlu0 5
    %6178 = vperm.xlu0 %6177, %v98
    %v6179 = vpop.permute.xlu0 %6178
    %6181 = vset.pattern.permute.xlu0 5
    %6182 = vperm.xlu0 %6181, %v99
    %v6183 = vpop.permute.xlu0 %6182
    %6185 = vset.pattern.permute.xlu0 5
    %6186 = vperm.xlu0 %6185, %v100
    %v6187 = vpop.permute.xlu0 %6186
    %6189 = vset.pattern.permute.xlu0 5
    %6190 = vperm.xlu0 %6189, %v101
    %v6191 = vpop.permute.xlu0 %6190
    %6193 = vset.pattern.permute.xlu0 5
    %6194 = vperm.xlu0 %6193, %v102
    %v6195 = vpop.permute.xlu0 %6194
    %6197 = vset.pattern.permute.xlu0 5
    %6198 = vperm.xlu0 %6197, %v103
    %v6199 = vpop.permute.xlu0 %6198
    %6201 = vset.pattern.permute.xlu0 5
    %6202 = vperm.xlu0 %6201, %v104
    %v6203 = vpop.permute.xlu0 %6202
    %6205 = vset.pattern.permute.xlu0 5
    %6206 = vperm.xlu0 %6205, %v105
    %v6207 = vpop.permute.xlu0 %6206
    %6209 = vset.pattern.permute.xlu0 5
    %6210 = vperm.xlu0 %6209, %v106
    %v6211 = vpop.permute.xlu0 %6210
    %6213 = vset.pattern.permute.xlu0 5
    %6214 = vperm.xlu0 %6213, %v107
    %v6215 = vpop.permute.xlu0 %6214
    %vm6217 = vcmask 261120
    %v6219 = vsel %vm6217, %v6098, 0
    %v6222 = vsel %vm6217, %v6100, 0
    %v6225 = vsel %vm6217, %v6102, 0
    %v6228 = vsel %vm6217, %v6104, 0
    %v6231 = vsel %vm6217, %v6106, 0
    %v6234 = vsel %vm6217, %v6108, 0
    %v6237 = vsel %vm6217, %v6110, 0
    %v6240 = vsel %vm6217, %v6112, 0
    %v6243 = vsel %vm6217, %v6114, 0
    %v6246 = vsel %vm6217, %v6116, 0
    %v6249 = vsel %vm6217, %v6118, 0
    %v6252 = vsel %vm6217, %v6120, 0
    %v6255 = vsel %vm6217, %v6122, 0
    %v6258 = vsel %vm6217, %v6124, 0
    %v6261 = vsel %vm6217, %v6126, 0
    %v6264 = vsel %vm6217, %v6128, 0
    %v6267 = vsel %vm6217, %v6130, 0
    %v6270 = vsel %vm6217, %v6132, 0
    %v6273 = vsel %vm6217, %v6134, 0
    %v6276 = vsel %vm6217, %v6136, 0
    %6278 = vmatprep.subr.mxu0 0.0
    %6279 = vmatpush1.msra.mxu0 %v6092
    %6280 = vmatprep.subr.mxu0 0.0
    %6281 = vmatpush1.msra.mxu0 %v6091
    %6282 = vmatprep.subr.mxu0 0.0
    %6283 = vmatpush1.msra.mxu0 %v6090
    %6284 = vmatprep.subr.mxu0 0.0
    %6285 = vmatpush1.msra.mxu0 %v6089
    %6286 = vmatprep.subr.mxu0 0.0
    %6287 = vmatpush1.msra.mxu0 %v6088
    %6288 = vmatprep.subr.mxu0 0.0
    %6289 = vmatpush1.msra.mxu0 %v6087
    %6290 = vmatprep.subr.mxu0 0.0
    %6291 = vmatpush1.msra.mxu0 %v6086
    %6292 = vmatprep.subr.mxu0 0.0
    %6293 = vmatpush1.msra.mxu0 %v6085
    %6294 = vmatprep.subr.mxu0 0.0
    %6295 = vmatpush1.msra.mxu0 %v6084
    %6296 = vmatprep.subr.mxu0 0.0
    %6297 = vmatpush1.msra.mxu0 %v6083
    %6298 = vmatprep.subr.mxu0 0.0
    %6299 = vmatpush1.msra.mxu0 %v6082
    %6300 = vmatprep.subr.mxu0 0.0
    %6301 = vmatpush1.msra.mxu0 %v6081
    %6302 = vmatprep.subr.mxu0 0.0
    %6303 = vmatpush1.msra.mxu0 %v6080
    %6304 = vmatprep.subr.mxu0 0.0
    %6305 = vmatpush1.msra.mxu0 %v6079
    %6306 = vmatprep.subr.mxu0 0.0
    %6307 = vmatpush1.msra.mxu0 %v6078
    %6308 = vmatprep.subr.mxu0 0.0
    %6309 = vmatpush1.msra.mxu0 %v6077
    %6310 = vmatprep.subr.mxu0 0.0
    %6311 = vmatpush2.msra.mxu0 0.0
    %6312 = vmatprep.subr.mxu0 0.0
    %6313 = vmatpush2.msra.mxu0 0.0
    %6314 = vmatprep.subr.mxu0 0.0
    %6315 = vmatpush2.msra.mxu0 0.0
    %6316 = vmatprep.subr.mxu0 0.0
    %6317 = vmatpush2.msra.mxu0 0.0
    %6318 = vmatprep.subr.mxu0 0.0
    %6319 = vmatpush2.msra.mxu0 0.0
    %6320 = vmatprep.subr.mxu0 0.0
    %6321 = vmatpush2.msra.mxu0 0.0
    %6322 = vmatprep.subr.mxu0 0.0
    %6323 = vmatpush2.msra.mxu0 0.0
    %6324 = vmatprep.subr.mxu0 0.0
    %6325 = vmatpush2.msra.mxu0 0.0
    %6326 = vmatprep.subr.mxu0 0.0
    %6327 = vmatpush2.msra.mxu0 0.0
    %6328 = vmatprep.subr.mxu0 0.0
    %6329 = vmatpush2.msra.mxu0 0.0
    %6330 = vmatprep.subr.mxu0 0.0
    %6331 = vmatpush2.msra.mxu0 0.0
    %6332 = vmatprep.subr.mxu0 0.0
    %6333 = vmatpush2.msra.mxu0 0.0
    %6334 = vmatprep.subr.mxu0 0.0
    %6335 = vmatpush2.msra.mxu0 %v6096
    %6336 = vmatprep.subr.mxu0 0.0
    %6337 = vmatpush2.msra.mxu0 %v6095
    %6338 = vmatprep.subr.mxu0 0.0
    %6339 = vmatpush2.msra.mxu0 %v6094
    %6340 = vmatprep.subr.mxu0 0.0
    %6341 = vmatpush2.msra.mxu0 %v6093
    %6342 = vmatprep.mubr.f32.mxu0 %v6219
    %6343 = vmatmul.mubr.f32.gmra.mxu0 %v6097
    %v6344 = vpop.f32.mrf.mxu0
    %v6345 = vadd.f32 %v6139, %v6344
    %v6346 = vpop.f32.mrf.mxu0
    %6347 = vmatprep.mubr.f32.mxu0 %v6222
    %6348 = vmatmul.mubr.f32.gmra.mxu0 %v6099
    %v6349 = vpop.f32.mrf.mxu0
    %v6350 = vadd.f32 %v6143, %v6349
    %v6351 = vpop.f32.mrf.mxu0
    %6352 = vmatprep.mubr.f32.mxu0 %v6225
    %6353 = vmatmul.mubr.f32.gmra.mxu0 %v6101
    %v6354 = vpop.f32.mrf.mxu0
    %v6355 = vadd.f32 %v6147, %v6354
    %v6356 = vpop.f32.mrf.mxu0
    %6357 = vmatprep.mubr.f32.mxu0 %v6228
    %6358 = vmatmul.mubr.f32.gmra.mxu0 %v6103
    %v6359 = vpop.f32.mrf.mxu0
    %v6360 = vadd.f32 %v6151, %v6359
    %v6361 = vpop.f32.mrf.mxu0
    %6362 = vmatprep.mubr.f32.mxu0 %v6231
    %6363 = vmatmul.mubr.f32.gmra.mxu0 %v6105
    %v6364 = vpop.f32.mrf.mxu0
    %v6365 = vadd.f32 %v6155, %v6364
    %v6366 = vpop.f32.mrf.mxu0
    %6367 = vmatprep.mubr.f32.mxu0 %v6234
    %6368 = vmatmul.mubr.f32.gmra.mxu0 %v6107
    %v6369 = vpop.f32.mrf.mxu0
    %v6370 = vadd.f32 %v6159, %v6369
    %v6371 = vpop.f32.mrf.mxu0
    %6372 = vmatprep.mubr.f32.mxu0 %v6237
    %6373 = vmatmul.mubr.f32.gmra.mxu0 %v6109
    %v6374 = vpop.f32.mrf.mxu0
    %v6375 = vadd.f32 %v6163, %v6374
    %v6376 = vpop.f32.mrf.mxu0
    %6377 = vmatprep.mubr.f32.mxu0 %v6240
    %6378 = vmatmul.mubr.f32.gmra.mxu0 %v6111
    %v6379 = vpop.f32.mrf.mxu0
    %v6380 = vadd.f32 %v6167, %v6379
    %v6381 = vpop.f32.mrf.mxu0
    %6382 = vmatprep.mubr.f32.mxu0 %v6243
    %6383 = vmatmul.mubr.f32.gmra.mxu0 %v6113
    %v6384 = vpop.f32.mrf.mxu0
    %v6385 = vadd.f32 %v6171, %v6384
    %v6386 = vpop.f32.mrf.mxu0
    %6387 = vmatprep.mubr.f32.mxu0 %v6246
    %6388 = vmatmul.mubr.f32.gmra.mxu0 %v6115
    %v6389 = vpop.f32.mrf.mxu0
    %v6390 = vadd.f32 %v6175, %v6389
    %v6391 = vpop.f32.mrf.mxu0
    %6392 = vmatprep.mubr.f32.mxu0 %v6249
    %6393 = vmatmul.mubr.f32.gmra.mxu0 %v6117
    %v6394 = vpop.f32.mrf.mxu0
    %v6395 = vadd.f32 %v6179, %v6394
    %v6396 = vpop.f32.mrf.mxu0
    %6397 = vmatprep.mubr.f32.mxu0 %v6252
    %6398 = vmatmul.mubr.f32.gmra.mxu0 %v6119
    %v6399 = vpop.f32.mrf.mxu0
    %v6400 = vadd.f32 %v6183, %v6399
    %v6401 = vpop.f32.mrf.mxu0
    %6402 = vmatprep.mubr.f32.mxu0 %v6255
    %6403 = vmatmul.mubr.f32.gmra.mxu0 %v6121
    %v6404 = vpop.f32.mrf.mxu0
    %v6405 = vadd.f32 %v6187, %v6404
    %v6406 = vpop.f32.mrf.mxu0
    %6407 = vmatprep.mubr.f32.mxu0 %v6258
    %6408 = vmatmul.mubr.f32.gmra.mxu0 %v6123
    %v6409 = vpop.f32.mrf.mxu0
    %v6410 = vadd.f32 %v6191, %v6409
    %v6411 = vpop.f32.mrf.mxu0
    %6412 = vmatprep.mubr.f32.mxu0 %v6261
    %6413 = vmatmul.mubr.f32.gmra.mxu0 %v6125
    %v6414 = vpop.f32.mrf.mxu0
    %v6415 = vadd.f32 %v6195, %v6414
    %v6416 = vpop.f32.mrf.mxu0
    %6417 = vmatprep.mubr.f32.mxu0 %v6264
    %6418 = vmatmul.mubr.f32.gmra.mxu0 %v6127
    %v6419 = vpop.f32.mrf.mxu0
    %v6420 = vadd.f32 %v6199, %v6419
    %v6421 = vpop.f32.mrf.mxu0
    %6422 = vmatprep.mubr.f32.mxu0 %v6267
    %6423 = vmatmul.mubr.f32.gmra.mxu0 %v6129
    %v6424 = vpop.f32.mrf.mxu0
    %v6425 = vadd.f32 %v6203, %v6424
    %v6426 = vpop.f32.mrf.mxu0
    %6427 = vmatprep.mubr.f32.mxu0 %v6270
    %6428 = vmatmul.mubr.f32.gmra.mxu0 %v6131
    %v6429 = vpop.f32.mrf.mxu0
    %v6430 = vadd.f32 %v6207, %v6429
    %v6431 = vpop.f32.mrf.mxu0
    %6432 = vmatprep.mubr.f32.mxu0 %v6273
    %6433 = vmatmul.mubr.f32.gmra.mxu0 %v6133
    %v6434 = vpop.f32.mrf.mxu0
    %v6435 = vadd.f32 %v6211, %v6434
    %v6436 = vpop.f32.mrf.mxu0
    %6437 = vmatprep.mubr.f32.mxu0 %v6276
    %6438 = vmatmul.mubr.f32.gmra.mxu0 %v6135
    %v6439 = vpop.f32.mrf.mxu0
    %v6440 = vadd.f32 %v6215, %v6439
    %v6441 = vpop.f32.mrf.mxu0
    %6442 = vdwg.mxu0
    %v6443 = vand.u32 %v1189, 63
    %vm6444 = vcmp.ge.s32.totalorder %v6443, 4
    %vm6445 = vcmp.lt.s32.totalorder %v6443, 59
    %vm6446 = vmand %vm6444, %vm6445
    %v6447 = vsel %vm6446, 1, 0
    %vm6448 = vcmp.eq.s32.totalorder %v6447, 1
    %v6449 = vsel %vm6448, %v6345, 0.0
    %v6450 = vsel %vm6448, %v6350, 0.0
    %v6451 = vsel %vm6448, %v6355, 0.0
    %v6452 = vsel %vm6448, %v6360, 0.0
    %v6453 = vsel %vm6448, %v6365, 0.0
    %v6454 = vsel %vm6448, %v6370, 0.0
    %v6455 = vsel %vm6448, %v6375, 0.0
    %v6456 = vsel %vm6448, %v6380, 0.0
    %v6457 = vsel %vm6448, %v6385, 0.0
    %v6458 = vsel %vm6448, %v6390, 0.0
    %v6459 = vsel %vm6448, %v6395, 0.0
    %v6460 = vsel %vm6448, %v6400, 0.0
    %v6461 = vsel %vm6448, %v6405, 0.0
    %v6462 = vsel %vm6448, %v6410, 0.0
    %v6463 = vsel %vm6448, %v6415, 0.0
    %v6464 = vsel %vm6448, %v6420, 0.0
    %v6465 = vsel %vm6448, %v6425, 0.0
    %v6466 = vsel %vm6448, %v6430, 0.0
    %v6467 = vsel %vm6448, %v6435, 0.0
    %v6468 = vsel %vm6448, %v6440, 0.0
    %6469 = vset.pattern.permute.xlu0 6
    %6470 = vperm.xlu0 %6469, %v88
    %v6471 = vpop.permute.xlu0 %6470
    %6473 = vset.pattern.permute.xlu0 6
    %6474 = vperm.xlu0 %6473, %v89
    %v6475 = vpop.permute.xlu0 %6474
    %6477 = vset.pattern.permute.xlu0 6
    %6478 = vperm.xlu0 %6477, %v90
    %v6479 = vpop.permute.xlu0 %6478
    %6481 = vset.pattern.permute.xlu0 6
    %6482 = vperm.xlu0 %6481, %v91
    %v6483 = vpop.permute.xlu0 %6482
    %6485 = vset.pattern.permute.xlu0 6
    %6486 = vperm.xlu0 %6485, %v92
    %v6487 = vpop.permute.xlu0 %6486
    %6489 = vset.pattern.permute.xlu0 6
    %6490 = vperm.xlu0 %6489, %v93
    %v6491 = vpop.permute.xlu0 %6490
    %6493 = vset.pattern.permute.xlu0 6
    %6494 = vperm.xlu0 %6493, %v94
    %v6495 = vpop.permute.xlu0 %6494
    %6497 = vset.pattern.permute.xlu0 6
    %6498 = vperm.xlu0 %6497, %v95
    %v6499 = vpop.permute.xlu0 %6498
    %6501 = vset.pattern.permute.xlu0 6
    %6502 = vperm.xlu0 %6501, %v96
    %v6503 = vpop.permute.xlu0 %6502
    %6505 = vset.pattern.permute.xlu0 6
    %6506 = vperm.xlu0 %6505, %v97
    %v6507 = vpop.permute.xlu0 %6506
    %6509 = vset.pattern.permute.xlu0 6
    %6510 = vperm.xlu0 %6509, %v98
    %v6511 = vpop.permute.xlu0 %6510
    %6513 = vset.pattern.permute.xlu0 6
    %6514 = vperm.xlu0 %6513, %v99
    %v6515 = vpop.permute.xlu0 %6514
    %6517 = vset.pattern.permute.xlu0 6
    %6518 = vperm.xlu0 %6517, %v100
    %v6519 = vpop.permute.xlu0 %6518
    %6521 = vset.pattern.permute.xlu0 6
    %6522 = vperm.xlu0 %6521, %v101
    %v6523 = vpop.permute.xlu0 %6522
    %6525 = vset.pattern.permute.xlu0 6
    %6526 = vperm.xlu0 %6525, %v102
    %v6527 = vpop.permute.xlu0 %6526
    %6529 = vset.pattern.permute.xlu0 6
    %6530 = vperm.xlu0 %6529, %v103
    %v6531 = vpop.permute.xlu0 %6530
    %6533 = vset.pattern.permute.xlu0 6
    %6534 = vperm.xlu0 %6533, %v104
    %v6535 = vpop.permute.xlu0 %6534
    %6537 = vset.pattern.permute.xlu0 6
    %6538 = vperm.xlu0 %6537, %v105
    %v6539 = vpop.permute.xlu0 %6538
    %6541 = vset.pattern.permute.xlu0 6
    %6542 = vperm.xlu0 %6541, %v106
    %v6543 = vpop.permute.xlu0 %6542
    %6545 = vset.pattern.permute.xlu0 6
    %6546 = vperm.xlu0 %6545, %v107
    %v6547 = vpop.permute.xlu0 %6546
    %v6549 = vmul.f32 %v6449, %v6471
    %v6550 = vmul.f32 %v6450, %v6475
    %v6551 = vmul.f32 %v6451, %v6479
    %v6552 = vmul.f32 %v6452, %v6483
    %v6553 = vmul.f32 %v6453, %v6487
    %v6554 = vmul.f32 %v6454, %v6491
    %v6555 = vmul.f32 %v6455, %v6495
    %v6556 = vmul.f32 %v6456, %v6499
    %v6557 = vmul.f32 %v6457, %v6503
    %v6558 = vmul.f32 %v6458, %v6507
    %v6559 = vmul.f32 %v6459, %v6511
    %v6560 = vmul.f32 %v6460, %v6515
    %v6561 = vmul.f32 %v6461, %v6519
    %v6562 = vmul.f32 %v6462, %v6523
    %v6563 = vmul.f32 %v6463, %v6527
    %v6564 = vmul.f32 %v6464, %v6531
    %v6565 = vmul.f32 %v6465, %v6535
    %v6566 = vmul.f32 %v6466, %v6539
    %v6567 = vmul.f32 %v6467, %v6543
    %v6568 = vmul.f32 %v6468, %v6547
    %6569 = vset.pattern.permute.xlu0 7
    %6570 = vperm.xlu0 %6569, %v88
    %v6571 = vpop.permute.xlu0 %6570
    %6573 = vset.pattern.permute.xlu0 7
    %6574 = vperm.xlu0 %6573, %v89
    %v6575 = vpop.permute.xlu0 %6574
    %6577 = vset.pattern.permute.xlu0 7
    %6578 = vperm.xlu0 %6577, %v90
    %v6579 = vpop.permute.xlu0 %6578
    %6581 = vset.pattern.permute.xlu0 7
    %6582 = vperm.xlu0 %6581, %v91
    %v6583 = vpop.permute.xlu0 %6582
    %6585 = vset.pattern.permute.xlu0 7
    %6586 = vperm.xlu0 %6585, %v92
    %v6587 = vpop.permute.xlu0 %6586
    %6589 = vset.pattern.permute.xlu0 7
    %6590 = vperm.xlu0 %6589, %v93
    %v6591 = vpop.permute.xlu0 %6590
    %6593 = vset.pattern.permute.xlu0 7
    %6594 = vperm.xlu0 %6593, %v94
    %v6595 = vpop.permute.xlu0 %6594
    %6597 = vset.pattern.permute.xlu0 7
    %6598 = vperm.xlu0 %6597, %v95
    %v6599 = vpop.permute.xlu0 %6598
    %6601 = vset.pattern.permute.xlu0 7
    %6602 = vperm.xlu0 %6601, %v96
    %v6603 = vpop.permute.xlu0 %6602
    %6605 = vset.pattern.permute.xlu0 7
    %6606 = vperm.xlu0 %6605, %v97
    %v6607 = vpop.permute.xlu0 %6606
    %6609 = vset.pattern.permute.xlu0 7
    %6610 = vperm.xlu0 %6609, %v98
    %v6611 = vpop.permute.xlu0 %6610
    %6613 = vset.pattern.permute.xlu0 7
    %6614 = vperm.xlu0 %6613, %v99
    %v6615 = vpop.permute.xlu0 %6614
    %6617 = vset.pattern.permute.xlu0 7
    %6618 = vperm.xlu0 %6617, %v100
    %v6619 = vpop.permute.xlu0 %6618
    %6621 = vset.pattern.permute.xlu0 7
    %6622 = vperm.xlu0 %6621, %v101
    %v6623 = vpop.permute.xlu0 %6622
    %6625 = vset.pattern.permute.xlu0 7
    %6626 = vperm.xlu0 %6625, %v102
    %v6627 = vpop.permute.xlu0 %6626
    %6629 = vset.pattern.permute.xlu0 7
    %6630 = vperm.xlu0 %6629, %v103
    %v6631 = vpop.permute.xlu0 %6630
    %6633 = vset.pattern.permute.xlu0 7
    %6634 = vperm.xlu0 %6633, %v104
    %v6635 = vpop.permute.xlu0 %6634
    %6637 = vset.pattern.permute.xlu0 7
    %6638 = vperm.xlu0 %6637, %v105
    %v6639 = vpop.permute.xlu0 %6638
    %6641 = vset.pattern.permute.xlu0 7
    %6642 = vperm.xlu0 %6641, %v106
    %v6643 = vpop.permute.xlu0 %6642
    %6645 = vset.pattern.permute.xlu0 7
    %6646 = vperm.xlu0 %6645, %v107
    %v6647 = vpop.permute.xlu0 %6646
    %v6649 = vadd.f32 %v6549, %v6571
    %v6650 = vadd.f32 %v6550, %v6575
    %v6651 = vadd.f32 %v6551, %v6579
    %v6652 = vadd.f32 %v6552, %v6583
    %v6653 = vadd.f32 %v6553, %v6587
    %v6654 = vadd.f32 %v6554, %v6591
    %v6655 = vadd.f32 %v6555, %v6595
    %v6656 = vadd.f32 %v6556, %v6599
    %v6657 = vadd.f32 %v6557, %v6603
    %v6658 = vadd.f32 %v6558, %v6607
    %v6659 = vadd.f32 %v6559, %v6611
    %v6660 = vadd.f32 %v6560, %v6615
    %v6661 = vadd.f32 %v6561, %v6619
    %v6662 = vadd.f32 %v6562, %v6623
    %v6663 = vadd.f32 %v6563, %v6627
    %v6664 = vadd.f32 %v6564, %v6631
    %v6665 = vadd.f32 %v6565, %v6635
    %v6666 = vadd.f32 %v6566, %v6639
    %v6667 = vadd.f32 %v6567, %v6643
    %v6668 = vadd.f32 %v6568, %v6647
    %vm6669 = vcmp.gt.f32.partialorder %v6649, 0.0
    %vm6670 = vcmp.gt.f32.partialorder %v6650, 0.0
    %vm6671 = vcmp.gt.f32.partialorder %v6651, 0.0
    %vm6672 = vcmp.gt.f32.partialorder %v6652, 0.0
    %vm6673 = vcmp.gt.f32.partialorder %v6653, 0.0
    %vm6674 = vcmp.gt.f32.partialorder %v6654, 0.0
    %vm6675 = vcmp.gt.f32.partialorder %v6655, 0.0
    %vm6676 = vcmp.gt.f32.partialorder %v6656, 0.0
    %vm6677 = vcmp.gt.f32.partialorder %v6657, 0.0
    %vm6678 = vcmp.gt.f32.partialorder %v6658, 0.0
    %vm6679 = vcmp.gt.f32.partialorder %v6659, 0.0
    %vm6680 = vcmp.gt.f32.partialorder %v6660, 0.0
    %vm6681 = vcmp.gt.f32.partialorder %v6661, 0.0
    %vm6682 = vcmp.gt.f32.partialorder %v6662, 0.0
    %vm6683 = vcmp.gt.f32.partialorder %v6663, 0.0
    %vm6684 = vcmp.gt.f32.partialorder %v6664, 0.0
    %vm6685 = vcmp.gt.f32.partialorder %v6665, 0.0
    %vm6686 = vcmp.gt.f32.partialorder %v6666, 0.0
    %vm6687 = vcmp.gt.f32.partialorder %v6667, 0.0
    %vm6688 = vcmp.gt.f32.partialorder %v6668, 0.0
    %v6689 = vmin.f32 %v6649, 0.0
    %v6690 = vmin.f32 %v6650, 0.0
    %v6691 = vmin.f32 %v6651, 0.0
    %v6692 = vmin.f32 %v6652, 0.0
    %v6693 = vmin.f32 %v6653, 0.0
    %v6694 = vmin.f32 %v6654, 0.0
    %v6695 = vmin.f32 %v6655, 0.0
    %v6696 = vmin.f32 %v6656, 0.0
    %v6697 = vmin.f32 %v6657, 0.0
    %v6698 = vmin.f32 %v6658, 0.0
    %v6699 = vmin.f32 %v6659, 0.0
    %v6700 = vmin.f32 %v6660, 0.0
    %v6701 = vmin.f32 %v6661, 0.0
    %v6702 = vmin.f32 %v6662, 0.0
    %v6703 = vmin.f32 %v6663, 0.0
    %v6704 = vmin.f32 %v6664, 0.0
    %v6705 = vmin.f32 %v6665, 0.0
    %v6706 = vmin.f32 %v6666, 0.0
    %v6707 = vmin.f32 %v6667, 0.0
    %v6708 = vmin.f32 %v6668, 0.0
    %v6709 = vmul.f32 %v6689, 1.442695
    %v6710 = vpow.pop %v6709
    %v6711 = vmul.f32 %v6690, 1.442695
    %v6712 = vpow.pop %v6711
    %v6713 = vmul.f32 %v6691, 1.442695
    %v6714 = vpow.pop %v6713
    %v6715 = vmul.f32 %v6692, 1.442695
    %v6716 = vpow.pop %v6715
    %v6717 = vmul.f32 %v6693, 1.442695
    %v6718 = vpow.pop %v6717
    %v6719 = vmul.f32 %v6694, 1.442695
    %v6720 = vpow.pop %v6719
    %v6721 = vmul.f32 %v6695, 1.442695
    %v6722 = vpow.pop %v6721
    %v6723 = vmul.f32 %v6696, 1.442695
    %v6724 = vpow.pop %v6723
    %v6725 = vmul.f32 %v6697, 1.442695
    %v6726 = vpow.pop %v6725
    %v6727 = vmul.f32 %v6698, 1.442695
    %v6728 = vpow.pop %v6727
    %v6729 = vmul.f32 %v6699, 1.442695
    %v6730 = vpow.pop %v6729
    %v6731 = vmul.f32 %v6700, 1.442695
    %v6732 = vpow.pop %v6731
    %v6733 = vmul.f32 %v6701, 1.442695
    %v6734 = vpow.pop %v6733
    %v6735 = vmul.f32 %v6702, 1.442695
    %v6736 = vpow.pop %v6735
    %v6737 = vmul.f32 %v6703, 1.442695
    %v6738 = vpow.pop %v6737
    %v6739 = vmul.f32 %v6704, 1.442695
    %v6740 = vpow.pop %v6739
    %v6741 = vmul.f32 %v6705, 1.442695
    %v6742 = vpow.pop %v6741
    %v6743 = vmul.f32 %v6706, 1.442695
    %v6744 = vpow.pop %v6743
    %v6745 = vmul.f32 %v6707, 1.442695
    %v6746 = vpow.pop %v6745
    %v6747 = vmul.f32 %v6708, 1.442695
    %v6748 = vpow.pop %v6747
    %v6749 = vsub.f32 %v6710, 1.0
    %v6750 = vsub.f32 %v6712, 1.0
    %v6751 = vsub.f32 %v6714, 1.0
    %v6752 = vsub.f32 %v6716, 1.0
    %v6753 = vsub.f32 %v6718, 1.0
    %v6754 = vsub.f32 %v6720, 1.0
    %v6755 = vsub.f32 %v6722, 1.0
    %v6756 = vsub.f32 %v6724, 1.0
    %v6757 = vsub.f32 %v6726, 1.0
    %v6758 = vsub.f32 %v6728, 1.0
    %v6759 = vsub.f32 %v6730, 1.0
    %v6760 = vsub.f32 %v6732, 1.0
    %v6761 = vsub.f32 %v6734, 1.0
    %v6762 = vsub.f32 %v6736, 1.0
    %v6763 = vsub.f32 %v6738, 1.0
    %v6764 = vsub.f32 %v6740, 1.0
    %v6765 = vsub.f32 %v6742, 1.0
    %v6766 = vsub.f32 %v6744, 1.0
    %v6767 = vsub.f32 %v6746, 1.0
    %v6768 = vsub.f32 %v6748, 1.0
    %v6769 = vsel %vm6669, %v6649, %v6749
    %v6770 = vsel %vm6670, %v6650, %v6750
    %v6771 = vsel %vm6671, %v6651, %v6751
    %v6772 = vsel %vm6672, %v6652, %v6752
    %v6773 = vsel %vm6673, %v6653, %v6753
    %v6774 = vsel %vm6674, %v6654, %v6754
    %v6775 = vsel %vm6675, %v6655, %v6755
    %v6776 = vsel %vm6676, %v6656, %v6756
    %v6777 = vsel %vm6677, %v6657, %v6757
    %v6778 = vsel %vm6678, %v6658, %v6758
    %v6779 = vsel %vm6679, %v6659, %v6759
    %v6780 = vsel %vm6680, %v6660, %v6760
    %v6781 = vsel %vm6681, %v6661, %v6761
    %v6782 = vsel %vm6682, %v6662, %v6762
    %v6783 = vsel %vm6683, %v6663, %v6763
    %v6784 = vsel %vm6684, %v6664, %v6764
    %v6785 = vsel %vm6685, %v6665, %v6765
    %v6786 = vsel %vm6686, %v6666, %v6766
    %v6787 = vsel %vm6687, %v6667, %v6767
    %v6788 = vsel %vm6688, %v6668, %v6768
    %v6789 = vld [vmem:[%s4] sm:$0xff]
    %v6790 = vld [vmem:[%s4 + $0x8] sm:$0xff]
    %v6791 = vld [vmem:[%s4 + $0x10] sm:$0xff]
    %v6792 = vld [vmem:[%s4 + $0x18] sm:$0xff]
    %v6793 = vld [vmem:[%s4 + $0x20] sm:$0xff]
    %v6794 = vld [vmem:[%s4 + $0x28] sm:$0xff]
    %v6795 = vld [vmem:[%s4 + $0x30] sm:$0xff]
    %v6796 = vld [vmem:[%s4 + $0x38] sm:$0xff]
    %v6797 = vld [vmem:[%s4 + $0x40] sm:$0xff]
    %v6798 = vld [vmem:[%s4 + $0x48] sm:$0xff]
    %v6799 = vld [vmem:[%s4 + $0x50] sm:$0xff]
    %v6800 = vld [vmem:[%s4 + $0x58] sm:$0xff]
    %v6801 = vld [vmem:[%s4 + $0x60] sm:$0xff]
    %v6802 = vld [vmem:[%s4 + $0x68] sm:$0xff]
    %v6803 = vld [vmem:[%s4 + $0x70] sm:$0xff]
    %v6804 = vld [vmem:[%s4 + $0x78] sm:$0xff]
    %6805 = vmatprep.subr.mxu0 0.0
    %6806 = vmatpush1.msra.mxu0 %v6804
    %6807 = vmatprep.subr.mxu0 0.0
    %6808 = vmatpush1.msra.mxu0 %v6803
    %6809 = vmatprep.subr.mxu0 0.0
    %6810 = vmatpush1.msra.mxu0 %v6802
    %6811 = vmatprep.subr.mxu0 0.0
    %6812 = vmatpush1.msra.mxu0 %v6801
    %6813 = vmatprep.subr.mxu0 0.0
    %6814 = vmatpush1.msra.mxu0 %v6800
    %6815 = vmatprep.subr.mxu0 0.0
    %6816 = vmatpush1.msra.mxu0 %v6799
    %6817 = vmatprep.subr.mxu0 0.0
    %6818 = vmatpush1.msra.mxu0 %v6798
    %6819 = vmatprep.subr.mxu0 0.0
    %6820 = vmatpush1.msra.mxu0 %v6797
    %6821 = vmatprep.subr.mxu0 0.0
    %6822 = vmatpush1.msra.mxu0 %v6796
    %6823 = vmatprep.subr.mxu0 0.0
    %6824 = vmatpush1.msra.mxu0 %v6795
    %6825 = vmatprep.subr.mxu0 0.0
    %6826 = vmatpush1.msra.mxu0 %v6794
    %6827 = vmatprep.subr.mxu0 0.0
    %6828 = vmatpush1.msra.mxu0 %v6793
    %6829 = vmatprep.subr.mxu0 0.0
    %6830 = vmatpush1.msra.mxu0 %v6792
    %6831 = vmatprep.subr.mxu0 0.0
    %6832 = vmatpush1.msra.mxu0 %v6791
    %6833 = vmatprep.subr.mxu0 0.0
    %6834 = vmatpush1.msra.mxu0 %v6790
    %6835 = vmatprep.subr.mxu0 0.0
    %6836 = vmatpush1.msra.mxu0 %v6789
    %6837 = vmatprep.subr.mxu0 0.0
    %6838 = vmatpush2.msra.mxu0 0.0
    %6839 = vmatprep.subr.mxu0 0.0
    %6840 = vmatpush2.msra.mxu0 0.0
    %6841 = vmatprep.subr.mxu0 0.0
    %6842 = vmatpush2.msra.mxu0 0.0
    %6843 = vmatprep.subr.mxu0 0.0
    %6844 = vmatpush2.msra.mxu0 0.0
    %6845 = vmatprep.subr.mxu0 0.0
    %6846 = vmatpush2.msra.mxu0 0.0
    %6847 = vmatprep.subr.mxu0 0.0
    %6848 = vmatpush2.msra.mxu0 0.0
    %6849 = vmatprep.subr.mxu0 0.0
    %6850 = vmatpush2.msra.mxu0 0.0
    %6851 = vmatprep.subr.mxu0 0.0
    %6852 = vmatpush2.msra.mxu0 0.0
    %6853 = vmatprep.subr.mxu0 0.0
    %6854 = vmatpush2.msra.mxu0 0.0
    %6855 = vmatprep.subr.mxu0 0.0
    %6856 = vmatpush2.msra.mxu0 0.0
    %6857 = vmatprep.subr.mxu0 0.0
    %6858 = vmatpush2.msra.mxu0 0.0
    %6859 = vmatprep.subr.mxu0 0.0
    %6860 = vmatpush2.msra.mxu0 0.0
    %6861 = vmatprep.subr.mxu0 0.0
    %6862 = vmatpush2.msra.mxu0 0.0
    %6863 = vmatprep.subr.mxu0 0.0
    %6864 = vmatpush2.msra.mxu0 0.0
    %6865 = vmatprep.subr.mxu0 0.0
    %6866 = vmatpush2.msra.mxu0 0.0
    %6867 = vmatprep.subr.mxu0 0.0
    %6868 = vmatpush2.msra.mxu0 0.0
    %6869 = vmatprep.mubr.f32.mxu0 0.0
    %6870 = vmatmul.mubr.f32.gmra.mxu0 %v6769
    %v6871 = vpop.f32.mrf.mxu0
    %v6872 = vadd.f32 0.0, %v6871
    %v6873 = vpop.f32.mrf.mxu0
    %6874 = vmatprep.mubr.f32.mxu0 0.0
    %6875 = vmatmul.mubr.f32.gmra.mxu0 %v6770
    %v6876 = vpop.f32.mrf.mxu0
    %v6877 = vadd.f32 0.0, %v6876
    %v6878 = vpop.f32.mrf.mxu0
    %6879 = vmatprep.mubr.f32.mxu0 0.0
    %6880 = vmatmul.mubr.f32.gmra.mxu0 %v6771
    %v6881 = vpop.f32.mrf.mxu0
    %v6882 = vadd.f32 0.0, %v6881
    %v6883 = vpop.f32.mrf.mxu0
    %6884 = vmatprep.mubr.f32.mxu0 0.0
    %6885 = vmatmul.mubr.f32.gmra.mxu0 %v6772
    %v6886 = vpop.f32.mrf.mxu0
    %v6887 = vadd.f32 0.0, %v6886
    %v6888 = vpop.f32.mrf.mxu0
    %6889 = vmatprep.mubr.f32.mxu0 0.0
    %6890 = vmatmul.mubr.f32.gmra.mxu0 %v6773
    %v6891 = vpop.f32.mrf.mxu0
    %v6892 = vadd.f32 0.0, %v6891
    %v6893 = vpop.f32.mrf.mxu0
    %6894 = vmatprep.mubr.f32.mxu0 0.0
    %6895 = vmatmul.mubr.f32.gmra.mxu0 %v6774
    %v6896 = vpop.f32.mrf.mxu0
    %v6897 = vadd.f32 0.0, %v6896
    %v6898 = vpop.f32.mrf.mxu0
    %6899 = vmatprep.mubr.f32.mxu0 0.0
    %6900 = vmatmul.mubr.f32.gmra.mxu0 %v6775
    %v6901 = vpop.f32.mrf.mxu0
    %v6902 = vadd.f32 0.0, %v6901
    %v6903 = vpop.f32.mrf.mxu0
    %6904 = vmatprep.mubr.f32.mxu0 0.0
    %6905 = vmatmul.mubr.f32.gmra.mxu0 %v6776
    %v6906 = vpop.f32.mrf.mxu0
    %v6907 = vadd.f32 0.0, %v6906
    %v6908 = vpop.f32.mrf.mxu0
    %6909 = vmatprep.mubr.f32.mxu0 0.0
    %6910 = vmatmul.mubr.f32.gmra.mxu0 %v6777
    %v6911 = vpop.f32.mrf.mxu0
    %v6912 = vadd.f32 0.0, %v6911
    %v6913 = vpop.f32.mrf.mxu0
    %6914 = vmatprep.mubr.f32.mxu0 0.0
    %6915 = vmatmul.mubr.f32.gmra.mxu0 %v6778
    %v6916 = vpop.f32.mrf.mxu0
    %v6917 = vadd.f32 0.0, %v6916
    %v6918 = vpop.f32.mrf.mxu0
    %6919 = vmatprep.mubr.f32.mxu0 0.0
    %6920 = vmatmul.mubr.f32.gmra.mxu0 %v6779
    %v6921 = vpop.f32.mrf.mxu0
    %v6922 = vadd.f32 0.0, %v6921
    %v6923 = vpop.f32.mrf.mxu0
    %6924 = vmatprep.mubr.f32.mxu0 0.0
    %6925 = vmatmul.mubr.f32.gmra.mxu0 %v6780
    %v6926 = vpop.f32.mrf.mxu0
    %v6927 = vadd.f32 0.0, %v6926
    %v6928 = vpop.f32.mrf.mxu0
    %6929 = vmatprep.mubr.f32.mxu0 0.0
    %6930 = vmatmul.mubr.f32.gmra.mxu0 %v6781
    %v6931 = vpop.f32.mrf.mxu0
    %v6932 = vadd.f32 0.0, %v6931
    %v6933 = vpop.f32.mrf.mxu0
    %6934 = vmatprep.mubr.f32.mxu0 0.0
    %6935 = vmatmul.mubr.f32.gmra.mxu0 %v6782
    %v6936 = vpop.f32.mrf.mxu0
    %v6937 = vadd.f32 0.0, %v6936
    %v6938 = vpop.f32.mrf.mxu0
    %6939 = vmatprep.mubr.f32.mxu0 0.0
    %6940 = vmatmul.mubr.f32.gmra.mxu0 %v6783
    %v6941 = vpop.f32.mrf.mxu0
    %v6942 = vadd.f32 0.0, %v6941
    %v6943 = vpop.f32.mrf.mxu0
    %6944 = vmatprep.mubr.f32.mxu0 0.0
    %6945 = vmatmul.mubr.f32.gmra.mxu0 %v6784
    %v6946 = vpop.f32.mrf.mxu0
    %v6947 = vadd.f32 0.0, %v6946
    %v6948 = vpop.f32.mrf.mxu0
    %6949 = vmatprep.mubr.f32.mxu0 0.0
    %6950 = vmatmul.mubr.f32.gmra.mxu0 %v6785
    %v6951 = vpop.f32.mrf.mxu0
    %v6952 = vadd.f32 0.0, %v6951
    %v6953 = vpop.f32.mrf.mxu0
    %6954 = vmatprep.mubr.f32.mxu0 0.0
    %6955 = vmatmul.mubr.f32.gmra.mxu0 %v6786
    %v6956 = vpop.f32.mrf.mxu0
    %v6957 = vadd.f32 0.0, %v6956
    %v6958 = vpop.f32.mrf.mxu0
    %6959 = vmatprep.mubr.f32.mxu0 0.0
    %6960 = vmatmul.mubr.f32.gmra.mxu0 %v6787
    %v6961 = vpop.f32.mrf.mxu0
    %v6962 = vadd.f32 0.0, %v6961
    %v6963 = vpop.f32.mrf.mxu0
    %6964 = vmatprep.mubr.f32.mxu0 0.0
    %6965 = vmatmul.mubr.f32.gmra.mxu0 %v6788
    %v6966 = vpop.f32.mrf.mxu0
    %v6967 = vadd.f32 0.0, %v6966
    %v6968 = vpop.f32.mrf.mxu0
    %6969 = vdwg.mxu0
    %v6970 = vld [vmem:[%s6] sm:$0xff]
    %v6971 = vld [vmem:[%s6 + $0x8] sm:$0xff]
    %v6972 = vld [vmem:[%s6 + $0x10] sm:$0xff]
    %v6973 = vld [vmem:[%s6 + $0x18] sm:$0xff]
    %v6974 = vld [vmem:[%s6 + $0x20] sm:$0xff]
    %v6975 = vld [vmem:[%s6 + $0x28] sm:$0xff]
    %v6976 = vld [vmem:[%s6 + $0x30] sm:$0xff]
    %v6977 = vld [vmem:[%s6 + $0x38] sm:$0xff]
    %v6978 = vld [vmem:[%s6 + $0x40] sm:$0xff]
    %v6979 = vld [vmem:[%s6 + $0x48] sm:$0xff]
    %v6980 = vld [vmem:[%s6 + $0x50] sm:$0xff]
    %v6981 = vld [vmem:[%s6 + $0x58] sm:$0xff]
    %v6982 = vld [vmem:[%s6 + $0x60] sm:$0xff]
    %v6983 = vld [vmem:[%s6 + $0x68] sm:$0xff]
    %v6984 = vld [vmem:[%s6 + $0x70] sm:$0xff]
    %v6985 = vld [vmem:[%s6 + $0x78] sm:$0xff]
    %v6986 = vld [vmem:[%s6 + $0x80] sm:$0xff]
    %v6987 = vld [vmem:[%s6 + $0x88] sm:$0xff]
    %v6988 = vld [vmem:[%s6 + $0x90] sm:$0xff]
    %v6989 = vld [vmem:[%s6 + $0x98] sm:$0xff]
    %v6990 = vld [vmem:[%s6 + $0xa0] sm:$0xff]
    %v6991 = vld [vmem:[%s6 + $0xa8] sm:$0xff]
    %v6992 = vld [vmem:[%s6 + $0xb0] sm:$0xff]
    %v6993 = vld [vmem:[%s6 + $0xb8] sm:$0xff]
    %v6994 = vld [vmem:[%s6 + $0xc0] sm:$0xff]
    %v6995 = vld [vmem:[%s6 + $0xc8] sm:$0xff]
    %v6996 = vld [vmem:[%s6 + $0xd0] sm:$0xff]
    %v6997 = vld [vmem:[%s6 + $0xd8] sm:$0xff]
    %v6998 = vld [vmem:[%s6 + $0xe0] sm:$0xff]
    %v6999 = vld [vmem:[%s6 + $0xe8] sm:$0xff]
    %v7000 = vld [vmem:[%s6 + $0xf0] sm:$0xff]
    %v7001 = vld [vmem:[%s6 + $0xf8] sm:$0xff]
    %v7002 = vld [vmem:[%s6 + $0x100] sm:$0xff]
    %v7003 = vld [vmem:[%s6 + $0x108] sm:$0xff]
    %v7004 = vld [vmem:[%s6 + $0x110] sm:$0xff]
    %v7005 = vld [vmem:[%s6 + $0x118] sm:$0xff]
    %v7006 = vld [vmem:[%s6 + $0x120] sm:$0xff]
    %v7007 = vld [vmem:[%s6 + $0x128] sm:$0xff]
    %v7008 = vld [vmem:[%s6 + $0x130] sm:$0xff]
    %v7009 = vld [vmem:[%s6 + $0x138] sm:$0xff]
    %v7010 = vmul.f32 %v6872, %v6970
    %v7011 = vmul.f32 %v6877, %v6971
    %v7012 = vmul.f32 %v6882, %v6972
    %v7013 = vmul.f32 %v6887, %v6973
    %v7014 = vmul.f32 %v6892, %v6974
    %v7015 = vmul.f32 %v6897, %v6975
    %v7016 = vmul.f32 %v6902, %v6976
    %v7017 = vmul.f32 %v6907, %v6977
    %v7018 = vmul.f32 %v6912, %v6978
    %v7019 = vmul.f32 %v6917, %v6979
    %v7020 = vmul.f32 %v6922, %v6980
    %v7021 = vmul.f32 %v6927, %v6981
    %v7022 = vmul.f32 %v6932, %v6982
    %v7023 = vmul.f32 %v6937, %v6983
    %v7024 = vmul.f32 %v6942, %v6984
    %v7025 = vmul.f32 %v6947, %v6985
    %v7026 = vmul.f32 %v6952, %v6986
    %v7027 = vmul.f32 %v6957, %v6987
    %v7028 = vmul.f32 %v6962, %v6988
    %v7029 = vmul.f32 %v6967, %v6989
    %v7030 = vld [vmem:[%s7] sm:$0xff]
    %v7031 = vld [vmem:[%s7 + $0x8] sm:$0xff]
    %v7032 = vld [vmem:[%s7 + $0x10] sm:$0xff]
    %v7033 = vld [vmem:[%s7 + $0x18] sm:$0xff]
    %v7035 = vsel %vm6217, %v7010, 0
    %v7038 = vsel %vm6217, %v7011, 0
    %v7041 = vsel %vm6217, %v7012, 0
    %v7044 = vsel %vm6217, %v7013, 0
    %v7047 = vsel %vm6217, %v7014, 0
    %v7050 = vsel %vm6217, %v7015, 0
    %v7053 = vsel %vm6217, %v7016, 0
    %v7056 = vsel %vm6217, %v7017, 0
    %v7059 = vsel %vm6217, %v7018, 0
    %v7062 = vsel %vm6217, %v7019, 0
    %v7065 = vsel %vm6217, %v7020, 0
    %v7068 = vsel %vm6217, %v7021, 0
    %v7071 = vsel %vm6217, %v7022, 0
    %v7074 = vsel %vm6217, %v7023, 0
    %v7077 = vsel %vm6217, %v7024, 0
    %v7080 = vsel %vm6217, %v7025, 0
    %v7083 = vsel %vm6217, %v7026, 0
    %v7086 = vsel %vm6217, %v7027, 0
    %v7089 = vsel %vm6217, %v7028, 0
    %v7092 = vsel %vm6217, %v7029, 0
    %7094 = vmatprep.subr.mxu0 0.0
    %7095 = vmatpush1.msra.mxu0 0.0
    %7096 = vmatprep.subr.mxu0 0.0
    %7097 = vmatpush1.msra.mxu0 0.0
    %7098 = vmatprep.subr.mxu0 0.0
    %7099 = vmatpush1.msra.mxu0 0.0
    %7100 = vmatprep.subr.mxu0 0.0
    %7101 = vmatpush1.msra.mxu0 0.0
    %7102 = vmatprep.subr.mxu0 0.0
    %7103 = vmatpush1.msra.mxu0 0.0
    %7104 = vmatprep.subr.mxu0 0.0
    %7105 = vmatpush1.msra.mxu0 0.0
    %7106 = vmatprep.subr.mxu0 0.0
    %7107 = vmatpush1.msra.mxu0 0.0
    %7108 = vmatprep.subr.mxu0 0.0
    %7109 = vmatpush1.msra.mxu0 0.0
    %7110 = vmatprep.subr.mxu0 0.0
    %7111 = vmatpush1.msra.mxu0 0.0
    %7112 = vmatprep.subr.mxu0 0.0
    %7113 = vmatpush1.msra.mxu0 0.0
    %7114 = vmatprep.subr.mxu0 0.0
    %7115 = vmatpush1.msra.mxu0 0.0
    %7116 = vmatprep.subr.mxu0 0.0
    %7117 = vmatpush1.msra.mxu0 0.0
    %7118 = vmatprep.subr.mxu0 0.0
    %7119 = vmatpush1.msra.mxu0 %v7033
    %7120 = vmatprep.subr.mxu0 0.0
    %7121 = vmatpush1.msra.mxu0 %v7032
    %7122 = vmatprep.subr.mxu0 0.0
    %7123 = vmatpush1.msra.mxu0 %v7031
    %7124 = vmatprep.subr.mxu0 0.0
    %7125 = vmatpush1.msra.mxu0 %v7030
    %7126 = vmatprep.subr.mxu0 0.0
    %7127 = vmatpush2.msra.mxu0 0.0
    %7128 = vmatprep.subr.mxu0 0.0
    %7129 = vmatpush2.msra.mxu0 0.0
    %7130 = vmatprep.subr.mxu0 0.0
    %7131 = vmatpush2.msra.mxu0 0.0
    %7132 = vmatprep.subr.mxu0 0.0
    %7133 = vmatpush2.msra.mxu0 0.0
    %7134 = vmatprep.subr.mxu0 0.0
    %7135 = vmatpush2.msra.mxu0 0.0
    %7136 = vmatprep.subr.mxu0 0.0
    %7137 = vmatpush2.msra.mxu0 0.0
    %7138 = vmatprep.subr.mxu0 0.0
    %7139 = vmatpush2.msra.mxu0 0.0
    %7140 = vmatprep.subr.mxu0 0.0
    %7141 = vmatpush2.msra.mxu0 0.0
    %7142 = vmatprep.subr.mxu0 0.0
    %7143 = vmatpush2.msra.mxu0 0.0
    %7144 = vmatprep.subr.mxu0 0.0
    %7145 = vmatpush2.msra.mxu0 0.0
    %7146 = vmatprep.subr.mxu0 0.0
    %7147 = vmatpush2.msra.mxu0 0.0
    %7148 = vmatprep.subr.mxu0 0.0
    %7149 = vmatpush2.msra.mxu0 0.0
    %7150 = vmatprep.subr.mxu0 0.0
    %7151 = vmatpush2.msra.mxu0 0.0
    %7152 = vmatprep.subr.mxu0 0.0
    %7153 = vmatpush2.msra.mxu0 0.0
    %7154 = vmatprep.subr.mxu0 0.0
    %7155 = vmatpush2.msra.mxu0 0.0
    %7156 = vmatprep.subr.mxu0 0.0
    %7157 = vmatpush2.msra.mxu0 0.0
    %7158 = vmatprep.mubr.f32.mxu0 0.0
    %7159 = vmatmul.mubr.f32.gmra.mxu0 %v7035
    %v7160 = vpop.f32.mrf.mxu0
    %v7161 = vadd.f32 0.0, %v7160
    %v7162 = vpop.f32.mrf.mxu0
    %7163 = vmatprep.mubr.f32.mxu0 0.0
    %7164 = vmatmul.mubr.f32.gmra.mxu0 %v7038
    %v7165 = vpop.f32.mrf.mxu0
    %v7166 = vadd.f32 0.0, %v7165
    %v7167 = vpop.f32.mrf.mxu0
    %7168 = vmatprep.mubr.f32.mxu0 0.0
    %7169 = vmatmul.mubr.f32.gmra.mxu0 %v7041
    %v7170 = vpop.f32.mrf.mxu0
    %v7171 = vadd.f32 0.0, %v7170
    %v7172 = vpop.f32.mrf.mxu0
    %7173 = vmatprep.mubr.f32.mxu0 0.0
    %7174 = vmatmul.mubr.f32.gmra.mxu0 %v7044
    %v7175 = vpop.f32.mrf.mxu0
    %v7176 = vadd.f32 0.0, %v7175
    %v7177 = vpop.f32.mrf.mxu0
    %7178 = vmatprep.mubr.f32.mxu0 0.0
    %7179 = vmatmul.mubr.f32.gmra.mxu0 %v7047
    %v7180 = vpop.f32.mrf.mxu0
    %v7181 = vadd.f32 0.0, %v7180
    %v7182 = vpop.f32.mrf.mxu0
    %7183 = vmatprep.mubr.f32.mxu0 0.0
    %7184 = vmatmul.mubr.f32.gmra.mxu0 %v7050
    %v7185 = vpop.f32.mrf.mxu0
    %v7186 = vadd.f32 0.0, %v7185
    %v7187 = vpop.f32.mrf.mxu0
    %7188 = vmatprep.mubr.f32.mxu0 0.0
    %7189 = vmatmul.mubr.f32.gmra.mxu0 %v7053
    %v7190 = vpop.f32.mrf.mxu0
    %v7191 = vadd.f32 0.0, %v7190
    %v7192 = vpop.f32.mrf.mxu0
    %7193 = vmatprep.mubr.f32.mxu0 0.0
    %7194 = vmatmul.mubr.f32.gmra.mxu0 %v7056
    %v7195 = vpop.f32.mrf.mxu0
    %v7196 = vadd.f32 0.0, %v7195
    %v7197 = vpop.f32.mrf.mxu0
    %7198 = vmatprep.mubr.f32.mxu0 0.0
    %7199 = vmatmul.mubr.f32.gmra.mxu0 %v7059
    %v7200 = vpop.f32.mrf.mxu0
    %v7201 = vadd.f32 0.0, %v7200
    %v7202 = vpop.f32.mrf.mxu0
    %7203 = vmatprep.mubr.f32.mxu0 0.0
    %7204 = vmatmul.mubr.f32.gmra.mxu0 %v7062
    %v7205 = vpop.f32.mrf.mxu0
    %v7206 = vadd.f32 0.0, %v7205
    %v7207 = vpop.f32.mrf.mxu0
    %7208 = vmatprep.mubr.f32.mxu0 0.0
    %7209 = vmatmul.mubr.f32.gmra.mxu0 %v7065
    %v7210 = vpop.f32.mrf.mxu0
    %v7211 = vadd.f32 0.0, %v7210
    %v7212 = vpop.f32.mrf.mxu0
    %7213 = vmatprep.mubr.f32.mxu0 0.0
    %7214 = vmatmul.mubr.f32.gmra.mxu0 %v7068
    %v7215 = vpop.f32.mrf.mxu0
    %v7216 = vadd.f32 0.0, %v7215
    %v7217 = vpop.f32.mrf.mxu0
    %7218 = vmatprep.mubr.f32.mxu0 0.0
    %7219 = vmatmul.mubr.f32.gmra.mxu0 %v7071
    %v7220 = vpop.f32.mrf.mxu0
    %v7221 = vadd.f32 0.0, %v7220
    %v7222 = vpop.f32.mrf.mxu0
    %7223 = vmatprep.mubr.f32.mxu0 0.0
    %7224 = vmatmul.mubr.f32.gmra.mxu0 %v7074
    %v7225 = vpop.f32.mrf.mxu0
    %v7226 = vadd.f32 0.0, %v7225
    %v7227 = vpop.f32.mrf.mxu0
    %7228 = vmatprep.mubr.f32.mxu0 0.0
    %7229 = vmatmul.mubr.f32.gmra.mxu0 %v7077
    %v7230 = vpop.f32.mrf.mxu0
    %v7231 = vadd.f32 0.0, %v7230
    %v7232 = vpop.f32.mrf.mxu0
    %7233 = vmatprep.mubr.f32.mxu0 0.0
    %7234 = vmatmul.mubr.f32.gmra.mxu0 %v7080
    %v7235 = vpop.f32.mrf.mxu0
    %v7236 = vadd.f32 0.0, %v7235
    %v7237 = vpop.f32.mrf.mxu0
    %7238 = vmatprep.mubr.f32.mxu0 0.0
    %7239 = vmatmul.mubr.f32.gmra.mxu0 %v7083
    %v7240 = vpop.f32.mrf.mxu0
    %v7241 = vadd.f32 0.0, %v7240
    %v7242 = vpop.f32.mrf.mxu0
    %7243 = vmatprep.mubr.f32.mxu0 0.0
    %7244 = vmatmul.mubr.f32.gmra.mxu0 %v7086
    %v7245 = vpop.f32.mrf.mxu0
    %v7246 = vadd.f32 0.0, %v7245
    %v7247 = vpop.f32.mrf.mxu0
    %7248 = vmatprep.mubr.f32.mxu0 0.0
    %7249 = vmatmul.mubr.f32.gmra.mxu0 %v7089
    %v7250 = vpop.f32.mrf.mxu0
    %v7251 = vadd.f32 0.0, %v7250
    %v7252 = vpop.f32.mrf.mxu0
    %7253 = vmatprep.mubr.f32.mxu0 0.0
    %7254 = vmatmul.mubr.f32.gmra.mxu0 %v7092
    %v7255 = vpop.f32.mrf.mxu0
    %v7256 = vadd.f32 0.0, %v7255
    %v7257 = vpop.f32.mrf.mxu0
    %7258 = vdwg.mxu0
    %v7259 = vmul.f32 %v6872, %v6990
    %v7260 = vmul.f32 %v6877, %v6991
    %v7261 = vmul.f32 %v6882, %v6992
    %v7262 = vmul.f32 %v6887, %v6993
    %v7263 = vmul.f32 %v6892, %v6994
    %v7264 = vmul.f32 %v6897, %v6995
    %v7265 = vmul.f32 %v6902, %v6996
    %v7266 = vmul.f32 %v6907, %v6997
    %v7267 = vmul.f32 %v6912, %v6998
    %v7268 = vmul.f32 %v6917, %v6999
    %v7269 = vmul.f32 %v6922, %v7000
    %v7270 = vmul.f32 %v6927, %v7001
    %v7271 = vmul.f32 %v6932, %v7002
    %v7272 = vmul.f32 %v6937, %v7003
    %v7273 = vmul.f32 %v6942, %v7004
    %v7274 = vmul.f32 %v6947, %v7005
    %v7275 = vmul.f32 %v6952, %v7006
    %v7276 = vmul.f32 %v6957, %v7007
    %v7277 = vmul.f32 %v6962, %v7008
    %v7278 = vmul.f32 %v6967, %v7009
    %v7280 = vsel %vm6217, %v7259, 0
    %v7283 = vsel %vm6217, %v7260, 0
    %v7286 = vsel %vm6217, %v7261, 0
    %v7289 = vsel %vm6217, %v7262, 0
    %v7292 = vsel %vm6217, %v7263, 0
    %v7295 = vsel %vm6217, %v7264, 0
    %v7298 = vsel %vm6217, %v7265, 0
    %v7301 = vsel %vm6217, %v7266, 0
    %v7304 = vsel %vm6217, %v7267, 0
    %v7307 = vsel %vm6217, %v7268, 0
    %v7310 = vsel %vm6217, %v7269, 0
    %v7313 = vsel %vm6217, %v7270, 0
    %v7316 = vsel %vm6217, %v7271, 0
    %v7319 = vsel %vm6217, %v7272, 0
    %v7322 = vsel %vm6217, %v7273, 0
    %v7325 = vsel %vm6217, %v7274, 0
    %v7328 = vsel %vm6217, %v7275, 0
    %v7331 = vsel %vm6217, %v7276, 0
    %v7334 = vsel %vm6217, %v7277, 0
    %v7337 = vsel %vm6217, %v7278, 0
    %7339 = vmatprep.subr.mxu0 0.0
    %7340 = vmatpush1.msra.mxu0 0.0
    %7341 = vmatprep.subr.mxu0 0.0
    %7342 = vmatpush1.msra.mxu0 0.0
    %7343 = vmatprep.subr.mxu0 0.0
    %7344 = vmatpush1.msra.mxu0 0.0
    %7345 = vmatprep.subr.mxu0 0.0
    %7346 = vmatpush1.msra.mxu0 0.0
    %7347 = vmatprep.subr.mxu0 0.0
    %7348 = vmatpush1.msra.mxu0 0.0
    %7349 = vmatprep.subr.mxu0 0.0
    %7350 = vmatpush1.msra.mxu0 0.0
    %7351 = vmatprep.subr.mxu0 0.0
    %7352 = vmatpush1.msra.mxu0 0.0
    %7353 = vmatprep.subr.mxu0 0.0
    %7354 = vmatpush1.msra.mxu0 0.0
    %7355 = vmatprep.subr.mxu0 0.0
    %7356 = vmatpush1.msra.mxu0 0.0
    %7357 = vmatprep.subr.mxu0 0.0
    %7358 = vmatpush1.msra.mxu0 0.0
    %7359 = vmatprep.subr.mxu0 0.0
    %7360 = vmatpush1.msra.mxu0 0.0
    %7361 = vmatprep.subr.mxu0 0.0
    %7362 = vmatpush1.msra.mxu0 0.0
    %7363 = vmatprep.subr.mxu0 0.0
    %7364 = vmatpush1.msra.mxu0 %v7033
    %7365 = vmatprep.subr.mxu0 0.0
    %7366 = vmatpush1.msra.mxu0 %v7032
    %7367 = vmatprep.subr.mxu0 0.0
    %7368 = vmatpush1.msra.mxu0 %v7031
    %7369 = vmatprep.subr.mxu0 0.0
    %7370 = vmatpush1.msra.mxu0 %v7030
    %7371 = vmatprep.subr.mxu0 0.0
    %7372 = vmatpush2.msra.mxu0 0.0
    %7373 = vmatprep.subr.mxu0 0.0
    %7374 = vmatpush2.msra.mxu0 0.0
    %7375 = vmatprep.subr.mxu0 0.0
    %7376 = vmatpush2.msra.mxu0 0.0
    %7377 = vmatprep.subr.mxu0 0.0
    %7378 = vmatpush2.msra.mxu0 0.0
    %7379 = vmatprep.subr.mxu0 0.0
    %7380 = vmatpush2.msra.mxu0 0.0
    %7381 = vmatprep.subr.mxu0 0.0
    %7382 = vmatpush2.msra.mxu0 0.0
    %7383 = vmatprep.subr.mxu0 0.0
    %7384 = vmatpush2.msra.mxu0 0.0
    %7385 = vmatprep.subr.mxu0 0.0
    %7386 = vmatpush2.msra.mxu0 0.0
    %7387 = vmatprep.subr.mxu0 0.0
    %7388 = vmatpush2.msra.mxu0 0.0
    %7389 = vmatprep.subr.mxu0 0.0
    %7390 = vmatpush2.msra.mxu0 0.0
    %7391 = vmatprep.subr.mxu0 0.0
    %7392 = vmatpush2.msra.mxu0 0.0
    %7393 = vmatprep.subr.mxu0 0.0
    %7394 = vmatpush2.msra.mxu0 0.0
    %7395 = vmatprep.subr.mxu0 0.0
    %7396 = vmatpush2.msra.mxu0 0.0
    %7397 = vmatprep.subr.mxu0 0.0
    %7398 = vmatpush2.msra.mxu0 0.0
    %7399 = vmatprep.subr.mxu0 0.0
    %7400 = vmatpush2.msra.mxu0 0.0
    %7401 = vmatprep.subr.mxu0 0.0
    %7402 = vmatpush2.msra.mxu0 0.0
    %7403 = vmatprep.mubr.f32.mxu0 0.0
    %7404 = vmatmul.mubr.f32.gmra.mxu0 %v7280
    %v7405 = vpop.f32.mrf.mxu0
    %v7406 = vadd.f32 0.0, %v7405
    %v7407 = vpop.f32.mrf.mxu0
    %7408 = vmatprep.mubr.f32.mxu0 0.0
    %7409 = vmatmul.mubr.f32.gmra.mxu0 %v7283
    %v7410 = vpop.f32.mrf.mxu0
    %v7411 = vadd.f32 0.0, %v7410
    %v7412 = vpop.f32.mrf.mxu0
    %7413 = vmatprep.mubr.f32.mxu0 0.0
    %7414 = vmatmul.mubr.f32.gmra.mxu0 %v7286
    %v7415 = vpop.f32.mrf.mxu0
    %v7416 = vadd.f32 0.0, %v7415
    %v7417 = vpop.f32.mrf.mxu0
    %7418 = vmatprep.mubr.f32.mxu0 0.0
    %7419 = vmatmul.mubr.f32.gmra.mxu0 %v7289
    %v7420 = vpop.f32.mrf.mxu0
    %v7421 = vadd.f32 0.0, %v7420
    %v7422 = vpop.f32.mrf.mxu0
    %7423 = vmatprep.mubr.f32.mxu0 0.0
    %7424 = vmatmul.mubr.f32.gmra.mxu0 %v7292
    %v7425 = vpop.f32.mrf.mxu0
    %v7426 = vadd.f32 0.0, %v7425
    %v7427 = vpop.f32.mrf.mxu0
    %7428 = vmatprep.mubr.f32.mxu0 0.0
    %7429 = vmatmul.mubr.f32.gmra.mxu0 %v7295
    %v7430 = vpop.f32.mrf.mxu0
    %v7431 = vadd.f32 0.0, %v7430
    %v7432 = vpop.f32.mrf.mxu0
    %7433 = vmatprep.mubr.f32.mxu0 0.0
    %7434 = vmatmul.mubr.f32.gmra.mxu0 %v7298
    %v7435 = vpop.f32.mrf.mxu0
    %v7436 = vadd.f32 0.0, %v7435
    %v7437 = vpop.f32.mrf.mxu0
    %7438 = vmatprep.mubr.f32.mxu0 0.0
    %7439 = vmatmul.mubr.f32.gmra.mxu0 %v7301
    %v7440 = vpop.f32.mrf.mxu0
    %v7441 = vadd.f32 0.0, %v7440
    %v7442 = vpop.f32.mrf.mxu0
    %7443 = vmatprep.mubr.f32.mxu0 0.0
    %7444 = vmatmul.mubr.f32.gmra.mxu0 %v7304
    %v7445 = vpop.f32.mrf.mxu0
    %v7446 = vadd.f32 0.0, %v7445
    %v7447 = vpop.f32.mrf.mxu0
    %7448 = vmatprep.mubr.f32.mxu0 0.0
    %7449 = vmatmul.mubr.f32.gmra.mxu0 %v7307
    %v7450 = vpop.f32.mrf.mxu0
    %v7451 = vadd.f32 0.0, %v7450
    %v7452 = vpop.f32.mrf.mxu0
    %7453 = vmatprep.mubr.f32.mxu0 0.0
    %7454 = vmatmul.mubr.f32.gmra.mxu0 %v7310
    %v7455 = vpop.f32.mrf.mxu0
    %v7456 = vadd.f32 0.0, %v7455
    %v7457 = vpop.f32.mrf.mxu0
    %7458 = vmatprep.mubr.f32.mxu0 0.0
    %7459 = vmatmul.mubr.f32.gmra.mxu0 %v7313
    %v7460 = vpop.f32.mrf.mxu0
    %v7461 = vadd.f32 0.0, %v7460
    %v7462 = vpop.f32.mrf.mxu0
    %7463 = vmatprep.mubr.f32.mxu0 0.0
    %7464 = vmatmul.mubr.f32.gmra.mxu0 %v7316
    %v7465 = vpop.f32.mrf.mxu0
    %v7466 = vadd.f32 0.0, %v7465
    %v7467 = vpop.f32.mrf.mxu0
    %7468 = vmatprep.mubr.f32.mxu0 0.0
    %7469 = vmatmul.mubr.f32.gmra.mxu0 %v7319
    %v7470 = vpop.f32.mrf.mxu0
    %v7471 = vadd.f32 0.0, %v7470
    %v7472 = vpop.f32.mrf.mxu0
    %7473 = vmatprep.mubr.f32.mxu0 0.0
    %7474 = vmatmul.mubr.f32.gmra.mxu0 %v7322
    %v7475 = vpop.f32.mrf.mxu0
    %v7476 = vadd.f32 0.0, %v7475
    %v7477 = vpop.f32.mrf.mxu0
    %7478 = vmatprep.mubr.f32.mxu0 0.0
    %7479 = vmatmul.mubr.f32.gmra.mxu0 %v7325
    %v7480 = vpop.f32.mrf.mxu0
    %v7481 = vadd.f32 0.0, %v7480
    %v7482 = vpop.f32.mrf.mxu0
    %7483 = vmatprep.mubr.f32.mxu0 0.0
    %7484 = vmatmul.mubr.f32.gmra.mxu0 %v7328
    %v7485 = vpop.f32.mrf.mxu0
    %v7486 = vadd.f32 0.0, %v7485
    %v7487 = vpop.f32.mrf.mxu0
    %7488 = vmatprep.mubr.f32.mxu0 0.0
    %7489 = vmatmul.mubr.f32.gmra.mxu0 %v7331
    %v7490 = vpop.f32.mrf.mxu0
    %v7491 = vadd.f32 0.0, %v7490
    %v7492 = vpop.f32.mrf.mxu0
    %7493 = vmatprep.mubr.f32.mxu0 0.0
    %7494 = vmatmul.mubr.f32.gmra.mxu0 %v7334
    %v7495 = vpop.f32.mrf.mxu0
    %v7496 = vadd.f32 0.0, %v7495
    %v7497 = vpop.f32.mrf.mxu0
    %7498 = vmatprep.mubr.f32.mxu0 0.0
    %7499 = vmatmul.mubr.f32.gmra.mxu0 %v7337
    %v7500 = vpop.f32.mrf.mxu0
    %v7501 = vadd.f32 0.0, %v7500
    %v7502 = vpop.f32.mrf.mxu0
    %7503 = vdwg.mxu0
    %v7504 = vsel %vm4676, %v7161, 0.0
    %v7505 = vsel %vm4676, %v7166, 0.0
    %v7506 = vadd.f32 %v7504, %v7505
    %v7507 = vsel %vm4676, %v7171, 0.0
    %v7508 = vadd.f32 %v7506, %v7507
    %v7509 = vsel %vm4676, %v7176, 0.0
    %v7510 = vadd.f32 %v7508, %v7509
    %v7511 = vsel %vm4676, %v7181, 0.0
    %v7512 = vadd.f32 %v7510, %v7511
    %v7513 = vsel %vm4676, %v7186, 0.0
    %v7514 = vadd.f32 %v7512, %v7513
    %v7515 = vsel %vm4676, %v7191, 0.0
    %v7516 = vadd.f32 %v7514, %v7515
    %v7517 = vsel %vm4676, %v7196, 0.0
    %v7518 = vadd.f32 %v7516, %v7517
    %v7519 = vsel %vm4676, %v7201, 0.0
    %v7520 = vadd.f32 %v7518, %v7519
    %v7521 = vsel %vm4676, %v7206, 0.0
    %v7522 = vadd.f32 %v7520, %v7521
    %v7523 = vsel %vm4676, %v7211, 0.0
    %v7524 = vadd.f32 %v7522, %v7523
    %v7525 = vsel %vm4676, %v7216, 0.0
    %v7526 = vadd.f32 %v7524, %v7525
    %v7527 = vsel %vm4676, %v7221, 0.0
    %v7528 = vadd.f32 %v7526, %v7527
    %v7529 = vsel %vm4676, %v7226, 0.0
    %v7530 = vadd.f32 %v7528, %v7529
    %v7531 = vsel %vm4676, %v7231, 0.0
    %v7532 = vadd.f32 %v7530, %v7531
    %v7533 = vsel %vm4676, %v7236, 0.0
    %v7534 = vadd.f32 %v7532, %v7533
    %v7535 = vsel %vm4676, %v7241, 0.0
    %v7536 = vadd.f32 %v7534, %v7535
    %v7537 = vsel %vm4676, %v7246, 0.0
    %v7538 = vadd.f32 %v7536, %v7537
    %v7539 = vsel %vm4676, %v7251, 0.0
    %v7540 = vadd.f32 %v7538, %v7539
    %v7541 = vsel %vm4676, %v7256, 0.0
    %v7542 = vadd.f32 %v7540, %v7541
    %v7543 = vrot.slane %v7542, 4
    %v7544 = vadd.f32 %v7542, %v7543
    %v7545 = vrot.slane %v7544, 2
    %v7546 = vadd.f32 %v7544, %v7545
    %v7547 = vrot.slane %v7546, 1
    %v7548 = vadd.f32 %v7546, %v7547
    %v7549 = vsel %vm4676, %v7406, 0.0
    %v7550 = vsel %vm4676, %v7411, 0.0
    %v7551 = vadd.f32 %v7549, %v7550
    %v7552 = vsel %vm4676, %v7416, 0.0
    %v7553 = vadd.f32 %v7551, %v7552
    %v7554 = vsel %vm4676, %v7421, 0.0
    %v7555 = vadd.f32 %v7553, %v7554
    %v7556 = vsel %vm4676, %v7426, 0.0
    %v7557 = vadd.f32 %v7555, %v7556
    %v7558 = vsel %vm4676, %v7431, 0.0
    %v7559 = vadd.f32 %v7557, %v7558
    %v7560 = vsel %vm4676, %v7436, 0.0
    %v7561 = vadd.f32 %v7559, %v7560
    %v7562 = vsel %vm4676, %v7441, 0.0
    %v7563 = vadd.f32 %v7561, %v7562
    %v7564 = vsel %vm4676, %v7446, 0.0
    %v7565 = vadd.f32 %v7563, %v7564
    %v7566 = vsel %vm4676, %v7451, 0.0
    %v7567 = vadd.f32 %v7565, %v7566
    %v7568 = vsel %vm4676, %v7456, 0.0
    %v7569 = vadd.f32 %v7567, %v7568
    %v7570 = vsel %vm4676, %v7461, 0.0
    %v7571 = vadd.f32 %v7569, %v7570
    %v7572 = vsel %vm4676, %v7466, 0.0
    %v7573 = vadd.f32 %v7571, %v7572
    %v7574 = vsel %vm4676, %v7471, 0.0
    %v7575 = vadd.f32 %v7573, %v7574
    %v7576 = vsel %vm4676, %v7476, 0.0
    %v7577 = vadd.f32 %v7575, %v7576
    %v7578 = vsel %vm4676, %v7481, 0.0
    %v7579 = vadd.f32 %v7577, %v7578
    %v7580 = vsel %vm4676, %v7486, 0.0
    %v7581 = vadd.f32 %v7579, %v7580
    %v7582 = vsel %vm4676, %v7491, 0.0
    %v7583 = vadd.f32 %v7581, %v7582
    %v7584 = vsel %vm4676, %v7496, 0.0
    %v7585 = vadd.f32 %v7583, %v7584
    %v7586 = vsel %vm4676, %v7501, 0.0
    %v7587 = vadd.f32 %v7585, %v7586
    %v7588 = vrot.slane %v7587, 4
    %v7589 = vadd.f32 %v7587, %v7588
    %v7590 = vrot.slane %v7589, 2
    %v7591 = vadd.f32 %v7589, %v7590
    %v7592 = vrot.slane %v7591, 1
    %v7593 = vadd.f32 %v7591, %v7592
    %vm7594 = vcmask 1040384
    %v7595 = vsel %vm7594, %v7548, %v7593
    %v7596 = vld [vmem:[%s8] sm:$0x3]
    %7598 = vset.pattern.permute.xlu0 0
    %7599 = vperm.xlu0 %7598, %v7596
    %v7600 = vpop.permute.xlu0 %7599
    %v7602 = vadd.f32 %v7595, %v7600
    %vm7603 = vcmask 9216
    %7604 = vst.msk [vmem:[#allocation10] sm:$0x3] %vm7603, %v7602
    // Predicated region
    $region54: #{tpu_custom_call.1} parent=1 // pred_check
      _
    $region55: #{tpu_custom_call.1} parent=1 // pred_check_branch
      %7606 = sbr.rel (0) target = $region57
    $region56: #{tpu_custom_call.1} parent=1 // pred_region
      %s7608 = ssub.s32 32, 32
      %7609 = vsyncadd [#allocation4], %s7608
      %s7611 = sshll.u32 [#allocation10], 4
      %s7612 = int_to_ptr.vmem [resolvable:$true] %s7611
      %7614 = dma.vmem_to_hbm [thread:$0]  %s7612, 32, %s9, [#allocation4]
    $region57: #{tpu_custom_call.1} parent=1 // pred_fallthru
      _
    // Predicated region
    $region58: #{tpu_custom_call.1} parent=1 // pred_check
      _
    $region59: #{tpu_custom_call.1} parent=1 // pred_check_branch
      %7616 = sbr.rel (0) target = $region61
    $region60: #{tpu_custom_call.1} parent=1 // pred_region
      %7617 = dma.done [#allocation4], 32
    $region61: #{tpu_custom_call.1} parent=1 // pred_fallthru
      _
    %7618 = vsyncpa [#allocation3], 1
    %7619 = vsyncpa [#allocation6], 1
    %7620 = vsyncpa [#allocation9], 1
    %7621 = vsyncpa [#allocation4], 1

</llo_original>
